<compile_context>
chip_gen: v6e
topology: v6e:2x2x1
jax: 0.10.0
libtpu: 0.0.40
codegen_flags: <defaults>
</compile_context>

<pallas_src>
import math

import jax
import jax.numpy as jnp
from jax import lax
from jax.experimental import pallas as pl
from jax.experimental.pallas import tpu as pltpu

NEG_SLOPE = 0.01  # nn.LeakyReLU default negative_slope
VMEM_SPEC = pl.BlockSpec(memory_space=pltpu.MemorySpace.VMEM)

HEAD_KEYS = ('pg_w1', 'pg_b1', 'pred_w2', 'pred_b2', 'gate_w2', 'gate_b2',
             'pro_w1', 'pro_b1', 'pro_w2', 'pro_b2')


# --------------------------------------------------------------------------
# Fused forward kernel builder
# --------------------------------------------------------------------------
def make_fused_forward(config, batch, feat_dim):
    S = config['seq_length']
    B = batch
    H = config['hidden_size']
    PRO = config['pro_size']
    P = config['priv_size']
    L = config['num_rnn_layers']
    HP = config['hidden_to_pred_shape'][0]
    HG = config['hidden_to_gate_shape'][0]
    slices = tuple(config['input_slice'].values())
    inv_sqrt_h = 1.0 / math.sqrt(H)
    f32 = jnp.float32

    n_inputs = 1 + 2 * (4 * L) + 4 + 10

    def dot(a, b):
        return jnp.dot(a, b, preferred_element_type=f32)

    def leaky(v):
        return jnp.where(v >= 0.0, v, NEG_SLOPE * v)

    def gru_branch(x_bsd, layers):
        # x_bsd: (B, S, d_in) -> (B, S, H).  Gate order packed as [r | z | n].
        seq = x_bsd
        for (wi, wh, bi, bh) in layers:
            d_in = seq.shape[-1]
            # Hoisted, time-parallel input projection: one matmul for all steps.
            gx = (dot(seq.reshape(B * S, d_in), wi) + bi).reshape(B, S, 3 * H)
            h = jnp.zeros((B, H), f32)
            outs = []
            for t in range(S):                 # S is small & static: unrolled
                gh = dot(h, wh) + bh           # single (B,H)x(H,3H) push/step
                gxt = gx[:, t, :]
                r = jax.nn.sigmoid(gxt[:, :H] + gh[:, :H])
                z = jax.nn.sigmoid(gxt[:, H:2 * H] + gh[:, H:2 * H])
                n = jnp.tanh(gxt[:, 2 * H:] + r * gh[:, 2 * H:])
                h = (1.0 - z) * n + z * h
                outs.append(h)
            seq = jnp.stack(outs, axis=1)      # (B, S, H), stays in VMEM
        return seq

    def attention(x_bsh, wqkv, bqkv):
        # Fused Q/K/V projection: one (H, 3H) matmul.
        qkv = (dot(x_bsh.reshape(B * S, H), wqkv) + bqkv).reshape(B, S, 3 * H)
        q, k, v = qkv[..., :H], qkv[..., H:2 * H], qkv[..., 2 * H:]
        s = jnp.einsum('bqd,bkd->bqk', q, k,
                       preferred_element_type=f32) * inv_sqrt_h
        s = s - jnp.max(s, axis=2, keepdims=True)
        e = jnp.exp(s)
        attn = e * pl.reciprocal(jnp.sum(e, axis=2, keepdims=True), approx=True)
        return jnp.einsum('bqk,bkd->bqd', attn, v, preferred_element_type=f32)

    def kernel(*refs):
        x_ref, out_ref = refs[0], refs[-1]
        vals = [r[...] for r in refs[1:-1]]
        it = iter(vals)
        rnn_full = [tuple(next(it) for _ in range(4)) for _ in range(L)]
        rnn_pro = [tuple(next(it) for _ in range(4)) for _ in range(L)]
        aw, ab = next(it), next(it)
        awp, abp = next(it), next(it)
        (pg_w1, pg_b1, pred_w2, pred_b2, gate_w2, gate_b2,
         pro_w1, pro_b1, pro_w2, pro_b2) = (next(it) for _ in range(10))

        # ---- input selection (static lane slices + concat) ----
        x = x_ref[...]                                       # (B, S, F)
        xs = jnp.concatenate([x[..., s0:s1] for (s0, s1) in slices], axis=-1)

        # ---- two independent GRU stacks (interleaved by the scheduler) ----
        out_full = gru_branch(xs, rnn_full)                  # (B, S, H)
        out_pro = gru_branch(xs[..., :PRO], rnn_pro)         # (B, S, H)

        # ---- self attention on each branch ----
        ow = attention(out_full, aw, ab)                     # (B, S, H)
        pw = attention(out_pro, awp, abp)                    # (B, S, H)

        # ---- fused gated head ----
        ow2 = ow.reshape(B * S, H)
        pw2 = pw.reshape(B * S, H)
        pg = leaky(dot(ow2, pg_w1) + pg_b1)                  # pred+gate layer 1
        pred = dot(pg[:, :HP], pred_w2) + pred_b2
        gate = dot(pg[:, HP:], gate_w2) + gate_b2
        hpro = leaky(dot(pw2, pro_w1) + pro_b1)
        pro_pred = dot(hpro, pro_w2) + pro_b2
        out = jax.nn.sigmoid(gate) * pro_pred + pred
        out_ref[...] = out.reshape(B, S, P)

    call = pl.pallas_call(
        kernel,
        out_shape=jax.ShapeDtypeStruct((B, S, P), jnp.float32),
        in_specs=[VMEM_SPEC] * n_inputs,
        out_specs=VMEM_SPEC,
    )

    def forward(params, x):
        flat = [x]
        for branch in ('rnn', 'rnn_pro'):
            for layer in params[branch]:
                flat.extend(layer)
        flat.extend(params['attention'])
        flat.extend(params['attention_pro'])
        flat.extend(params['head'][k] for k in HEAD_KEYS)
        assert len(flat) == n_inputs
        return call(*flat)

    return forward


# --------------------------------------------------------------------------
# Parameter init (weights pre-packed: GRU gates [r|z|n], attention [q|k|v],
# head pred+gate first layers concatenated)
# --------------------------------------------------------------------------
def init_params(key, config):
    H = config['hidden_size']
    I = config['input_size']
    P = config['priv_size']
    PRO = config['pro_size']
    L = config['num_rnn_layers']
    HP = config['hidden_to_pred_shape'][0]
    HG = config['hidden_to_gate_shape'][0]
    scale = 0.1

    keys = iter(jax.random.split(key, 128))

    def nrm(shape):
        return scale * jax.random.normal(next(keys), shape, jnp.float32)

    def gru_stack(in_size):
        layers = []
        for l in range(L):
            d_in = in_size if l == 0 else H
            layers.append((nrm((d_in, 3 * H)),   # W_ih packed [r|z|n]
                           nrm((H, 3 * H)),      # W_hh packed [r|z|n]
                           nrm((1, 3 * H)),      # b_ih
                           nrm((1, 3 * H))))     # b_hh
        return layers

    def attn_params():
        return (nrm((H, 3 * H)), nrm((1, 3 * H)))   # [Wq|Wk|Wv], [bq|bk|bv]

    head = {
        'pg_w1': nrm((H, HP + HG)), 'pg_b1': nrm((1, HP + HG)),
        'pred_w2': nrm((HP, P)), 'pred_b2': nrm((1, P)),
        'gate_w2': nrm((HG, P)), 'gate_b2': nrm((1, P)),
        'pro_w1': nrm((H, HP)), 'pro_b1': nrm((1, HP)),
        'pro_w2': nrm((HP, P)), 'pro_b2': nrm((1, P)),
    }
    return {'rnn': gru_stack(I), 'rnn_pro': gru_stack(PRO),
            'attention': attn_params(), 'attention_pro': attn_params(),
            'head': head}


# --------------------------------------------------------------------------
# Pure-JAX reference (correctness check)
# --------------------------------------------------------------------------
def input_selection(x, input_slice):
    return jnp.concatenate([x[..., s:e] for (s, e) in input_slice.values()],
                           axis=-1)


def _ref_gru_layer(x_sbd, h0, wi, wh, bi, bh, H):
    def step(h, x_t):
        gx = x_t @ wi + bi
        gh = h @ wh + bh
        r = jax.nn.sigmoid(gx[:, :H] + gh[:, :H])
        z = jax.nn.sigmoid(gx[:, H:2 * H] + gh[:, H:2 * H])
        n = jnp.tanh(gx[:, 2 * H:] + r * gh[:, 2 * H:])
        h_new = (1.0 - z) * n + z * h
        return h_new, h_new
    _, ys = lax.scan(step, h0, x_sbd)
    return ys


def reference_forward(params, x, config):
    H = config['hidden_size']
    HP = config['hidden_to_pred_shape'][0]
    xs = input_selection(x, config['input_slice'])
    xt = jnp.transpose(xs, (1, 0, 2))                 # (S, B, I)
    B = xt.shape[1]

    def run_stack(seq, layers):
        for (wi, wh, bi, bh) in layers:
            seq = _ref_gru_layer(seq, jnp.zeros((B, H), jnp.float32),
                                 wi, wh, bi, bh, H)
        return jnp.transpose(seq, (1, 0, 2))          # (B, S, H)

    output = run_stack(xt, params['rnn'])
    pro_output = run_stack(xt[..., :config['pro_size']], params['rnn_pro'])

    def ref_attn(xb, wqkv, bqkv):
        q = xb @ wqkv[:, :H] + bqkv[:, :H]
        k = xb @ wqkv[:, H:2 * H] + bqkv[:, H:2 * H]
        v = xb @ wqkv[:, 2 * H:] + bqkv[:, 2 * H:]
        s = jnp.einsum('bqd,bkd->bqk', q, k) / (H ** 0.5)
        a = jax.nn.softmax(s, axis=2)
        return jnp.einsum('bqk,bkd->bqd', a, v)

    ow = ref_attn(output, *params['attention'])
    pw = ref_attn(pro_output, *params['attention_pro'])

    hd = params['head']

    def mlp(xb, w1, b1, w2, b2):
        h = xb @ w1 + b1
        h = jnp.where(h >= 0.0, h, NEG_SLOPE * h)
        return h @ w2 + b2

    pred_w1, gate_w1 = hd['pg_w1'][:, :HP], hd['pg_w1'][:, HP:]
    pred_b1, gate_b1 = hd['pg_b1'][:, :HP], hd['pg_b1'][:, HP:]
    pro_pred = mlp(pw, hd['pro_w1'], hd['pro_b1'], hd['pro_w2'], hd['pro_b2'])
    alpha = jax.nn.sigmoid(mlp(ow, gate_w1, gate_b1,
                               hd['gate_w2'], hd['gate_b2']))
    return alpha * pro_pred + mlp(ow, pred_w1, pred_b1,
                                  hd['pred_w2'], hd['pred_b2'])


# --------------------------------------------------------------------------
if __name__ == "__main__":
    config = {
        'input_slice': {'pro': (0, 10), 'ext': (12, 20)},   # -> input_size = 18
        'input_size': 18,
        'pro_size': 10,
        'priv_size': 6,
        'hidden_size': 32,
        'num_rnn_layers': 2,
        'seq_length': 8,
        'hidden_to_pred_shape': [64],
        'hidden_to_gate_shape': [48],
        'gate_to_pred_shape': [32],      # present in config; unused by Parallel
    }
    B, S, F = 4, config['seq_length'], 24

    key = jax.random.PRNGKey(0)
    k_x, k_p = jax.random.split(key)
    x = jax.random.normal(k_x, (B, S, F), jnp.float32)
    params = init_params(k_p, config)

    forward = make_fused_forward(config, B, F)
    pred = jax.block_until_ready(forward(params, x))

    ref = jax.block_until_ready(reference_forward(params, x, config))
    assert pred.shape == (B, S, config['priv_size']), pred.shape
    assert bool(jnp.all(jnp.isfinite(pred)))
    max_err = float(jnp.max(jnp.abs(pred - ref)))
    assert jnp.allclose(pred, ref, rtol=1e-2, atol=2e-3), max_err

    print("KERNEL_OK")
</pallas_src>

<mosaic_0001>
module attributes {stable_mosaic.version = 11 : i64} {
  func.func @kernel(%arg0: memref<4x8x24xf32, #tpu.memory_space<vmem>>, %arg1: memref<18x96xf32, #tpu.memory_space<vmem>>, %arg2: memref<32x96xf32, #tpu.memory_space<vmem>>, %arg3: memref<1x96xf32, #tpu.memory_space<vmem>>, %arg4: memref<1x96xf32, #tpu.memory_space<vmem>>, %arg5: memref<32x96xf32, #tpu.memory_space<vmem>>, %arg6: memref<32x96xf32, #tpu.memory_space<vmem>>, %arg7: memref<1x96xf32, #tpu.memory_space<vmem>>, %arg8: memref<1x96xf32, #tpu.memory_space<vmem>>, %arg9: memref<10x96xf32, #tpu.memory_space<vmem>>, %arg10: memref<32x96xf32, #tpu.memory_space<vmem>>, %arg11: memref<1x96xf32, #tpu.memory_space<vmem>>, %arg12: memref<1x96xf32, #tpu.memory_space<vmem>>, %arg13: memref<32x96xf32, #tpu.memory_space<vmem>>, %arg14: memref<32x96xf32, #tpu.memory_space<vmem>>, %arg15: memref<1x96xf32, #tpu.memory_space<vmem>>, %arg16: memref<1x96xf32, #tpu.memory_space<vmem>>, %arg17: memref<32x96xf32, #tpu.memory_space<vmem>>, %arg18: memref<1x96xf32, #tpu.memory_space<vmem>>, %arg19: memref<32x96xf32, #tpu.memory_space<vmem>>, %arg20: memref<1x96xf32, #tpu.memory_space<vmem>>, %arg21: memref<32x112xf32, #tpu.memory_space<vmem>>, %arg22: memref<1x112xf32, #tpu.memory_space<vmem>>, %arg23: memref<64x6xf32, #tpu.memory_space<vmem>>, %arg24: memref<1x6xf32, #tpu.memory_space<vmem>>, %arg25: memref<48x6xf32, #tpu.memory_space<vmem>>, %arg26: memref<1x6xf32, #tpu.memory_space<vmem>>, %arg27: memref<32x64xf32, #tpu.memory_space<vmem>>, %arg28: memref<1x64xf32, #tpu.memory_space<vmem>>, %arg29: memref<64x6xf32, #tpu.memory_space<vmem>>, %arg30: memref<1x6xf32, #tpu.memory_space<vmem>>, %arg31: memref<4x8x6xf32, #tpu.memory_space<vmem>>) attributes {dimension_semantics = [], scalar_prefetch = 0 : i64, scratch_operands = 0 : i64, tpu.core_type = #tpu.core_type<tc>} {
    %c0 = arith.constant 0 : index
    %c0_0 = arith.constant 0 : index
    %0 = vector.load %arg1[%c0, %c0_0] : memref<18x96xf32, #tpu.memory_space<vmem>>, vector<18x96xf32>
    %c0_1 = arith.constant 0 : index
    %c0_2 = arith.constant 0 : index
    %1 = vector.load %arg2[%c0_1, %c0_2] : memref<32x96xf32, #tpu.memory_space<vmem>>, vector<32x96xf32>
    %c0_3 = arith.constant 0 : index
    %c0_4 = arith.constant 0 : index
    %2 = vector.load %arg3[%c0_3, %c0_4] : memref<1x96xf32, #tpu.memory_space<vmem>>, vector<1x96xf32>
    %c0_5 = arith.constant 0 : index
    %c0_6 = arith.constant 0 : index
    %3 = vector.load %arg4[%c0_5, %c0_6] : memref<1x96xf32, #tpu.memory_space<vmem>>, vector<1x96xf32>
    %c0_7 = arith.constant 0 : index
    %c0_8 = arith.constant 0 : index
    %4 = vector.load %arg5[%c0_7, %c0_8] : memref<32x96xf32, #tpu.memory_space<vmem>>, vector<32x96xf32>
    %c0_9 = arith.constant 0 : index
    %c0_10 = arith.constant 0 : index
    %5 = vector.load %arg6[%c0_9, %c0_10] : memref<32x96xf32, #tpu.memory_space<vmem>>, vector<32x96xf32>
    %c0_11 = arith.constant 0 : index
    %c0_12 = arith.constant 0 : index
    %6 = vector.load %arg7[%c0_11, %c0_12] : memref<1x96xf32, #tpu.memory_space<vmem>>, vector<1x96xf32>
    %c0_13 = arith.constant 0 : index
    %c0_14 = arith.constant 0 : index
    %7 = vector.load %arg8[%c0_13, %c0_14] : memref<1x96xf32, #tpu.memory_space<vmem>>, vector<1x96xf32>
    %c0_15 = arith.constant 0 : index
    %c0_16 = arith.constant 0 : index
    %8 = vector.load %arg9[%c0_15, %c0_16] : memref<10x96xf32, #tpu.memory_space<vmem>>, vector<10x96xf32>
    %c0_17 = arith.constant 0 : index
    %c0_18 = arith.constant 0 : index
    %9 = vector.load %arg10[%c0_17, %c0_18] : memref<32x96xf32, #tpu.memory_space<vmem>>, vector<32x96xf32>
    %c0_19 = arith.constant 0 : index
    %c0_20 = arith.constant 0 : index
    %10 = vector.load %arg11[%c0_19, %c0_20] : memref<1x96xf32, #tpu.memory_space<vmem>>, vector<1x96xf32>
    %c0_21 = arith.constant 0 : index
    %c0_22 = arith.constant 0 : index
    %11 = vector.load %arg12[%c0_21, %c0_22] : memref<1x96xf32, #tpu.memory_space<vmem>>, vector<1x96xf32>
    %c0_23 = arith.constant 0 : index
    %c0_24 = arith.constant 0 : index
    %12 = vector.load %arg13[%c0_23, %c0_24] : memref<32x96xf32, #tpu.memory_space<vmem>>, vector<32x96xf32>
    %c0_25 = arith.constant 0 : index
    %c0_26 = arith.constant 0 : index
    %13 = vector.load %arg14[%c0_25, %c0_26] : memref<32x96xf32, #tpu.memory_space<vmem>>, vector<32x96xf32>
    %c0_27 = arith.constant 0 : index
    %c0_28 = arith.constant 0 : index
    %14 = vector.load %arg15[%c0_27, %c0_28] : memref<1x96xf32, #tpu.memory_space<vmem>>, vector<1x96xf32>
    %c0_29 = arith.constant 0 : index
    %c0_30 = arith.constant 0 : index
    %15 = vector.load %arg16[%c0_29, %c0_30] : memref<1x96xf32, #tpu.memory_space<vmem>>, vector<1x96xf32>
    %c0_31 = arith.constant 0 : index
    %c0_32 = arith.constant 0 : index
    %16 = vector.load %arg17[%c0_31, %c0_32] : memref<32x96xf32, #tpu.memory_space<vmem>>, vector<32x96xf32>
    %c0_33 = arith.constant 0 : index
    %c0_34 = arith.constant 0 : index
    %17 = vector.load %arg18[%c0_33, %c0_34] : memref<1x96xf32, #tpu.memory_space<vmem>>, vector<1x96xf32>
    %c0_35 = arith.constant 0 : index
    %c0_36 = arith.constant 0 : index
    %18 = vector.load %arg19[%c0_35, %c0_36] : memref<32x96xf32, #tpu.memory_space<vmem>>, vector<32x96xf32>
    %c0_37 = arith.constant 0 : index
    %c0_38 = arith.constant 0 : index
    %19 = vector.load %arg20[%c0_37, %c0_38] : memref<1x96xf32, #tpu.memory_space<vmem>>, vector<1x96xf32>
    %c0_39 = arith.constant 0 : index
    %c0_40 = arith.constant 0 : index
    %20 = vector.load %arg21[%c0_39, %c0_40] : memref<32x112xf32, #tpu.memory_space<vmem>>, vector<32x112xf32>
    %c0_41 = arith.constant 0 : index
    %c0_42 = arith.constant 0 : index
    %21 = vector.load %arg22[%c0_41, %c0_42] : memref<1x112xf32, #tpu.memory_space<vmem>>, vector<1x112xf32>
    %c0_43 = arith.constant 0 : index
    %c0_44 = arith.constant 0 : index
    %22 = vector.load %arg23[%c0_43, %c0_44] : memref<64x6xf32, #tpu.memory_space<vmem>>, vector<64x6xf32>
    %c0_45 = arith.constant 0 : index
    %c0_46 = arith.constant 0 : index
    %23 = vector.load %arg24[%c0_45, %c0_46] : memref<1x6xf32, #tpu.memory_space<vmem>>, vector<1x6xf32>
    %c0_47 = arith.constant 0 : index
    %c0_48 = arith.constant 0 : index
    %24 = vector.load %arg25[%c0_47, %c0_48] : memref<48x6xf32, #tpu.memory_space<vmem>>, vector<48x6xf32>
    %c0_49 = arith.constant 0 : index
    %c0_50 = arith.constant 0 : index
    %25 = vector.load %arg26[%c0_49, %c0_50] : memref<1x6xf32, #tpu.memory_space<vmem>>, vector<1x6xf32>
    %c0_51 = arith.constant 0 : index
    %c0_52 = arith.constant 0 : index
    %26 = vector.load %arg27[%c0_51, %c0_52] : memref<32x64xf32, #tpu.memory_space<vmem>>, vector<32x64xf32>
    %c0_53 = arith.constant 0 : index
    %c0_54 = arith.constant 0 : index
    %27 = vector.load %arg28[%c0_53, %c0_54] : memref<1x64xf32, #tpu.memory_space<vmem>>, vector<1x64xf32>
    %c0_55 = arith.constant 0 : index
    %c0_56 = arith.constant 0 : index
    %28 = vector.load %arg29[%c0_55, %c0_56] : memref<64x6xf32, #tpu.memory_space<vmem>>, vector<64x6xf32>
    %c0_57 = arith.constant 0 : index
    %c0_58 = arith.constant 0 : index
    %29 = vector.load %arg30[%c0_57, %c0_58] : memref<1x6xf32, #tpu.memory_space<vmem>>, vector<1x6xf32>
    %c0_59 = arith.constant 0 : index
    %c0_60 = arith.constant 0 : index
    %c0_61 = arith.constant 0 : index
    %30 = vector.load %arg0[%c0_59, %c0_60, %c0_61] : memref<4x8x24xf32, #tpu.memory_space<vmem>>, vector<4x8x24xf32>
    %31 = vector.extract_strided_slice %30 {offsets = [0, 0, 0], sizes = [4, 8, 10], strides = [1, 1, 1]} : vector<4x8x24xf32> to vector<4x8x10xf32>
    %32 = vector.extract_strided_slice %30 {offsets = [0, 0, 12], sizes = [4, 8, 8], strides = [1, 1, 1]} : vector<4x8x24xf32> to vector<4x8x8xf32>
    %33 = tpu.concatenate %31, %32 in 2 : vector<4x8x10xf32>, vector<4x8x8xf32> -> vector<4x8x18xf32>
    %34 = vector.shape_cast %33 : vector<4x8x18xf32> to vector<32x18xf32>
    %cst = arith.constant dense<0.000000e+00> : vector<32x96xf32>
    %35 = tpu.matmul %34, %0, %cst {dimension_numbers = #tpu.dot_dimension_numbers<[1], [0], [0], [1], [0, 0, 1, 1], [], []>} : vector<32x18xf32>, vector<18x96xf32>, vector<32x96xf32> -> vector<32x96xf32>
    %36 = vector.broadcast %2 : vector<1x96xf32> to vector<32x96xf32>
    %37 = arith.addf %35, %36 : vector<32x96xf32>
    %38 = vector.shape_cast %37 : vector<32x96xf32> to vector<4x8x96xf32>
    %cst_62 = arith.constant 0.000000e+00 : f32
    %39 = vector.broadcast %cst_62 : f32 to vector<4x32xf32>
    %cst_63 = arith.constant dense<0.000000e+00> : vector<4x96xf32>
    %40 = tpu.matmul %39, %1, %cst_63 {dimension_numbers = #tpu.dot_dimension_numbers<[1], [0], [0], [1], [0, 0, 1, 1], [], []>} : vector<4x32xf32>, vector<32x96xf32>, vector<4x96xf32> -> vector<4x96xf32>
    %41 = vector.broadcast %3 : vector<1x96xf32> to vector<4x96xf32>
    %42 = arith.addf %40, %41 : vector<4x96xf32>
    %43 = vector.extract_strided_slice %38 {offsets = [0, 0, 0], sizes = [4, 1, 96], strides = [1, 1, 1]} : vector<4x8x96xf32> to vector<4x1x96xf32>
    %44 = vector.shape_cast %43 : vector<4x1x96xf32> to vector<4x96xf32>
    %45 = vector.extract_strided_slice %44 {offsets = [0, 0], sizes = [4, 32], strides = [1, 1]} : vector<4x96xf32> to vector<4x32xf32>
    %46 = vector.extract_strided_slice %42 {offsets = [0, 0], sizes = [4, 32], strides = [1, 1]} : vector<4x96xf32> to vector<4x32xf32>
    %47 = arith.addf %45, %46 : vector<4x32xf32>
    %48 = arith.negf %47 : vector<4x32xf32>
    %49 = math.exp %48 : vector<4x32xf32>
    %cst_64 = arith.constant 1.000000e+00 : f32
    %50 = vector.broadcast %cst_64 : f32 to vector<4x32xf32>
    %51 = arith.addf %50, %49 : vector<4x32xf32>
    %52 = arith.divf %50, %51 : vector<4x32xf32>
    %53 = vector.extract_strided_slice %44 {offsets = [0, 32], sizes = [4, 32], strides = [1, 1]} : vector<4x96xf32> to vector<4x32xf32>
    %54 = vector.extract_strided_slice %42 {offsets = [0, 32], sizes = [4, 32], strides = [1, 1]} : vector<4x96xf32> to vector<4x32xf32>
    %55 = arith.addf %53, %54 : vector<4x32xf32>
    %56 = arith.negf %55 : vector<4x32xf32>
    %57 = math.exp %56 : vector<4x32xf32>
    %cst_65 = arith.constant 1.000000e+00 : f32
    %58 = vector.broadcast %cst_65 : f32 to vector<4x32xf32>
    %59 = arith.addf %58, %57 : vector<4x32xf32>
    %60 = arith.divf %58, %59 : vector<4x32xf32>
    %61 = vector.extract_strided_slice %44 {offsets = [0, 64], sizes = [4, 32], strides = [1, 1]} : vector<4x96xf32> to vector<4x32xf32>
    %62 = vector.extract_strided_slice %42 {offsets = [0, 64], sizes = [4, 32], strides = [1, 1]} : vector<4x96xf32> to vector<4x32xf32>
    %63 = arith.mulf %52, %62 : vector<4x32xf32>
    %64 = arith.addf %61, %63 : vector<4x32xf32>
    %65 = math.tanh %64 : vector<4x32xf32>
    %cst_66 = arith.constant 1.000000e+00 : f32
    %66 = vector.broadcast %cst_66 : f32 to vector<4x32xf32>
    %67 = arith.subf %66, %60 : vector<4x32xf32>
    %68 = arith.mulf %67, %65 : vector<4x32xf32>
    %69 = arith.mulf %60, %39 : vector<4x32xf32>
    %70 = arith.addf %68, %69 : vector<4x32xf32>
    %cst_67 = arith.constant dense<0.000000e+00> : vector<4x96xf32>
    %71 = tpu.matmul %70, %1, %cst_67 {dimension_numbers = #tpu.dot_dimension_numbers<[1], [0], [0], [1], [0, 0, 1, 1], [], []>} : vector<4x32xf32>, vector<32x96xf32>, vector<4x96xf32> -> vector<4x96xf32>
    %72 = vector.broadcast %3 : vector<1x96xf32> to vector<4x96xf32>
    %73 = arith.addf %71, %72 : vector<4x96xf32>
    %74 = vector.extract_strided_slice %38 {offsets = [0, 1, 0], sizes = [4, 1, 96], strides = [1, 1, 1]} : vector<4x8x96xf32> to vector<4x1x96xf32>
    %75 = vector.shape_cast %74 : vector<4x1x96xf32> to vector<4x96xf32>
    %76 = vector.extract_strided_slice %75 {offsets = [0, 0], sizes = [4, 32], strides = [1, 1]} : vector<4x96xf32> to vector<4x32xf32>
    %77 = vector.extract_strided_slice %73 {offsets = [0, 0], sizes = [4, 32], strides = [1, 1]} : vector<4x96xf32> to vector<4x32xf32>
    %78 = arith.addf %76, %77 : vector<4x32xf32>
    %79 = arith.negf %78 : vector<4x32xf32>
    %80 = math.exp %79 : vector<4x32xf32>
    %cst_68 = arith.constant 1.000000e+00 : f32
    %81 = vector.broadcast %cst_68 : f32 to vector<4x32xf32>
    %82 = arith.addf %81, %80 : vector<4x32xf32>
    %83 = arith.divf %81, %82 : vector<4x32xf32>
    %84 = vector.extract_strided_slice %75 {offsets = [0, 32], sizes = [4, 32], strides = [1, 1]} : vector<4x96xf32> to vector<4x32xf32>
    %85 = vector.extract_strided_slice %73 {offsets = [0, 32], sizes = [4, 32], strides = [1, 1]} : vector<4x96xf32> to vector<4x32xf32>
    %86 = arith.addf %84, %85 : vector<4x32xf32>
    %87 = arith.negf %86 : vector<4x32xf32>
    %88 = math.exp %87 : vector<4x32xf32>
    %cst_69 = arith.constant 1.000000e+00 : f32
    %89 = vector.broadcast %cst_69 : f32 to vector<4x32xf32>
    %90 = arith.addf %89, %88 : vector<4x32xf32>
    %91 = arith.divf %89, %90 : vector<4x32xf32>
    %92 = vector.extract_strided_slice %75 {offsets = [0, 64], sizes = [4, 32], strides = [1, 1]} : vector<4x96xf32> to vector<4x32xf32>
    %93 = vector.extract_strided_slice %73 {offsets = [0, 64], sizes = [4, 32], strides = [1, 1]} : vector<4x96xf32> to vector<4x32xf32>
    %94 = arith.mulf %83, %93 : vector<4x32xf32>
    %95 = arith.addf %92, %94 : vector<4x32xf32>
    %96 = math.tanh %95 : vector<4x32xf32>
    %cst_70 = arith.constant 1.000000e+00 : f32
    %97 = vector.broadcast %cst_70 : f32 to vector<4x32xf32>
    %98 = arith.subf %97, %91 : vector<4x32xf32>
    %99 = arith.mulf %98, %96 : vector<4x32xf32>
    %100 = arith.mulf %91, %70 : vector<4x32xf32>
    %101 = arith.addf %99, %100 : vector<4x32xf32>
    %cst_71 = arith.constant dense<0.000000e+00> : vector<4x96xf32>
    %102 = tpu.matmul %101, %1, %cst_71 {dimension_numbers = #tpu.dot_dimension_numbers<[1], [0], [0], [1], [0, 0, 1, 1], [], []>} : vector<4x32xf32>, vector<32x96xf32>, vector<4x96xf32> -> vector<4x96xf32>
    %103 = vector.broadcast %3 : vector<1x96xf32> to vector<4x96xf32>
    %104 = arith.addf %102, %103 : vector<4x96xf32>
    %105 = vector.extract_strided_slice %38 {offsets = [0, 2, 0], sizes = [4, 1, 96], strides = [1, 1, 1]} : vector<4x8x96xf32> to vector<4x1x96xf32>
    %106 = vector.shape_cast %105 : vector<4x1x96xf32> to vector<4x96xf32>
    %107 = vector.extract_strided_slice %106 {offsets = [0, 0], sizes = [4, 32], strides = [1, 1]} : vector<4x96xf32> to vector<4x32xf32>
    %108 = vector.extract_strided_slice %104 {offsets = [0, 0], sizes = [4, 32], strides = [1, 1]} : vector<4x96xf32> to vector<4x32xf32>
    %109 = arith.addf %107, %108 : vector<4x32xf32>
    %110 = arith.negf %109 : vector<4x32xf32>
    %111 = math.exp %110 : vector<4x32xf32>
    %cst_72 = arith.constant 1.000000e+00 : f32
    %112 = vector.broadcast %cst_72 : f32 to vector<4x32xf32>
    %113 = arith.addf %112, %111 : vector<4x32xf32>
    %114 = arith.divf %112, %113 : vector<4x32xf32>
    %115 = vector.extract_strided_slice %106 {offsets = [0, 32], sizes = [4, 32], strides = [1, 1]} : vector<4x96xf32> to vector<4x32xf32>
    %116 = vector.extract_strided_slice %104 {offsets = [0, 32], sizes = [4, 32], strides = [1, 1]} : vector<4x96xf32> to vector<4x32xf32>
    %117 = arith.addf %115, %116 : vector<4x32xf32>
    %118 = arith.negf %117 : vector<4x32xf32>
    %119 = math.exp %118 : vector<4x32xf32>
    %cst_73 = arith.constant 1.000000e+00 : f32
    %120 = vector.broadcast %cst_73 : f32 to vector<4x32xf32>
    %121 = arith.addf %120, %119 : vector<4x32xf32>
    %122 = arith.divf %120, %121 : vector<4x32xf32>
    %123 = vector.extract_strided_slice %106 {offsets = [0, 64], sizes = [4, 32], strides = [1, 1]} : vector<4x96xf32> to vector<4x32xf32>
    %124 = vector.extract_strided_slice %104 {offsets = [0, 64], sizes = [4, 32], strides = [1, 1]} : vector<4x96xf32> to vector<4x32xf32>
    %125 = arith.mulf %114, %124 : vector<4x32xf32>
    %126 = arith.addf %123, %125 : vector<4x32xf32>
    %127 = math.tanh %126 : vector<4x32xf32>
    %cst_74 = arith.constant 1.000000e+00 : f32
    %128 = vector.broadcast %cst_74 : f32 to vector<4x32xf32>
    %129 = arith.subf %128, %122 : vector<4x32xf32>
    %130 = arith.mulf %129, %127 : vector<4x32xf32>
    %131 = arith.mulf %122, %101 : vector<4x32xf32>
    %132 = arith.addf %130, %131 : vector<4x32xf32>
    %cst_75 = arith.constant dense<0.000000e+00> : vector<4x96xf32>
    %133 = tpu.matmul %132, %1, %cst_75 {dimension_numbers = #tpu.dot_dimension_numbers<[1], [0], [0], [1], [0, 0, 1, 1], [], []>} : vector<4x32xf32>, vector<32x96xf32>, vector<4x96xf32> -> vector<4x96xf32>
    %134 = vector.broadcast %3 : vector<1x96xf32> to vector<4x96xf32>
    %135 = arith.addf %133, %134 : vector<4x96xf32>
    %136 = vector.extract_strided_slice %38 {offsets = [0, 3, 0], sizes = [4, 1, 96], strides = [1, 1, 1]} : vector<4x8x96xf32> to vector<4x1x96xf32>
    %137 = vector.shape_cast %136 : vector<4x1x96xf32> to vector<4x96xf32>
    %138 = vector.extract_strided_slice %137 {offsets = [0, 0], sizes = [4, 32], strides = [1, 1]} : vector<4x96xf32> to vector<4x32xf32>
    %139 = vector.extract_strided_slice %135 {offsets = [0, 0], sizes = [4, 32], strides = [1, 1]} : vector<4x96xf32> to vector<4x32xf32>
    %140 = arith.addf %138, %139 : vector<4x32xf32>
    %141 = arith.negf %140 : vector<4x32xf32>
    %142 = math.exp %141 : vector<4x32xf32>
    %cst_76 = arith.constant 1.000000e+00 : f32
    %143 = vector.broadcast %cst_76 : f32 to vector<4x32xf32>
    %144 = arith.addf %143, %142 : vector<4x32xf32>
    %145 = arith.divf %143, %144 : vector<4x32xf32>
    %146 = vector.extract_strided_slice %137 {offsets = [0, 32], sizes = [4, 32], strides = [1, 1]} : vector<4x96xf32> to vector<4x32xf32>
    %147 = vector.extract_strided_slice %135 {offsets = [0, 32], sizes = [4, 32], strides = [1, 1]} : vector<4x96xf32> to vector<4x32xf32>
    %148 = arith.addf %146, %147 : vector<4x32xf32>
    %149 = arith.negf %148 : vector<4x32xf32>
    %150 = math.exp %149 : vector<4x32xf32>
    %cst_77 = arith.constant 1.000000e+00 : f32
    %151 = vector.broadcast %cst_77 : f32 to vector<4x32xf32>
    %152 = arith.addf %151, %150 : vector<4x32xf32>
    %153 = arith.divf %151, %152 : vector<4x32xf32>
    %154 = vector.extract_strided_slice %137 {offsets = [0, 64], sizes = [4, 32], strides = [1, 1]} : vector<4x96xf32> to vector<4x32xf32>
    %155 = vector.extract_strided_slice %135 {offsets = [0, 64], sizes = [4, 32], strides = [1, 1]} : vector<4x96xf32> to vector<4x32xf32>
    %156 = arith.mulf %145, %155 : vector<4x32xf32>
    %157 = arith.addf %154, %156 : vector<4x32xf32>
    %158 = math.tanh %157 : vector<4x32xf32>
    %cst_78 = arith.constant 1.000000e+00 : f32
    %159 = vector.broadcast %cst_78 : f32 to vector<4x32xf32>
    %160 = arith.subf %159, %153 : vector<4x32xf32>
    %161 = arith.mulf %160, %158 : vector<4x32xf32>
    %162 = arith.mulf %153, %132 : vector<4x32xf32>
    %163 = arith.addf %161, %162 : vector<4x32xf32>
    %cst_79 = arith.constant dense<0.000000e+00> : vector<4x96xf32>
    %164 = tpu.matmul %163, %1, %cst_79 {dimension_numbers = #tpu.dot_dimension_numbers<[1], [0], [0], [1], [0, 0, 1, 1], [], []>} : vector<4x32xf32>, vector<32x96xf32>, vector<4x96xf32> -> vector<4x96xf32>
    %165 = vector.broadcast %3 : vector<1x96xf32> to vector<4x96xf32>
    %166 = arith.addf %164, %165 : vector<4x96xf32>
    %167 = vector.extract_strided_slice %38 {offsets = [0, 4, 0], sizes = [4, 1, 96], strides = [1, 1, 1]} : vector<4x8x96xf32> to vector<4x1x96xf32>
    %168 = vector.shape_cast %167 : vector<4x1x96xf32> to vector<4x96xf32>
    %169 = vector.extract_strided_slice %168 {offsets = [0, 0], sizes = [4, 32], strides = [1, 1]} : vector<4x96xf32> to vector<4x32xf32>
    %170 = vector.extract_strided_slice %166 {offsets = [0, 0], sizes = [4, 32], strides = [1, 1]} : vector<4x96xf32> to vector<4x32xf32>
    %171 = arith.addf %169, %170 : vector<4x32xf32>
    %172 = arith.negf %171 : vector<4x32xf32>
    %173 = math.exp %172 : vector<4x32xf32>
    %cst_80 = arith.constant 1.000000e+00 : f32
    %174 = vector.broadcast %cst_80 : f32 to vector<4x32xf32>
    %175 = arith.addf %174, %173 : vector<4x32xf32>
    %176 = arith.divf %174, %175 : vector<4x32xf32>
    %177 = vector.extract_strided_slice %168 {offsets = [0, 32], sizes = [4, 32], strides = [1, 1]} : vector<4x96xf32> to vector<4x32xf32>
    %178 = vector.extract_strided_slice %166 {offsets = [0, 32], sizes = [4, 32], strides = [1, 1]} : vector<4x96xf32> to vector<4x32xf32>
    %179 = arith.addf %177, %178 : vector<4x32xf32>
    %180 = arith.negf %179 : vector<4x32xf32>
    %181 = math.exp %180 : vector<4x32xf32>
    %cst_81 = arith.constant 1.000000e+00 : f32
    %182 = vector.broadcast %cst_81 : f32 to vector<4x32xf32>
    %183 = arith.addf %182, %181 : vector<4x32xf32>
    %184 = arith.divf %182, %183 : vector<4x32xf32>
    %185 = vector.extract_strided_slice %168 {offsets = [0, 64], sizes = [4, 32], strides = [1, 1]} : vector<4x96xf32> to vector<4x32xf32>
    %186 = vector.extract_strided_slice %166 {offsets = [0, 64], sizes = [4, 32], strides = [1, 1]} : vector<4x96xf32> to vector<4x32xf32>
    %187 = arith.mulf %176, %186 : vector<4x32xf32>
    %188 = arith.addf %185, %187 : vector<4x32xf32>
    %189 = math.tanh %188 : vector<4x32xf32>
    %cst_82 = arith.constant 1.000000e+00 : f32
    %190 = vector.broadcast %cst_82 : f32 to vector<4x32xf32>
    %191 = arith.subf %190, %184 : vector<4x32xf32>
    %192 = arith.mulf %191, %189 : vector<4x32xf32>
    %193 = arith.mulf %184, %163 : vector<4x32xf32>
    %194 = arith.addf %192, %193 : vector<4x32xf32>
    %cst_83 = arith.constant dense<0.000000e+00> : vector<4x96xf32>
    %195 = tpu.matmul %194, %1, %cst_83 {dimension_numbers = #tpu.dot_dimension_numbers<[1], [0], [0], [1], [0, 0, 1, 1], [], []>} : vector<4x32xf32>, vector<32x96xf32>, vector<4x96xf32> -> vector<4x96xf32>
    %196 = vector.broadcast %3 : vector<1x96xf32> to vector<4x96xf32>
    %197 = arith.addf %195, %196 : vector<4x96xf32>
    %198 = vector.extract_strided_slice %38 {offsets = [0, 5, 0], sizes = [4, 1, 96], strides = [1, 1, 1]} : vector<4x8x96xf32> to vector<4x1x96xf32>
    %199 = vector.shape_cast %198 : vector<4x1x96xf32> to vector<4x96xf32>
    %200 = vector.extract_strided_slice %199 {offsets = [0, 0], sizes = [4, 32], strides = [1, 1]} : vector<4x96xf32> to vector<4x32xf32>
    %201 = vector.extract_strided_slice %197 {offsets = [0, 0], sizes = [4, 32], strides = [1, 1]} : vector<4x96xf32> to vector<4x32xf32>
    %202 = arith.addf %200, %201 : vector<4x32xf32>
    %203 = arith.negf %202 : vector<4x32xf32>
    %204 = math.exp %203 : vector<4x32xf32>
    %cst_84 = arith.constant 1.000000e+00 : f32
    %205 = vector.broadcast %cst_84 : f32 to vector<4x32xf32>
    %206 = arith.addf %205, %204 : vector<4x32xf32>
    %207 = arith.divf %205, %206 : vector<4x32xf32>
    %208 = vector.extract_strided_slice %199 {offsets = [0, 32], sizes = [4, 32], strides = [1, 1]} : vector<4x96xf32> to vector<4x32xf32>
    %209 = vector.extract_strided_slice %197 {offsets = [0, 32], sizes = [4, 32], strides = [1, 1]} : vector<4x96xf32> to vector<4x32xf32>
    %210 = arith.addf %208, %209 : vector<4x32xf32>
    %211 = arith.negf %210 : vector<4x32xf32>
    %212 = math.exp %211 : vector<4x32xf32>
    %cst_85 = arith.constant 1.000000e+00 : f32
    %213 = vector.broadcast %cst_85 : f32 to vector<4x32xf32>
    %214 = arith.addf %213, %212 : vector<4x32xf32>
    %215 = arith.divf %213, %214 : vector<4x32xf32>
    %216 = vector.extract_strided_slice %199 {offsets = [0, 64], sizes = [4, 32], strides = [1, 1]} : vector<4x96xf32> to vector<4x32xf32>
    %217 = vector.extract_strided_slice %197 {offsets = [0, 64], sizes = [4, 32], strides = [1, 1]} : vector<4x96xf32> to vector<4x32xf32>
    %218 = arith.mulf %207, %217 : vector<4x32xf32>
    %219 = arith.addf %216, %218 : vector<4x32xf32>
    %220 = math.tanh %219 : vector<4x32xf32>
    %cst_86 = arith.constant 1.000000e+00 : f32
    %221 = vector.broadcast %cst_86 : f32 to vector<4x32xf32>
    %222 = arith.subf %221, %215 : vector<4x32xf32>
    %223 = arith.mulf %222, %220 : vector<4x32xf32>
    %224 = arith.mulf %215, %194 : vector<4x32xf32>
    %225 = arith.addf %223, %224 : vector<4x32xf32>
    %cst_87 = arith.constant dense<0.000000e+00> : vector<4x96xf32>
    %226 = tpu.matmul %225, %1, %cst_87 {dimension_numbers = #tpu.dot_dimension_numbers<[1], [0], [0], [1], [0, 0, 1, 1], [], []>} : vector<4x32xf32>, vector<32x96xf32>, vector<4x96xf32> -> vector<4x96xf32>
    %227 = vector.broadcast %3 : vector<1x96xf32> to vector<4x96xf32>
    %228 = arith.addf %226, %227 : vector<4x96xf32>
    %229 = vector.extract_strided_slice %38 {offsets = [0, 6, 0], sizes = [4, 1, 96], strides = [1, 1, 1]} : vector<4x8x96xf32> to vector<4x1x96xf32>
    %230 = vector.shape_cast %229 : vector<4x1x96xf32> to vector<4x96xf32>
    %231 = vector.extract_strided_slice %230 {offsets = [0, 0], sizes = [4, 32], strides = [1, 1]} : vector<4x96xf32> to vector<4x32xf32>
    %232 = vector.extract_strided_slice %228 {offsets = [0, 0], sizes = [4, 32], strides = [1, 1]} : vector<4x96xf32> to vector<4x32xf32>
    %233 = arith.addf %231, %232 : vector<4x32xf32>
    %234 = arith.negf %233 : vector<4x32xf32>
    %235 = math.exp %234 : vector<4x32xf32>
    %cst_88 = arith.constant 1.000000e+00 : f32
    %236 = vector.broadcast %cst_88 : f32 to vector<4x32xf32>
    %237 = arith.addf %236, %235 : vector<4x32xf32>
    %238 = arith.divf %236, %237 : vector<4x32xf32>
    %239 = vector.extract_strided_slice %230 {offsets = [0, 32], sizes = [4, 32], strides = [1, 1]} : vector<4x96xf32> to vector<4x32xf32>
    %240 = vector.extract_strided_slice %228 {offsets = [0, 32], sizes = [4, 32], strides = [1, 1]} : vector<4x96xf32> to vector<4x32xf32>
    %241 = arith.addf %239, %240 : vector<4x32xf32>
    %242 = arith.negf %241 : vector<4x32xf32>
    %243 = math.exp %242 : vector<4x32xf32>
    %cst_89 = arith.constant 1.000000e+00 : f32
    %244 = vector.broadcast %cst_89 : f32 to vector<4x32xf32>
    %245 = arith.addf %244, %243 : vector<4x32xf32>
    %246 = arith.divf %244, %245 : vector<4x32xf32>
    %247 = vector.extract_strided_slice %230 {offsets = [0, 64], sizes = [4, 32], strides = [1, 1]} : vector<4x96xf32> to vector<4x32xf32>
    %248 = vector.extract_strided_slice %228 {offsets = [0, 64], sizes = [4, 32], strides = [1, 1]} : vector<4x96xf32> to vector<4x32xf32>
    %249 = arith.mulf %238, %248 : vector<4x32xf32>
    %250 = arith.addf %247, %249 : vector<4x32xf32>
    %251 = math.tanh %250 : vector<4x32xf32>
    %cst_90 = arith.constant 1.000000e+00 : f32
    %252 = vector.broadcast %cst_90 : f32 to vector<4x32xf32>
    %253 = arith.subf %252, %246 : vector<4x32xf32>
    %254 = arith.mulf %253, %251 : vector<4x32xf32>
    %255 = arith.mulf %246, %225 : vector<4x32xf32>
    %256 = arith.addf %254, %255 : vector<4x32xf32>
    %cst_91 = arith.constant dense<0.000000e+00> : vector<4x96xf32>
    %257 = tpu.matmul %256, %1, %cst_91 {dimension_numbers = #tpu.dot_dimension_numbers<[1], [0], [0], [1], [0, 0, 1, 1], [], []>} : vector<4x32xf32>, vector<32x96xf32>, vector<4x96xf32> -> vector<4x96xf32>
    %258 = vector.broadcast %3 : vector<1x96xf32> to vector<4x96xf32>
    %259 = arith.addf %257, %258 : vector<4x96xf32>
    %260 = vector.extract_strided_slice %38 {offsets = [0, 7, 0], sizes = [4, 1, 96], strides = [1, 1, 1]} : vector<4x8x96xf32> to vector<4x1x96xf32>
    %261 = vector.shape_cast %260 : vector<4x1x96xf32> to vector<4x96xf32>
    %262 = vector.extract_strided_slice %261 {offsets = [0, 0], sizes = [4, 32], strides = [1, 1]} : vector<4x96xf32> to vector<4x32xf32>
    %263 = vector.extract_strided_slice %259 {offsets = [0, 0], sizes = [4, 32], strides = [1, 1]} : vector<4x96xf32> to vector<4x32xf32>
    %264 = arith.addf %262, %263 : vector<4x32xf32>
    %265 = arith.negf %264 : vector<4x32xf32>
    %266 = math.exp %265 : vector<4x32xf32>
    %cst_92 = arith.constant 1.000000e+00 : f32
    %267 = vector.broadcast %cst_92 : f32 to vector<4x32xf32>
    %268 = arith.addf %267, %266 : vector<4x32xf32>
    %269 = arith.divf %267, %268 : vector<4x32xf32>
    %270 = vector.extract_strided_slice %261 {offsets = [0, 32], sizes = [4, 32], strides = [1, 1]} : vector<4x96xf32> to vector<4x32xf32>
    %271 = vector.extract_strided_slice %259 {offsets = [0, 32], sizes = [4, 32], strides = [1, 1]} : vector<4x96xf32> to vector<4x32xf32>
    %272 = arith.addf %270, %271 : vector<4x32xf32>
    %273 = arith.negf %272 : vector<4x32xf32>
    %274 = math.exp %273 : vector<4x32xf32>
    %cst_93 = arith.constant 1.000000e+00 : f32
    %275 = vector.broadcast %cst_93 : f32 to vector<4x32xf32>
    %276 = arith.addf %275, %274 : vector<4x32xf32>
    %277 = arith.divf %275, %276 : vector<4x32xf32>
    %278 = vector.extract_strided_slice %261 {offsets = [0, 64], sizes = [4, 32], strides = [1, 1]} : vector<4x96xf32> to vector<4x32xf32>
    %279 = vector.extract_strided_slice %259 {offsets = [0, 64], sizes = [4, 32], strides = [1, 1]} : vector<4x96xf32> to vector<4x32xf32>
    %280 = arith.mulf %269, %279 : vector<4x32xf32>
    %281 = arith.addf %278, %280 : vector<4x32xf32>
    %282 = math.tanh %281 : vector<4x32xf32>
    %cst_94 = arith.constant 1.000000e+00 : f32
    %283 = vector.broadcast %cst_94 : f32 to vector<4x32xf32>
    %284 = arith.subf %283, %277 : vector<4x32xf32>
    %285 = arith.mulf %284, %282 : vector<4x32xf32>
    %286 = arith.mulf %277, %256 : vector<4x32xf32>
    %287 = arith.addf %285, %286 : vector<4x32xf32>
    %288 = vector.shape_cast %70 : vector<4x32xf32> to vector<4x1x32xf32>
    %289 = vector.shape_cast %101 : vector<4x32xf32> to vector<4x1x32xf32>
    %290 = vector.shape_cast %132 : vector<4x32xf32> to vector<4x1x32xf32>
    %291 = vector.shape_cast %163 : vector<4x32xf32> to vector<4x1x32xf32>
    %292 = vector.shape_cast %194 : vector<4x32xf32> to vector<4x1x32xf32>
    %293 = vector.shape_cast %225 : vector<4x32xf32> to vector<4x1x32xf32>
    %294 = vector.shape_cast %256 : vector<4x32xf32> to vector<4x1x32xf32>
    %295 = vector.shape_cast %287 : vector<4x32xf32> to vector<4x1x32xf32>
    %296 = tpu.concatenate %288, %289, %290, %291, %292, %293, %294, %295 in 1 : vector<4x1x32xf32>, vector<4x1x32xf32>, vector<4x1x32xf32>, vector<4x1x32xf32>, vector<4x1x32xf32>, vector<4x1x32xf32>, vector<4x1x32xf32>, vector<4x1x32xf32> -> vector<4x8x32xf32>
    %297 = vector.shape_cast %296 : vector<4x8x32xf32> to vector<32x32xf32>
    %cst_95 = arith.constant dense<0.000000e+00> : vector<32x96xf32>
    %298 = tpu.matmul %297, %4, %cst_95 {dimension_numbers = #tpu.dot_dimension_numbers<[1], [0], [0], [1], [0, 0, 1, 1], [], []>} : vector<32x32xf32>, vector<32x96xf32>, vector<32x96xf32> -> vector<32x96xf32>
    %299 = vector.broadcast %6 : vector<1x96xf32> to vector<32x96xf32>
    %300 = arith.addf %298, %299 : vector<32x96xf32>
    %301 = vector.shape_cast %300 : vector<32x96xf32> to vector<4x8x96xf32>
    %cst_96 = arith.constant 0.000000e+00 : f32
    %302 = vector.broadcast %cst_96 : f32 to vector<4x32xf32>
    %cst_97 = arith.constant dense<0.000000e+00> : vector<4x96xf32>
    %303 = tpu.matmul %302, %5, %cst_97 {dimension_numbers = #tpu.dot_dimension_numbers<[1], [0], [0], [1], [0, 0, 1, 1], [], []>} : vector<4x32xf32>, vector<32x96xf32>, vector<4x96xf32> -> vector<4x96xf32>
    %304 = vector.broadcast %7 : vector<1x96xf32> to vector<4x96xf32>
    %305 = arith.addf %303, %304 : vector<4x96xf32>
    %306 = vector.extract_strided_slice %301 {offsets = [0, 0, 0], sizes = [4, 1, 96], strides = [1, 1, 1]} : vector<4x8x96xf32> to vector<4x1x96xf32>
    %307 = vector.shape_cast %306 : vector<4x1x96xf32> to vector<4x96xf32>
    %308 = vector.extract_strided_slice %307 {offsets = [0, 0], sizes = [4, 32], strides = [1, 1]} : vector<4x96xf32> to vector<4x32xf32>
    %309 = vector.extract_strided_slice %305 {offsets = [0, 0], sizes = [4, 32], strides = [1, 1]} : vector<4x96xf32> to vector<4x32xf32>
    %310 = arith.addf %308, %309 : vector<4x32xf32>
    %311 = arith.negf %310 : vector<4x32xf32>
    %312 = math.exp %311 : vector<4x32xf32>
    %cst_98 = arith.constant 1.000000e+00 : f32
    %313 = vector.broadcast %cst_98 : f32 to vector<4x32xf32>
    %314 = arith.addf %313, %312 : vector<4x32xf32>
    %315 = arith.divf %313, %314 : vector<4x32xf32>
    %316 = vector.extract_strided_slice %307 {offsets = [0, 32], sizes = [4, 32], strides = [1, 1]} : vector<4x96xf32> to vector<4x32xf32>
    %317 = vector.extract_strided_slice %305 {offsets = [0, 32], sizes = [4, 32], strides = [1, 1]} : vector<4x96xf32> to vector<4x32xf32>
    %318 = arith.addf %316, %317 : vector<4x32xf32>
    %319 = arith.negf %318 : vector<4x32xf32>
    %320 = math.exp %319 : vector<4x32xf32>
    %cst_99 = arith.constant 1.000000e+00 : f32
    %321 = vector.broadcast %cst_99 : f32 to vector<4x32xf32>
    %322 = arith.addf %321, %320 : vector<4x32xf32>
    %323 = arith.divf %321, %322 : vector<4x32xf32>
    %324 = vector.extract_strided_slice %307 {offsets = [0, 64], sizes = [4, 32], strides = [1, 1]} : vector<4x96xf32> to vector<4x32xf32>
    %325 = vector.extract_strided_slice %305 {offsets = [0, 64], sizes = [4, 32], strides = [1, 1]} : vector<4x96xf32> to vector<4x32xf32>
    %326 = arith.mulf %315, %325 : vector<4x32xf32>
    %327 = arith.addf %324, %326 : vector<4x32xf32>
    %328 = math.tanh %327 : vector<4x32xf32>
    %cst_100 = arith.constant 1.000000e+00 : f32
    %329 = vector.broadcast %cst_100 : f32 to vector<4x32xf32>
    %330 = arith.subf %329, %323 : vector<4x32xf32>
    %331 = arith.mulf %330, %328 : vector<4x32xf32>
    %332 = arith.mulf %323, %302 : vector<4x32xf32>
    %333 = arith.addf %331, %332 : vector<4x32xf32>
    %cst_101 = arith.constant dense<0.000000e+00> : vector<4x96xf32>
    %334 = tpu.matmul %333, %5, %cst_101 {dimension_numbers = #tpu.dot_dimension_numbers<[1], [0], [0], [1], [0, 0, 1, 1], [], []>} : vector<4x32xf32>, vector<32x96xf32>, vector<4x96xf32> -> vector<4x96xf32>
    %335 = vector.broadcast %7 : vector<1x96xf32> to vector<4x96xf32>
    %336 = arith.addf %334, %335 : vector<4x96xf32>
    %337 = vector.extract_strided_slice %301 {offsets = [0, 1, 0], sizes = [4, 1, 96], strides = [1, 1, 1]} : vector<4x8x96xf32> to vector<4x1x96xf32>
    %338 = vector.shape_cast %337 : vector<4x1x96xf32> to vector<4x96xf32>
    %339 = vector.extract_strided_slice %338 {offsets = [0, 0], sizes = [4, 32], strides = [1, 1]} : vector<4x96xf32> to vector<4x32xf32>
    %340 = vector.extract_strided_slice %336 {offsets = [0, 0], sizes = [4, 32], strides = [1, 1]} : vector<4x96xf32> to vector<4x32xf32>
    %341 = arith.addf %339, %340 : vector<4x32xf32>
    %342 = arith.negf %341 : vector<4x32xf32>
    %343 = math.exp %342 : vector<4x32xf32>
    %cst_102 = arith.constant 1.000000e+00 : f32
    %344 = vector.broadcast %cst_102 : f32 to vector<4x32xf32>
    %345 = arith.addf %344, %343 : vector<4x32xf32>
    %346 = arith.divf %344, %345 : vector<4x32xf32>
    %347 = vector.extract_strided_slice %338 {offsets = [0, 32], sizes = [4, 32], strides = [1, 1]} : vector<4x96xf32> to vector<4x32xf32>
    %348 = vector.extract_strided_slice %336 {offsets = [0, 32], sizes = [4, 32], strides = [1, 1]} : vector<4x96xf32> to vector<4x32xf32>
    %349 = arith.addf %347, %348 : vector<4x32xf32>
    %350 = arith.negf %349 : vector<4x32xf32>
    %351 = math.exp %350 : vector<4x32xf32>
    %cst_103 = arith.constant 1.000000e+00 : f32
    %352 = vector.broadcast %cst_103 : f32 to vector<4x32xf32>
    %353 = arith.addf %352, %351 : vector<4x32xf32>
    %354 = arith.divf %352, %353 : vector<4x32xf32>
    %355 = vector.extract_strided_slice %338 {offsets = [0, 64], sizes = [4, 32], strides = [1, 1]} : vector<4x96xf32> to vector<4x32xf32>
    %356 = vector.extract_strided_slice %336 {offsets = [0, 64], sizes = [4, 32], strides = [1, 1]} : vector<4x96xf32> to vector<4x32xf32>
    %357 = arith.mulf %346, %356 : vector<4x32xf32>
    %358 = arith.addf %355, %357 : vector<4x32xf32>
    %359 = math.tanh %358 : vector<4x32xf32>
    %cst_104 = arith.constant 1.000000e+00 : f32
    %360 = vector.broadcast %cst_104 : f32 to vector<4x32xf32>
    %361 = arith.subf %360, %354 : vector<4x32xf32>
    %362 = arith.mulf %361, %359 : vector<4x32xf32>
    %363 = arith.mulf %354, %333 : vector<4x32xf32>
    %364 = arith.addf %362, %363 : vector<4x32xf32>
    %cst_105 = arith.constant dense<0.000000e+00> : vector<4x96xf32>
    %365 = tpu.matmul %364, %5, %cst_105 {dimension_numbers = #tpu.dot_dimension_numbers<[1], [0], [0], [1], [0, 0, 1, 1], [], []>} : vector<4x32xf32>, vector<32x96xf32>, vector<4x96xf32> -> vector<4x96xf32>
    %366 = vector.broadcast %7 : vector<1x96xf32> to vector<4x96xf32>
    %367 = arith.addf %365, %366 : vector<4x96xf32>
    %368 = vector.extract_strided_slice %301 {offsets = [0, 2, 0], sizes = [4, 1, 96], strides = [1, 1, 1]} : vector<4x8x96xf32> to vector<4x1x96xf32>
    %369 = vector.shape_cast %368 : vector<4x1x96xf32> to vector<4x96xf32>
    %370 = vector.extract_strided_slice %369 {offsets = [0, 0], sizes = [4, 32], strides = [1, 1]} : vector<4x96xf32> to vector<4x32xf32>
    %371 = vector.extract_strided_slice %367 {offsets = [0, 0], sizes = [4, 32], strides = [1, 1]} : vector<4x96xf32> to vector<4x32xf32>
    %372 = arith.addf %370, %371 : vector<4x32xf32>
    %373 = arith.negf %372 : vector<4x32xf32>
    %374 = math.exp %373 : vector<4x32xf32>
    %cst_106 = arith.constant 1.000000e+00 : f32
    %375 = vector.broadcast %cst_106 : f32 to vector<4x32xf32>
    %376 = arith.addf %375, %374 : vector<4x32xf32>
    %377 = arith.divf %375, %376 : vector<4x32xf32>
    %378 = vector.extract_strided_slice %369 {offsets = [0, 32], sizes = [4, 32], strides = [1, 1]} : vector<4x96xf32> to vector<4x32xf32>
    %379 = vector.extract_strided_slice %367 {offsets = [0, 32], sizes = [4, 32], strides = [1, 1]} : vector<4x96xf32> to vector<4x32xf32>
    %380 = arith.addf %378, %379 : vector<4x32xf32>
    %381 = arith.negf %380 : vector<4x32xf32>
    %382 = math.exp %381 : vector<4x32xf32>
    %cst_107 = arith.constant 1.000000e+00 : f32
    %383 = vector.broadcast %cst_107 : f32 to vector<4x32xf32>
    %384 = arith.addf %383, %382 : vector<4x32xf32>
    %385 = arith.divf %383, %384 : vector<4x32xf32>
    %386 = vector.extract_strided_slice %369 {offsets = [0, 64], sizes = [4, 32], strides = [1, 1]} : vector<4x96xf32> to vector<4x32xf32>
    %387 = vector.extract_strided_slice %367 {offsets = [0, 64], sizes = [4, 32], strides = [1, 1]} : vector<4x96xf32> to vector<4x32xf32>
    %388 = arith.mulf %377, %387 : vector<4x32xf32>
    %389 = arith.addf %386, %388 : vector<4x32xf32>
    %390 = math.tanh %389 : vector<4x32xf32>
    %cst_108 = arith.constant 1.000000e+00 : f32
    %391 = vector.broadcast %cst_108 : f32 to vector<4x32xf32>
    %392 = arith.subf %391, %385 : vector<4x32xf32>
    %393 = arith.mulf %392, %390 : vector<4x32xf32>
    %394 = arith.mulf %385, %364 : vector<4x32xf32>
    %395 = arith.addf %393, %394 : vector<4x32xf32>
    %cst_109 = arith.constant dense<0.000000e+00> : vector<4x96xf32>
    %396 = tpu.matmul %395, %5, %cst_109 {dimension_numbers = #tpu.dot_dimension_numbers<[1], [0], [0], [1], [0, 0, 1, 1], [], []>} : vector<4x32xf32>, vector<32x96xf32>, vector<4x96xf32> -> vector<4x96xf32>
    %397 = vector.broadcast %7 : vector<1x96xf32> to vector<4x96xf32>
    %398 = arith.addf %396, %397 : vector<4x96xf32>
    %399 = vector.extract_strided_slice %301 {offsets = [0, 3, 0], sizes = [4, 1, 96], strides = [1, 1, 1]} : vector<4x8x96xf32> to vector<4x1x96xf32>
    %400 = vector.shape_cast %399 : vector<4x1x96xf32> to vector<4x96xf32>
    %401 = vector.extract_strided_slice %400 {offsets = [0, 0], sizes = [4, 32], strides = [1, 1]} : vector<4x96xf32> to vector<4x32xf32>
    %402 = vector.extract_strided_slice %398 {offsets = [0, 0], sizes = [4, 32], strides = [1, 1]} : vector<4x96xf32> to vector<4x32xf32>
    %403 = arith.addf %401, %402 : vector<4x32xf32>
    %404 = arith.negf %403 : vector<4x32xf32>
    %405 = math.exp %404 : vector<4x32xf32>
    %cst_110 = arith.constant 1.000000e+00 : f32
    %406 = vector.broadcast %cst_110 : f32 to vector<4x32xf32>
    %407 = arith.addf %406, %405 : vector<4x32xf32>
    %408 = arith.divf %406, %407 : vector<4x32xf32>
    %409 = vector.extract_strided_slice %400 {offsets = [0, 32], sizes = [4, 32], strides = [1, 1]} : vector<4x96xf32> to vector<4x32xf32>
    %410 = vector.extract_strided_slice %398 {offsets = [0, 32], sizes = [4, 32], strides = [1, 1]} : vector<4x96xf32> to vector<4x32xf32>
    %411 = arith.addf %409, %410 : vector<4x32xf32>
    %412 = arith.negf %411 : vector<4x32xf32>
    %413 = math.exp %412 : vector<4x32xf32>
    %cst_111 = arith.constant 1.000000e+00 : f32
    %414 = vector.broadcast %cst_111 : f32 to vector<4x32xf32>
    %415 = arith.addf %414, %413 : vector<4x32xf32>
    %416 = arith.divf %414, %415 : vector<4x32xf32>
    %417 = vector.extract_strided_slice %400 {offsets = [0, 64], sizes = [4, 32], strides = [1, 1]} : vector<4x96xf32> to vector<4x32xf32>
    %418 = vector.extract_strided_slice %398 {offsets = [0, 64], sizes = [4, 32], strides = [1, 1]} : vector<4x96xf32> to vector<4x32xf32>
    %419 = arith.mulf %408, %418 : vector<4x32xf32>
    %420 = arith.addf %417, %419 : vector<4x32xf32>
    %421 = math.tanh %420 : vector<4x32xf32>
    %cst_112 = arith.constant 1.000000e+00 : f32
    %422 = vector.broadcast %cst_112 : f32 to vector<4x32xf32>
    %423 = arith.subf %422, %416 : vector<4x32xf32>
    %424 = arith.mulf %423, %421 : vector<4x32xf32>
    %425 = arith.mulf %416, %395 : vector<4x32xf32>
    %426 = arith.addf %424, %425 : vector<4x32xf32>
    %cst_113 = arith.constant dense<0.000000e+00> : vector<4x96xf32>
    %427 = tpu.matmul %426, %5, %cst_113 {dimension_numbers = #tpu.dot_dimension_numbers<[1], [0], [0], [1], [0, 0, 1, 1], [], []>} : vector<4x32xf32>, vector<32x96xf32>, vector<4x96xf32> -> vector<4x96xf32>
    %428 = vector.broadcast %7 : vector<1x96xf32> to vector<4x96xf32>
    %429 = arith.addf %427, %428 : vector<4x96xf32>
    %430 = vector.extract_strided_slice %301 {offsets = [0, 4, 0], sizes = [4, 1, 96], strides = [1, 1, 1]} : vector<4x8x96xf32> to vector<4x1x96xf32>
    %431 = vector.shape_cast %430 : vector<4x1x96xf32> to vector<4x96xf32>
    %432 = vector.extract_strided_slice %431 {offsets = [0, 0], sizes = [4, 32], strides = [1, 1]} : vector<4x96xf32> to vector<4x32xf32>
    %433 = vector.extract_strided_slice %429 {offsets = [0, 0], sizes = [4, 32], strides = [1, 1]} : vector<4x96xf32> to vector<4x32xf32>
    %434 = arith.addf %432, %433 : vector<4x32xf32>
    %435 = arith.negf %434 : vector<4x32xf32>
    %436 = math.exp %435 : vector<4x32xf32>
    %cst_114 = arith.constant 1.000000e+00 : f32
    %437 = vector.broadcast %cst_114 : f32 to vector<4x32xf32>
    %438 = arith.addf %437, %436 : vector<4x32xf32>
    %439 = arith.divf %437, %438 : vector<4x32xf32>
    %440 = vector.extract_strided_slice %431 {offsets = [0, 32], sizes = [4, 32], strides = [1, 1]} : vector<4x96xf32> to vector<4x32xf32>
    %441 = vector.extract_strided_slice %429 {offsets = [0, 32], sizes = [4, 32], strides = [1, 1]} : vector<4x96xf32> to vector<4x32xf32>
    %442 = arith.addf %440, %441 : vector<4x32xf32>
    %443 = arith.negf %442 : vector<4x32xf32>
    %444 = math.exp %443 : vector<4x32xf32>
    %cst_115 = arith.constant 1.000000e+00 : f32
    %445 = vector.broadcast %cst_115 : f32 to vector<4x32xf32>
    %446 = arith.addf %445, %444 : vector<4x32xf32>
    %447 = arith.divf %445, %446 : vector<4x32xf32>
    %448 = vector.extract_strided_slice %431 {offsets = [0, 64], sizes = [4, 32], strides = [1, 1]} : vector<4x96xf32> to vector<4x32xf32>
    %449 = vector.extract_strided_slice %429 {offsets = [0, 64], sizes = [4, 32], strides = [1, 1]} : vector<4x96xf32> to vector<4x32xf32>
    %450 = arith.mulf %439, %449 : vector<4x32xf32>
    %451 = arith.addf %448, %450 : vector<4x32xf32>
    %452 = math.tanh %451 : vector<4x32xf32>
    %cst_116 = arith.constant 1.000000e+00 : f32
    %453 = vector.broadcast %cst_116 : f32 to vector<4x32xf32>
    %454 = arith.subf %453, %447 : vector<4x32xf32>
    %455 = arith.mulf %454, %452 : vector<4x32xf32>
    %456 = arith.mulf %447, %426 : vector<4x32xf32>
    %457 = arith.addf %455, %456 : vector<4x32xf32>
    %cst_117 = arith.constant dense<0.000000e+00> : vector<4x96xf32>
    %458 = tpu.matmul %457, %5, %cst_117 {dimension_numbers = #tpu.dot_dimension_numbers<[1], [0], [0], [1], [0, 0, 1, 1], [], []>} : vector<4x32xf32>, vector<32x96xf32>, vector<4x96xf32> -> vector<4x96xf32>
    %459 = vector.broadcast %7 : vector<1x96xf32> to vector<4x96xf32>
    %460 = arith.addf %458, %459 : vector<4x96xf32>
    %461 = vector.extract_strided_slice %301 {offsets = [0, 5, 0], sizes = [4, 1, 96], strides = [1, 1, 1]} : vector<4x8x96xf32> to vector<4x1x96xf32>
    %462 = vector.shape_cast %461 : vector<4x1x96xf32> to vector<4x96xf32>
    %463 = vector.extract_strided_slice %462 {offsets = [0, 0], sizes = [4, 32], strides = [1, 1]} : vector<4x96xf32> to vector<4x32xf32>
    %464 = vector.extract_strided_slice %460 {offsets = [0, 0], sizes = [4, 32], strides = [1, 1]} : vector<4x96xf32> to vector<4x32xf32>
    %465 = arith.addf %463, %464 : vector<4x32xf32>
    %466 = arith.negf %465 : vector<4x32xf32>
    %467 = math.exp %466 : vector<4x32xf32>
    %cst_118 = arith.constant 1.000000e+00 : f32
    %468 = vector.broadcast %cst_118 : f32 to vector<4x32xf32>
    %469 = arith.addf %468, %467 : vector<4x32xf32>
    %470 = arith.divf %468, %469 : vector<4x32xf32>
    %471 = vector.extract_strided_slice %462 {offsets = [0, 32], sizes = [4, 32], strides = [1, 1]} : vector<4x96xf32> to vector<4x32xf32>
    %472 = vector.extract_strided_slice %460 {offsets = [0, 32], sizes = [4, 32], strides = [1, 1]} : vector<4x96xf32> to vector<4x32xf32>
    %473 = arith.addf %471, %472 : vector<4x32xf32>
    %474 = arith.negf %473 : vector<4x32xf32>
    %475 = math.exp %474 : vector<4x32xf32>
    %cst_119 = arith.constant 1.000000e+00 : f32
    %476 = vector.broadcast %cst_119 : f32 to vector<4x32xf32>
    %477 = arith.addf %476, %475 : vector<4x32xf32>
    %478 = arith.divf %476, %477 : vector<4x32xf32>
    %479 = vector.extract_strided_slice %462 {offsets = [0, 64], sizes = [4, 32], strides = [1, 1]} : vector<4x96xf32> to vector<4x32xf32>
    %480 = vector.extract_strided_slice %460 {offsets = [0, 64], sizes = [4, 32], strides = [1, 1]} : vector<4x96xf32> to vector<4x32xf32>
    %481 = arith.mulf %470, %480 : vector<4x32xf32>
    %482 = arith.addf %479, %481 : vector<4x32xf32>
    %483 = math.tanh %482 : vector<4x32xf32>
    %cst_120 = arith.constant 1.000000e+00 : f32
    %484 = vector.broadcast %cst_120 : f32 to vector<4x32xf32>
    %485 = arith.subf %484, %478 : vector<4x32xf32>
    %486 = arith.mulf %485, %483 : vector<4x32xf32>
    %487 = arith.mulf %478, %457 : vector<4x32xf32>
    %488 = arith.addf %486, %487 : vector<4x32xf32>
    %cst_121 = arith.constant dense<0.000000e+00> : vector<4x96xf32>
    %489 = tpu.matmul %488, %5, %cst_121 {dimension_numbers = #tpu.dot_dimension_numbers<[1], [0], [0], [1], [0, 0, 1, 1], [], []>} : vector<4x32xf32>, vector<32x96xf32>, vector<4x96xf32> -> vector<4x96xf32>
    %490 = vector.broadcast %7 : vector<1x96xf32> to vector<4x96xf32>
    %491 = arith.addf %489, %490 : vector<4x96xf32>
    %492 = vector.extract_strided_slice %301 {offsets = [0, 6, 0], sizes = [4, 1, 96], strides = [1, 1, 1]} : vector<4x8x96xf32> to vector<4x1x96xf32>
    %493 = vector.shape_cast %492 : vector<4x1x96xf32> to vector<4x96xf32>
    %494 = vector.extract_strided_slice %493 {offsets = [0, 0], sizes = [4, 32], strides = [1, 1]} : vector<4x96xf32> to vector<4x32xf32>
    %495 = vector.extract_strided_slice %491 {offsets = [0, 0], sizes = [4, 32], strides = [1, 1]} : vector<4x96xf32> to vector<4x32xf32>
    %496 = arith.addf %494, %495 : vector<4x32xf32>
    %497 = arith.negf %496 : vector<4x32xf32>
    %498 = math.exp %497 : vector<4x32xf32>
    %cst_122 = arith.constant 1.000000e+00 : f32
    %499 = vector.broadcast %cst_122 : f32 to vector<4x32xf32>
    %500 = arith.addf %499, %498 : vector<4x32xf32>
    %501 = arith.divf %499, %500 : vector<4x32xf32>
    %502 = vector.extract_strided_slice %493 {offsets = [0, 32], sizes = [4, 32], strides = [1, 1]} : vector<4x96xf32> to vector<4x32xf32>
    %503 = vector.extract_strided_slice %491 {offsets = [0, 32], sizes = [4, 32], strides = [1, 1]} : vector<4x96xf32> to vector<4x32xf32>
    %504 = arith.addf %502, %503 : vector<4x32xf32>
    %505 = arith.negf %504 : vector<4x32xf32>
    %506 = math.exp %505 : vector<4x32xf32>
    %cst_123 = arith.constant 1.000000e+00 : f32
    %507 = vector.broadcast %cst_123 : f32 to vector<4x32xf32>
    %508 = arith.addf %507, %506 : vector<4x32xf32>
    %509 = arith.divf %507, %508 : vector<4x32xf32>
    %510 = vector.extract_strided_slice %493 {offsets = [0, 64], sizes = [4, 32], strides = [1, 1]} : vector<4x96xf32> to vector<4x32xf32>
    %511 = vector.extract_strided_slice %491 {offsets = [0, 64], sizes = [4, 32], strides = [1, 1]} : vector<4x96xf32> to vector<4x32xf32>
    %512 = arith.mulf %501, %511 : vector<4x32xf32>
    %513 = arith.addf %510, %512 : vector<4x32xf32>
    %514 = math.tanh %513 : vector<4x32xf32>
    %cst_124 = arith.constant 1.000000e+00 : f32
    %515 = vector.broadcast %cst_124 : f32 to vector<4x32xf32>
    %516 = arith.subf %515, %509 : vector<4x32xf32>
    %517 = arith.mulf %516, %514 : vector<4x32xf32>
    %518 = arith.mulf %509, %488 : vector<4x32xf32>
    %519 = arith.addf %517, %518 : vector<4x32xf32>
    %cst_125 = arith.constant dense<0.000000e+00> : vector<4x96xf32>
    %520 = tpu.matmul %519, %5, %cst_125 {dimension_numbers = #tpu.dot_dimension_numbers<[1], [0], [0], [1], [0, 0, 1, 1], [], []>} : vector<4x32xf32>, vector<32x96xf32>, vector<4x96xf32> -> vector<4x96xf32>
    %521 = vector.broadcast %7 : vector<1x96xf32> to vector<4x96xf32>
    %522 = arith.addf %520, %521 : vector<4x96xf32>
    %523 = vector.extract_strided_slice %301 {offsets = [0, 7, 0], sizes = [4, 1, 96], strides = [1, 1, 1]} : vector<4x8x96xf32> to vector<4x1x96xf32>
    %524 = vector.shape_cast %523 : vector<4x1x96xf32> to vector<4x96xf32>
    %525 = vector.extract_strided_slice %524 {offsets = [0, 0], sizes = [4, 32], strides = [1, 1]} : vector<4x96xf32> to vector<4x32xf32>
    %526 = vector.extract_strided_slice %522 {offsets = [0, 0], sizes = [4, 32], strides = [1, 1]} : vector<4x96xf32> to vector<4x32xf32>
    %527 = arith.addf %525, %526 : vector<4x32xf32>
    %528 = arith.negf %527 : vector<4x32xf32>
    %529 = math.exp %528 : vector<4x32xf32>
    %cst_126 = arith.constant 1.000000e+00 : f32
    %530 = vector.broadcast %cst_126 : f32 to vector<4x32xf32>
    %531 = arith.addf %530, %529 : vector<4x32xf32>
    %532 = arith.divf %530, %531 : vector<4x32xf32>
    %533 = vector.extract_strided_slice %524 {offsets = [0, 32], sizes = [4, 32], strides = [1, 1]} : vector<4x96xf32> to vector<4x32xf32>
    %534 = vector.extract_strided_slice %522 {offsets = [0, 32], sizes = [4, 32], strides = [1, 1]} : vector<4x96xf32> to vector<4x32xf32>
    %535 = arith.addf %533, %534 : vector<4x32xf32>
    %536 = arith.negf %535 : vector<4x32xf32>
    %537 = math.exp %536 : vector<4x32xf32>
    %cst_127 = arith.constant 1.000000e+00 : f32
    %538 = vector.broadcast %cst_127 : f32 to vector<4x32xf32>
    %539 = arith.addf %538, %537 : vector<4x32xf32>
    %540 = arith.divf %538, %539 : vector<4x32xf32>
    %541 = vector.extract_strided_slice %524 {offsets = [0, 64], sizes = [4, 32], strides = [1, 1]} : vector<4x96xf32> to vector<4x32xf32>
    %542 = vector.extract_strided_slice %522 {offsets = [0, 64], sizes = [4, 32], strides = [1, 1]} : vector<4x96xf32> to vector<4x32xf32>
    %543 = arith.mulf %532, %542 : vector<4x32xf32>
    %544 = arith.addf %541, %543 : vector<4x32xf32>
    %545 = math.tanh %544 : vector<4x32xf32>
    %cst_128 = arith.constant 1.000000e+00 : f32
    %546 = vector.broadcast %cst_128 : f32 to vector<4x32xf32>
    %547 = arith.subf %546, %540 : vector<4x32xf32>
    %548 = arith.mulf %547, %545 : vector<4x32xf32>
    %549 = arith.mulf %540, %519 : vector<4x32xf32>
    %550 = arith.addf %548, %549 : vector<4x32xf32>
    %551 = vector.shape_cast %333 : vector<4x32xf32> to vector<4x1x32xf32>
    %552 = vector.shape_cast %364 : vector<4x32xf32> to vector<4x1x32xf32>
    %553 = vector.shape_cast %395 : vector<4x32xf32> to vector<4x1x32xf32>
    %554 = vector.shape_cast %426 : vector<4x32xf32> to vector<4x1x32xf32>
    %555 = vector.shape_cast %457 : vector<4x32xf32> to vector<4x1x32xf32>
    %556 = vector.shape_cast %488 : vector<4x32xf32> to vector<4x1x32xf32>
    %557 = vector.shape_cast %519 : vector<4x32xf32> to vector<4x1x32xf32>
    %558 = vector.shape_cast %550 : vector<4x32xf32> to vector<4x1x32xf32>
    %559 = tpu.concatenate %551, %552, %553, %554, %555, %556, %557, %558 in 1 : vector<4x1x32xf32>, vector<4x1x32xf32>, vector<4x1x32xf32>, vector<4x1x32xf32>, vector<4x1x32xf32>, vector<4x1x32xf32>, vector<4x1x32xf32>, vector<4x1x32xf32> -> vector<4x8x32xf32>
    %560 = vector.extract_strided_slice %33 {offsets = [0, 0, 0], sizes = [4, 8, 10], strides = [1, 1, 1]} : vector<4x8x18xf32> to vector<4x8x10xf32>
    %561 = vector.shape_cast %560 : vector<4x8x10xf32> to vector<32x10xf32>
    %cst_129 = arith.constant dense<0.000000e+00> : vector<32x96xf32>
    %562 = tpu.matmul %561, %8, %cst_129 {dimension_numbers = #tpu.dot_dimension_numbers<[1], [0], [0], [1], [0, 0, 1, 1], [], []>} : vector<32x10xf32>, vector<10x96xf32>, vector<32x96xf32> -> vector<32x96xf32>
    %563 = vector.broadcast %10 : vector<1x96xf32> to vector<32x96xf32>
    %564 = arith.addf %562, %563 : vector<32x96xf32>
    %565 = vector.shape_cast %564 : vector<32x96xf32> to vector<4x8x96xf32>
    %cst_130 = arith.constant 0.000000e+00 : f32
    %566 = vector.broadcast %cst_130 : f32 to vector<4x32xf32>
    %cst_131 = arith.constant dense<0.000000e+00> : vector<4x96xf32>
    %567 = tpu.matmul %566, %9, %cst_131 {dimension_numbers = #tpu.dot_dimension_numbers<[1], [0], [0], [1], [0, 0, 1, 1], [], []>} : vector<4x32xf32>, vector<32x96xf32>, vector<4x96xf32> -> vector<4x96xf32>
    %568 = vector.broadcast %11 : vector<1x96xf32> to vector<4x96xf32>
    %569 = arith.addf %567, %568 : vector<4x96xf32>
    %570 = vector.extract_strided_slice %565 {offsets = [0, 0, 0], sizes = [4, 1, 96], strides = [1, 1, 1]} : vector<4x8x96xf32> to vector<4x1x96xf32>
    %571 = vector.shape_cast %570 : vector<4x1x96xf32> to vector<4x96xf32>
    %572 = vector.extract_strided_slice %571 {offsets = [0, 0], sizes = [4, 32], strides = [1, 1]} : vector<4x96xf32> to vector<4x32xf32>
    %573 = vector.extract_strided_slice %569 {offsets = [0, 0], sizes = [4, 32], strides = [1, 1]} : vector<4x96xf32> to vector<4x32xf32>
    %574 = arith.addf %572, %573 : vector<4x32xf32>
    %575 = arith.negf %574 : vector<4x32xf32>
    %576 = math.exp %575 : vector<4x32xf32>
    %cst_132 = arith.constant 1.000000e+00 : f32
    %577 = vector.broadcast %cst_132 : f32 to vector<4x32xf32>
    %578 = arith.addf %577, %576 : vector<4x32xf32>
    %579 = arith.divf %577, %578 : vector<4x32xf32>
    %580 = vector.extract_strided_slice %571 {offsets = [0, 32], sizes = [4, 32], strides = [1, 1]} : vector<4x96xf32> to vector<4x32xf32>
    %581 = vector.extract_strided_slice %569 {offsets = [0, 32], sizes = [4, 32], strides = [1, 1]} : vector<4x96xf32> to vector<4x32xf32>
    %582 = arith.addf %580, %581 : vector<4x32xf32>
    %583 = arith.negf %582 : vector<4x32xf32>
    %584 = math.exp %583 : vector<4x32xf32>
    %cst_133 = arith.constant 1.000000e+00 : f32
    %585 = vector.broadcast %cst_133 : f32 to vector<4x32xf32>
    %586 = arith.addf %585, %584 : vector<4x32xf32>
    %587 = arith.divf %585, %586 : vector<4x32xf32>
    %588 = vector.extract_strided_slice %571 {offsets = [0, 64], sizes = [4, 32], strides = [1, 1]} : vector<4x96xf32> to vector<4x32xf32>
    %589 = vector.extract_strided_slice %569 {offsets = [0, 64], sizes = [4, 32], strides = [1, 1]} : vector<4x96xf32> to vector<4x32xf32>
    %590 = arith.mulf %579, %589 : vector<4x32xf32>
    %591 = arith.addf %588, %590 : vector<4x32xf32>
    %592 = math.tanh %591 : vector<4x32xf32>
    %cst_134 = arith.constant 1.000000e+00 : f32
    %593 = vector.broadcast %cst_134 : f32 to vector<4x32xf32>
    %594 = arith.subf %593, %587 : vector<4x32xf32>
    %595 = arith.mulf %594, %592 : vector<4x32xf32>
    %596 = arith.mulf %587, %566 : vector<4x32xf32>
    %597 = arith.addf %595, %596 : vector<4x32xf32>
    %cst_135 = arith.constant dense<0.000000e+00> : vector<4x96xf32>
    %598 = tpu.matmul %597, %9, %cst_135 {dimension_numbers = #tpu.dot_dimension_numbers<[1], [0], [0], [1], [0, 0, 1, 1], [], []>} : vector<4x32xf32>, vector<32x96xf32>, vector<4x96xf32> -> vector<4x96xf32>
    %599 = vector.broadcast %11 : vector<1x96xf32> to vector<4x96xf32>
    %600 = arith.addf %598, %599 : vector<4x96xf32>
    %601 = vector.extract_strided_slice %565 {offsets = [0, 1, 0], sizes = [4, 1, 96], strides = [1, 1, 1]} : vector<4x8x96xf32> to vector<4x1x96xf32>
    %602 = vector.shape_cast %601 : vector<4x1x96xf32> to vector<4x96xf32>
    %603 = vector.extract_strided_slice %602 {offsets = [0, 0], sizes = [4, 32], strides = [1, 1]} : vector<4x96xf32> to vector<4x32xf32>
    %604 = vector.extract_strided_slice %600 {offsets = [0, 0], sizes = [4, 32], strides = [1, 1]} : vector<4x96xf32> to vector<4x32xf32>
    %605 = arith.addf %603, %604 : vector<4x32xf32>
    %606 = arith.negf %605 : vector<4x32xf32>
    %607 = math.exp %606 : vector<4x32xf32>
    %cst_136 = arith.constant 1.000000e+00 : f32
    %608 = vector.broadcast %cst_136 : f32 to vector<4x32xf32>
    %609 = arith.addf %608, %607 : vector<4x32xf32>
    %610 = arith.divf %608, %609 : vector<4x32xf32>
    %611 = vector.extract_strided_slice %602 {offsets = [0, 32], sizes = [4, 32], strides = [1, 1]} : vector<4x96xf32> to vector<4x32xf32>
    %612 = vector.extract_strided_slice %600 {offsets = [0, 32], sizes = [4, 32], strides = [1, 1]} : vector<4x96xf32> to vector<4x32xf32>
    %613 = arith.addf %611, %612 : vector<4x32xf32>
    %614 = arith.negf %613 : vector<4x32xf32>
    %615 = math.exp %614 : vector<4x32xf32>
    %cst_137 = arith.constant 1.000000e+00 : f32
    %616 = vector.broadcast %cst_137 : f32 to vector<4x32xf32>
    %617 = arith.addf %616, %615 : vector<4x32xf32>
    %618 = arith.divf %616, %617 : vector<4x32xf32>
    %619 = vector.extract_strided_slice %602 {offsets = [0, 64], sizes = [4, 32], strides = [1, 1]} : vector<4x96xf32> to vector<4x32xf32>
    %620 = vector.extract_strided_slice %600 {offsets = [0, 64], sizes = [4, 32], strides = [1, 1]} : vector<4x96xf32> to vector<4x32xf32>
    %621 = arith.mulf %610, %620 : vector<4x32xf32>
    %622 = arith.addf %619, %621 : vector<4x32xf32>
    %623 = math.tanh %622 : vector<4x32xf32>
    %cst_138 = arith.constant 1.000000e+00 : f32
    %624 = vector.broadcast %cst_138 : f32 to vector<4x32xf32>
    %625 = arith.subf %624, %618 : vector<4x32xf32>
    %626 = arith.mulf %625, %623 : vector<4x32xf32>
    %627 = arith.mulf %618, %597 : vector<4x32xf32>
    %628 = arith.addf %626, %627 : vector<4x32xf32>
    %cst_139 = arith.constant dense<0.000000e+00> : vector<4x96xf32>
    %629 = tpu.matmul %628, %9, %cst_139 {dimension_numbers = #tpu.dot_dimension_numbers<[1], [0], [0], [1], [0, 0, 1, 1], [], []>} : vector<4x32xf32>, vector<32x96xf32>, vector<4x96xf32> -> vector<4x96xf32>
    %630 = vector.broadcast %11 : vector<1x96xf32> to vector<4x96xf32>
    %631 = arith.addf %629, %630 : vector<4x96xf32>
    %632 = vector.extract_strided_slice %565 {offsets = [0, 2, 0], sizes = [4, 1, 96], strides = [1, 1, 1]} : vector<4x8x96xf32> to vector<4x1x96xf32>
    %633 = vector.shape_cast %632 : vector<4x1x96xf32> to vector<4x96xf32>
    %634 = vector.extract_strided_slice %633 {offsets = [0, 0], sizes = [4, 32], strides = [1, 1]} : vector<4x96xf32> to vector<4x32xf32>
    %635 = vector.extract_strided_slice %631 {offsets = [0, 0], sizes = [4, 32], strides = [1, 1]} : vector<4x96xf32> to vector<4x32xf32>
    %636 = arith.addf %634, %635 : vector<4x32xf32>
    %637 = arith.negf %636 : vector<4x32xf32>
    %638 = math.exp %637 : vector<4x32xf32>
    %cst_140 = arith.constant 1.000000e+00 : f32
    %639 = vector.broadcast %cst_140 : f32 to vector<4x32xf32>
    %640 = arith.addf %639, %638 : vector<4x32xf32>
    %641 = arith.divf %639, %640 : vector<4x32xf32>
    %642 = vector.extract_strided_slice %633 {offsets = [0, 32], sizes = [4, 32], strides = [1, 1]} : vector<4x96xf32> to vector<4x32xf32>
    %643 = vector.extract_strided_slice %631 {offsets = [0, 32], sizes = [4, 32], strides = [1, 1]} : vector<4x96xf32> to vector<4x32xf32>
    %644 = arith.addf %642, %643 : vector<4x32xf32>
    %645 = arith.negf %644 : vector<4x32xf32>
    %646 = math.exp %645 : vector<4x32xf32>
    %cst_141 = arith.constant 1.000000e+00 : f32
    %647 = vector.broadcast %cst_141 : f32 to vector<4x32xf32>
    %648 = arith.addf %647, %646 : vector<4x32xf32>
    %649 = arith.divf %647, %648 : vector<4x32xf32>
    %650 = vector.extract_strided_slice %633 {offsets = [0, 64], sizes = [4, 32], strides = [1, 1]} : vector<4x96xf32> to vector<4x32xf32>
    %651 = vector.extract_strided_slice %631 {offsets = [0, 64], sizes = [4, 32], strides = [1, 1]} : vector<4x96xf32> to vector<4x32xf32>
    %652 = arith.mulf %641, %651 : vector<4x32xf32>
    %653 = arith.addf %650, %652 : vector<4x32xf32>
    %654 = math.tanh %653 : vector<4x32xf32>
    %cst_142 = arith.constant 1.000000e+00 : f32
    %655 = vector.broadcast %cst_142 : f32 to vector<4x32xf32>
    %656 = arith.subf %655, %649 : vector<4x32xf32>
    %657 = arith.mulf %656, %654 : vector<4x32xf32>
    %658 = arith.mulf %649, %628 : vector<4x32xf32>
    %659 = arith.addf %657, %658 : vector<4x32xf32>
    %cst_143 = arith.constant dense<0.000000e+00> : vector<4x96xf32>
    %660 = tpu.matmul %659, %9, %cst_143 {dimension_numbers = #tpu.dot_dimension_numbers<[1], [0], [0], [1], [0, 0, 1, 1], [], []>} : vector<4x32xf32>, vector<32x96xf32>, vector<4x96xf32> -> vector<4x96xf32>
    %661 = vector.broadcast %11 : vector<1x96xf32> to vector<4x96xf32>
    %662 = arith.addf %660, %661 : vector<4x96xf32>
    %663 = vector.extract_strided_slice %565 {offsets = [0, 3, 0], sizes = [4, 1, 96], strides = [1, 1, 1]} : vector<4x8x96xf32> to vector<4x1x96xf32>
    %664 = vector.shape_cast %663 : vector<4x1x96xf32> to vector<4x96xf32>
    %665 = vector.extract_strided_slice %664 {offsets = [0, 0], sizes = [4, 32], strides = [1, 1]} : vector<4x96xf32> to vector<4x32xf32>
    %666 = vector.extract_strided_slice %662 {offsets = [0, 0], sizes = [4, 32], strides = [1, 1]} : vector<4x96xf32> to vector<4x32xf32>
    %667 = arith.addf %665, %666 : vector<4x32xf32>
    %668 = arith.negf %667 : vector<4x32xf32>
    %669 = math.exp %668 : vector<4x32xf32>
    %cst_144 = arith.constant 1.000000e+00 : f32
    %670 = vector.broadcast %cst_144 : f32 to vector<4x32xf32>
    %671 = arith.addf %670, %669 : vector<4x32xf32>
    %672 = arith.divf %670, %671 : vector<4x32xf32>
    %673 = vector.extract_strided_slice %664 {offsets = [0, 32], sizes = [4, 32], strides = [1, 1]} : vector<4x96xf32> to vector<4x32xf32>
    %674 = vector.extract_strided_slice %662 {offsets = [0, 32], sizes = [4, 32], strides = [1, 1]} : vector<4x96xf32> to vector<4x32xf32>
    %675 = arith.addf %673, %674 : vector<4x32xf32>
    %676 = arith.negf %675 : vector<4x32xf32>
    %677 = math.exp %676 : vector<4x32xf32>
    %cst_145 = arith.constant 1.000000e+00 : f32
    %678 = vector.broadcast %cst_145 : f32 to vector<4x32xf32>
    %679 = arith.addf %678, %677 : vector<4x32xf32>
    %680 = arith.divf %678, %679 : vector<4x32xf32>
    %681 = vector.extract_strided_slice %664 {offsets = [0, 64], sizes = [4, 32], strides = [1, 1]} : vector<4x96xf32> to vector<4x32xf32>
    %682 = vector.extract_strided_slice %662 {offsets = [0, 64], sizes = [4, 32], strides = [1, 1]} : vector<4x96xf32> to vector<4x32xf32>
    %683 = arith.mulf %672, %682 : vector<4x32xf32>
    %684 = arith.addf %681, %683 : vector<4x32xf32>
    %685 = math.tanh %684 : vector<4x32xf32>
    %cst_146 = arith.constant 1.000000e+00 : f32
    %686 = vector.broadcast %cst_146 : f32 to vector<4x32xf32>
    %687 = arith.subf %686, %680 : vector<4x32xf32>
    %688 = arith.mulf %687, %685 : vector<4x32xf32>
    %689 = arith.mulf %680, %659 : vector<4x32xf32>
    %690 = arith.addf %688, %689 : vector<4x32xf32>
    %cst_147 = arith.constant dense<0.000000e+00> : vector<4x96xf32>
    %691 = tpu.matmul %690, %9, %cst_147 {dimension_numbers = #tpu.dot_dimension_numbers<[1], [0], [0], [1], [0, 0, 1, 1], [], []>} : vector<4x32xf32>, vector<32x96xf32>, vector<4x96xf32> -> vector<4x96xf32>
    %692 = vector.broadcast %11 : vector<1x96xf32> to vector<4x96xf32>
    %693 = arith.addf %691, %692 : vector<4x96xf32>
    %694 = vector.extract_strided_slice %565 {offsets = [0, 4, 0], sizes = [4, 1, 96], strides = [1, 1, 1]} : vector<4x8x96xf32> to vector<4x1x96xf32>
    %695 = vector.shape_cast %694 : vector<4x1x96xf32> to vector<4x96xf32>
    %696 = vector.extract_strided_slice %695 {offsets = [0, 0], sizes = [4, 32], strides = [1, 1]} : vector<4x96xf32> to vector<4x32xf32>
    %697 = vector.extract_strided_slice %693 {offsets = [0, 0], sizes = [4, 32], strides = [1, 1]} : vector<4x96xf32> to vector<4x32xf32>
    %698 = arith.addf %696, %697 : vector<4x32xf32>
    %699 = arith.negf %698 : vector<4x32xf32>
    %700 = math.exp %699 : vector<4x32xf32>
    %cst_148 = arith.constant 1.000000e+00 : f32
    %701 = vector.broadcast %cst_148 : f32 to vector<4x32xf32>
    %702 = arith.addf %701, %700 : vector<4x32xf32>
    %703 = arith.divf %701, %702 : vector<4x32xf32>
    %704 = vector.extract_strided_slice %695 {offsets = [0, 32], sizes = [4, 32], strides = [1, 1]} : vector<4x96xf32> to vector<4x32xf32>
    %705 = vector.extract_strided_slice %693 {offsets = [0, 32], sizes = [4, 32], strides = [1, 1]} : vector<4x96xf32> to vector<4x32xf32>
    %706 = arith.addf %704, %705 : vector<4x32xf32>
    %707 = arith.negf %706 : vector<4x32xf32>
    %708 = math.exp %707 : vector<4x32xf32>
    %cst_149 = arith.constant 1.000000e+00 : f32
    %709 = vector.broadcast %cst_149 : f32 to vector<4x32xf32>
    %710 = arith.addf %709, %708 : vector<4x32xf32>
    %711 = arith.divf %709, %710 : vector<4x32xf32>
    %712 = vector.extract_strided_slice %695 {offsets = [0, 64], sizes = [4, 32], strides = [1, 1]} : vector<4x96xf32> to vector<4x32xf32>
    %713 = vector.extract_strided_slice %693 {offsets = [0, 64], sizes = [4, 32], strides = [1, 1]} : vector<4x96xf32> to vector<4x32xf32>
    %714 = arith.mulf %703, %713 : vector<4x32xf32>
    %715 = arith.addf %712, %714 : vector<4x32xf32>
    %716 = math.tanh %715 : vector<4x32xf32>
    %cst_150 = arith.constant 1.000000e+00 : f32
    %717 = vector.broadcast %cst_150 : f32 to vector<4x32xf32>
    %718 = arith.subf %717, %711 : vector<4x32xf32>
    %719 = arith.mulf %718, %716 : vector<4x32xf32>
    %720 = arith.mulf %711, %690 : vector<4x32xf32>
    %721 = arith.addf %719, %720 : vector<4x32xf32>
    %cst_151 = arith.constant dense<0.000000e+00> : vector<4x96xf32>
    %722 = tpu.matmul %721, %9, %cst_151 {dimension_numbers = #tpu.dot_dimension_numbers<[1], [0], [0], [1], [0, 0, 1, 1], [], []>} : vector<4x32xf32>, vector<32x96xf32>, vector<4x96xf32> -> vector<4x96xf32>
    %723 = vector.broadcast %11 : vector<1x96xf32> to vector<4x96xf32>
    %724 = arith.addf %722, %723 : vector<4x96xf32>
    %725 = vector.extract_strided_slice %565 {offsets = [0, 5, 0], sizes = [4, 1, 96], strides = [1, 1, 1]} : vector<4x8x96xf32> to vector<4x1x96xf32>
    %726 = vector.shape_cast %725 : vector<4x1x96xf32> to vector<4x96xf32>
    %727 = vector.extract_strided_slice %726 {offsets = [0, 0], sizes = [4, 32], strides = [1, 1]} : vector<4x96xf32> to vector<4x32xf32>
    %728 = vector.extract_strided_slice %724 {offsets = [0, 0], sizes = [4, 32], strides = [1, 1]} : vector<4x96xf32> to vector<4x32xf32>
    %729 = arith.addf %727, %728 : vector<4x32xf32>
    %730 = arith.negf %729 : vector<4x32xf32>
    %731 = math.exp %730 : vector<4x32xf32>
    %cst_152 = arith.constant 1.000000e+00 : f32
    %732 = vector.broadcast %cst_152 : f32 to vector<4x32xf32>
    %733 = arith.addf %732, %731 : vector<4x32xf32>
    %734 = arith.divf %732, %733 : vector<4x32xf32>
    %735 = vector.extract_strided_slice %726 {offsets = [0, 32], sizes = [4, 32], strides = [1, 1]} : vector<4x96xf32> to vector<4x32xf32>
    %736 = vector.extract_strided_slice %724 {offsets = [0, 32], sizes = [4, 32], strides = [1, 1]} : vector<4x96xf32> to vector<4x32xf32>
    %737 = arith.addf %735, %736 : vector<4x32xf32>
    %738 = arith.negf %737 : vector<4x32xf32>
    %739 = math.exp %738 : vector<4x32xf32>
    %cst_153 = arith.constant 1.000000e+00 : f32
    %740 = vector.broadcast %cst_153 : f32 to vector<4x32xf32>
    %741 = arith.addf %740, %739 : vector<4x32xf32>
    %742 = arith.divf %740, %741 : vector<4x32xf32>
    %743 = vector.extract_strided_slice %726 {offsets = [0, 64], sizes = [4, 32], strides = [1, 1]} : vector<4x96xf32> to vector<4x32xf32>
    %744 = vector.extract_strided_slice %724 {offsets = [0, 64], sizes = [4, 32], strides = [1, 1]} : vector<4x96xf32> to vector<4x32xf32>
    %745 = arith.mulf %734, %744 : vector<4x32xf32>
    %746 = arith.addf %743, %745 : vector<4x32xf32>
    %747 = math.tanh %746 : vector<4x32xf32>
    %cst_154 = arith.constant 1.000000e+00 : f32
    %748 = vector.broadcast %cst_154 : f32 to vector<4x32xf32>
    %749 = arith.subf %748, %742 : vector<4x32xf32>
    %750 = arith.mulf %749, %747 : vector<4x32xf32>
    %751 = arith.mulf %742, %721 : vector<4x32xf32>
    %752 = arith.addf %750, %751 : vector<4x32xf32>
    %cst_155 = arith.constant dense<0.000000e+00> : vector<4x96xf32>
    %753 = tpu.matmul %752, %9, %cst_155 {dimension_numbers = #tpu.dot_dimension_numbers<[1], [0], [0], [1], [0, 0, 1, 1], [], []>} : vector<4x32xf32>, vector<32x96xf32>, vector<4x96xf32> -> vector<4x96xf32>
    %754 = vector.broadcast %11 : vector<1x96xf32> to vector<4x96xf32>
    %755 = arith.addf %753, %754 : vector<4x96xf32>
    %756 = vector.extract_strided_slice %565 {offsets = [0, 6, 0], sizes = [4, 1, 96], strides = [1, 1, 1]} : vector<4x8x96xf32> to vector<4x1x96xf32>
    %757 = vector.shape_cast %756 : vector<4x1x96xf32> to vector<4x96xf32>
    %758 = vector.extract_strided_slice %757 {offsets = [0, 0], sizes = [4, 32], strides = [1, 1]} : vector<4x96xf32> to vector<4x32xf32>
    %759 = vector.extract_strided_slice %755 {offsets = [0, 0], sizes = [4, 32], strides = [1, 1]} : vector<4x96xf32> to vector<4x32xf32>
    %760 = arith.addf %758, %759 : vector<4x32xf32>
    %761 = arith.negf %760 : vector<4x32xf32>
    %762 = math.exp %761 : vector<4x32xf32>
    %cst_156 = arith.constant 1.000000e+00 : f32
    %763 = vector.broadcast %cst_156 : f32 to vector<4x32xf32>
    %764 = arith.addf %763, %762 : vector<4x32xf32>
    %765 = arith.divf %763, %764 : vector<4x32xf32>
    %766 = vector.extract_strided_slice %757 {offsets = [0, 32], sizes = [4, 32], strides = [1, 1]} : vector<4x96xf32> to vector<4x32xf32>
    %767 = vector.extract_strided_slice %755 {offsets = [0, 32], sizes = [4, 32], strides = [1, 1]} : vector<4x96xf32> to vector<4x32xf32>
    %768 = arith.addf %766, %767 : vector<4x32xf32>
    %769 = arith.negf %768 : vector<4x32xf32>
    %770 = math.exp %769 : vector<4x32xf32>
    %cst_157 = arith.constant 1.000000e+00 : f32
    %771 = vector.broadcast %cst_157 : f32 to vector<4x32xf32>
    %772 = arith.addf %771, %770 : vector<4x32xf32>
    %773 = arith.divf %771, %772 : vector<4x32xf32>
    %774 = vector.extract_strided_slice %757 {offsets = [0, 64], sizes = [4, 32], strides = [1, 1]} : vector<4x96xf32> to vector<4x32xf32>
    %775 = vector.extract_strided_slice %755 {offsets = [0, 64], sizes = [4, 32], strides = [1, 1]} : vector<4x96xf32> to vector<4x32xf32>
    %776 = arith.mulf %765, %775 : vector<4x32xf32>
    %777 = arith.addf %774, %776 : vector<4x32xf32>
    %778 = math.tanh %777 : vector<4x32xf32>
    %cst_158 = arith.constant 1.000000e+00 : f32
    %779 = vector.broadcast %cst_158 : f32 to vector<4x32xf32>
    %780 = arith.subf %779, %773 : vector<4x32xf32>
    %781 = arith.mulf %780, %778 : vector<4x32xf32>
    %782 = arith.mulf %773, %752 : vector<4x32xf32>
    %783 = arith.addf %781, %782 : vector<4x32xf32>
    %cst_159 = arith.constant dense<0.000000e+00> : vector<4x96xf32>
    %784 = tpu.matmul %783, %9, %cst_159 {dimension_numbers = #tpu.dot_dimension_numbers<[1], [0], [0], [1], [0, 0, 1, 1], [], []>} : vector<4x32xf32>, vector<32x96xf32>, vector<4x96xf32> -> vector<4x96xf32>
    %785 = vector.broadcast %11 : vector<1x96xf32> to vector<4x96xf32>
    %786 = arith.addf %784, %785 : vector<4x96xf32>
    %787 = vector.extract_strided_slice %565 {offsets = [0, 7, 0], sizes = [4, 1, 96], strides = [1, 1, 1]} : vector<4x8x96xf32> to vector<4x1x96xf32>
    %788 = vector.shape_cast %787 : vector<4x1x96xf32> to vector<4x96xf32>
    %789 = vector.extract_strided_slice %788 {offsets = [0, 0], sizes = [4, 32], strides = [1, 1]} : vector<4x96xf32> to vector<4x32xf32>
    %790 = vector.extract_strided_slice %786 {offsets = [0, 0], sizes = [4, 32], strides = [1, 1]} : vector<4x96xf32> to vector<4x32xf32>
    %791 = arith.addf %789, %790 : vector<4x32xf32>
    %792 = arith.negf %791 : vector<4x32xf32>
    %793 = math.exp %792 : vector<4x32xf32>
    %cst_160 = arith.constant 1.000000e+00 : f32
    %794 = vector.broadcast %cst_160 : f32 to vector<4x32xf32>
    %795 = arith.addf %794, %793 : vector<4x32xf32>
    %796 = arith.divf %794, %795 : vector<4x32xf32>
    %797 = vector.extract_strided_slice %788 {offsets = [0, 32], sizes = [4, 32], strides = [1, 1]} : vector<4x96xf32> to vector<4x32xf32>
    %798 = vector.extract_strided_slice %786 {offsets = [0, 32], sizes = [4, 32], strides = [1, 1]} : vector<4x96xf32> to vector<4x32xf32>
    %799 = arith.addf %797, %798 : vector<4x32xf32>
    %800 = arith.negf %799 : vector<4x32xf32>
    %801 = math.exp %800 : vector<4x32xf32>
    %cst_161 = arith.constant 1.000000e+00 : f32
    %802 = vector.broadcast %cst_161 : f32 to vector<4x32xf32>
    %803 = arith.addf %802, %801 : vector<4x32xf32>
    %804 = arith.divf %802, %803 : vector<4x32xf32>
    %805 = vector.extract_strided_slice %788 {offsets = [0, 64], sizes = [4, 32], strides = [1, 1]} : vector<4x96xf32> to vector<4x32xf32>
    %806 = vector.extract_strided_slice %786 {offsets = [0, 64], sizes = [4, 32], strides = [1, 1]} : vector<4x96xf32> to vector<4x32xf32>
    %807 = arith.mulf %796, %806 : vector<4x32xf32>
    %808 = arith.addf %805, %807 : vector<4x32xf32>
    %809 = math.tanh %808 : vector<4x32xf32>
    %cst_162 = arith.constant 1.000000e+00 : f32
    %810 = vector.broadcast %cst_162 : f32 to vector<4x32xf32>
    %811 = arith.subf %810, %804 : vector<4x32xf32>
    %812 = arith.mulf %811, %809 : vector<4x32xf32>
    %813 = arith.mulf %804, %783 : vector<4x32xf32>
    %814 = arith.addf %812, %813 : vector<4x32xf32>
    %815 = vector.shape_cast %597 : vector<4x32xf32> to vector<4x1x32xf32>
    %816 = vector.shape_cast %628 : vector<4x32xf32> to vector<4x1x32xf32>
    %817 = vector.shape_cast %659 : vector<4x32xf32> to vector<4x1x32xf32>
    %818 = vector.shape_cast %690 : vector<4x32xf32> to vector<4x1x32xf32>
    %819 = vector.shape_cast %721 : vector<4x32xf32> to vector<4x1x32xf32>
    %820 = vector.shape_cast %752 : vector<4x32xf32> to vector<4x1x32xf32>
    %821 = vector.shape_cast %783 : vector<4x32xf32> to vector<4x1x32xf32>
    %822 = vector.shape_cast %814 : vector<4x32xf32> to vector<4x1x32xf32>
    %823 = tpu.concatenate %815, %816, %817, %818, %819, %820, %821, %822 in 1 : vector<4x1x32xf32>, vector<4x1x32xf32>, vector<4x1x32xf32>, vector<4x1x32xf32>, vector<4x1x32xf32>, vector<4x1x32xf32>, vector<4x1x32xf32>, vector<4x1x32xf32> -> vector<4x8x32xf32>
    %824 = vector.shape_cast %823 : vector<4x8x32xf32> to vector<32x32xf32>
    %cst_163 = arith.constant dense<0.000000e+00> : vector<32x96xf32>
    %825 = tpu.matmul %824, %12, %cst_163 {dimension_numbers = #tpu.dot_dimension_numbers<[1], [0], [0], [1], [0, 0, 1, 1], [], []>} : vector<32x32xf32>, vector<32x96xf32>, vector<32x96xf32> -> vector<32x96xf32>
    %826 = vector.broadcast %14 : vector<1x96xf32> to vector<32x96xf32>
    %827 = arith.addf %825, %826 : vector<32x96xf32>
    %828 = vector.shape_cast %827 : vector<32x96xf32> to vector<4x8x96xf32>
    %cst_164 = arith.constant 0.000000e+00 : f32
    %829 = vector.broadcast %cst_164 : f32 to vector<4x32xf32>
    %cst_165 = arith.constant dense<0.000000e+00> : vector<4x96xf32>
    %830 = tpu.matmul %829, %13, %cst_165 {dimension_numbers = #tpu.dot_dimension_numbers<[1], [0], [0], [1], [0, 0, 1, 1], [], []>} : vector<4x32xf32>, vector<32x96xf32>, vector<4x96xf32> -> vector<4x96xf32>
    %831 = vector.broadcast %15 : vector<1x96xf32> to vector<4x96xf32>
    %832 = arith.addf %830, %831 : vector<4x96xf32>
    %833 = vector.extract_strided_slice %828 {offsets = [0, 0, 0], sizes = [4, 1, 96], strides = [1, 1, 1]} : vector<4x8x96xf32> to vector<4x1x96xf32>
    %834 = vector.shape_cast %833 : vector<4x1x96xf32> to vector<4x96xf32>
    %835 = vector.extract_strided_slice %834 {offsets = [0, 0], sizes = [4, 32], strides = [1, 1]} : vector<4x96xf32> to vector<4x32xf32>
    %836 = vector.extract_strided_slice %832 {offsets = [0, 0], sizes = [4, 32], strides = [1, 1]} : vector<4x96xf32> to vector<4x32xf32>
    %837 = arith.addf %835, %836 : vector<4x32xf32>
    %838 = arith.negf %837 : vector<4x32xf32>
    %839 = math.exp %838 : vector<4x32xf32>
    %cst_166 = arith.constant 1.000000e+00 : f32
    %840 = vector.broadcast %cst_166 : f32 to vector<4x32xf32>
    %841 = arith.addf %840, %839 : vector<4x32xf32>
    %842 = arith.divf %840, %841 : vector<4x32xf32>
    %843 = vector.extract_strided_slice %834 {offsets = [0, 32], sizes = [4, 32], strides = [1, 1]} : vector<4x96xf32> to vector<4x32xf32>
    %844 = vector.extract_strided_slice %832 {offsets = [0, 32], sizes = [4, 32], strides = [1, 1]} : vector<4x96xf32> to vector<4x32xf32>
    %845 = arith.addf %843, %844 : vector<4x32xf32>
    %846 = arith.negf %845 : vector<4x32xf32>
    %847 = math.exp %846 : vector<4x32xf32>
    %cst_167 = arith.constant 1.000000e+00 : f32
    %848 = vector.broadcast %cst_167 : f32 to vector<4x32xf32>
    %849 = arith.addf %848, %847 : vector<4x32xf32>
    %850 = arith.divf %848, %849 : vector<4x32xf32>
    %851 = vector.extract_strided_slice %834 {offsets = [0, 64], sizes = [4, 32], strides = [1, 1]} : vector<4x96xf32> to vector<4x32xf32>
    %852 = vector.extract_strided_slice %832 {offsets = [0, 64], sizes = [4, 32], strides = [1, 1]} : vector<4x96xf32> to vector<4x32xf32>
    %853 = arith.mulf %842, %852 : vector<4x32xf32>
    %854 = arith.addf %851, %853 : vector<4x32xf32>
    %855 = math.tanh %854 : vector<4x32xf32>
    %cst_168 = arith.constant 1.000000e+00 : f32
    %856 = vector.broadcast %cst_168 : f32 to vector<4x32xf32>
    %857 = arith.subf %856, %850 : vector<4x32xf32>
    %858 = arith.mulf %857, %855 : vector<4x32xf32>
    %859 = arith.mulf %850, %829 : vector<4x32xf32>
    %860 = arith.addf %858, %859 : vector<4x32xf32>
    %cst_169 = arith.constant dense<0.000000e+00> : vector<4x96xf32>
    %861 = tpu.matmul %860, %13, %cst_169 {dimension_numbers = #tpu.dot_dimension_numbers<[1], [0], [0], [1], [0, 0, 1, 1], [], []>} : vector<4x32xf32>, vector<32x96xf32>, vector<4x96xf32> -> vector<4x96xf32>
    %862 = vector.broadcast %15 : vector<1x96xf32> to vector<4x96xf32>
    %863 = arith.addf %861, %862 : vector<4x96xf32>
    %864 = vector.extract_strided_slice %828 {offsets = [0, 1, 0], sizes = [4, 1, 96], strides = [1, 1, 1]} : vector<4x8x96xf32> to vector<4x1x96xf32>
    %865 = vector.shape_cast %864 : vector<4x1x96xf32> to vector<4x96xf32>
    %866 = vector.extract_strided_slice %865 {offsets = [0, 0], sizes = [4, 32], strides = [1, 1]} : vector<4x96xf32> to vector<4x32xf32>
    %867 = vector.extract_strided_slice %863 {offsets = [0, 0], sizes = [4, 32], strides = [1, 1]} : vector<4x96xf32> to vector<4x32xf32>
    %868 = arith.addf %866, %867 : vector<4x32xf32>
    %869 = arith.negf %868 : vector<4x32xf32>
    %870 = math.exp %869 : vector<4x32xf32>
    %cst_170 = arith.constant 1.000000e+00 : f32
    %871 = vector.broadcast %cst_170 : f32 to vector<4x32xf32>
    %872 = arith.addf %871, %870 : vector<4x32xf32>
    %873 = arith.divf %871, %872 : vector<4x32xf32>
    %874 = vector.extract_strided_slice %865 {offsets = [0, 32], sizes = [4, 32], strides = [1, 1]} : vector<4x96xf32> to vector<4x32xf32>
    %875 = vector.extract_strided_slice %863 {offsets = [0, 32], sizes = [4, 32], strides = [1, 1]} : vector<4x96xf32> to vector<4x32xf32>
    %876 = arith.addf %874, %875 : vector<4x32xf32>
    %877 = arith.negf %876 : vector<4x32xf32>
    %878 = math.exp %877 : vector<4x32xf32>
    %cst_171 = arith.constant 1.000000e+00 : f32
    %879 = vector.broadcast %cst_171 : f32 to vector<4x32xf32>
    %880 = arith.addf %879, %878 : vector<4x32xf32>
    %881 = arith.divf %879, %880 : vector<4x32xf32>
    %882 = vector.extract_strided_slice %865 {offsets = [0, 64], sizes = [4, 32], strides = [1, 1]} : vector<4x96xf32> to vector<4x32xf32>
    %883 = vector.extract_strided_slice %863 {offsets = [0, 64], sizes = [4, 32], strides = [1, 1]} : vector<4x96xf32> to vector<4x32xf32>
    %884 = arith.mulf %873, %883 : vector<4x32xf32>
    %885 = arith.addf %882, %884 : vector<4x32xf32>
    %886 = math.tanh %885 : vector<4x32xf32>
    %cst_172 = arith.constant 1.000000e+00 : f32
    %887 = vector.broadcast %cst_172 : f32 to vector<4x32xf32>
    %888 = arith.subf %887, %881 : vector<4x32xf32>
    %889 = arith.mulf %888, %886 : vector<4x32xf32>
    %890 = arith.mulf %881, %860 : vector<4x32xf32>
    %891 = arith.addf %889, %890 : vector<4x32xf32>
    %cst_173 = arith.constant dense<0.000000e+00> : vector<4x96xf32>
    %892 = tpu.matmul %891, %13, %cst_173 {dimension_numbers = #tpu.dot_dimension_numbers<[1], [0], [0], [1], [0, 0, 1, 1], [], []>} : vector<4x32xf32>, vector<32x96xf32>, vector<4x96xf32> -> vector<4x96xf32>
    %893 = vector.broadcast %15 : vector<1x96xf32> to vector<4x96xf32>
    %894 = arith.addf %892, %893 : vector<4x96xf32>
    %895 = vector.extract_strided_slice %828 {offsets = [0, 2, 0], sizes = [4, 1, 96], strides = [1, 1, 1]} : vector<4x8x96xf32> to vector<4x1x96xf32>
    %896 = vector.shape_cast %895 : vector<4x1x96xf32> to vector<4x96xf32>
    %897 = vector.extract_strided_slice %896 {offsets = [0, 0], sizes = [4, 32], strides = [1, 1]} : vector<4x96xf32> to vector<4x32xf32>
    %898 = vector.extract_strided_slice %894 {offsets = [0, 0], sizes = [4, 32], strides = [1, 1]} : vector<4x96xf32> to vector<4x32xf32>
    %899 = arith.addf %897, %898 : vector<4x32xf32>
    %900 = arith.negf %899 : vector<4x32xf32>
    %901 = math.exp %900 : vector<4x32xf32>
    %cst_174 = arith.constant 1.000000e+00 : f32
    %902 = vector.broadcast %cst_174 : f32 to vector<4x32xf32>
    %903 = arith.addf %902, %901 : vector<4x32xf32>
    %904 = arith.divf %902, %903 : vector<4x32xf32>
    %905 = vector.extract_strided_slice %896 {offsets = [0, 32], sizes = [4, 32], strides = [1, 1]} : vector<4x96xf32> to vector<4x32xf32>
    %906 = vector.extract_strided_slice %894 {offsets = [0, 32], sizes = [4, 32], strides = [1, 1]} : vector<4x96xf32> to vector<4x32xf32>
    %907 = arith.addf %905, %906 : vector<4x32xf32>
    %908 = arith.negf %907 : vector<4x32xf32>
    %909 = math.exp %908 : vector<4x32xf32>
    %cst_175 = arith.constant 1.000000e+00 : f32
    %910 = vector.broadcast %cst_175 : f32 to vector<4x32xf32>
    %911 = arith.addf %910, %909 : vector<4x32xf32>
    %912 = arith.divf %910, %911 : vector<4x32xf32>
    %913 = vector.extract_strided_slice %896 {offsets = [0, 64], sizes = [4, 32], strides = [1, 1]} : vector<4x96xf32> to vector<4x32xf32>
    %914 = vector.extract_strided_slice %894 {offsets = [0, 64], sizes = [4, 32], strides = [1, 1]} : vector<4x96xf32> to vector<4x32xf32>
    %915 = arith.mulf %904, %914 : vector<4x32xf32>
    %916 = arith.addf %913, %915 : vector<4x32xf32>
    %917 = math.tanh %916 : vector<4x32xf32>
    %cst_176 = arith.constant 1.000000e+00 : f32
    %918 = vector.broadcast %cst_176 : f32 to vector<4x32xf32>
    %919 = arith.subf %918, %912 : vector<4x32xf32>
    %920 = arith.mulf %919, %917 : vector<4x32xf32>
    %921 = arith.mulf %912, %891 : vector<4x32xf32>
    %922 = arith.addf %920, %921 : vector<4x32xf32>
    %cst_177 = arith.constant dense<0.000000e+00> : vector<4x96xf32>
    %923 = tpu.matmul %922, %13, %cst_177 {dimension_numbers = #tpu.dot_dimension_numbers<[1], [0], [0], [1], [0, 0, 1, 1], [], []>} : vector<4x32xf32>, vector<32x96xf32>, vector<4x96xf32> -> vector<4x96xf32>
    %924 = vector.broadcast %15 : vector<1x96xf32> to vector<4x96xf32>
    %925 = arith.addf %923, %924 : vector<4x96xf32>
    %926 = vector.extract_strided_slice %828 {offsets = [0, 3, 0], sizes = [4, 1, 96], strides = [1, 1, 1]} : vector<4x8x96xf32> to vector<4x1x96xf32>
    %927 = vector.shape_cast %926 : vector<4x1x96xf32> to vector<4x96xf32>
    %928 = vector.extract_strided_slice %927 {offsets = [0, 0], sizes = [4, 32], strides = [1, 1]} : vector<4x96xf32> to vector<4x32xf32>
    %929 = vector.extract_strided_slice %925 {offsets = [0, 0], sizes = [4, 32], strides = [1, 1]} : vector<4x96xf32> to vector<4x32xf32>
    %930 = arith.addf %928, %929 : vector<4x32xf32>
    %931 = arith.negf %930 : vector<4x32xf32>
    %932 = math.exp %931 : vector<4x32xf32>
    %cst_178 = arith.constant 1.000000e+00 : f32
    %933 = vector.broadcast %cst_178 : f32 to vector<4x32xf32>
    %934 = arith.addf %933, %932 : vector<4x32xf32>
    %935 = arith.divf %933, %934 : vector<4x32xf32>
    %936 = vector.extract_strided_slice %927 {offsets = [0, 32], sizes = [4, 32], strides = [1, 1]} : vector<4x96xf32> to vector<4x32xf32>
    %937 = vector.extract_strided_slice %925 {offsets = [0, 32], sizes = [4, 32], strides = [1, 1]} : vector<4x96xf32> to vector<4x32xf32>
    %938 = arith.addf %936, %937 : vector<4x32xf32>
    %939 = arith.negf %938 : vector<4x32xf32>
    %940 = math.exp %939 : vector<4x32xf32>
    %cst_179 = arith.constant 1.000000e+00 : f32
    %941 = vector.broadcast %cst_179 : f32 to vector<4x32xf32>
    %942 = arith.addf %941, %940 : vector<4x32xf32>
    %943 = arith.divf %941, %942 : vector<4x32xf32>
    %944 = vector.extract_strided_slice %927 {offsets = [0, 64], sizes = [4, 32], strides = [1, 1]} : vector<4x96xf32> to vector<4x32xf32>
    %945 = vector.extract_strided_slice %925 {offsets = [0, 64], sizes = [4, 32], strides = [1, 1]} : vector<4x96xf32> to vector<4x32xf32>
    %946 = arith.mulf %935, %945 : vector<4x32xf32>
    %947 = arith.addf %944, %946 : vector<4x32xf32>
    %948 = math.tanh %947 : vector<4x32xf32>
    %cst_180 = arith.constant 1.000000e+00 : f32
    %949 = vector.broadcast %cst_180 : f32 to vector<4x32xf32>
    %950 = arith.subf %949, %943 : vector<4x32xf32>
    %951 = arith.mulf %950, %948 : vector<4x32xf32>
    %952 = arith.mulf %943, %922 : vector<4x32xf32>
    %953 = arith.addf %951, %952 : vector<4x32xf32>
    %cst_181 = arith.constant dense<0.000000e+00> : vector<4x96xf32>
    %954 = tpu.matmul %953, %13, %cst_181 {dimension_numbers = #tpu.dot_dimension_numbers<[1], [0], [0], [1], [0, 0, 1, 1], [], []>} : vector<4x32xf32>, vector<32x96xf32>, vector<4x96xf32> -> vector<4x96xf32>
    %955 = vector.broadcast %15 : vector<1x96xf32> to vector<4x96xf32>
    %956 = arith.addf %954, %955 : vector<4x96xf32>
    %957 = vector.extract_strided_slice %828 {offsets = [0, 4, 0], sizes = [4, 1, 96], strides = [1, 1, 1]} : vector<4x8x96xf32> to vector<4x1x96xf32>
    %958 = vector.shape_cast %957 : vector<4x1x96xf32> to vector<4x96xf32>
    %959 = vector.extract_strided_slice %958 {offsets = [0, 0], sizes = [4, 32], strides = [1, 1]} : vector<4x96xf32> to vector<4x32xf32>
    %960 = vector.extract_strided_slice %956 {offsets = [0, 0], sizes = [4, 32], strides = [1, 1]} : vector<4x96xf32> to vector<4x32xf32>
    %961 = arith.addf %959, %960 : vector<4x32xf32>
    %962 = arith.negf %961 : vector<4x32xf32>
    %963 = math.exp %962 : vector<4x32xf32>
    %cst_182 = arith.constant 1.000000e+00 : f32
    %964 = vector.broadcast %cst_182 : f32 to vector<4x32xf32>
    %965 = arith.addf %964, %963 : vector<4x32xf32>
    %966 = arith.divf %964, %965 : vector<4x32xf32>
    %967 = vector.extract_strided_slice %958 {offsets = [0, 32], sizes = [4, 32], strides = [1, 1]} : vector<4x96xf32> to vector<4x32xf32>
    %968 = vector.extract_strided_slice %956 {offsets = [0, 32], sizes = [4, 32], strides = [1, 1]} : vector<4x96xf32> to vector<4x32xf32>
    %969 = arith.addf %967, %968 : vector<4x32xf32>
    %970 = arith.negf %969 : vector<4x32xf32>
    %971 = math.exp %970 : vector<4x32xf32>
    %cst_183 = arith.constant 1.000000e+00 : f32
    %972 = vector.broadcast %cst_183 : f32 to vector<4x32xf32>
    %973 = arith.addf %972, %971 : vector<4x32xf32>
    %974 = arith.divf %972, %973 : vector<4x32xf32>
    %975 = vector.extract_strided_slice %958 {offsets = [0, 64], sizes = [4, 32], strides = [1, 1]} : vector<4x96xf32> to vector<4x32xf32>
    %976 = vector.extract_strided_slice %956 {offsets = [0, 64], sizes = [4, 32], strides = [1, 1]} : vector<4x96xf32> to vector<4x32xf32>
    %977 = arith.mulf %966, %976 : vector<4x32xf32>
    %978 = arith.addf %975, %977 : vector<4x32xf32>
    %979 = math.tanh %978 : vector<4x32xf32>
    %cst_184 = arith.constant 1.000000e+00 : f32
    %980 = vector.broadcast %cst_184 : f32 to vector<4x32xf32>
    %981 = arith.subf %980, %974 : vector<4x32xf32>
    %982 = arith.mulf %981, %979 : vector<4x32xf32>
    %983 = arith.mulf %974, %953 : vector<4x32xf32>
    %984 = arith.addf %982, %983 : vector<4x32xf32>
    %cst_185 = arith.constant dense<0.000000e+00> : vector<4x96xf32>
    %985 = tpu.matmul %984, %13, %cst_185 {dimension_numbers = #tpu.dot_dimension_numbers<[1], [0], [0], [1], [0, 0, 1, 1], [], []>} : vector<4x32xf32>, vector<32x96xf32>, vector<4x96xf32> -> vector<4x96xf32>
    %986 = vector.broadcast %15 : vector<1x96xf32> to vector<4x96xf32>
    %987 = arith.addf %985, %986 : vector<4x96xf32>
    %988 = vector.extract_strided_slice %828 {offsets = [0, 5, 0], sizes = [4, 1, 96], strides = [1, 1, 1]} : vector<4x8x96xf32> to vector<4x1x96xf32>
    %989 = vector.shape_cast %988 : vector<4x1x96xf32> to vector<4x96xf32>
    %990 = vector.extract_strided_slice %989 {offsets = [0, 0], sizes = [4, 32], strides = [1, 1]} : vector<4x96xf32> to vector<4x32xf32>
    %991 = vector.extract_strided_slice %987 {offsets = [0, 0], sizes = [4, 32], strides = [1, 1]} : vector<4x96xf32> to vector<4x32xf32>
    %992 = arith.addf %990, %991 : vector<4x32xf32>
    %993 = arith.negf %992 : vector<4x32xf32>
    %994 = math.exp %993 : vector<4x32xf32>
    %cst_186 = arith.constant 1.000000e+00 : f32
    %995 = vector.broadcast %cst_186 : f32 to vector<4x32xf32>
    %996 = arith.addf %995, %994 : vector<4x32xf32>
    %997 = arith.divf %995, %996 : vector<4x32xf32>
    %998 = vector.extract_strided_slice %989 {offsets = [0, 32], sizes = [4, 32], strides = [1, 1]} : vector<4x96xf32> to vector<4x32xf32>
    %999 = vector.extract_strided_slice %987 {offsets = [0, 32], sizes = [4, 32], strides = [1, 1]} : vector<4x96xf32> to vector<4x32xf32>
    %1000 = arith.addf %998, %999 : vector<4x32xf32>
    %1001 = arith.negf %1000 : vector<4x32xf32>
    %1002 = math.exp %1001 : vector<4x32xf32>
    %cst_187 = arith.constant 1.000000e+00 : f32
    %1003 = vector.broadcast %cst_187 : f32 to vector<4x32xf32>
    %1004 = arith.addf %1003, %1002 : vector<4x32xf32>
    %1005 = arith.divf %1003, %1004 : vector<4x32xf32>
    %1006 = vector.extract_strided_slice %989 {offsets = [0, 64], sizes = [4, 32], strides = [1, 1]} : vector<4x96xf32> to vector<4x32xf32>
    %1007 = vector.extract_strided_slice %987 {offsets = [0, 64], sizes = [4, 32], strides = [1, 1]} : vector<4x96xf32> to vector<4x32xf32>
    %1008 = arith.mulf %997, %1007 : vector<4x32xf32>
    %1009 = arith.addf %1006, %1008 : vector<4x32xf32>
    %1010 = math.tanh %1009 : vector<4x32xf32>
    %cst_188 = arith.constant 1.000000e+00 : f32
    %1011 = vector.broadcast %cst_188 : f32 to vector<4x32xf32>
    %1012 = arith.subf %1011, %1005 : vector<4x32xf32>
    %1013 = arith.mulf %1012, %1010 : vector<4x32xf32>
    %1014 = arith.mulf %1005, %984 : vector<4x32xf32>
    %1015 = arith.addf %1013, %1014 : vector<4x32xf32>
    %cst_189 = arith.constant dense<0.000000e+00> : vector<4x96xf32>
    %1016 = tpu.matmul %1015, %13, %cst_189 {dimension_numbers = #tpu.dot_dimension_numbers<[1], [0], [0], [1], [0, 0, 1, 1], [], []>} : vector<4x32xf32>, vector<32x96xf32>, vector<4x96xf32> -> vector<4x96xf32>
    %1017 = vector.broadcast %15 : vector<1x96xf32> to vector<4x96xf32>
    %1018 = arith.addf %1016, %1017 : vector<4x96xf32>
    %1019 = vector.extract_strided_slice %828 {offsets = [0, 6, 0], sizes = [4, 1, 96], strides = [1, 1, 1]} : vector<4x8x96xf32> to vector<4x1x96xf32>
    %1020 = vector.shape_cast %1019 : vector<4x1x96xf32> to vector<4x96xf32>
    %1021 = vector.extract_strided_slice %1020 {offsets = [0, 0], sizes = [4, 32], strides = [1, 1]} : vector<4x96xf32> to vector<4x32xf32>
    %1022 = vector.extract_strided_slice %1018 {offsets = [0, 0], sizes = [4, 32], strides = [1, 1]} : vector<4x96xf32> to vector<4x32xf32>
    %1023 = arith.addf %1021, %1022 : vector<4x32xf32>
    %1024 = arith.negf %1023 : vector<4x32xf32>
    %1025 = math.exp %1024 : vector<4x32xf32>
    %cst_190 = arith.constant 1.000000e+00 : f32
    %1026 = vector.broadcast %cst_190 : f32 to vector<4x32xf32>
    %1027 = arith.addf %1026, %1025 : vector<4x32xf32>
    %1028 = arith.divf %1026, %1027 : vector<4x32xf32>
    %1029 = vector.extract_strided_slice %1020 {offsets = [0, 32], sizes = [4, 32], strides = [1, 1]} : vector<4x96xf32> to vector<4x32xf32>
    %1030 = vector.extract_strided_slice %1018 {offsets = [0, 32], sizes = [4, 32], strides = [1, 1]} : vector<4x96xf32> to vector<4x32xf32>
    %1031 = arith.addf %1029, %1030 : vector<4x32xf32>
    %1032 = arith.negf %1031 : vector<4x32xf32>
    %1033 = math.exp %1032 : vector<4x32xf32>
    %cst_191 = arith.constant 1.000000e+00 : f32
    %1034 = vector.broadcast %cst_191 : f32 to vector<4x32xf32>
    %1035 = arith.addf %1034, %1033 : vector<4x32xf32>
    %1036 = arith.divf %1034, %1035 : vector<4x32xf32>
    %1037 = vector.extract_strided_slice %1020 {offsets = [0, 64], sizes = [4, 32], strides = [1, 1]} : vector<4x96xf32> to vector<4x32xf32>
    %1038 = vector.extract_strided_slice %1018 {offsets = [0, 64], sizes = [4, 32], strides = [1, 1]} : vector<4x96xf32> to vector<4x32xf32>
    %1039 = arith.mulf %1028, %1038 : vector<4x32xf32>
    %1040 = arith.addf %1037, %1039 : vector<4x32xf32>
    %1041 = math.tanh %1040 : vector<4x32xf32>
    %cst_192 = arith.constant 1.000000e+00 : f32
    %1042 = vector.broadcast %cst_192 : f32 to vector<4x32xf32>
    %1043 = arith.subf %1042, %1036 : vector<4x32xf32>
    %1044 = arith.mulf %1043, %1041 : vector<4x32xf32>
    %1045 = arith.mulf %1036, %1015 : vector<4x32xf32>
    %1046 = arith.addf %1044, %1045 : vector<4x32xf32>
    %cst_193 = arith.constant dense<0.000000e+00> : vector<4x96xf32>
    %1047 = tpu.matmul %1046, %13, %cst_193 {dimension_numbers = #tpu.dot_dimension_numbers<[1], [0], [0], [1], [0, 0, 1, 1], [], []>} : vector<4x32xf32>, vector<32x96xf32>, vector<4x96xf32> -> vector<4x96xf32>
    %1048 = vector.broadcast %15 : vector<1x96xf32> to vector<4x96xf32>
    %1049 = arith.addf %1047, %1048 : vector<4x96xf32>
    %1050 = vector.extract_strided_slice %828 {offsets = [0, 7, 0], sizes = [4, 1, 96], strides = [1, 1, 1]} : vector<4x8x96xf32> to vector<4x1x96xf32>
    %1051 = vector.shape_cast %1050 : vector<4x1x96xf32> to vector<4x96xf32>
    %1052 = vector.extract_strided_slice %1051 {offsets = [0, 0], sizes = [4, 32], strides = [1, 1]} : vector<4x96xf32> to vector<4x32xf32>
    %1053 = vector.extract_strided_slice %1049 {offsets = [0, 0], sizes = [4, 32], strides = [1, 1]} : vector<4x96xf32> to vector<4x32xf32>
    %1054 = arith.addf %1052, %1053 : vector<4x32xf32>
    %1055 = arith.negf %1054 : vector<4x32xf32>
    %1056 = math.exp %1055 : vector<4x32xf32>
    %cst_194 = arith.constant 1.000000e+00 : f32
    %1057 = vector.broadcast %cst_194 : f32 to vector<4x32xf32>
    %1058 = arith.addf %1057, %1056 : vector<4x32xf32>
    %1059 = arith.divf %1057, %1058 : vector<4x32xf32>
    %1060 = vector.extract_strided_slice %1051 {offsets = [0, 32], sizes = [4, 32], strides = [1, 1]} : vector<4x96xf32> to vector<4x32xf32>
    %1061 = vector.extract_strided_slice %1049 {offsets = [0, 32], sizes = [4, 32], strides = [1, 1]} : vector<4x96xf32> to vector<4x32xf32>
    %1062 = arith.addf %1060, %1061 : vector<4x32xf32>
    %1063 = arith.negf %1062 : vector<4x32xf32>
    %1064 = math.exp %1063 : vector<4x32xf32>
    %cst_195 = arith.constant 1.000000e+00 : f32
    %1065 = vector.broadcast %cst_195 : f32 to vector<4x32xf32>
    %1066 = arith.addf %1065, %1064 : vector<4x32xf32>
    %1067 = arith.divf %1065, %1066 : vector<4x32xf32>
    %1068 = vector.extract_strided_slice %1051 {offsets = [0, 64], sizes = [4, 32], strides = [1, 1]} : vector<4x96xf32> to vector<4x32xf32>
    %1069 = vector.extract_strided_slice %1049 {offsets = [0, 64], sizes = [4, 32], strides = [1, 1]} : vector<4x96xf32> to vector<4x32xf32>
    %1070 = arith.mulf %1059, %1069 : vector<4x32xf32>
    %1071 = arith.addf %1068, %1070 : vector<4x32xf32>
    %1072 = math.tanh %1071 : vector<4x32xf32>
    %cst_196 = arith.constant 1.000000e+00 : f32
    %1073 = vector.broadcast %cst_196 : f32 to vector<4x32xf32>
    %1074 = arith.subf %1073, %1067 : vector<4x32xf32>
    %1075 = arith.mulf %1074, %1072 : vector<4x32xf32>
    %1076 = arith.mulf %1067, %1046 : vector<4x32xf32>
    %1077 = arith.addf %1075, %1076 : vector<4x32xf32>
    %1078 = vector.shape_cast %860 : vector<4x32xf32> to vector<4x1x32xf32>
    %1079 = vector.shape_cast %891 : vector<4x32xf32> to vector<4x1x32xf32>
    %1080 = vector.shape_cast %922 : vector<4x32xf32> to vector<4x1x32xf32>
    %1081 = vector.shape_cast %953 : vector<4x32xf32> to vector<4x1x32xf32>
    %1082 = vector.shape_cast %984 : vector<4x32xf32> to vector<4x1x32xf32>
    %1083 = vector.shape_cast %1015 : vector<4x32xf32> to vector<4x1x32xf32>
    %1084 = vector.shape_cast %1046 : vector<4x32xf32> to vector<4x1x32xf32>
    %1085 = vector.shape_cast %1077 : vector<4x32xf32> to vector<4x1x32xf32>
    %1086 = tpu.concatenate %1078, %1079, %1080, %1081, %1082, %1083, %1084, %1085 in 1 : vector<4x1x32xf32>, vector<4x1x32xf32>, vector<4x1x32xf32>, vector<4x1x32xf32>, vector<4x1x32xf32>, vector<4x1x32xf32>, vector<4x1x32xf32>, vector<4x1x32xf32> -> vector<4x8x32xf32>
    %1087 = vector.shape_cast %559 : vector<4x8x32xf32> to vector<32x32xf32>
    %cst_197 = arith.constant dense<0.000000e+00> : vector<32x96xf32>
    %1088 = tpu.matmul %1087, %16, %cst_197 {dimension_numbers = #tpu.dot_dimension_numbers<[1], [0], [0], [1], [0, 0, 1, 1], [], []>} : vector<32x32xf32>, vector<32x96xf32>, vector<32x96xf32> -> vector<32x96xf32>
    %1089 = vector.broadcast %17 : vector<1x96xf32> to vector<32x96xf32>
    %1090 = arith.addf %1088, %1089 : vector<32x96xf32>
    %1091 = vector.shape_cast %1090 : vector<32x96xf32> to vector<4x8x96xf32>
    %1092 = vector.extract_strided_slice %1091 {offsets = [0, 0, 0], sizes = [4, 8, 32], strides = [1, 1, 1]} : vector<4x8x96xf32> to vector<4x8x32xf32>
    %1093 = vector.extract_strided_slice %1091 {offsets = [0, 0, 32], sizes = [4, 8, 32], strides = [1, 1, 1]} : vector<4x8x96xf32> to vector<4x8x32xf32>
    %1094 = vector.extract_strided_slice %1091 {offsets = [0, 0, 64], sizes = [4, 8, 32], strides = [1, 1, 1]} : vector<4x8x96xf32> to vector<4x8x32xf32>
    "tpu.trace_start"() <{level = 10 : i32, message = "bqd,bkd->bqk"}> : () -> ()
    %cst_198 = arith.constant dense<0.000000e+00> : vector<4x8x8xf32>
    %1095 = tpu.matmul %1092, %1093, %cst_198 {dimension_numbers = #tpu.dot_dimension_numbers<[2], [2], [1], [1], [0, 0, 0, 1, 1, 1], [0], [0]>} : vector<4x8x32xf32>, vector<4x8x32xf32>, vector<4x8x8xf32> -> vector<4x8x8xf32>
    "tpu.trace_stop"() : () -> ()
    %cst_199 = arith.constant 0.176776692 : f32
    %1096 = vector.broadcast %cst_199 : f32 to vector<4x8x8xf32>
    %1097 = arith.mulf %1095, %1096 : vector<4x8x8xf32>
    %cst_200 = arith.constant dense<0xFF800000> : vector<4x8xf32>
    %1098 = vector.multi_reduction <maximumf>, %1097, %cst_200 [2] : vector<4x8x8xf32> to vector<4x8xf32>
    %1099 = vector.shape_cast %1098 : vector<4x8xf32> to vector<4x8x1xf32>
    %1100 = vector.broadcast %1099 : vector<4x8x1xf32> to vector<4x8x8xf32>
    %1101 = arith.subf %1097, %1100 : vector<4x8x8xf32>
    %1102 = math.exp %1101 : vector<4x8x8xf32>
    %cst_201 = arith.constant dense<0.000000e+00> : vector<4x8xf32>
    %1103 = vector.multi_reduction <add>, %1102, %cst_201 [2] : vector<4x8x8xf32> to vector<4x8xf32>
    %1104 = vector.shape_cast %1103 : vector<4x8xf32> to vector<4x8x1xf32>
    %1105 = tpu.reciprocal %1104 {approx = true} : vector<4x8x1xf32> -> vector<4x8x1xf32>
    %1106 = vector.broadcast %1105 : vector<4x8x1xf32> to vector<4x8x8xf32>
    %1107 = arith.mulf %1102, %1106 : vector<4x8x8xf32>
    "tpu.trace_start"() <{level = 10 : i32, message = "bqk,bkd->bqd"}> : () -> ()
    %cst_202 = arith.constant dense<0.000000e+00> : vector<4x8x32xf32>
    %1108 = tpu.matmul %1107, %1094, %cst_202 {dimension_numbers = #tpu.dot_dimension_numbers<[2], [1], [1], [2], [0, 0, 0, 1, 1, 2], [0], [0]>} : vector<4x8x8xf32>, vector<4x8x32xf32>, vector<4x8x32xf32> -> vector<4x8x32xf32>
    "tpu.trace_stop"() : () -> ()
    %1109 = vector.shape_cast %1086 : vector<4x8x32xf32> to vector<32x32xf32>
    %cst_203 = arith.constant dense<0.000000e+00> : vector<32x96xf32>
    %1110 = tpu.matmul %1109, %18, %cst_203 {dimension_numbers = #tpu.dot_dimension_numbers<[1], [0], [0], [1], [0, 0, 1, 1], [], []>} : vector<32x32xf32>, vector<32x96xf32>, vector<32x96xf32> -> vector<32x96xf32>
    %1111 = vector.broadcast %19 : vector<1x96xf32> to vector<32x96xf32>
    %1112 = arith.addf %1110, %1111 : vector<32x96xf32>
    %1113 = vector.shape_cast %1112 : vector<32x96xf32> to vector<4x8x96xf32>
    %1114 = vector.extract_strided_slice %1113 {offsets = [0, 0, 0], sizes = [4, 8, 32], strides = [1, 1, 1]} : vector<4x8x96xf32> to vector<4x8x32xf32>
    %1115 = vector.extract_strided_slice %1113 {offsets = [0, 0, 32], sizes = [4, 8, 32], strides = [1, 1, 1]} : vector<4x8x96xf32> to vector<4x8x32xf32>
    %1116 = vector.extract_strided_slice %1113 {offsets = [0, 0, 64], sizes = [4, 8, 32], strides = [1, 1, 1]} : vector<4x8x96xf32> to vector<4x8x32xf32>
    "tpu.trace_start"() <{level = 10 : i32, message = "bqd,bkd->bqk"}> : () -> ()
    %cst_204 = arith.constant dense<0.000000e+00> : vector<4x8x8xf32>
    %1117 = tpu.matmul %1114, %1115, %cst_204 {dimension_numbers = #tpu.dot_dimension_numbers<[2], [2], [1], [1], [0, 0, 0, 1, 1, 1], [0], [0]>} : vector<4x8x32xf32>, vector<4x8x32xf32>, vector<4x8x8xf32> -> vector<4x8x8xf32>
    "tpu.trace_stop"() : () -> ()
    %cst_205 = arith.constant 0.176776692 : f32
    %1118 = vector.broadcast %cst_205 : f32 to vector<4x8x8xf32>
    %1119 = arith.mulf %1117, %1118 : vector<4x8x8xf32>
    %cst_206 = arith.constant dense<0xFF800000> : vector<4x8xf32>
    %1120 = vector.multi_reduction <maximumf>, %1119, %cst_206 [2] : vector<4x8x8xf32> to vector<4x8xf32>
    %1121 = vector.shape_cast %1120 : vector<4x8xf32> to vector<4x8x1xf32>
    %1122 = vector.broadcast %1121 : vector<4x8x1xf32> to vector<4x8x8xf32>
    %1123 = arith.subf %1119, %1122 : vector<4x8x8xf32>
    %1124 = math.exp %1123 : vector<4x8x8xf32>
    %cst_207 = arith.constant dense<0.000000e+00> : vector<4x8xf32>
    %1125 = vector.multi_reduction <add>, %1124, %cst_207 [2] : vector<4x8x8xf32> to vector<4x8xf32>
    %1126 = vector.shape_cast %1125 : vector<4x8xf32> to vector<4x8x1xf32>
    %1127 = tpu.reciprocal %1126 {approx = true} : vector<4x8x1xf32> -> vector<4x8x1xf32>
    %1128 = vector.broadcast %1127 : vector<4x8x1xf32> to vector<4x8x8xf32>
    %1129 = arith.mulf %1124, %1128 : vector<4x8x8xf32>
    "tpu.trace_start"() <{level = 10 : i32, message = "bqk,bkd->bqd"}> : () -> ()
    %cst_208 = arith.constant dense<0.000000e+00> : vector<4x8x32xf32>
    %1130 = tpu.matmul %1129, %1116, %cst_208 {dimension_numbers = #tpu.dot_dimension_numbers<[2], [1], [1], [2], [0, 0, 0, 1, 1, 2], [0], [0]>} : vector<4x8x8xf32>, vector<4x8x32xf32>, vector<4x8x32xf32> -> vector<4x8x32xf32>
    "tpu.trace_stop"() : () -> ()
    %1131 = vector.shape_cast %1108 : vector<4x8x32xf32> to vector<32x32xf32>
    %1132 = vector.shape_cast %1130 : vector<4x8x32xf32> to vector<32x32xf32>
    %cst_209 = arith.constant dense<0.000000e+00> : vector<32x112xf32>
    %1133 = tpu.matmul %1131, %20, %cst_209 {dimension_numbers = #tpu.dot_dimension_numbers<[1], [0], [0], [1], [0, 0, 1, 1], [], []>} : vector<32x32xf32>, vector<32x112xf32>, vector<32x112xf32> -> vector<32x112xf32>
    %1134 = vector.broadcast %21 : vector<1x112xf32> to vector<32x112xf32>
    %1135 = arith.addf %1133, %1134 : vector<32x112xf32>
    %cst_210 = arith.constant 0.000000e+00 : f32
    %1136 = vector.broadcast %cst_210 : f32 to vector<32x112xf32>
    %1137 = arith.cmpf oge, %1135, %1136 : vector<32x112xf32>
    %cst_211 = arith.constant 0.00999999977 : f32
    %1138 = vector.broadcast %cst_211 : f32 to vector<32x112xf32>
    %1139 = arith.mulf %1138, %1135 : vector<32x112xf32>
    %1140 = arith.select %1137, %1135, %1139 : vector<32x112xi1>, vector<32x112xf32>
    %1141 = vector.extract_strided_slice %1140 {offsets = [0, 0], sizes = [32, 64], strides = [1, 1]} : vector<32x112xf32> to vector<32x64xf32>
    %cst_212 = arith.constant dense<0.000000e+00> : vector<32x6xf32>
    %1142 = tpu.matmul %1141, %22, %cst_212 {dimension_numbers = #tpu.dot_dimension_numbers<[1], [0], [0], [1], [0, 0, 1, 1], [], []>} : vector<32x64xf32>, vector<64x6xf32>, vector<32x6xf32> -> vector<32x6xf32>
    %1143 = vector.broadcast %23 : vector<1x6xf32> to vector<32x6xf32>
    %1144 = arith.addf %1142, %1143 : vector<32x6xf32>
    %1145 = vector.extract_strided_slice %1140 {offsets = [0, 64], sizes = [32, 48], strides = [1, 1]} : vector<32x112xf32> to vector<32x48xf32>
    %cst_213 = arith.constant dense<0.000000e+00> : vector<32x6xf32>
    %1146 = tpu.matmul %1145, %24, %cst_213 {dimension_numbers = #tpu.dot_dimension_numbers<[1], [0], [0], [1], [0, 0, 1, 1], [], []>} : vector<32x48xf32>, vector<48x6xf32>, vector<32x6xf32> -> vector<32x6xf32>
    %1147 = vector.broadcast %25 : vector<1x6xf32> to vector<32x6xf32>
    %1148 = arith.addf %1146, %1147 : vector<32x6xf32>
    %cst_214 = arith.constant dense<0.000000e+00> : vector<32x64xf32>
    %1149 = tpu.matmul %1132, %26, %cst_214 {dimension_numbers = #tpu.dot_dimension_numbers<[1], [0], [0], [1], [0, 0, 1, 1], [], []>} : vector<32x32xf32>, vector<32x64xf32>, vector<32x64xf32> -> vector<32x64xf32>
    %1150 = vector.broadcast %27 : vector<1x64xf32> to vector<32x64xf32>
    %1151 = arith.addf %1149, %1150 : vector<32x64xf32>
    %cst_215 = arith.constant 0.000000e+00 : f32
    %1152 = vector.broadcast %cst_215 : f32 to vector<32x64xf32>
    %1153 = arith.cmpf oge, %1151, %1152 : vector<32x64xf32>
    %cst_216 = arith.constant 0.00999999977 : f32
    %1154 = vector.broadcast %cst_216 : f32 to vector<32x64xf32>
    %1155 = arith.mulf %1154, %1151 : vector<32x64xf32>
    %1156 = arith.select %1153, %1151, %1155 : vector<32x64xi1>, vector<32x64xf32>
    %cst_217 = arith.constant dense<0.000000e+00> : vector<32x6xf32>
    %1157 = tpu.matmul %1156, %28, %cst_217 {dimension_numbers = #tpu.dot_dimension_numbers<[1], [0], [0], [1], [0, 0, 1, 1], [], []>} : vector<32x64xf32>, vector<64x6xf32>, vector<32x6xf32> -> vector<32x6xf32>
    %1158 = vector.broadcast %29 : vector<1x6xf32> to vector<32x6xf32>
    %1159 = arith.addf %1157, %1158 : vector<32x6xf32>
    %1160 = arith.negf %1148 : vector<32x6xf32>
    %1161 = math.exp %1160 : vector<32x6xf32>
    %cst_218 = arith.constant 1.000000e+00 : f32
    %1162 = vector.broadcast %cst_218 : f32 to vector<32x6xf32>
    %1163 = arith.addf %1162, %1161 : vector<32x6xf32>
    %1164 = arith.divf %1162, %1163 : vector<32x6xf32>
    %1165 = arith.mulf %1164, %1159 : vector<32x6xf32>
    %1166 = arith.addf %1165, %1144 : vector<32x6xf32>
    %1167 = vector.shape_cast %1166 : vector<32x6xf32> to vector<4x8x6xf32>
    %c0_219 = arith.constant 0 : index
    %c0_220 = arith.constant 0 : index
    %c0_221 = arith.constant 0 : index
    %1168 = vector.load %arg31[%c0_219, %c0_220, %c0_221] : memref<4x8x6xf32, #tpu.memory_space<vmem>>, vector<4x8x6xf32>
    tpu.vector_store %arg31[%c0_219, %c0_220, %c0_221], %1167 {strides = array<i32>} : memref<4x8x6xf32, #tpu.memory_space<vmem>>, vector<4x8x6xf32>,
    return
  }
}

</mosaic_0001>

<llo_original>
// kernel: tpu_custom_call.1
$region0: #{tpu_custom_call.1}
  #allocation0 [shape = 'u32[]', space=smem, size = 0x4, offset = 0x4, fixed_abs, tag = 'smem constant byte address 0x4 - core index']
  #allocation1 [shape = 'u32[144,128]{1,0:T(1,128)}', space=vmem, size = 0x12000, scoped, tag = 'internal scratch']
  %s0 = inlined_call_operand.smem [shape: u32[32], index: -1, kind: input, shape index: {}]
  %s1 = sld [smem:[%s0]]
  %s2 = scalar_lea.smem %s0, 1
  %s3 = sld [smem:[%s2]]
  %s4 = scalar_lea.smem %s0, 2
  %s5 = sld [smem:[%s4]]
  %s6 = scalar_lea.smem %s0, 3
  %s7 = sld [smem:[%s6]]
  %s8 = scalar_lea.smem %s0, 4
  %s9 = sld [smem:[%s8]]
  %s10 = scalar_lea.smem %s0, 5
  %s11 = sld [smem:[%s10]]
  %s12 = scalar_lea.smem %s0, 6
  %s13 = sld [smem:[%s12]]
  %s14 = scalar_lea.smem %s0, 7
  %s15 = sld [smem:[%s14]]
  %s16 = scalar_lea.smem %s0, 8
  %s17 = sld [smem:[%s16]]
  %s18 = scalar_lea.smem %s0, 9
  %s19 = sld [smem:[%s18]]
  %s20 = scalar_lea.smem %s0, 10
  %s21 = sld [smem:[%s20]]
  %s22 = scalar_lea.smem %s0, 11
  %s23 = sld [smem:[%s22]]
  %s24 = scalar_lea.smem %s0, 12
  %s25 = sld [smem:[%s24]]
  %s26 = scalar_lea.smem %s0, 13
  %s27 = sld [smem:[%s26]]
  %s28 = scalar_lea.smem %s0, 14
  %s29 = sld [smem:[%s28]]
  %s30 = scalar_lea.smem %s0, 15
  %s31 = sld [smem:[%s30]]
  %s32 = scalar_lea.smem %s0, 16
  %s33 = sld [smem:[%s32]]
  %s34 = scalar_lea.smem %s0, 17
  %s35 = sld [smem:[%s34]]
  %s36 = scalar_lea.smem %s0, 18
  %s37 = sld [smem:[%s36]]
  %s38 = scalar_lea.smem %s0, 19
  %s39 = sld [smem:[%s38]]
  %s40 = scalar_lea.smem %s0, 20
  %s41 = sld [smem:[%s40]]
  %s42 = scalar_lea.smem %s0, 21
  %s43 = sld [smem:[%s42]]
  %s44 = scalar_lea.smem %s0, 22
  %s45 = sld [smem:[%s44]]
  %s46 = scalar_lea.smem %s0, 23
  %s47 = sld [smem:[%s46]]
  %s48 = scalar_lea.smem %s0, 24
  %s49 = sld [smem:[%s48]]
  %s50 = scalar_lea.smem %s0, 25
  %s51 = sld [smem:[%s50]]
  %s52 = scalar_lea.smem %s0, 26
  %s53 = sld [smem:[%s52]]
  %s54 = scalar_lea.smem %s0, 27
  %s55 = sld [smem:[%s54]]
  %s56 = scalar_lea.smem %s0, 28
  %s57 = sld [smem:[%s56]]
  %s58 = scalar_lea.smem %s0, 29
  %s59 = sld [smem:[%s58]]
  %s60 = scalar_lea.smem %s0, 30
  %s61 = sld [smem:[%s60]]
  %s62 = scalar_lea.smem %s0, 31
  %s63 = sld [smem:[%s62]]
  %s64 = sld [smem:[#allocation0]]
  $region206: #{tpu_custom_call.1} parent=0
    _
  %s66 = ssub.s32 1, %s64
  %s67 = scalar_select 0, %s66, %s64
  $region1: #{tpu_custom_call.1} parent=0
    #allocation2 [shape = 'u8[12288]{0}', space=vmem, size = 0x3000, scoped, tag = 'input window, operand 1, single buffered']
    #allocation3 [shape = 's32[1]{0}', space=sflag, size = 0x4, scoped, tag = 'scoped memory for tpu_custom_call.1']
    #allocation4 [shape = 'u8[512]{0}', space=vmem, size = 0x400, scoped, tag = 'input window, operand 3, single buffered']
    #allocation5 [shape = 's32[1]{0}', space=sflag, size = 0x4, scoped, tag = 'scoped memory for tpu_custom_call.1']
    #allocation6 [shape = 'u8[512]{0}', space=vmem, size = 0x400, scoped, tag = 'input window, operand 4, single buffered']
    #allocation7 [shape = 'u8[512]{0}', space=vmem, size = 0x400, scoped, tag = 'input window, operand 7, single buffered']
    #allocation8 [shape = 's32[1]{0}', space=sflag, size = 0x4, scoped, tag = 'scoped memory for tpu_custom_call.1']
    #allocation9 [shape = 'u8[512]{0}', space=vmem, size = 0x400, scoped, tag = 'input window, operand 8, single buffered']
    #allocation10 [shape = 'u8[8192]{0}', space=vmem, size = 0x2000, scoped, tag = 'input window, operand 9, single buffered']
    #allocation11 [shape = 's32[1]{0}', space=sflag, size = 0x4, scoped, tag = 'scoped memory for tpu_custom_call.1']
    #allocation12 [shape = 'u8[512]{0}', space=vmem, size = 0x400, scoped, tag = 'input window, operand 11, single buffered']
    #allocation13 [shape = 'u8[512]{0}', space=vmem, size = 0x400, scoped, tag = 'input window, operand 12, single buffered']
    #allocation14 [shape = 's32[1]{0}', space=sflag, size = 0x4, scoped, tag = 'scoped memory for tpu_custom_call.1']
    #allocation15 [shape = 'u8[512]{0}', space=vmem, size = 0x400, scoped, tag = 'input window, operand 15, single buffered']
    #allocation16 [shape = 'u8[512]{0}', space=vmem, size = 0x400, scoped, tag = 'input window, operand 16, single buffered']
    #allocation17 [shape = 's32[1]{0}', space=sflag, size = 0x4, scoped, tag = 'scoped memory for tpu_custom_call.1']
    #allocation18 [shape = 'u8[16384]{0}', space=vmem, size = 0x4000, scoped, tag = 'input window, operand 17, single buffered']
    #allocation19 [shape = 'u8[512]{0}', space=vmem, size = 0x400, scoped, tag = 'input window, operand 18, single buffered']
    #allocation20 [shape = 's32[1]{0}', space=sflag, size = 0x4, scoped, tag = 'scoped memory for tpu_custom_call.1']
    #allocation21 [shape = 'u8[16384]{0}', space=vmem, size = 0x4000, scoped, tag = 'input window, operand 19, single buffered']
    #allocation22 [shape = 'u8[512]{0}', space=vmem, size = 0x400, scoped, tag = 'input window, operand 20, single buffered']
    #allocation23 [shape = 's32[1]{0}', space=sflag, size = 0x4, scoped, tag = 'scoped memory for tpu_custom_call.1']
    #allocation24 [shape = 'u8[16384]{0}', space=vmem, size = 0x4000, scoped, tag = 'input window, operand 21, single buffered']
    #allocation25 [shape = 'u8[512]{0}', space=vmem, size = 0x400, scoped, tag = 'input window, operand 22, single buffered']
    #allocation26 [shape = 's32[1]{0}', space=sflag, size = 0x4, scoped, tag = 'scoped memory for tpu_custom_call.1']
    #allocation27 [shape = 'u8[512]{0}', space=vmem, size = 0x400, scoped, tag = 'input window, operand 26, single buffered']
    #allocation28 [shape = 'u8[16384]{0}', space=vmem, size = 0x4000, scoped, tag = 'input window, operand 27, single buffered']
    #allocation29 [shape = 's32[1]{0}', space=sflag, size = 0x4, scoped, tag = 'scoped memory for tpu_custom_call.1']
    %68 = vsyncpa [#allocation3], 0
    %69 = vsyncpa [#allocation5], 0
    %70 = vsyncpa [#allocation8], 0
    %71 = vsyncpa [#allocation11], 0
    %72 = vsyncpa [#allocation14], 0
    %73 = vsyncpa [#allocation17], 0
    %74 = vsyncpa [#allocation20], 0
    %75 = vsyncpa [#allocation23], 0
    %76 = vsyncpa [#allocation26], 0
    %77 = vsyncpa [#allocation29], 0
    // Predicated region
    $region2: #{tpu_custom_call.1} parent=1 // pred_check
      _
    $region3: #{tpu_custom_call.1} parent=1 // pred_check_branch
      %79 = sbr.rel (0) target = $region5
    $region4: #{tpu_custom_call.1} parent=1 // pred_region
      _
    $region5: #{tpu_custom_call.1} parent=1 // pred_fallthru
      _
    // Predicated region
    $region6: #{tpu_custom_call.1} parent=1 // pred_check
      _
    $region7: #{tpu_custom_call.1} parent=1 // pred_check_branch
      %81 = sbr.rel (0) target = $region9
    $region8: #{tpu_custom_call.1} parent=1 // pred_region
      %s83 = ssub.s32 384, 384
      %84 = vsyncadd [#allocation3], %s83
      %s85 = sshll.u32 [#allocation2], 4
      %s86 = int_to_ptr.vmem [resolvable:$true] %s85
      %91 = dma.hbm_to_vmem [thread:$0]  %s3, 384, %s86, [#allocation3], 128, 128, 8
    $region9: #{tpu_custom_call.1} parent=1 // pred_fallthru
      _
    // Predicated region
    $region10: #{tpu_custom_call.1} parent=1 // pred_check
      _
    $region11: #{tpu_custom_call.1} parent=1 // pred_check_branch
      %93 = sbr.rel (0) target = $region13
    $region12: #{tpu_custom_call.1} parent=1 // pred_region
      _
    $region13: #{tpu_custom_call.1} parent=1 // pred_fallthru
      _
    // Predicated region
    $region14: #{tpu_custom_call.1} parent=1 // pred_check
      _
    $region15: #{tpu_custom_call.1} parent=1 // pred_check_branch
      %95 = sbr.rel (0) target = $region17
    $region16: #{tpu_custom_call.1} parent=1 // pred_region
      %s97 = ssub.s32 16, 16
      %98 = vsyncadd [#allocation5], %s97
      %s100 = sshll.u32 [#allocation4], 4
      %s101 = int_to_ptr.vmem [resolvable:$true] %s100
      %103 = dma.hbm_to_vmem [thread:$0]  %s7, 16, %s101, [#allocation5]
    $region17: #{tpu_custom_call.1} parent=1 // pred_fallthru
      _
    // Predicated region
    $region18: #{tpu_custom_call.1} parent=1 // pred_check
      _
    $region19: #{tpu_custom_call.1} parent=1 // pred_check_branch
      %105 = sbr.rel (0) target = $region21
    $region20: #{tpu_custom_call.1} parent=1 // pred_region
      %s107 = ssub.s32 16, 16
      %108 = vsyncadd [#allocation5], %s107
      %s110 = sshll.u32 [#allocation6], 4
      %s111 = int_to_ptr.vmem [resolvable:$true] %s110
      %113 = dma.hbm_to_vmem [thread:$0]  %s9, 16, %s111, [#allocation5]
    $region21: #{tpu_custom_call.1} parent=1 // pred_fallthru
      _
    // Predicated region
    $region22: #{tpu_custom_call.1} parent=1 // pred_check
      _
    $region23: #{tpu_custom_call.1} parent=1 // pred_check_branch
      %115 = sbr.rel (0) target = $region25
    $region24: #{tpu_custom_call.1} parent=1 // pred_region
      _
    $region25: #{tpu_custom_call.1} parent=1 // pred_fallthru
      _
    // Predicated region
    $region26: #{tpu_custom_call.1} parent=1 // pred_check
      _
    $region27: #{tpu_custom_call.1} parent=1 // pred_check_branch
      %117 = sbr.rel (0) target = $region29
    $region28: #{tpu_custom_call.1} parent=1 // pred_region
      _
    $region29: #{tpu_custom_call.1} parent=1 // pred_fallthru
      _
    // Predicated region
    $region30: #{tpu_custom_call.1} parent=1 // pred_check
      _
    $region31: #{tpu_custom_call.1} parent=1 // pred_check_branch
      %119 = sbr.rel (0) target = $region33
    $region32: #{tpu_custom_call.1} parent=1 // pred_region
      %s121 = ssub.s32 16, 16
      %122 = vsyncadd [#allocation8], %s121
      %s124 = sshll.u32 [#allocation7], 4
      %s125 = int_to_ptr.vmem [resolvable:$true] %s124
      %127 = dma.hbm_to_vmem [thread:$0]  %s15, 16, %s125, [#allocation8]
    $region33: #{tpu_custom_call.1} parent=1 // pred_fallthru
      _
    // Predicated region
    $region34: #{tpu_custom_call.1} parent=1 // pred_check
      _
    $region35: #{tpu_custom_call.1} parent=1 // pred_check_branch
      %129 = sbr.rel (0) target = $region37
    $region36: #{tpu_custom_call.1} parent=1 // pred_region
      %s131 = ssub.s32 16, 16
      %132 = vsyncadd [#allocation8], %s131
      %s134 = sshll.u32 [#allocation9], 4
      %s135 = int_to_ptr.vmem [resolvable:$true] %s134
      %137 = dma.hbm_to_vmem [thread:$0]  %s17, 16, %s135, [#allocation8]
    $region37: #{tpu_custom_call.1} parent=1 // pred_fallthru
      _
    // Predicated region
    $region38: #{tpu_custom_call.1} parent=1 // pred_check
      _
    $region39: #{tpu_custom_call.1} parent=1 // pred_check_branch
      %139 = sbr.rel (0) target = $region41
    $region40: #{tpu_custom_call.1} parent=1 // pred_region
      %s141 = ssub.s32 256, 256
      %142 = vsyncadd [#allocation11], %s141
      %s143 = sshll.u32 [#allocation10], 4
      %s144 = int_to_ptr.vmem [resolvable:$true] %s143
      %149 = dma.hbm_to_vmem [thread:$0]  %s19, 256, %s144, [#allocation11], 128, 128, 8
    $region41: #{tpu_custom_call.1} parent=1 // pred_fallthru
      _
    // Predicated region
    $region42: #{tpu_custom_call.1} parent=1 // pred_check
      _
    $region43: #{tpu_custom_call.1} parent=1 // pred_check_branch
      %151 = sbr.rel (0) target = $region45
    $region44: #{tpu_custom_call.1} parent=1 // pred_region
      _
    $region45: #{tpu_custom_call.1} parent=1 // pred_fallthru
      _
    // Predicated region
    $region46: #{tpu_custom_call.1} parent=1 // pred_check
      _
    $region47: #{tpu_custom_call.1} parent=1 // pred_check_branch
      %153 = sbr.rel (0) target = $region49
    $region48: #{tpu_custom_call.1} parent=1 // pred_region
      %s155 = ssub.s32 16, 16
      %156 = vsyncadd [#allocation11], %s155
      %s158 = sshll.u32 [#allocation12], 4
      %s159 = int_to_ptr.vmem [resolvable:$true] %s158
      %161 = dma.hbm_to_vmem [thread:$0]  %s23, 16, %s159, [#allocation11]
    $region49: #{tpu_custom_call.1} parent=1 // pred_fallthru
      _
    // Predicated region
    $region50: #{tpu_custom_call.1} parent=1 // pred_check
      _
    $region51: #{tpu_custom_call.1} parent=1 // pred_check_branch
      %163 = sbr.rel (0) target = $region53
    $region52: #{tpu_custom_call.1} parent=1 // pred_region
      %s165 = ssub.s32 16, 16
      %166 = vsyncadd [#allocation14], %s165
      %s168 = sshll.u32 [#allocation13], 4
      %s169 = int_to_ptr.vmem [resolvable:$true] %s168
      %171 = dma.hbm_to_vmem [thread:$0]  %s25, 16, %s169, [#allocation14]
    $region53: #{tpu_custom_call.1} parent=1 // pred_fallthru
      _
    // Predicated region
    $region54: #{tpu_custom_call.1} parent=1 // pred_check
      _
    $region55: #{tpu_custom_call.1} parent=1 // pred_check_branch
      %173 = sbr.rel (0) target = $region57
    $region56: #{tpu_custom_call.1} parent=1 // pred_region
      _
    $region57: #{tpu_custom_call.1} parent=1 // pred_fallthru
      _
    // Predicated region
    $region58: #{tpu_custom_call.1} parent=1 // pred_check
      _
    $region59: #{tpu_custom_call.1} parent=1 // pred_check_branch
      %175 = sbr.rel (0) target = $region61
    $region60: #{tpu_custom_call.1} parent=1 // pred_region
      _
    $region61: #{tpu_custom_call.1} parent=1 // pred_fallthru
      _
    // Predicated region
    $region62: #{tpu_custom_call.1} parent=1 // pred_check
      _
    $region63: #{tpu_custom_call.1} parent=1 // pred_check_branch
      %177 = sbr.rel (0) target = $region65
    $region64: #{tpu_custom_call.1} parent=1 // pred_region
      %s179 = ssub.s32 16, 16
      %180 = vsyncadd [#allocation14], %s179
      %s182 = sshll.u32 [#allocation15], 4
      %s183 = int_to_ptr.vmem [resolvable:$true] %s182
      %185 = dma.hbm_to_vmem [thread:$0]  %s31, 16, %s183, [#allocation14]
    $region65: #{tpu_custom_call.1} parent=1 // pred_fallthru
      _
    // Predicated region
    $region66: #{tpu_custom_call.1} parent=1 // pred_check
      _
    $region67: #{tpu_custom_call.1} parent=1 // pred_check_branch
      %187 = sbr.rel (0) target = $region69
    $region68: #{tpu_custom_call.1} parent=1 // pred_region
      %s189 = ssub.s32 16, 16
      %190 = vsyncadd [#allocation17], %s189
      %s192 = sshll.u32 [#allocation16], 4
      %s193 = int_to_ptr.vmem [resolvable:$true] %s192
      %195 = dma.hbm_to_vmem [thread:$0]  %s33, 16, %s193, [#allocation17]
    $region69: #{tpu_custom_call.1} parent=1 // pred_fallthru
      _
    // Predicated region
    $region70: #{tpu_custom_call.1} parent=1 // pred_check
      _
    $region71: #{tpu_custom_call.1} parent=1 // pred_check_branch
      %197 = sbr.rel (0) target = $region73
    $region72: #{tpu_custom_call.1} parent=1 // pred_region
      %s199 = ssub.s32 512, 512
      %200 = vsyncadd [#allocation17], %s199
      %s201 = sshll.u32 [#allocation18], 4
      %s202 = int_to_ptr.vmem [resolvable:$true] %s201
      %207 = dma.hbm_to_vmem [thread:$0]  %s35, 512, %s202, [#allocation17], 128, 128, 8
    $region73: #{tpu_custom_call.1} parent=1 // pred_fallthru
      _
    // Predicated region
    $region74: #{tpu_custom_call.1} parent=1 // pred_check
      _
    $region75: #{tpu_custom_call.1} parent=1 // pred_check_branch
      %209 = sbr.rel (0) target = $region77
    $region76: #{tpu_custom_call.1} parent=1 // pred_region
      %s211 = ssub.s32 16, 16
      %212 = vsyncadd [#allocation20], %s211
      %s214 = sshll.u32 [#allocation19], 4
      %s215 = int_to_ptr.vmem [resolvable:$true] %s214
      %217 = dma.hbm_to_vmem [thread:$0]  %s37, 16, %s215, [#allocation20]
    $region77: #{tpu_custom_call.1} parent=1 // pred_fallthru
      _
    // Predicated region
    $region78: #{tpu_custom_call.1} parent=1 // pred_check
      _
    $region79: #{tpu_custom_call.1} parent=1 // pred_check_branch
      %219 = sbr.rel (0) target = $region81
    $region80: #{tpu_custom_call.1} parent=1 // pred_region
      %s221 = ssub.s32 512, 512
      %222 = vsyncadd [#allocation20], %s221
      %s223 = sshll.u32 [#allocation21], 4
      %s224 = int_to_ptr.vmem [resolvable:$true] %s223
      %229 = dma.hbm_to_vmem [thread:$0]  %s39, 512, %s224, [#allocation20], 128, 128, 8
    $region81: #{tpu_custom_call.1} parent=1 // pred_fallthru
      _
    // Predicated region
    $region82: #{tpu_custom_call.1} parent=1 // pred_check
      _
    $region83: #{tpu_custom_call.1} parent=1 // pred_check_branch
      %231 = sbr.rel (0) target = $region85
    $region84: #{tpu_custom_call.1} parent=1 // pred_region
      %s233 = ssub.s32 16, 16
      %234 = vsyncadd [#allocation23], %s233
      %s236 = sshll.u32 [#allocation22], 4
      %s237 = int_to_ptr.vmem [resolvable:$true] %s236
      %239 = dma.hbm_to_vmem [thread:$0]  %s41, 16, %s237, [#allocation23]
    $region85: #{tpu_custom_call.1} parent=1 // pred_fallthru
      _
    // Predicated region
    $region86: #{tpu_custom_call.1} parent=1 // pred_check
      _
    $region87: #{tpu_custom_call.1} parent=1 // pred_check_branch
      %241 = sbr.rel (0) target = $region89
    $region88: #{tpu_custom_call.1} parent=1 // pred_region
      %s243 = ssub.s32 512, 512
      %244 = vsyncadd [#allocation23], %s243
      %s245 = sshll.u32 [#allocation24], 4
      %s246 = int_to_ptr.vmem [resolvable:$true] %s245
      %251 = dma.hbm_to_vmem [thread:$0]  %s43, 512, %s246, [#allocation23], 128, 128, 8
    $region89: #{tpu_custom_call.1} parent=1 // pred_fallthru
      _
    // Predicated region
    $region90: #{tpu_custom_call.1} parent=1 // pred_check
      _
    $region91: #{tpu_custom_call.1} parent=1 // pred_check_branch
      %253 = sbr.rel (0) target = $region93
    $region92: #{tpu_custom_call.1} parent=1 // pred_region
      %s255 = ssub.s32 16, 16
      %256 = vsyncadd [#allocation26], %s255
      %s258 = sshll.u32 [#allocation25], 4
      %s259 = int_to_ptr.vmem [resolvable:$true] %s258
      %261 = dma.hbm_to_vmem [thread:$0]  %s45, 16, %s259, [#allocation26]
    $region93: #{tpu_custom_call.1} parent=1 // pred_fallthru
      _
    // Predicated region
    $region94: #{tpu_custom_call.1} parent=1 // pred_check
      _
    $region95: #{tpu_custom_call.1} parent=1 // pred_check_branch
      %263 = sbr.rel (0) target = $region97
    $region96: #{tpu_custom_call.1} parent=1 // pred_region
      _
    $region97: #{tpu_custom_call.1} parent=1 // pred_fallthru
      _
    // Predicated region
    $region98: #{tpu_custom_call.1} parent=1 // pred_check
      _
    $region99: #{tpu_custom_call.1} parent=1 // pred_check_branch
      %265 = sbr.rel (0) target = $region101
    $region100: #{tpu_custom_call.1} parent=1 // pred_region
      _
    $region101: #{tpu_custom_call.1} parent=1 // pred_fallthru
      _
    // Predicated region
    $region102: #{tpu_custom_call.1} parent=1 // pred_check
      _
    $region103: #{tpu_custom_call.1} parent=1 // pred_check_branch
      %267 = sbr.rel (0) target = $region105
    $region104: #{tpu_custom_call.1} parent=1 // pred_region
      _
    $region105: #{tpu_custom_call.1} parent=1 // pred_fallthru
      _
    // Predicated region
    $region106: #{tpu_custom_call.1} parent=1 // pred_check
      _
    $region107: #{tpu_custom_call.1} parent=1 // pred_check_branch
      %269 = sbr.rel (0) target = $region109
    $region108: #{tpu_custom_call.1} parent=1 // pred_region
      %s271 = ssub.s32 16, 16
      %272 = vsyncadd [#allocation26], %s271
      %s274 = sshll.u32 [#allocation27], 4
      %s275 = int_to_ptr.vmem [resolvable:$true] %s274
      %277 = dma.hbm_to_vmem [thread:$0]  %s53, 16, %s275, [#allocation26]
    $region109: #{tpu_custom_call.1} parent=1 // pred_fallthru
      _
    // Predicated region
    $region110: #{tpu_custom_call.1} parent=1 // pred_check
      _
    $region111: #{tpu_custom_call.1} parent=1 // pred_check_branch
      %279 = sbr.rel (0) target = $region113
    $region112: #{tpu_custom_call.1} parent=1 // pred_region
      %s281 = ssub.s32 512, 512
      %282 = vsyncadd [#allocation29], %s281
      %s283 = sshll.u32 [#allocation28], 4
      %s284 = int_to_ptr.vmem [resolvable:$true] %s283
      %289 = dma.hbm_to_vmem [thread:$0]  %s55, 512, %s284, [#allocation29], 128, 128, 8
    $region113: #{tpu_custom_call.1} parent=1 // pred_fallthru
      _
    // Predicated region
    $region114: #{tpu_custom_call.1} parent=1 // pred_check
      _
    $region115: #{tpu_custom_call.1} parent=1 // pred_check_branch
      %291 = sbr.rel (0) target = $region117
    $region116: #{tpu_custom_call.1} parent=1 // pred_region
      _
    $region117: #{tpu_custom_call.1} parent=1 // pred_fallthru
      _
    // Predicated region
    $region118: #{tpu_custom_call.1} parent=1 // pred_check
      _
    $region119: #{tpu_custom_call.1} parent=1 // pred_check_branch
      %293 = sbr.rel (0) target = $region121
    $region120: #{tpu_custom_call.1} parent=1 // pred_region
      _
    $region121: #{tpu_custom_call.1} parent=1 // pred_fallthru
      _
    // Predicated region
    $region122: #{tpu_custom_call.1} parent=1 // pred_check
      _
    $region123: #{tpu_custom_call.1} parent=1 // pred_check_branch
      %295 = sbr.rel (0) target = $region125
    $region124: #{tpu_custom_call.1} parent=1 // pred_region
      _
    $region125: #{tpu_custom_call.1} parent=1 // pred_fallthru
      _
    // Predicated region
    $region126: #{tpu_custom_call.1} parent=1 // pred_check
      _
    $region127: #{tpu_custom_call.1} parent=1 // pred_check_branch
      %297 = sbr.rel (0) target = $region129
    $region128: #{tpu_custom_call.1} parent=1 // pred_region
      %298 = dma.done [#allocation3], 384
    $region129: #{tpu_custom_call.1} parent=1 // pred_fallthru
      _
    // Predicated region
    $region130: #{tpu_custom_call.1} parent=1 // pred_check
      _
    $region131: #{tpu_custom_call.1} parent=1 // pred_check_branch
      %300 = sbr.rel (0) target = $region133
    $region132: #{tpu_custom_call.1} parent=1 // pred_region
      %301 = dma.done [#allocation5], 16
    $region133: #{tpu_custom_call.1} parent=1 // pred_fallthru
      _
    // Predicated region
    $region134: #{tpu_custom_call.1} parent=1 // pred_check
      _
    $region135: #{tpu_custom_call.1} parent=1 // pred_check_branch
      %303 = sbr.rel (0) target = $region137
    $region136: #{tpu_custom_call.1} parent=1 // pred_region
      %304 = dma.done [#allocation5], 16
    $region137: #{tpu_custom_call.1} parent=1 // pred_fallthru
      _
    // Predicated region
    $region138: #{tpu_custom_call.1} parent=1 // pred_check
      _
    $region139: #{tpu_custom_call.1} parent=1 // pred_check_branch
      %306 = sbr.rel (0) target = $region141
    $region140: #{tpu_custom_call.1} parent=1 // pred_region
      %307 = dma.done [#allocation8], 16
    $region141: #{tpu_custom_call.1} parent=1 // pred_fallthru
      _
    // Predicated region
    $region142: #{tpu_custom_call.1} parent=1 // pred_check
      _
    $region143: #{tpu_custom_call.1} parent=1 // pred_check_branch
      %309 = sbr.rel (0) target = $region145
    $region144: #{tpu_custom_call.1} parent=1 // pred_region
      %310 = dma.done [#allocation8], 16
    $region145: #{tpu_custom_call.1} parent=1 // pred_fallthru
      _
    // Predicated region
    $region146: #{tpu_custom_call.1} parent=1 // pred_check
      _
    $region147: #{tpu_custom_call.1} parent=1 // pred_check_branch
      %312 = sbr.rel (0) target = $region149
    $region148: #{tpu_custom_call.1} parent=1 // pred_region
      %313 = dma.done [#allocation11], 256
    $region149: #{tpu_custom_call.1} parent=1 // pred_fallthru
      _
    // Predicated region
    $region150: #{tpu_custom_call.1} parent=1 // pred_check
      _
    $region151: #{tpu_custom_call.1} parent=1 // pred_check_branch
      %315 = sbr.rel (0) target = $region153
    $region152: #{tpu_custom_call.1} parent=1 // pred_region
      %316 = dma.done [#allocation11], 16
    $region153: #{tpu_custom_call.1} parent=1 // pred_fallthru
      _
    // Predicated region
    $region154: #{tpu_custom_call.1} parent=1 // pred_check
      _
    $region155: #{tpu_custom_call.1} parent=1 // pred_check_branch
      %318 = sbr.rel (0) target = $region157
    $region156: #{tpu_custom_call.1} parent=1 // pred_region
      %319 = dma.done [#allocation14], 16
    $region157: #{tpu_custom_call.1} parent=1 // pred_fallthru
      _
    // Predicated region
    $region158: #{tpu_custom_call.1} parent=1 // pred_check
      _
    $region159: #{tpu_custom_call.1} parent=1 // pred_check_branch
      %321 = sbr.rel (0) target = $region161
    $region160: #{tpu_custom_call.1} parent=1 // pred_region
      %322 = dma.done [#allocation14], 16
    $region161: #{tpu_custom_call.1} parent=1 // pred_fallthru
      _
    // Predicated region
    $region162: #{tpu_custom_call.1} parent=1 // pred_check
      _
    $region163: #{tpu_custom_call.1} parent=1 // pred_check_branch
      %324 = sbr.rel (0) target = $region165
    $region164: #{tpu_custom_call.1} parent=1 // pred_region
      %325 = dma.done [#allocation17], 16
    $region165: #{tpu_custom_call.1} parent=1 // pred_fallthru
      _
    // Predicated region
    $region166: #{tpu_custom_call.1} parent=1 // pred_check
      _
    $region167: #{tpu_custom_call.1} parent=1 // pred_check_branch
      %327 = sbr.rel (0) target = $region169
    $region168: #{tpu_custom_call.1} parent=1 // pred_region
      %328 = dma.done [#allocation17], 512
    $region169: #{tpu_custom_call.1} parent=1 // pred_fallthru
      _
    // Predicated region
    $region170: #{tpu_custom_call.1} parent=1 // pred_check
      _
    $region171: #{tpu_custom_call.1} parent=1 // pred_check_branch
      %330 = sbr.rel (0) target = $region173
    $region172: #{tpu_custom_call.1} parent=1 // pred_region
      %331 = dma.done [#allocation20], 16
    $region173: #{tpu_custom_call.1} parent=1 // pred_fallthru
      _
    // Predicated region
    $region174: #{tpu_custom_call.1} parent=1 // pred_check
      _
    $region175: #{tpu_custom_call.1} parent=1 // pred_check_branch
      %333 = sbr.rel (0) target = $region177
    $region176: #{tpu_custom_call.1} parent=1 // pred_region
      %334 = dma.done [#allocation20], 512
    $region177: #{tpu_custom_call.1} parent=1 // pred_fallthru
      _
    // Predicated region
    $region178: #{tpu_custom_call.1} parent=1 // pred_check
      _
    $region179: #{tpu_custom_call.1} parent=1 // pred_check_branch
      %336 = sbr.rel (0) target = $region181
    $region180: #{tpu_custom_call.1} parent=1 // pred_region
      %337 = dma.done [#allocation23], 16
    $region181: #{tpu_custom_call.1} parent=1 // pred_fallthru
      _
    // Predicated region
    $region182: #{tpu_custom_call.1} parent=1 // pred_check
      _
    $region183: #{tpu_custom_call.1} parent=1 // pred_check_branch
      %339 = sbr.rel (0) target = $region185
    $region184: #{tpu_custom_call.1} parent=1 // pred_region
      %340 = dma.done [#allocation23], 512
    $region185: #{tpu_custom_call.1} parent=1 // pred_fallthru
      _
    // Predicated region
    $region186: #{tpu_custom_call.1} parent=1 // pred_check
      _
    $region187: #{tpu_custom_call.1} parent=1 // pred_check_branch
      %342 = sbr.rel (0) target = $region189
    $region188: #{tpu_custom_call.1} parent=1 // pred_region
      %343 = dma.done [#allocation26], 16
    $region189: #{tpu_custom_call.1} parent=1 // pred_fallthru
      _
    // Predicated region
    $region190: #{tpu_custom_call.1} parent=1 // pred_check
      _
    $region191: #{tpu_custom_call.1} parent=1 // pred_check_branch
      %345 = sbr.rel (0) target = $region193
    $region192: #{tpu_custom_call.1} parent=1 // pred_region
      %346 = dma.done [#allocation26], 16
    $region193: #{tpu_custom_call.1} parent=1 // pred_fallthru
      _
    // Predicated region
    $region194: #{tpu_custom_call.1} parent=1 // pred_check
      _
    $region195: #{tpu_custom_call.1} parent=1 // pred_check_branch
      %348 = sbr.rel (0) target = $region197
    $region196: #{tpu_custom_call.1} parent=1 // pred_region
      %349 = dma.done [#allocation29], 512
    $region197: #{tpu_custom_call.1} parent=1 // pred_fallthru
      _
    %v350 = vld [vmem:[#allocation2] sm:$0xff]
    %v351 = vld [vmem:[#allocation2 + $0x8] sm:$0xff]
    %v352 = vld [vmem:[#allocation2 + $0x10] sm:$0x3]
    %v353 = vld [vmem:[%s5] sm:$0xff]
    %v354 = vld [vmem:[%s5 + $0x8] sm:$0xff]
    %v355 = vld [vmem:[%s5 + $0x10] sm:$0xff]
    %v356 = vld [vmem:[%s5 + $0x18] sm:$0xff]
    %v357 = vld [vmem:[#allocation4] sm:$0x1]
    %v358 = vld [vmem:[#allocation6] sm:$0x1]
    %v359 = vld [vmem:[%s11] sm:$0xff]
    %v360 = vld [vmem:[%s11 + $0x8] sm:$0xff]
    %v361 = vld [vmem:[%s11 + $0x10] sm:$0xff]
    %v362 = vld [vmem:[%s11 + $0x18] sm:$0xff]
    %v363 = vld [vmem:[%s13] sm:$0xff]
    %v364 = vld [vmem:[%s13 + $0x8] sm:$0xff]
    %v365 = vld [vmem:[%s13 + $0x10] sm:$0xff]
    %v366 = vld [vmem:[%s13 + $0x18] sm:$0xff]
    %v367 = vld [vmem:[#allocation7] sm:$0x1]
    %v368 = vld [vmem:[#allocation9] sm:$0x1]
    %v369 = vld [vmem:[#allocation10] sm:$0xff]
    %v370 = vld [vmem:[#allocation10 + $0x8] sm:$0x3]
    %v371 = vld [vmem:[%s21] sm:$0xff]
    %v372 = vld [vmem:[%s21 + $0x8] sm:$0xff]
    %v373 = vld [vmem:[%s21 + $0x10] sm:$0xff]
    %v374 = vld [vmem:[%s21 + $0x18] sm:$0xff]
    %v375 = vld [vmem:[#allocation12] sm:$0x1]
    %v376 = vld [vmem:[#allocation13] sm:$0x1]
    %v377 = vld [vmem:[%s27] sm:$0xff]
    %v378 = vld [vmem:[%s27 + $0x8] sm:$0xff]
    %v379 = vld [vmem:[%s27 + $0x10] sm:$0xff]
    %v380 = vld [vmem:[%s27 + $0x18] sm:$0xff]
    %v381 = vld [vmem:[%s29] sm:$0xff]
    %v382 = vld [vmem:[%s29 + $0x8] sm:$0xff]
    %v383 = vld [vmem:[%s29 + $0x10] sm:$0xff]
    %v384 = vld [vmem:[%s29 + $0x18] sm:$0xff]
    %v385 = vld [vmem:[#allocation15] sm:$0x1]
    %v386 = vld [vmem:[#allocation16] sm:$0x1]
    %v387 = vld [vmem:[#allocation18] sm:$0xff]
    %v388 = vld [vmem:[#allocation18 + $0x8] sm:$0xff]
    %v389 = vld [vmem:[#allocation18 + $0x10] sm:$0xff]
    %v390 = vld [vmem:[#allocation18 + $0x18] sm:$0xff]
    %v391 = vld [vmem:[#allocation19] sm:$0x1]
    %v392 = vld [vmem:[#allocation21] sm:$0xff]
    %v393 = vld [vmem:[#allocation21 + $0x8] sm:$0xff]
    %v394 = vld [vmem:[#allocation21 + $0x10] sm:$0xff]
    %v395 = vld [vmem:[#allocation21 + $0x18] sm:$0xff]
    %v396 = vld [vmem:[#allocation22] sm:$0x1]
    %v397 = vld [vmem:[#allocation24] sm:$0xff]
    %v398 = vld [vmem:[#allocation24 + $0x8] sm:$0xff]
    %v399 = vld [vmem:[#allocation24 + $0x10] sm:$0xff]
    %v400 = vld [vmem:[#allocation24 + $0x18] sm:$0xff]
    %v401 = vld [vmem:[#allocation25] sm:$0x1]
    %v402 = vld [vmem:[%s47] sm:$0xff]
    %v403 = vld [vmem:[%s47 + $0x8] sm:$0xff]
    %v404 = vld [vmem:[%s47 + $0x10] sm:$0xff]
    %v405 = vld [vmem:[%s47 + $0x18] sm:$0xff]
    %v406 = vld [vmem:[%s47 + $0x20] sm:$0xff]
    %v407 = vld [vmem:[%s47 + $0x28] sm:$0xff]
    %v408 = vld [vmem:[%s47 + $0x30] sm:$0xff]
    %v409 = vld [vmem:[%s47 + $0x38] sm:$0xff]
    %v410 = vld [vmem:[%s49] sm:$0x1]
    %v411 = vld [vmem:[%s51] sm:$0xff]
    %v412 = vld [vmem:[%s51 + $0x8] sm:$0xff]
    %v413 = vld [vmem:[%s51 + $0x10] sm:$0xff]
    %v414 = vld [vmem:[%s51 + $0x18] sm:$0xff]
    %v415 = vld [vmem:[%s51 + $0x20] sm:$0xff]
    %v416 = vld [vmem:[%s51 + $0x28] sm:$0xff]
    %v417 = vld [vmem:[#allocation27] sm:$0x1]
    %v418 = vld [vmem:[#allocation28] sm:$0xff]
    %v419 = vld [vmem:[#allocation28 + $0x8] sm:$0xff]
    %v420 = vld [vmem:[#allocation28 + $0x10] sm:$0xff]
    %v421 = vld [vmem:[#allocation28 + $0x18] sm:$0xff]
    %v422 = vld [vmem:[%s57] sm:$0x1]
    %v423 = vld [vmem:[%s59] sm:$0xff]
    %v424 = vld [vmem:[%s59 + $0x8] sm:$0xff]
    %v425 = vld [vmem:[%s59 + $0x10] sm:$0xff]
    %v426 = vld [vmem:[%s59 + $0x18] sm:$0xff]
    %v427 = vld [vmem:[%s59 + $0x20] sm:$0xff]
    %v428 = vld [vmem:[%s59 + $0x28] sm:$0xff]
    %v429 = vld [vmem:[%s59 + $0x30] sm:$0xff]
    %v430 = vld [vmem:[%s59 + $0x38] sm:$0xff]
    %v431 = vld [vmem:[%s61] sm:$0x1]
    %v432 = vld [vmem:[%s1] sm:$0xff]
    %v433 = vld [vmem:[%s1 + $0x8] sm:$0xff]
    %v434 = vld [vmem:[%s1 + $0x10] sm:$0xff]
    %v435 = vld [vmem:[%s1 + $0x18] sm:$0xff]
    %440 = vrot.lane.b32.xlu0 %v432, 126
    %v441 = vpop.permute.xlu0 %440
    %442 = vrot.lane.b32.xlu0 %v433, 126
    %v443 = vpop.permute.xlu0 %442
    %444 = vrot.lane.b32.xlu0 %v434, 126
    %v445 = vpop.permute.xlu0 %444
    %446 = vrot.lane.b32.xlu0 %v435, 126
    %v447 = vpop.permute.xlu0 %446
    %vm452 = vcmask 80896
    %v453 = vsel %vm452, %v432, %v441
    %v454 = vsel %vm452, %v433, %v443
    %v455 = vsel %vm452, %v434, %v445
    %v456 = vsel %vm452, %v435, %v447
    %v458 = vlaneseq
    %v459 = vshrl.u32 %v458, 7
    %v460 = vsub.s32 0, %v459
    %v461 = vrot.slane %v357, %v460
    %vm463 = vcmask 146432
    %v465 = vsel %vm463, %v453, 0
    %v468 = vsel %vm463, %v454, 0
    %v471 = vsel %vm463, %v455, 0
    %v474 = vsel %vm463, %v456, 0
    %vm476 = vcmask 1041408
    %v478 = vsel %vm476, %v352, 0
    %480 = vmatprep.subr.mxu0 0.0
    %481 = vmatpush1.msra.mxu0 0.0
    %482 = vmatprep.subr.mxu0 0.0
    %483 = vmatpush1.msra.mxu0 0.0
    %484 = vmatprep.subr.mxu0 0.0
    %485 = vmatpush1.msra.mxu0 0.0
    %486 = vmatprep.subr.mxu0 0.0
    %487 = vmatpush1.msra.mxu0 0.0
    %488 = vmatprep.subr.mxu0 0.0
    %489 = vmatpush1.msra.mxu0 0.0
    %490 = vmatprep.subr.mxu0 0.0
    %491 = vmatpush1.msra.mxu0 0.0
    %492 = vmatprep.subr.mxu0 0.0
    %493 = vmatpush1.msra.mxu0 0.0
    %494 = vmatprep.subr.mxu0 0.0
    %495 = vmatpush1.msra.mxu0 0.0
    %496 = vmatprep.subr.mxu0 0.0
    %497 = vmatpush1.msra.mxu0 0.0
    %498 = vmatprep.subr.mxu0 0.0
    %499 = vmatpush1.msra.mxu0 0.0
    %500 = vmatprep.subr.mxu0 0.0
    %501 = vmatpush1.msra.mxu0 0.0
    %502 = vmatprep.subr.mxu0 0.0
    %503 = vmatpush1.msra.mxu0 0.0
    %504 = vmatprep.subr.mxu0 0.0
    %505 = vmatpush1.msra.mxu0 0.0
    %506 = vmatprep.subr.mxu0 0.0
    %507 = vmatpush1.msra.mxu0 %v478
    %508 = vmatprep.subr.mxu0 0.0
    %509 = vmatpush1.msra.mxu0 %v351
    %510 = vmatprep.subr.mxu0 0.0
    %511 = vmatpush1.msra.mxu0 %v350
    %512 = vmatprep.subr.mxu0 0.0
    %513 = vmatpush2.msra.mxu0 0.0
    %514 = vmatprep.subr.mxu0 0.0
    %515 = vmatpush2.msra.mxu0 0.0
    %516 = vmatprep.subr.mxu0 0.0
    %517 = vmatpush2.msra.mxu0 0.0
    %518 = vmatprep.subr.mxu0 0.0
    %519 = vmatpush2.msra.mxu0 0.0
    %520 = vmatprep.subr.mxu0 0.0
    %521 = vmatpush2.msra.mxu0 0.0
    %522 = vmatprep.subr.mxu0 0.0
    %523 = vmatpush2.msra.mxu0 0.0
    %524 = vmatprep.subr.mxu0 0.0
    %525 = vmatpush2.msra.mxu0 0.0
    %526 = vmatprep.subr.mxu0 0.0
    %527 = vmatpush2.msra.mxu0 0.0
    %528 = vmatprep.subr.mxu0 0.0
    %529 = vmatpush2.msra.mxu0 0.0
    %530 = vmatprep.subr.mxu0 0.0
    %531 = vmatpush2.msra.mxu0 0.0
    %532 = vmatprep.subr.mxu0 0.0
    %533 = vmatpush2.msra.mxu0 0.0
    %534 = vmatprep.subr.mxu0 0.0
    %535 = vmatpush2.msra.mxu0 0.0
    %536 = vmatprep.subr.mxu0 0.0
    %537 = vmatpush2.msra.mxu0 0.0
    %538 = vmatprep.subr.mxu0 0.0
    %539 = vmatpush2.msra.mxu0 0.0
    %540 = vmatprep.subr.mxu0 0.0
    %541 = vmatpush2.msra.mxu0 0.0
    %542 = vmatprep.subr.mxu0 0.0
    %543 = vmatpush2.msra.mxu0 0.0
    %544 = vmatprep.mubr.f32.mxu0 0.0
    %545 = vmatmul.mubr.f32.gmra.mxu0 %v465
    %v546 = vpop.f32.mrf.mxu0
    %v547 = vadd.f32 %v461, %v546
    %v548 = vpop.f32.mrf.mxu0
    %549 = vmatprep.mubr.f32.mxu0 0.0
    %550 = vmatmul.mubr.f32.gmra.mxu0 %v468
    %v551 = vpop.f32.mrf.mxu0
    %v552 = vadd.f32 %v461, %v551
    %v553 = vpop.f32.mrf.mxu0
    %554 = vmatprep.mubr.f32.mxu0 0.0
    %555 = vmatmul.mubr.f32.gmra.mxu0 %v471
    %v556 = vpop.f32.mrf.mxu0
    %v557 = vadd.f32 %v461, %v556
    %v558 = vpop.f32.mrf.mxu0
    %559 = vmatprep.mubr.f32.mxu0 0.0
    %560 = vmatmul.mubr.f32.gmra.mxu0 %v474
    %v561 = vpop.f32.mrf.mxu0
    %v562 = vadd.f32 %v461, %v561
    %v563 = vpop.f32.mrf.mxu0
    %564 = vdwg.mxu0
    %v566 = vlaneseq
    %v567 = vshrl.u32 %v566, 7
    %v568 = vsub.s32 0, %v567
    %v569 = vrot.slane %v358, %v568
    %vm571 = vcmask 261120
    %v573 = vsel %vm571, 0.0, 0
    %575 = vmatprep.subr.mxu0 0.0
    %576 = vmatpush1.msra.mxu0 0.0
    %577 = vmatprep.subr.mxu0 0.0
    %578 = vmatpush1.msra.mxu0 0.0
    %579 = vmatprep.subr.mxu0 0.0
    %580 = vmatpush1.msra.mxu0 0.0
    %581 = vmatprep.subr.mxu0 0.0
    %582 = vmatpush1.msra.mxu0 0.0
    %583 = vmatprep.subr.mxu0 0.0
    %584 = vmatpush1.msra.mxu0 0.0
    %585 = vmatprep.subr.mxu0 0.0
    %586 = vmatpush1.msra.mxu0 0.0
    %587 = vmatprep.subr.mxu0 0.0
    %588 = vmatpush1.msra.mxu0 0.0
    %589 = vmatprep.subr.mxu0 0.0
    %590 = vmatpush1.msra.mxu0 0.0
    %591 = vmatprep.subr.mxu0 0.0
    %592 = vmatpush1.msra.mxu0 0.0
    %593 = vmatprep.subr.mxu0 0.0
    %594 = vmatpush1.msra.mxu0 0.0
    %595 = vmatprep.subr.mxu0 0.0
    %596 = vmatpush1.msra.mxu0 0.0
    %597 = vmatprep.subr.mxu0 0.0
    %598 = vmatpush1.msra.mxu0 0.0
    %599 = vmatprep.subr.mxu0 0.0
    %600 = vmatpush1.msra.mxu0 %v356
    %601 = vmatprep.subr.mxu0 0.0
    %602 = vmatpush1.msra.mxu0 %v355
    %603 = vmatprep.subr.mxu0 0.0
    %604 = vmatpush1.msra.mxu0 %v354
    %605 = vmatprep.subr.mxu0 0.0
    %606 = vmatpush1.msra.mxu0 %v353
    %607 = vmatprep.subr.mxu0 0.0
    %608 = vmatpush2.msra.mxu0 0.0
    %609 = vmatprep.subr.mxu0 0.0
    %610 = vmatpush2.msra.mxu0 0.0
    %611 = vmatprep.subr.mxu0 0.0
    %612 = vmatpush2.msra.mxu0 0.0
    %613 = vmatprep.subr.mxu0 0.0
    %614 = vmatpush2.msra.mxu0 0.0
    %615 = vmatprep.subr.mxu0 0.0
    %616 = vmatpush2.msra.mxu0 0.0
    %617 = vmatprep.subr.mxu0 0.0
    %618 = vmatpush2.msra.mxu0 0.0
    %619 = vmatprep.subr.mxu0 0.0
    %620 = vmatpush2.msra.mxu0 0.0
    %621 = vmatprep.subr.mxu0 0.0
    %622 = vmatpush2.msra.mxu0 0.0
    %623 = vmatprep.subr.mxu0 0.0
    %624 = vmatpush2.msra.mxu0 0.0
    %625 = vmatprep.subr.mxu0 0.0
    %626 = vmatpush2.msra.mxu0 0.0
    %627 = vmatprep.subr.mxu0 0.0
    %628 = vmatpush2.msra.mxu0 0.0
    %629 = vmatprep.subr.mxu0 0.0
    %630 = vmatpush2.msra.mxu0 0.0
    %631 = vmatprep.subr.mxu0 0.0
    %632 = vmatpush2.msra.mxu0 0.0
    %633 = vmatprep.subr.mxu0 0.0
    %634 = vmatpush2.msra.mxu0 0.0
    %635 = vmatprep.subr.mxu0 0.0
    %636 = vmatpush2.msra.mxu0 0.0
    %637 = vmatprep.subr.mxu0 0.0
    %638 = vmatpush2.msra.mxu0 0.0
    %639 = vmatprep.mubr.f32.mxu0 0.0
    %640 = vmatmul.mubr.f32.gmra.mxu0 %v573
    %v641 = vpop.f32.mrf.mxu0
    %v642 = vadd.f32 %v569, %v641
    %v643 = vpop.f32.mrf.mxu0
    %644 = vdwg.mxu0
    %v646 = vrot.slane %v642, 1
    %v647 = vrot.slane %v642, 2
    %v648 = vrot.slane %v642, 3
    %v653 = vadd.f32 %v547, %v642
    %v654 = vadd.f32 %v552, %v646
    %v655 = vadd.f32 %v557, %v647
    %v656 = vadd.f32 %v562, %v648
    %v657 = vxor.u32 %v653, 2147483648
    %v658 = vxor.u32 %v654, 2147483648
    %v659 = vxor.u32 %v655, 2147483648
    %v660 = vxor.u32 %v656, 2147483648
    %v661 = vmul.f32 %v657, 1.442695
    %v662 = vpow.pop %v661
    %v663 = vmul.f32 %v658, 1.442695
    %v664 = vpow.pop %v663
    %v665 = vmul.f32 %v659, 1.442695
    %v666 = vpow.pop %v665
    %v667 = vmul.f32 %v660, 1.442695
    %v668 = vpow.pop %v667
    %v669 = vadd.f32 %v662, 1.0
    %v670 = vadd.f32 %v664, 1.0
    %v671 = vadd.f32 %v666, 1.0
    %v672 = vadd.f32 %v668, 1.0
    %v673 = vrcp.pop %v669
    %v674 = vmul.f32 1.0, %v673
    %v675 = vrcp.pop %v670
    %v676 = vmul.f32 1.0, %v675
    %v677 = vrcp.pop %v671
    %v678 = vmul.f32 1.0, %v677
    %v679 = vrcp.pop %v672
    %v680 = vmul.f32 1.0, %v679
    %681 = vrot.lane.b32.xlu0 %v642, 64
    %v682 = vpop.permute.xlu0 %681
    %683 = vrot.lane.b32.xlu0 %v646, 64
    %v684 = vpop.permute.xlu0 %683
    %685 = vrot.lane.b32.xlu0 %v647, 64
    %v686 = vpop.permute.xlu0 %685
    %687 = vrot.lane.b32.xlu0 %v648, 64
    %v688 = vpop.permute.xlu0 %687
    %v693 = vmul.f32 %v674, %v682
    %v694 = vmul.f32 %v676, %v684
    %v695 = vmul.f32 %v678, %v686
    %v696 = vmul.f32 %v680, %v688
    %701 = vrot.lane.b32.xlu0 %v693, 64
    %v702 = vpop.permute.xlu0 %701
    %703 = vrot.lane.b32.xlu0 %v694, 64
    %v704 = vpop.permute.xlu0 %703
    %705 = vrot.lane.b32.xlu0 %v695, 64
    %v706 = vpop.permute.xlu0 %705
    %707 = vrot.lane.b32.xlu0 %v696, 64
    %v708 = vpop.permute.xlu0 %707
    %v713 = vadd.f32 %v547, %v702
    %v714 = vadd.f32 %v552, %v704
    %v715 = vadd.f32 %v557, %v706
    %v716 = vadd.f32 %v562, %v708
    %v717 = vtanh.pop %v713
    %v718 = vtanh.pop %v714
    %v719 = vtanh.pop %v715
    %v720 = vtanh.pop %v716
    %v721 = vsub.f32 1.0, %v674
    %v722 = vsub.f32 1.0, %v676
    %v723 = vsub.f32 1.0, %v678
    %v724 = vsub.f32 1.0, %v680
    %729 = vrot.lane.b32.xlu0 %v717, 96
    %v730 = vpop.permute.xlu0 %729
    %731 = vrot.lane.b32.xlu0 %v718, 96
    %v732 = vpop.permute.xlu0 %731
    %733 = vrot.lane.b32.xlu0 %v719, 96
    %v734 = vpop.permute.xlu0 %733
    %735 = vrot.lane.b32.xlu0 %v720, 96
    %v736 = vpop.permute.xlu0 %735
    %v741 = vmul.f32 %v721, %v730
    %v742 = vmul.f32 %v722, %v732
    %v743 = vmul.f32 %v723, %v734
    %v744 = vmul.f32 %v724, %v736
    %v745 = vmul.f32 %v674, 0.0
    %v746 = vmul.f32 %v676, 0.0
    %v747 = vmul.f32 %v678, 0.0
    %v748 = vmul.f32 %v680, 0.0
    %v749 = vadd.f32 %v741, %v745
    %v750 = vadd.f32 %v742, %v746
    %v751 = vadd.f32 %v743, %v747
    %v752 = vadd.f32 %v744, %v748
    %v757 = vrot.slane %v750, 7
    %vm758 = vcmask 1041409
    %v759 = vsel %vm758, %v757, %v749
    %v760 = vrot.slane %v751, 6
    %vm761 = vcmask 1042434
    %v762 = vsel %vm761, %v760, %v759
    %v763 = vrot.slane %v752, 5
    %vm764 = vcmask 1043459
    %v765 = vsel %vm764, %v763, %v762
    %766 = vrot.lane.b32.xlu0 %v765, 96
    %v767 = vpop.permute.xlu0 %766
    %v768 = vsel %vm571, %v767, 0
    %770 = vmatprep.subr.mxu0 0.0
    %771 = vmatpush1.msra.mxu0 0.0
    %772 = vmatprep.subr.mxu0 0.0
    %773 = vmatpush1.msra.mxu0 0.0
    %774 = vmatprep.subr.mxu0 0.0
    %775 = vmatpush1.msra.mxu0 0.0
    %776 = vmatprep.subr.mxu0 0.0
    %777 = vmatpush1.msra.mxu0 0.0
    %778 = vmatprep.subr.mxu0 0.0
    %779 = vmatpush1.msra.mxu0 0.0
    %780 = vmatprep.subr.mxu0 0.0
    %781 = vmatpush1.msra.mxu0 0.0
    %782 = vmatprep.subr.mxu0 0.0
    %783 = vmatpush1.msra.mxu0 0.0
    %784 = vmatprep.subr.mxu0 0.0
    %785 = vmatpush1.msra.mxu0 0.0
    %786 = vmatprep.subr.mxu0 0.0
    %787 = vmatpush1.msra.mxu0 0.0
    %788 = vmatprep.subr.mxu0 0.0
    %789 = vmatpush1.msra.mxu0 0.0
    %790 = vmatprep.subr.mxu0 0.0
    %791 = vmatpush1.msra.mxu0 0.0
    %792 = vmatprep.subr.mxu0 0.0
    %793 = vmatpush1.msra.mxu0 0.0
    %794 = vmatprep.subr.mxu0 0.0
    %795 = vmatpush1.msra.mxu0 %v356
    %796 = vmatprep.subr.mxu0 0.0
    %797 = vmatpush1.msra.mxu0 %v355
    %798 = vmatprep.subr.mxu0 0.0
    %799 = vmatpush1.msra.mxu0 %v354
    %800 = vmatprep.subr.mxu0 0.0
    %801 = vmatpush1.msra.mxu0 %v353
    %802 = vmatprep.subr.mxu0 0.0
    %803 = vmatpush2.msra.mxu0 0.0
    %804 = vmatprep.subr.mxu0 0.0
    %805 = vmatpush2.msra.mxu0 0.0
    %806 = vmatprep.subr.mxu0 0.0
    %807 = vmatpush2.msra.mxu0 0.0
    %808 = vmatprep.subr.mxu0 0.0
    %809 = vmatpush2.msra.mxu0 0.0
    %810 = vmatprep.subr.mxu0 0.0
    %811 = vmatpush2.msra.mxu0 0.0
    %812 = vmatprep.subr.mxu0 0.0
    %813 = vmatpush2.msra.mxu0 0.0
    %814 = vmatprep.subr.mxu0 0.0
    %815 = vmatpush2.msra.mxu0 0.0
    %816 = vmatprep.subr.mxu0 0.0
    %817 = vmatpush2.msra.mxu0 0.0
    %818 = vmatprep.subr.mxu0 0.0
    %819 = vmatpush2.msra.mxu0 0.0
    %820 = vmatprep.subr.mxu0 0.0
    %821 = vmatpush2.msra.mxu0 0.0
    %822 = vmatprep.subr.mxu0 0.0
    %823 = vmatpush2.msra.mxu0 0.0
    %824 = vmatprep.subr.mxu0 0.0
    %825 = vmatpush2.msra.mxu0 0.0
    %826 = vmatprep.subr.mxu0 0.0
    %827 = vmatpush2.msra.mxu0 0.0
    %828 = vmatprep.subr.mxu0 0.0
    %829 = vmatpush2.msra.mxu0 0.0
    %830 = vmatprep.subr.mxu0 0.0
    %831 = vmatpush2.msra.mxu0 0.0
    %832 = vmatprep.subr.mxu0 0.0
    %833 = vmatpush2.msra.mxu0 0.0
    %834 = vmatprep.mubr.f32.mxu0 0.0
    %835 = vmatmul.mubr.f32.gmra.mxu0 %v768
    %v836 = vpop.f32.mrf.mxu0
    %v837 = vadd.f32 %v569, %v836
    %v838 = vpop.f32.mrf.mxu0
    %839 = vdwg.mxu0
    %v841 = vrot.slane %v837, 7
    %v842 = vrot.slane %v837, 1
    %v843 = vrot.slane %v837, 2
    %v848 = vadd.f32 %v547, %v841
    %v849 = vadd.f32 %v552, %v837
    %v850 = vadd.f32 %v557, %v842
    %v851 = vadd.f32 %v562, %v843
    %v852 = vxor.u32 %v848, 2147483648
    %v853 = vxor.u32 %v849, 2147483648
    %v854 = vxor.u32 %v850, 2147483648
    %v855 = vxor.u32 %v851, 2147483648
    %v856 = vmul.f32 %v852, 1.442695
    %v857 = vpow.pop %v856
    %v858 = vmul.f32 %v853, 1.442695
    %v859 = vpow.pop %v858
    %v860 = vmul.f32 %v854, 1.442695
    %v861 = vpow.pop %v860
    %v862 = vmul.f32 %v855, 1.442695
    %v863 = vpow.pop %v862
    %v864 = vadd.f32 %v857, 1.0
    %v865 = vadd.f32 %v859, 1.0
    %v866 = vadd.f32 %v861, 1.0
    %v867 = vadd.f32 %v863, 1.0
    %v868 = vrcp.pop %v864
    %v869 = vmul.f32 1.0, %v868
    %v870 = vrcp.pop %v865
    %v871 = vmul.f32 1.0, %v870
    %v872 = vrcp.pop %v866
    %v873 = vmul.f32 1.0, %v872
    %v874 = vrcp.pop %v867
    %v875 = vmul.f32 1.0, %v874
    %876 = vrot.lane.b32.xlu0 %v841, 64
    %v877 = vpop.permute.xlu0 %876
    %878 = vrot.lane.b32.xlu0 %v837, 64
    %v879 = vpop.permute.xlu0 %878
    %880 = vrot.lane.b32.xlu0 %v842, 64
    %v881 = vpop.permute.xlu0 %880
    %882 = vrot.lane.b32.xlu0 %v843, 64
    %v883 = vpop.permute.xlu0 %882
    %v888 = vmul.f32 %v869, %v877
    %v889 = vmul.f32 %v871, %v879
    %v890 = vmul.f32 %v873, %v881
    %v891 = vmul.f32 %v875, %v883
    %896 = vrot.lane.b32.xlu0 %v888, 64
    %v897 = vpop.permute.xlu0 %896
    %898 = vrot.lane.b32.xlu0 %v889, 64
    %v899 = vpop.permute.xlu0 %898
    %900 = vrot.lane.b32.xlu0 %v890, 64
    %v901 = vpop.permute.xlu0 %900
    %902 = vrot.lane.b32.xlu0 %v891, 64
    %v903 = vpop.permute.xlu0 %902
    %v908 = vadd.f32 %v547, %v897
    %v909 = vadd.f32 %v552, %v899
    %v910 = vadd.f32 %v557, %v901
    %v911 = vadd.f32 %v562, %v903
    %v912 = vtanh.pop %v908
    %v913 = vtanh.pop %v909
    %v914 = vtanh.pop %v910
    %v915 = vtanh.pop %v911
    %v916 = vsub.f32 1.0, %v869
    %v917 = vsub.f32 1.0, %v871
    %v918 = vsub.f32 1.0, %v873
    %v919 = vsub.f32 1.0, %v875
    %924 = vrot.lane.b32.xlu0 %v912, 96
    %v925 = vpop.permute.xlu0 %924
    %926 = vrot.lane.b32.xlu0 %v913, 96
    %v927 = vpop.permute.xlu0 %926
    %928 = vrot.lane.b32.xlu0 %v914, 96
    %v929 = vpop.permute.xlu0 %928
    %930 = vrot.lane.b32.xlu0 %v915, 96
    %v931 = vpop.permute.xlu0 %930
    %v936 = vmul.f32 %v916, %v925
    %v937 = vmul.f32 %v917, %v927
    %v938 = vmul.f32 %v918, %v929
    %v939 = vmul.f32 %v919, %v931
    %v940 = vrot.slane %v749, 7
    %v941 = vrot.slane %v751, 7
    %v942 = vrot.slane %v752, 7
    %v947 = vmul.f32 %v869, %v940
    %v948 = vmul.f32 %v871, %v757
    %v949 = vmul.f32 %v873, %v941
    %v950 = vmul.f32 %v875, %v942
    %v951 = vadd.f32 %v936, %v947
    %v952 = vadd.f32 %v937, %v948
    %v953 = vadd.f32 %v938, %v949
    %v954 = vadd.f32 %v939, %v950
    %v959 = vrot.slane %v951, 1
    %v960 = vsel %vm758, %v952, %v959
    %v961 = vrot.slane %v953, 7
    %v962 = vsel %vm761, %v961, %v960
    %v963 = vrot.slane %v954, 6
    %v964 = vsel %vm764, %v963, %v962
    %965 = vrot.lane.b32.xlu0 %v964, 96
    %v966 = vpop.permute.xlu0 %965
    %v967 = vsel %vm571, %v966, 0
    %969 = vmatprep.subr.mxu0 0.0
    %970 = vmatpush1.msra.mxu0 0.0
    %971 = vmatprep.subr.mxu0 0.0
    %972 = vmatpush1.msra.mxu0 0.0
    %973 = vmatprep.subr.mxu0 0.0
    %974 = vmatpush1.msra.mxu0 0.0
    %975 = vmatprep.subr.mxu0 0.0
    %976 = vmatpush1.msra.mxu0 0.0
    %977 = vmatprep.subr.mxu0 0.0
    %978 = vmatpush1.msra.mxu0 0.0
    %979 = vmatprep.subr.mxu0 0.0
    %980 = vmatpush1.msra.mxu0 0.0
    %981 = vmatprep.subr.mxu0 0.0
    %982 = vmatpush1.msra.mxu0 0.0
    %983 = vmatprep.subr.mxu0 0.0
    %984 = vmatpush1.msra.mxu0 0.0
    %985 = vmatprep.subr.mxu0 0.0
    %986 = vmatpush1.msra.mxu0 0.0
    %987 = vmatprep.subr.mxu0 0.0
    %988 = vmatpush1.msra.mxu0 0.0
    %989 = vmatprep.subr.mxu0 0.0
    %990 = vmatpush1.msra.mxu0 0.0
    %991 = vmatprep.subr.mxu0 0.0
    %992 = vmatpush1.msra.mxu0 0.0
    %993 = vmatprep.subr.mxu0 0.0
    %994 = vmatpush1.msra.mxu0 %v356
    %995 = vmatprep.subr.mxu0 0.0
    %996 = vmatpush1.msra.mxu0 %v355
    %997 = vmatprep.subr.mxu0 0.0
    %998 = vmatpush1.msra.mxu0 %v354
    %999 = vmatprep.subr.mxu0 0.0
    %1000 = vmatpush1.msra.mxu0 %v353
    %1001 = vmatprep.subr.mxu0 0.0
    %1002 = vmatpush2.msra.mxu0 0.0
    %1003 = vmatprep.subr.mxu0 0.0
    %1004 = vmatpush2.msra.mxu0 0.0
    %1005 = vmatprep.subr.mxu0 0.0
    %1006 = vmatpush2.msra.mxu0 0.0
    %1007 = vmatprep.subr.mxu0 0.0
    %1008 = vmatpush2.msra.mxu0 0.0
    %1009 = vmatprep.subr.mxu0 0.0
    %1010 = vmatpush2.msra.mxu0 0.0
    %1011 = vmatprep.subr.mxu0 0.0
    %1012 = vmatpush2.msra.mxu0 0.0
    %1013 = vmatprep.subr.mxu0 0.0
    %1014 = vmatpush2.msra.mxu0 0.0
    %1015 = vmatprep.subr.mxu0 0.0
    %1016 = vmatpush2.msra.mxu0 0.0
    %1017 = vmatprep.subr.mxu0 0.0
    %1018 = vmatpush2.msra.mxu0 0.0
    %1019 = vmatprep.subr.mxu0 0.0
    %1020 = vmatpush2.msra.mxu0 0.0
    %1021 = vmatprep.subr.mxu0 0.0
    %1022 = vmatpush2.msra.mxu0 0.0
    %1023 = vmatprep.subr.mxu0 0.0
    %1024 = vmatpush2.msra.mxu0 0.0
    %1025 = vmatprep.subr.mxu0 0.0
    %1026 = vmatpush2.msra.mxu0 0.0
    %1027 = vmatprep.subr.mxu0 0.0
    %1028 = vmatpush2.msra.mxu0 0.0
    %1029 = vmatprep.subr.mxu0 0.0
    %1030 = vmatpush2.msra.mxu0 0.0
    %1031 = vmatprep.subr.mxu0 0.0
    %1032 = vmatpush2.msra.mxu0 0.0
    %1033 = vmatprep.mubr.f32.mxu0 0.0
    %1034 = vmatmul.mubr.f32.gmra.mxu0 %v967
    %v1035 = vpop.f32.mrf.mxu0
    %v1036 = vadd.f32 %v569, %v1035
    %v1037 = vpop.f32.mrf.mxu0
    %1038 = vdwg.mxu0
    %v1040 = vrot.slane %v1036, 6
    %v1041 = vrot.slane %v1036, 7
    %v1042 = vrot.slane %v1036, 1
    %v1047 = vadd.f32 %v547, %v1040
    %v1048 = vadd.f32 %v552, %v1041
    %v1049 = vadd.f32 %v557, %v1036
    %v1050 = vadd.f32 %v562, %v1042
    %v1051 = vxor.u32 %v1047, 2147483648
    %v1052 = vxor.u32 %v1048, 2147483648
    %v1053 = vxor.u32 %v1049, 2147483648
    %v1054 = vxor.u32 %v1050, 2147483648
    %v1055 = vmul.f32 %v1051, 1.442695
    %v1056 = vpow.pop %v1055
    %v1057 = vmul.f32 %v1052, 1.442695
    %v1058 = vpow.pop %v1057
    %v1059 = vmul.f32 %v1053, 1.442695
    %v1060 = vpow.pop %v1059
    %v1061 = vmul.f32 %v1054, 1.442695
    %v1062 = vpow.pop %v1061
    %v1063 = vadd.f32 %v1056, 1.0
    %v1064 = vadd.f32 %v1058, 1.0
    %v1065 = vadd.f32 %v1060, 1.0
    %v1066 = vadd.f32 %v1062, 1.0
    %v1067 = vrcp.pop %v1063
    %v1068 = vmul.f32 1.0, %v1067
    %v1069 = vrcp.pop %v1064
    %v1070 = vmul.f32 1.0, %v1069
    %v1071 = vrcp.pop %v1065
    %v1072 = vmul.f32 1.0, %v1071
    %v1073 = vrcp.pop %v1066
    %v1074 = vmul.f32 1.0, %v1073
    %1075 = vrot.lane.b32.xlu0 %v1040, 64
    %v1076 = vpop.permute.xlu0 %1075
    %1077 = vrot.lane.b32.xlu0 %v1041, 64
    %v1078 = vpop.permute.xlu0 %1077
    %1079 = vrot.lane.b32.xlu0 %v1036, 64
    %v1080 = vpop.permute.xlu0 %1079
    %1081 = vrot.lane.b32.xlu0 %v1042, 64
    %v1082 = vpop.permute.xlu0 %1081
    %v1087 = vmul.f32 %v1068, %v1076
    %v1088 = vmul.f32 %v1070, %v1078
    %v1089 = vmul.f32 %v1072, %v1080
    %v1090 = vmul.f32 %v1074, %v1082
    %1095 = vrot.lane.b32.xlu0 %v1087, 64
    %v1096 = vpop.permute.xlu0 %1095
    %1097 = vrot.lane.b32.xlu0 %v1088, 64
    %v1098 = vpop.permute.xlu0 %1097
    %1099 = vrot.lane.b32.xlu0 %v1089, 64
    %v1100 = vpop.permute.xlu0 %1099
    %1101 = vrot.lane.b32.xlu0 %v1090, 64
    %v1102 = vpop.permute.xlu0 %1101
    %v1107 = vadd.f32 %v547, %v1096
    %v1108 = vadd.f32 %v552, %v1098
    %v1109 = vadd.f32 %v557, %v1100
    %v1110 = vadd.f32 %v562, %v1102
    %v1111 = vtanh.pop %v1107
    %v1112 = vtanh.pop %v1108
    %v1113 = vtanh.pop %v1109
    %v1114 = vtanh.pop %v1110
    %v1115 = vsub.f32 1.0, %v1068
    %v1116 = vsub.f32 1.0, %v1070
    %v1117 = vsub.f32 1.0, %v1072
    %v1118 = vsub.f32 1.0, %v1074
    %1123 = vrot.lane.b32.xlu0 %v1111, 96
    %v1124 = vpop.permute.xlu0 %1123
    %1125 = vrot.lane.b32.xlu0 %v1112, 96
    %v1126 = vpop.permute.xlu0 %1125
    %1127 = vrot.lane.b32.xlu0 %v1113, 96
    %v1128 = vpop.permute.xlu0 %1127
    %1129 = vrot.lane.b32.xlu0 %v1114, 96
    %v1130 = vpop.permute.xlu0 %1129
    %v1135 = vmul.f32 %v1115, %v1124
    %v1136 = vmul.f32 %v1116, %v1126
    %v1137 = vmul.f32 %v1117, %v1128
    %v1138 = vmul.f32 %v1118, %v1130
    %v1139 = vrot.slane %v951, 7
    %v1140 = vrot.slane %v952, 7
    %v1141 = vrot.slane %v954, 7
    %v1146 = vmul.f32 %v1068, %v1139
    %v1147 = vmul.f32 %v1070, %v1140
    %v1148 = vmul.f32 %v1072, %v961
    %v1149 = vmul.f32 %v1074, %v1141
    %v1150 = vadd.f32 %v1135, %v1146
    %v1151 = vadd.f32 %v1136, %v1147
    %v1152 = vadd.f32 %v1137, %v1148
    %v1153 = vadd.f32 %v1138, %v1149
    %v1158 = vrot.slane %v1150, 2
    %v1159 = vrot.slane %v1151, 1
    %v1160 = vsel %vm758, %v1159, %v1158
    %v1161 = vsel %vm761, %v1152, %v1160
    %v1162 = vrot.slane %v1153, 7
    %v1163 = vsel %vm764, %v1162, %v1161
    %1164 = vrot.lane.b32.xlu0 %v1163, 96
    %v1165 = vpop.permute.xlu0 %1164
    %v1166 = vsel %vm571, %v1165, 0
    %1168 = vmatprep.subr.mxu0 0.0
    %1169 = vmatpush1.msra.mxu0 0.0
    %1170 = vmatprep.subr.mxu0 0.0
    %1171 = vmatpush1.msra.mxu0 0.0
    %1172 = vmatprep.subr.mxu0 0.0
    %1173 = vmatpush1.msra.mxu0 0.0
    %1174 = vmatprep.subr.mxu0 0.0
    %1175 = vmatpush1.msra.mxu0 0.0
    %1176 = vmatprep.subr.mxu0 0.0
    %1177 = vmatpush1.msra.mxu0 0.0
    %1178 = vmatprep.subr.mxu0 0.0
    %1179 = vmatpush1.msra.mxu0 0.0
    %1180 = vmatprep.subr.mxu0 0.0
    %1181 = vmatpush1.msra.mxu0 0.0
    %1182 = vmatprep.subr.mxu0 0.0
    %1183 = vmatpush1.msra.mxu0 0.0
    %1184 = vmatprep.subr.mxu0 0.0
    %1185 = vmatpush1.msra.mxu0 0.0
    %1186 = vmatprep.subr.mxu0 0.0
    %1187 = vmatpush1.msra.mxu0 0.0
    %1188 = vmatprep.subr.mxu0 0.0
    %1189 = vmatpush1.msra.mxu0 0.0
    %1190 = vmatprep.subr.mxu0 0.0
    %1191 = vmatpush1.msra.mxu0 0.0
    %1192 = vmatprep.subr.mxu0 0.0
    %1193 = vmatpush1.msra.mxu0 %v356
    %1194 = vmatprep.subr.mxu0 0.0
    %1195 = vmatpush1.msra.mxu0 %v355
    %1196 = vmatprep.subr.mxu0 0.0
    %1197 = vmatpush1.msra.mxu0 %v354
    %1198 = vmatprep.subr.mxu0 0.0
    %1199 = vmatpush1.msra.mxu0 %v353
    %1200 = vmatprep.subr.mxu0 0.0
    %1201 = vmatpush2.msra.mxu0 0.0
    %1202 = vmatprep.subr.mxu0 0.0
    %1203 = vmatpush2.msra.mxu0 0.0
    %1204 = vmatprep.subr.mxu0 0.0
    %1205 = vmatpush2.msra.mxu0 0.0
    %1206 = vmatprep.subr.mxu0 0.0
    %1207 = vmatpush2.msra.mxu0 0.0
    %1208 = vmatprep.subr.mxu0 0.0
    %1209 = vmatpush2.msra.mxu0 0.0
    %1210 = vmatprep.subr.mxu0 0.0
    %1211 = vmatpush2.msra.mxu0 0.0
    %1212 = vmatprep.subr.mxu0 0.0
    %1213 = vmatpush2.msra.mxu0 0.0
    %1214 = vmatprep.subr.mxu0 0.0
    %1215 = vmatpush2.msra.mxu0 0.0
    %1216 = vmatprep.subr.mxu0 0.0
    %1217 = vmatpush2.msra.mxu0 0.0
    %1218 = vmatprep.subr.mxu0 0.0
    %1219 = vmatpush2.msra.mxu0 0.0
    %1220 = vmatprep.subr.mxu0 0.0
    %1221 = vmatpush2.msra.mxu0 0.0
    %1222 = vmatprep.subr.mxu0 0.0
    %1223 = vmatpush2.msra.mxu0 0.0
    %1224 = vmatprep.subr.mxu0 0.0
    %1225 = vmatpush2.msra.mxu0 0.0
    %1226 = vmatprep.subr.mxu0 0.0
    %1227 = vmatpush2.msra.mxu0 0.0
    %1228 = vmatprep.subr.mxu0 0.0
    %1229 = vmatpush2.msra.mxu0 0.0
    %1230 = vmatprep.subr.mxu0 0.0
    %1231 = vmatpush2.msra.mxu0 0.0
    %1232 = vmatprep.mubr.f32.mxu0 0.0
    %1233 = vmatmul.mubr.f32.gmra.mxu0 %v1166
    %v1234 = vpop.f32.mrf.mxu0
    %v1235 = vadd.f32 %v569, %v1234
    %v1236 = vpop.f32.mrf.mxu0
    %1237 = vdwg.mxu0
    %v1239 = vrot.slane %v1235, 5
    %v1240 = vrot.slane %v1235, 6
    %v1241 = vrot.slane %v1235, 7
    %v1246 = vadd.f32 %v547, %v1239
    %v1247 = vadd.f32 %v552, %v1240
    %v1248 = vadd.f32 %v557, %v1241
    %v1249 = vadd.f32 %v562, %v1235
    %v1250 = vxor.u32 %v1246, 2147483648
    %v1251 = vxor.u32 %v1247, 2147483648
    %v1252 = vxor.u32 %v1248, 2147483648
    %v1253 = vxor.u32 %v1249, 2147483648
    %v1254 = vmul.f32 %v1250, 1.442695
    %v1255 = vpow.pop %v1254
    %v1256 = vmul.f32 %v1251, 1.442695
    %v1257 = vpow.pop %v1256
    %v1258 = vmul.f32 %v1252, 1.442695
    %v1259 = vpow.pop %v1258
    %v1260 = vmul.f32 %v1253, 1.442695
    %v1261 = vpow.pop %v1260
    %v1262 = vadd.f32 %v1255, 1.0
    %v1263 = vadd.f32 %v1257, 1.0
    %v1264 = vadd.f32 %v1259, 1.0
    %v1265 = vadd.f32 %v1261, 1.0
    %v1266 = vrcp.pop %v1262
    %v1267 = vmul.f32 1.0, %v1266
    %v1268 = vrcp.pop %v1263
    %v1269 = vmul.f32 1.0, %v1268
    %v1270 = vrcp.pop %v1264
    %v1271 = vmul.f32 1.0, %v1270
    %v1272 = vrcp.pop %v1265
    %v1273 = vmul.f32 1.0, %v1272
    %1274 = vrot.lane.b32.xlu0 %v1239, 64
    %v1275 = vpop.permute.xlu0 %1274
    %1276 = vrot.lane.b32.xlu0 %v1240, 64
    %v1277 = vpop.permute.xlu0 %1276
    %1278 = vrot.lane.b32.xlu0 %v1241, 64
    %v1279 = vpop.permute.xlu0 %1278
    %1280 = vrot.lane.b32.xlu0 %v1235, 64
    %v1281 = vpop.permute.xlu0 %1280
    %v1286 = vmul.f32 %v1267, %v1275
    %v1287 = vmul.f32 %v1269, %v1277
    %v1288 = vmul.f32 %v1271, %v1279
    %v1289 = vmul.f32 %v1273, %v1281
    %1294 = vrot.lane.b32.xlu0 %v1286, 64
    %v1295 = vpop.permute.xlu0 %1294
    %1296 = vrot.lane.b32.xlu0 %v1287, 64
    %v1297 = vpop.permute.xlu0 %1296
    %1298 = vrot.lane.b32.xlu0 %v1288, 64
    %v1299 = vpop.permute.xlu0 %1298
    %1300 = vrot.lane.b32.xlu0 %v1289, 64
    %v1301 = vpop.permute.xlu0 %1300
    %v1306 = vadd.f32 %v547, %v1295
    %v1307 = vadd.f32 %v552, %v1297
    %v1308 = vadd.f32 %v557, %v1299
    %v1309 = vadd.f32 %v562, %v1301
    %v1310 = vtanh.pop %v1306
    %v1311 = vtanh.pop %v1307
    %v1312 = vtanh.pop %v1308
    %v1313 = vtanh.pop %v1309
    %v1314 = vsub.f32 1.0, %v1267
    %v1315 = vsub.f32 1.0, %v1269
    %v1316 = vsub.f32 1.0, %v1271
    %v1317 = vsub.f32 1.0, %v1273
    %1322 = vrot.lane.b32.xlu0 %v1310, 96
    %v1323 = vpop.permute.xlu0 %1322
    %1324 = vrot.lane.b32.xlu0 %v1311, 96
    %v1325 = vpop.permute.xlu0 %1324
    %1326 = vrot.lane.b32.xlu0 %v1312, 96
    %v1327 = vpop.permute.xlu0 %1326
    %1328 = vrot.lane.b32.xlu0 %v1313, 96
    %v1329 = vpop.permute.xlu0 %1328
    %v1334 = vmul.f32 %v1314, %v1323
    %v1335 = vmul.f32 %v1315, %v1325
    %v1336 = vmul.f32 %v1316, %v1327
    %v1337 = vmul.f32 %v1317, %v1329
    %v1338 = vrot.slane %v1150, 7
    %v1339 = vrot.slane %v1151, 7
    %v1340 = vrot.slane %v1152, 7
    %v1345 = vmul.f32 %v1267, %v1338
    %v1346 = vmul.f32 %v1269, %v1339
    %v1347 = vmul.f32 %v1271, %v1340
    %v1348 = vmul.f32 %v1273, %v1162
    %v1349 = vadd.f32 %v1334, %v1345
    %v1350 = vadd.f32 %v1335, %v1346
    %v1351 = vadd.f32 %v1336, %v1347
    %v1352 = vadd.f32 %v1337, %v1348
    %v1357 = vrot.slane %v1349, 3
    %v1358 = vrot.slane %v1350, 2
    %v1359 = vsel %vm758, %v1358, %v1357
    %v1360 = vrot.slane %v1351, 1
    %v1361 = vsel %vm761, %v1360, %v1359
    %v1362 = vsel %vm764, %v1352, %v1361
    %1363 = vrot.lane.b32.xlu0 %v1362, 96
    %v1364 = vpop.permute.xlu0 %1363
    %v1365 = vsel %vm571, %v1364, 0
    %1367 = vmatprep.subr.mxu0 0.0
    %1368 = vmatpush1.msra.mxu0 0.0
    %1369 = vmatprep.subr.mxu0 0.0
    %1370 = vmatpush1.msra.mxu0 0.0
    %1371 = vmatprep.subr.mxu0 0.0
    %1372 = vmatpush1.msra.mxu0 0.0
    %1373 = vmatprep.subr.mxu0 0.0
    %1374 = vmatpush1.msra.mxu0 0.0
    %1375 = vmatprep.subr.mxu0 0.0
    %1376 = vmatpush1.msra.mxu0 0.0
    %1377 = vmatprep.subr.mxu0 0.0
    %1378 = vmatpush1.msra.mxu0 0.0
    %1379 = vmatprep.subr.mxu0 0.0
    %1380 = vmatpush1.msra.mxu0 0.0
    %1381 = vmatprep.subr.mxu0 0.0
    %1382 = vmatpush1.msra.mxu0 0.0
    %1383 = vmatprep.subr.mxu0 0.0
    %1384 = vmatpush1.msra.mxu0 0.0
    %1385 = vmatprep.subr.mxu0 0.0
    %1386 = vmatpush1.msra.mxu0 0.0
    %1387 = vmatprep.subr.mxu0 0.0
    %1388 = vmatpush1.msra.mxu0 0.0
    %1389 = vmatprep.subr.mxu0 0.0
    %1390 = vmatpush1.msra.mxu0 0.0
    %1391 = vmatprep.subr.mxu0 0.0
    %1392 = vmatpush1.msra.mxu0 %v356
    %1393 = vmatprep.subr.mxu0 0.0
    %1394 = vmatpush1.msra.mxu0 %v355
    %1395 = vmatprep.subr.mxu0 0.0
    %1396 = vmatpush1.msra.mxu0 %v354
    %1397 = vmatprep.subr.mxu0 0.0
    %1398 = vmatpush1.msra.mxu0 %v353
    %1399 = vmatprep.subr.mxu0 0.0
    %1400 = vmatpush2.msra.mxu0 0.0
    %1401 = vmatprep.subr.mxu0 0.0
    %1402 = vmatpush2.msra.mxu0 0.0
    %1403 = vmatprep.subr.mxu0 0.0
    %1404 = vmatpush2.msra.mxu0 0.0
    %1405 = vmatprep.subr.mxu0 0.0
    %1406 = vmatpush2.msra.mxu0 0.0
    %1407 = vmatprep.subr.mxu0 0.0
    %1408 = vmatpush2.msra.mxu0 0.0
    %1409 = vmatprep.subr.mxu0 0.0
    %1410 = vmatpush2.msra.mxu0 0.0
    %1411 = vmatprep.subr.mxu0 0.0
    %1412 = vmatpush2.msra.mxu0 0.0
    %1413 = vmatprep.subr.mxu0 0.0
    %1414 = vmatpush2.msra.mxu0 0.0
    %1415 = vmatprep.subr.mxu0 0.0
    %1416 = vmatpush2.msra.mxu0 0.0
    %1417 = vmatprep.subr.mxu0 0.0
    %1418 = vmatpush2.msra.mxu0 0.0
    %1419 = vmatprep.subr.mxu0 0.0
    %1420 = vmatpush2.msra.mxu0 0.0
    %1421 = vmatprep.subr.mxu0 0.0
    %1422 = vmatpush2.msra.mxu0 0.0
    %1423 = vmatprep.subr.mxu0 0.0
    %1424 = vmatpush2.msra.mxu0 0.0
    %1425 = vmatprep.subr.mxu0 0.0
    %1426 = vmatpush2.msra.mxu0 0.0
    %1427 = vmatprep.subr.mxu0 0.0
    %1428 = vmatpush2.msra.mxu0 0.0
    %1429 = vmatprep.subr.mxu0 0.0
    %1430 = vmatpush2.msra.mxu0 0.0
    %1431 = vmatprep.mubr.f32.mxu0 0.0
    %1432 = vmatmul.mubr.f32.gmra.mxu0 %v1365
    %v1433 = vpop.f32.mrf.mxu0
    %v1434 = vadd.f32 %v569, %v1433
    %v1435 = vpop.f32.mrf.mxu0
    %1436 = vdwg.mxu0
    %v1438 = vrot.slane %v1434, 4
    %v1439 = vrot.slane %v1434, 5
    %v1440 = vrot.slane %v1434, 6
    %v1441 = vrot.slane %v1434, 7
    %v1446 = vadd.f32 %v547, %v1438
    %v1447 = vadd.f32 %v552, %v1439
    %v1448 = vadd.f32 %v557, %v1440
    %v1449 = vadd.f32 %v562, %v1441
    %v1450 = vxor.u32 %v1446, 2147483648
    %v1451 = vxor.u32 %v1447, 2147483648
    %v1452 = vxor.u32 %v1448, 2147483648
    %v1453 = vxor.u32 %v1449, 2147483648
    %v1454 = vmul.f32 %v1450, 1.442695
    %v1455 = vpow.pop %v1454
    %v1456 = vmul.f32 %v1451, 1.442695
    %v1457 = vpow.pop %v1456
    %v1458 = vmul.f32 %v1452, 1.442695
    %v1459 = vpow.pop %v1458
    %v1460 = vmul.f32 %v1453, 1.442695
    %v1461 = vpow.pop %v1460
    %v1462 = vadd.f32 %v1455, 1.0
    %v1463 = vadd.f32 %v1457, 1.0
    %v1464 = vadd.f32 %v1459, 1.0
    %v1465 = vadd.f32 %v1461, 1.0
    %v1466 = vrcp.pop %v1462
    %v1467 = vmul.f32 1.0, %v1466
    %v1468 = vrcp.pop %v1463
    %v1469 = vmul.f32 1.0, %v1468
    %v1470 = vrcp.pop %v1464
    %v1471 = vmul.f32 1.0, %v1470
    %v1472 = vrcp.pop %v1465
    %v1473 = vmul.f32 1.0, %v1472
    %1474 = vrot.lane.b32.xlu0 %v1438, 64
    %v1475 = vpop.permute.xlu0 %1474
    %1476 = vrot.lane.b32.xlu0 %v1439, 64
    %v1477 = vpop.permute.xlu0 %1476
    %1478 = vrot.lane.b32.xlu0 %v1440, 64
    %v1479 = vpop.permute.xlu0 %1478
    %1480 = vrot.lane.b32.xlu0 %v1441, 64
    %v1481 = vpop.permute.xlu0 %1480
    %v1486 = vmul.f32 %v1467, %v1475
    %v1487 = vmul.f32 %v1469, %v1477
    %v1488 = vmul.f32 %v1471, %v1479
    %v1489 = vmul.f32 %v1473, %v1481
    %1494 = vrot.lane.b32.xlu0 %v1486, 64
    %v1495 = vpop.permute.xlu0 %1494
    %1496 = vrot.lane.b32.xlu0 %v1487, 64
    %v1497 = vpop.permute.xlu0 %1496
    %1498 = vrot.lane.b32.xlu0 %v1488, 64
    %v1499 = vpop.permute.xlu0 %1498
    %1500 = vrot.lane.b32.xlu0 %v1489, 64
    %v1501 = vpop.permute.xlu0 %1500
    %v1506 = vadd.f32 %v547, %v1495
    %v1507 = vadd.f32 %v552, %v1497
    %v1508 = vadd.f32 %v557, %v1499
    %v1509 = vadd.f32 %v562, %v1501
    %v1510 = vtanh.pop %v1506
    %v1511 = vtanh.pop %v1507
    %v1512 = vtanh.pop %v1508
    %v1513 = vtanh.pop %v1509
    %v1514 = vsub.f32 1.0, %v1467
    %v1515 = vsub.f32 1.0, %v1469
    %v1516 = vsub.f32 1.0, %v1471
    %v1517 = vsub.f32 1.0, %v1473
    %1522 = vrot.lane.b32.xlu0 %v1510, 96
    %v1523 = vpop.permute.xlu0 %1522
    %1524 = vrot.lane.b32.xlu0 %v1511, 96
    %v1525 = vpop.permute.xlu0 %1524
    %1526 = vrot.lane.b32.xlu0 %v1512, 96
    %v1527 = vpop.permute.xlu0 %1526
    %1528 = vrot.lane.b32.xlu0 %v1513, 96
    %v1529 = vpop.permute.xlu0 %1528
    %v1534 = vmul.f32 %v1514, %v1523
    %v1535 = vmul.f32 %v1515, %v1525
    %v1536 = vmul.f32 %v1516, %v1527
    %v1537 = vmul.f32 %v1517, %v1529
    %v1538 = vrot.slane %v1349, 7
    %v1539 = vrot.slane %v1350, 7
    %v1540 = vrot.slane %v1351, 7
    %v1541 = vrot.slane %v1352, 7
    %v1546 = vmul.f32 %v1467, %v1538
    %v1547 = vmul.f32 %v1469, %v1539
    %v1548 = vmul.f32 %v1471, %v1540
    %v1549 = vmul.f32 %v1473, %v1541
    %v1550 = vadd.f32 %v1534, %v1546
    %v1551 = vadd.f32 %v1535, %v1547
    %v1552 = vadd.f32 %v1536, %v1548
    %v1553 = vadd.f32 %v1537, %v1549
    %v1558 = vrot.slane %v1550, 4
    %v1559 = vrot.slane %v1551, 3
    %v1560 = vsel %vm758, %v1559, %v1558
    %v1561 = vrot.slane %v1552, 2
    %v1562 = vsel %vm761, %v1561, %v1560
    %v1563 = vrot.slane %v1553, 1
    %v1564 = vsel %vm764, %v1563, %v1562
    %1565 = vrot.lane.b32.xlu0 %v1564, 96
    %v1566 = vpop.permute.xlu0 %1565
    %v1567 = vsel %vm571, %v1566, 0
    %1569 = vmatprep.subr.mxu0 0.0
    %1570 = vmatpush1.msra.mxu0 0.0
    %1571 = vmatprep.subr.mxu0 0.0
    %1572 = vmatpush1.msra.mxu0 0.0
    %1573 = vmatprep.subr.mxu0 0.0
    %1574 = vmatpush1.msra.mxu0 0.0
    %1575 = vmatprep.subr.mxu0 0.0
    %1576 = vmatpush1.msra.mxu0 0.0
    %1577 = vmatprep.subr.mxu0 0.0
    %1578 = vmatpush1.msra.mxu0 0.0
    %1579 = vmatprep.subr.mxu0 0.0
    %1580 = vmatpush1.msra.mxu0 0.0
    %1581 = vmatprep.subr.mxu0 0.0
    %1582 = vmatpush1.msra.mxu0 0.0
    %1583 = vmatprep.subr.mxu0 0.0
    %1584 = vmatpush1.msra.mxu0 0.0
    %1585 = vmatprep.subr.mxu0 0.0
    %1586 = vmatpush1.msra.mxu0 0.0
    %1587 = vmatprep.subr.mxu0 0.0
    %1588 = vmatpush1.msra.mxu0 0.0
    %1589 = vmatprep.subr.mxu0 0.0
    %1590 = vmatpush1.msra.mxu0 0.0
    %1591 = vmatprep.subr.mxu0 0.0
    %1592 = vmatpush1.msra.mxu0 0.0
    %1593 = vmatprep.subr.mxu0 0.0
    %1594 = vmatpush1.msra.mxu0 %v356
    %1595 = vmatprep.subr.mxu0 0.0
    %1596 = vmatpush1.msra.mxu0 %v355
    %1597 = vmatprep.subr.mxu0 0.0
    %1598 = vmatpush1.msra.mxu0 %v354
    %1599 = vmatprep.subr.mxu0 0.0
    %1600 = vmatpush1.msra.mxu0 %v353
    %1601 = vmatprep.subr.mxu0 0.0
    %1602 = vmatpush2.msra.mxu0 0.0
    %1603 = vmatprep.subr.mxu0 0.0
    %1604 = vmatpush2.msra.mxu0 0.0
    %1605 = vmatprep.subr.mxu0 0.0
    %1606 = vmatpush2.msra.mxu0 0.0
    %1607 = vmatprep.subr.mxu0 0.0
    %1608 = vmatpush2.msra.mxu0 0.0
    %1609 = vmatprep.subr.mxu0 0.0
    %1610 = vmatpush2.msra.mxu0 0.0
    %1611 = vmatprep.subr.mxu0 0.0
    %1612 = vmatpush2.msra.mxu0 0.0
    %1613 = vmatprep.subr.mxu0 0.0
    %1614 = vmatpush2.msra.mxu0 0.0
    %1615 = vmatprep.subr.mxu0 0.0
    %1616 = vmatpush2.msra.mxu0 0.0
    %1617 = vmatprep.subr.mxu0 0.0
    %1618 = vmatpush2.msra.mxu0 0.0
    %1619 = vmatprep.subr.mxu0 0.0
    %1620 = vmatpush2.msra.mxu0 0.0
    %1621 = vmatprep.subr.mxu0 0.0
    %1622 = vmatpush2.msra.mxu0 0.0
    %1623 = vmatprep.subr.mxu0 0.0
    %1624 = vmatpush2.msra.mxu0 0.0
    %1625 = vmatprep.subr.mxu0 0.0
    %1626 = vmatpush2.msra.mxu0 0.0
    %1627 = vmatprep.subr.mxu0 0.0
    %1628 = vmatpush2.msra.mxu0 0.0
    %1629 = vmatprep.subr.mxu0 0.0
    %1630 = vmatpush2.msra.mxu0 0.0
    %1631 = vmatprep.subr.mxu0 0.0
    %1632 = vmatpush2.msra.mxu0 0.0
    %1633 = vmatprep.mubr.f32.mxu0 0.0
    %1634 = vmatmul.mubr.f32.gmra.mxu0 %v1567
    %v1635 = vpop.f32.mrf.mxu0
    %v1636 = vadd.f32 %v569, %v1635
    %v1637 = vpop.f32.mrf.mxu0
    %1638 = vdwg.mxu0
    %v1640 = vrot.slane %v1636, 3
    %v1641 = vrot.slane %v1636, 4
    %v1642 = vrot.slane %v1636, 5
    %v1643 = vrot.slane %v1636, 6
    %v1648 = vadd.f32 %v547, %v1640
    %v1649 = vadd.f32 %v552, %v1641
    %v1650 = vadd.f32 %v557, %v1642
    %v1651 = vadd.f32 %v562, %v1643
    %v1652 = vxor.u32 %v1648, 2147483648
    %v1653 = vxor.u32 %v1649, 2147483648
    %v1654 = vxor.u32 %v1650, 2147483648
    %v1655 = vxor.u32 %v1651, 2147483648
    %v1656 = vmul.f32 %v1652, 1.442695
    %v1657 = vpow.pop %v1656
    %v1658 = vmul.f32 %v1653, 1.442695
    %v1659 = vpow.pop %v1658
    %v1660 = vmul.f32 %v1654, 1.442695
    %v1661 = vpow.pop %v1660
    %v1662 = vmul.f32 %v1655, 1.442695
    %v1663 = vpow.pop %v1662
    %v1664 = vadd.f32 %v1657, 1.0
    %v1665 = vadd.f32 %v1659, 1.0
    %v1666 = vadd.f32 %v1661, 1.0
    %v1667 = vadd.f32 %v1663, 1.0
    %v1668 = vrcp.pop %v1664
    %v1669 = vmul.f32 1.0, %v1668
    %v1670 = vrcp.pop %v1665
    %v1671 = vmul.f32 1.0, %v1670
    %v1672 = vrcp.pop %v1666
    %v1673 = vmul.f32 1.0, %v1672
    %v1674 = vrcp.pop %v1667
    %v1675 = vmul.f32 1.0, %v1674
    %1676 = vrot.lane.b32.xlu0 %v1640, 64
    %v1677 = vpop.permute.xlu0 %1676
    %1678 = vrot.lane.b32.xlu0 %v1641, 64
    %v1679 = vpop.permute.xlu0 %1678
    %1680 = vrot.lane.b32.xlu0 %v1642, 64
    %v1681 = vpop.permute.xlu0 %1680
    %1682 = vrot.lane.b32.xlu0 %v1643, 64
    %v1683 = vpop.permute.xlu0 %1682
    %v1688 = vmul.f32 %v1669, %v1677
    %v1689 = vmul.f32 %v1671, %v1679
    %v1690 = vmul.f32 %v1673, %v1681
    %v1691 = vmul.f32 %v1675, %v1683
    %1696 = vrot.lane.b32.xlu0 %v1688, 64
    %v1697 = vpop.permute.xlu0 %1696
    %1698 = vrot.lane.b32.xlu0 %v1689, 64
    %v1699 = vpop.permute.xlu0 %1698
    %1700 = vrot.lane.b32.xlu0 %v1690, 64
    %v1701 = vpop.permute.xlu0 %1700
    %1702 = vrot.lane.b32.xlu0 %v1691, 64
    %v1703 = vpop.permute.xlu0 %1702
    %v1708 = vadd.f32 %v547, %v1697
    %v1709 = vadd.f32 %v552, %v1699
    %v1710 = vadd.f32 %v557, %v1701
    %v1711 = vadd.f32 %v562, %v1703
    %v1712 = vtanh.pop %v1708
    %v1713 = vtanh.pop %v1709
    %v1714 = vtanh.pop %v1710
    %v1715 = vtanh.pop %v1711
    %v1716 = vsub.f32 1.0, %v1669
    %v1717 = vsub.f32 1.0, %v1671
    %v1718 = vsub.f32 1.0, %v1673
    %v1719 = vsub.f32 1.0, %v1675
    %1724 = vrot.lane.b32.xlu0 %v1712, 96
    %v1725 = vpop.permute.xlu0 %1724
    %1726 = vrot.lane.b32.xlu0 %v1713, 96
    %v1727 = vpop.permute.xlu0 %1726
    %1728 = vrot.lane.b32.xlu0 %v1714, 96
    %v1729 = vpop.permute.xlu0 %1728
    %1730 = vrot.lane.b32.xlu0 %v1715, 96
    %v1731 = vpop.permute.xlu0 %1730
    %v1736 = vmul.f32 %v1716, %v1725
    %v1737 = vmul.f32 %v1717, %v1727
    %v1738 = vmul.f32 %v1718, %v1729
    %v1739 = vmul.f32 %v1719, %v1731
    %v1740 = vrot.slane %v1550, 7
    %v1741 = vrot.slane %v1551, 7
    %v1742 = vrot.slane %v1552, 7
    %v1743 = vrot.slane %v1553, 7
    %v1748 = vmul.f32 %v1669, %v1740
    %v1749 = vmul.f32 %v1671, %v1741
    %v1750 = vmul.f32 %v1673, %v1742
    %v1751 = vmul.f32 %v1675, %v1743
    %v1752 = vadd.f32 %v1736, %v1748
    %v1753 = vadd.f32 %v1737, %v1749
    %v1754 = vadd.f32 %v1738, %v1750
    %v1755 = vadd.f32 %v1739, %v1751
    %v1760 = vrot.slane %v1752, 5
    %v1761 = vrot.slane %v1753, 4
    %v1762 = vsel %vm758, %v1761, %v1760
    %v1763 = vrot.slane %v1754, 3
    %v1764 = vsel %vm761, %v1763, %v1762
    %v1765 = vrot.slane %v1755, 2
    %v1766 = vsel %vm764, %v1765, %v1764
    %1767 = vrot.lane.b32.xlu0 %v1766, 96
    %v1768 = vpop.permute.xlu0 %1767
    %v1769 = vsel %vm571, %v1768, 0
    %1771 = vmatprep.subr.mxu0 0.0
    %1772 = vmatpush1.msra.mxu0 0.0
    %1773 = vmatprep.subr.mxu0 0.0
    %1774 = vmatpush1.msra.mxu0 0.0
    %1775 = vmatprep.subr.mxu0 0.0
    %1776 = vmatpush1.msra.mxu0 0.0
    %1777 = vmatprep.subr.mxu0 0.0
    %1778 = vmatpush1.msra.mxu0 0.0
    %1779 = vmatprep.subr.mxu0 0.0
    %1780 = vmatpush1.msra.mxu0 0.0
    %1781 = vmatprep.subr.mxu0 0.0
    %1782 = vmatpush1.msra.mxu0 0.0
    %1783 = vmatprep.subr.mxu0 0.0
    %1784 = vmatpush1.msra.mxu0 0.0
    %1785 = vmatprep.subr.mxu0 0.0
    %1786 = vmatpush1.msra.mxu0 0.0
    %1787 = vmatprep.subr.mxu0 0.0
    %1788 = vmatpush1.msra.mxu0 0.0
    %1789 = vmatprep.subr.mxu0 0.0
    %1790 = vmatpush1.msra.mxu0 0.0
    %1791 = vmatprep.subr.mxu0 0.0
    %1792 = vmatpush1.msra.mxu0 0.0
    %1793 = vmatprep.subr.mxu0 0.0
    %1794 = vmatpush1.msra.mxu0 0.0
    %1795 = vmatprep.subr.mxu0 0.0
    %1796 = vmatpush1.msra.mxu0 %v356
    %1797 = vmatprep.subr.mxu0 0.0
    %1798 = vmatpush1.msra.mxu0 %v355
    %1799 = vmatprep.subr.mxu0 0.0
    %1800 = vmatpush1.msra.mxu0 %v354
    %1801 = vmatprep.subr.mxu0 0.0
    %1802 = vmatpush1.msra.mxu0 %v353
    %1803 = vmatprep.subr.mxu0 0.0
    %1804 = vmatpush2.msra.mxu0 0.0
    %1805 = vmatprep.subr.mxu0 0.0
    %1806 = vmatpush2.msra.mxu0 0.0
    %1807 = vmatprep.subr.mxu0 0.0
    %1808 = vmatpush2.msra.mxu0 0.0
    %1809 = vmatprep.subr.mxu0 0.0
    %1810 = vmatpush2.msra.mxu0 0.0
    %1811 = vmatprep.subr.mxu0 0.0
    %1812 = vmatpush2.msra.mxu0 0.0
    %1813 = vmatprep.subr.mxu0 0.0
    %1814 = vmatpush2.msra.mxu0 0.0
    %1815 = vmatprep.subr.mxu0 0.0
    %1816 = vmatpush2.msra.mxu0 0.0
    %1817 = vmatprep.subr.mxu0 0.0
    %1818 = vmatpush2.msra.mxu0 0.0
    %1819 = vmatprep.subr.mxu0 0.0
    %1820 = vmatpush2.msra.mxu0 0.0
    %1821 = vmatprep.subr.mxu0 0.0
    %1822 = vmatpush2.msra.mxu0 0.0
    %1823 = vmatprep.subr.mxu0 0.0
    %1824 = vmatpush2.msra.mxu0 0.0
    %1825 = vmatprep.subr.mxu0 0.0
    %1826 = vmatpush2.msra.mxu0 0.0
    %1827 = vmatprep.subr.mxu0 0.0
    %1828 = vmatpush2.msra.mxu0 0.0
    %1829 = vmatprep.subr.mxu0 0.0
    %1830 = vmatpush2.msra.mxu0 0.0
    %1831 = vmatprep.subr.mxu0 0.0
    %1832 = vmatpush2.msra.mxu0 0.0
    %1833 = vmatprep.subr.mxu0 0.0
    %1834 = vmatpush2.msra.mxu0 0.0
    %1835 = vmatprep.mubr.f32.mxu0 0.0
    %1836 = vmatmul.mubr.f32.gmra.mxu0 %v1769
    %v1837 = vpop.f32.mrf.mxu0
    %v1838 = vadd.f32 %v569, %v1837
    %v1839 = vpop.f32.mrf.mxu0
    %1840 = vdwg.mxu0
    %v1842 = vrot.slane %v1838, 2
    %v1843 = vrot.slane %v1838, 3
    %v1844 = vrot.slane %v1838, 4
    %v1845 = vrot.slane %v1838, 5
    %v1850 = vadd.f32 %v547, %v1842
    %v1851 = vadd.f32 %v552, %v1843
    %v1852 = vadd.f32 %v557, %v1844
    %v1853 = vadd.f32 %v562, %v1845
    %v1854 = vxor.u32 %v1850, 2147483648
    %v1855 = vxor.u32 %v1851, 2147483648
    %v1856 = vxor.u32 %v1852, 2147483648
    %v1857 = vxor.u32 %v1853, 2147483648
    %v1858 = vmul.f32 %v1854, 1.442695
    %v1859 = vpow.pop %v1858
    %v1860 = vmul.f32 %v1855, 1.442695
    %v1861 = vpow.pop %v1860
    %v1862 = vmul.f32 %v1856, 1.442695
    %v1863 = vpow.pop %v1862
    %v1864 = vmul.f32 %v1857, 1.442695
    %v1865 = vpow.pop %v1864
    %v1866 = vadd.f32 %v1859, 1.0
    %v1867 = vadd.f32 %v1861, 1.0
    %v1868 = vadd.f32 %v1863, 1.0
    %v1869 = vadd.f32 %v1865, 1.0
    %v1870 = vrcp.pop %v1866
    %v1871 = vmul.f32 1.0, %v1870
    %v1872 = vrcp.pop %v1867
    %v1873 = vmul.f32 1.0, %v1872
    %v1874 = vrcp.pop %v1868
    %v1875 = vmul.f32 1.0, %v1874
    %v1876 = vrcp.pop %v1869
    %v1877 = vmul.f32 1.0, %v1876
    %1878 = vrot.lane.b32.xlu0 %v1842, 64
    %v1879 = vpop.permute.xlu0 %1878
    %1880 = vrot.lane.b32.xlu0 %v1843, 64
    %v1881 = vpop.permute.xlu0 %1880
    %1882 = vrot.lane.b32.xlu0 %v1844, 64
    %v1883 = vpop.permute.xlu0 %1882
    %1884 = vrot.lane.b32.xlu0 %v1845, 64
    %v1885 = vpop.permute.xlu0 %1884
    %v1890 = vmul.f32 %v1871, %v1879
    %v1891 = vmul.f32 %v1873, %v1881
    %v1892 = vmul.f32 %v1875, %v1883
    %v1893 = vmul.f32 %v1877, %v1885
    %1898 = vrot.lane.b32.xlu0 %v1890, 64
    %v1899 = vpop.permute.xlu0 %1898
    %1900 = vrot.lane.b32.xlu0 %v1891, 64
    %v1901 = vpop.permute.xlu0 %1900
    %1902 = vrot.lane.b32.xlu0 %v1892, 64
    %v1903 = vpop.permute.xlu0 %1902
    %1904 = vrot.lane.b32.xlu0 %v1893, 64
    %v1905 = vpop.permute.xlu0 %1904
    %v1910 = vadd.f32 %v547, %v1899
    %v1911 = vadd.f32 %v552, %v1901
    %v1912 = vadd.f32 %v557, %v1903
    %v1913 = vadd.f32 %v562, %v1905
    %v1914 = vtanh.pop %v1910
    %v1915 = vtanh.pop %v1911
    %v1916 = vtanh.pop %v1912
    %v1917 = vtanh.pop %v1913
    %v1918 = vsub.f32 1.0, %v1871
    %v1919 = vsub.f32 1.0, %v1873
    %v1920 = vsub.f32 1.0, %v1875
    %v1921 = vsub.f32 1.0, %v1877
    %1926 = vrot.lane.b32.xlu0 %v1914, 96
    %v1927 = vpop.permute.xlu0 %1926
    %1928 = vrot.lane.b32.xlu0 %v1915, 96
    %v1929 = vpop.permute.xlu0 %1928
    %1930 = vrot.lane.b32.xlu0 %v1916, 96
    %v1931 = vpop.permute.xlu0 %1930
    %1932 = vrot.lane.b32.xlu0 %v1917, 96
    %v1933 = vpop.permute.xlu0 %1932
    %v1938 = vmul.f32 %v1918, %v1927
    %v1939 = vmul.f32 %v1919, %v1929
    %v1940 = vmul.f32 %v1920, %v1931
    %v1941 = vmul.f32 %v1921, %v1933
    %v1942 = vrot.slane %v1752, 7
    %v1943 = vrot.slane %v1753, 7
    %v1944 = vrot.slane %v1754, 7
    %v1945 = vrot.slane %v1755, 7
    %v1950 = vmul.f32 %v1871, %v1942
    %v1951 = vmul.f32 %v1873, %v1943
    %v1952 = vmul.f32 %v1875, %v1944
    %v1953 = vmul.f32 %v1877, %v1945
    %v1954 = vadd.f32 %v1938, %v1950
    %v1955 = vadd.f32 %v1939, %v1951
    %v1956 = vadd.f32 %v1940, %v1952
    %v1957 = vadd.f32 %v1941, %v1953
    %v1962 = vrot.slane %v1954, 6
    %v1963 = vrot.slane %v1955, 5
    %v1964 = vsel %vm758, %v1963, %v1962
    %v1965 = vrot.slane %v1956, 4
    %v1966 = vsel %vm761, %v1965, %v1964
    %v1967 = vrot.slane %v1957, 3
    %v1968 = vsel %vm764, %v1967, %v1966
    %1969 = vrot.lane.b32.xlu0 %v1968, 96
    %v1970 = vpop.permute.xlu0 %1969
    %v1971 = vsel %vm571, %v1970, 0
    %1973 = vmatprep.subr.mxu0 0.0
    %1974 = vmatpush1.msra.mxu0 0.0
    %1975 = vmatprep.subr.mxu0 0.0
    %1976 = vmatpush1.msra.mxu0 0.0
    %1977 = vmatprep.subr.mxu0 0.0
    %1978 = vmatpush1.msra.mxu0 0.0
    %1979 = vmatprep.subr.mxu0 0.0
    %1980 = vmatpush1.msra.mxu0 0.0
    %1981 = vmatprep.subr.mxu0 0.0
    %1982 = vmatpush1.msra.mxu0 0.0
    %1983 = vmatprep.subr.mxu0 0.0
    %1984 = vmatpush1.msra.mxu0 0.0
    %1985 = vmatprep.subr.mxu0 0.0
    %1986 = vmatpush1.msra.mxu0 0.0
    %1987 = vmatprep.subr.mxu0 0.0
    %1988 = vmatpush1.msra.mxu0 0.0
    %1989 = vmatprep.subr.mxu0 0.0
    %1990 = vmatpush1.msra.mxu0 0.0
    %1991 = vmatprep.subr.mxu0 0.0
    %1992 = vmatpush1.msra.mxu0 0.0
    %1993 = vmatprep.subr.mxu0 0.0
    %1994 = vmatpush1.msra.mxu0 0.0
    %1995 = vmatprep.subr.mxu0 0.0
    %1996 = vmatpush1.msra.mxu0 0.0
    %1997 = vmatprep.subr.mxu0 0.0
    %1998 = vmatpush1.msra.mxu0 %v356
    %1999 = vmatprep.subr.mxu0 0.0
    %2000 = vmatpush1.msra.mxu0 %v355
    %2001 = vmatprep.subr.mxu0 0.0
    %2002 = vmatpush1.msra.mxu0 %v354
    %2003 = vmatprep.subr.mxu0 0.0
    %2004 = vmatpush1.msra.mxu0 %v353
    %2005 = vmatprep.subr.mxu0 0.0
    %2006 = vmatpush2.msra.mxu0 0.0
    %2007 = vmatprep.subr.mxu0 0.0
    %2008 = vmatpush2.msra.mxu0 0.0
    %2009 = vmatprep.subr.mxu0 0.0
    %2010 = vmatpush2.msra.mxu0 0.0
    %2011 = vmatprep.subr.mxu0 0.0
    %2012 = vmatpush2.msra.mxu0 0.0
    %2013 = vmatprep.subr.mxu0 0.0
    %2014 = vmatpush2.msra.mxu0 0.0
    %2015 = vmatprep.subr.mxu0 0.0
    %2016 = vmatpush2.msra.mxu0 0.0
    %2017 = vmatprep.subr.mxu0 0.0
    %2018 = vmatpush2.msra.mxu0 0.0
    %2019 = vmatprep.subr.mxu0 0.0
    %2020 = vmatpush2.msra.mxu0 0.0
    %2021 = vmatprep.subr.mxu0 0.0
    %2022 = vmatpush2.msra.mxu0 0.0
    %2023 = vmatprep.subr.mxu0 0.0
    %2024 = vmatpush2.msra.mxu0 0.0
    %2025 = vmatprep.subr.mxu0 0.0
    %2026 = vmatpush2.msra.mxu0 0.0
    %2027 = vmatprep.subr.mxu0 0.0
    %2028 = vmatpush2.msra.mxu0 0.0
    %2029 = vmatprep.subr.mxu0 0.0
    %2030 = vmatpush2.msra.mxu0 0.0
    %2031 = vmatprep.subr.mxu0 0.0
    %2032 = vmatpush2.msra.mxu0 0.0
    %2033 = vmatprep.subr.mxu0 0.0
    %2034 = vmatpush2.msra.mxu0 0.0
    %2035 = vmatprep.subr.mxu0 0.0
    %2036 = vmatpush2.msra.mxu0 0.0
    %2037 = vmatprep.mubr.f32.mxu0 0.0
    %2038 = vmatmul.mubr.f32.gmra.mxu0 %v1971
    %v2039 = vpop.f32.mrf.mxu0
    %v2040 = vadd.f32 %v569, %v2039
    %v2041 = vpop.f32.mrf.mxu0
    %2042 = vdwg.mxu0
    %v2044 = vrot.slane %v2040, 1
    %v2045 = vrot.slane %v2040, 2
    %v2046 = vrot.slane %v2040, 3
    %v2047 = vrot.slane %v2040, 4
    %v2052 = vadd.f32 %v547, %v2044
    %v2053 = vadd.f32 %v552, %v2045
    %v2054 = vadd.f32 %v557, %v2046
    %v2055 = vadd.f32 %v562, %v2047
    %v2056 = vxor.u32 %v2052, 2147483648
    %v2057 = vxor.u32 %v2053, 2147483648
    %v2058 = vxor.u32 %v2054, 2147483648
    %v2059 = vxor.u32 %v2055, 2147483648
    %v2060 = vmul.f32 %v2056, 1.442695
    %v2061 = vpow.pop %v2060
    %v2062 = vmul.f32 %v2057, 1.442695
    %v2063 = vpow.pop %v2062
    %v2064 = vmul.f32 %v2058, 1.442695
    %v2065 = vpow.pop %v2064
    %v2066 = vmul.f32 %v2059, 1.442695
    %v2067 = vpow.pop %v2066
    %v2068 = vadd.f32 %v2061, 1.0
    %v2069 = vadd.f32 %v2063, 1.0
    %v2070 = vadd.f32 %v2065, 1.0
    %v2071 = vadd.f32 %v2067, 1.0
    %v2072 = vrcp.pop %v2068
    %v2073 = vmul.f32 1.0, %v2072
    %v2074 = vrcp.pop %v2069
    %v2075 = vmul.f32 1.0, %v2074
    %v2076 = vrcp.pop %v2070
    %v2077 = vmul.f32 1.0, %v2076
    %v2078 = vrcp.pop %v2071
    %v2079 = vmul.f32 1.0, %v2078
    %2080 = vrot.lane.b32.xlu0 %v2044, 64
    %v2081 = vpop.permute.xlu0 %2080
    %2082 = vrot.lane.b32.xlu0 %v2045, 64
    %v2083 = vpop.permute.xlu0 %2082
    %2084 = vrot.lane.b32.xlu0 %v2046, 64
    %v2085 = vpop.permute.xlu0 %2084
    %2086 = vrot.lane.b32.xlu0 %v2047, 64
    %v2087 = vpop.permute.xlu0 %2086
    %v2092 = vmul.f32 %v2073, %v2081
    %v2093 = vmul.f32 %v2075, %v2083
    %v2094 = vmul.f32 %v2077, %v2085
    %v2095 = vmul.f32 %v2079, %v2087
    %2100 = vrot.lane.b32.xlu0 %v2092, 64
    %v2101 = vpop.permute.xlu0 %2100
    %2102 = vrot.lane.b32.xlu0 %v2093, 64
    %v2103 = vpop.permute.xlu0 %2102
    %2104 = vrot.lane.b32.xlu0 %v2094, 64
    %v2105 = vpop.permute.xlu0 %2104
    %2106 = vrot.lane.b32.xlu0 %v2095, 64
    %v2107 = vpop.permute.xlu0 %2106
    %v2112 = vadd.f32 %v547, %v2101
    %v2113 = vadd.f32 %v552, %v2103
    %v2114 = vadd.f32 %v557, %v2105
    %v2115 = vadd.f32 %v562, %v2107
    %v2116 = vtanh.pop %v2112
    %v2117 = vtanh.pop %v2113
    %v2118 = vtanh.pop %v2114
    %v2119 = vtanh.pop %v2115
    %v2120 = vsub.f32 1.0, %v2073
    %v2121 = vsub.f32 1.0, %v2075
    %v2122 = vsub.f32 1.0, %v2077
    %v2123 = vsub.f32 1.0, %v2079
    %2128 = vrot.lane.b32.xlu0 %v2116, 96
    %v2129 = vpop.permute.xlu0 %2128
    %2130 = vrot.lane.b32.xlu0 %v2117, 96
    %v2131 = vpop.permute.xlu0 %2130
    %2132 = vrot.lane.b32.xlu0 %v2118, 96
    %v2133 = vpop.permute.xlu0 %2132
    %2134 = vrot.lane.b32.xlu0 %v2119, 96
    %v2135 = vpop.permute.xlu0 %2134
    %v2140 = vmul.f32 %v2120, %v2129
    %v2141 = vmul.f32 %v2121, %v2131
    %v2142 = vmul.f32 %v2122, %v2133
    %v2143 = vmul.f32 %v2123, %v2135
    %v2144 = vrot.slane %v1954, 7
    %v2145 = vrot.slane %v1955, 7
    %v2146 = vrot.slane %v1956, 7
    %v2147 = vrot.slane %v1957, 7
    %v2152 = vmul.f32 %v2073, %v2144
    %v2153 = vmul.f32 %v2075, %v2145
    %v2154 = vmul.f32 %v2077, %v2146
    %v2155 = vmul.f32 %v2079, %v2147
    %v2156 = vadd.f32 %v2140, %v2152
    %v2157 = vadd.f32 %v2141, %v2153
    %v2158 = vadd.f32 %v2142, %v2154
    %v2159 = vadd.f32 %v2143, %v2155
    %vm2160 = vcmask 1040384
    %v2161 = vsel %vm2160, %v749, %v951
    %v2162 = vsel %vm2160, %v750, %v952
    %v2163 = vsel %vm2160, %v751, %v953
    %v2164 = vsel %vm2160, %v752, %v954
    %v2165 = vsel %vm476, %v2161, %v1150
    %v2166 = vsel %vm476, %v2162, %v1151
    %v2167 = vsel %vm476, %v2163, %v1152
    %v2168 = vsel %vm476, %v2164, %v1153
    %vm2169 = vcmask 1042432
    %v2170 = vsel %vm2169, %v2165, %v1349
    %v2171 = vsel %vm2169, %v2166, %v1350
    %v2172 = vsel %vm2169, %v2167, %v1351
    %v2173 = vsel %vm2169, %v2168, %v1352
    %vm2174 = vcmask 1043456
    %v2175 = vsel %vm2174, %v2170, %v1550
    %v2176 = vsel %vm2174, %v2171, %v1551
    %v2177 = vsel %vm2174, %v2172, %v1552
    %v2178 = vsel %vm2174, %v2173, %v1553
    %vm2179 = vcmask 1044480
    %v2180 = vsel %vm2179, %v2175, %v1752
    %v2181 = vsel %vm2179, %v2176, %v1753
    %v2182 = vsel %vm2179, %v2177, %v1754
    %v2183 = vsel %vm2179, %v2178, %v1755
    %vm2184 = vcmask 1045504
    %v2185 = vsel %vm2184, %v2180, %v1954
    %v2186 = vsel %vm2184, %v2181, %v1955
    %v2187 = vsel %vm2184, %v2182, %v1956
    %v2188 = vsel %vm2184, %v2183, %v1957
    %vm2189 = vcmask 1046528
    %v2190 = vsel %vm2189, %v2185, %v2156
    %v2191 = vsel %vm2189, %v2186, %v2157
    %v2192 = vsel %vm2189, %v2187, %v2158
    %v2193 = vsel %vm2189, %v2188, %v2159
    %v2195 = vlaneseq
    %v2196 = vshrl.u32 %v2195, 7
    %v2197 = vsub.s32 0, %v2196
    %v2198 = vrot.slane %v367, %v2197
    %2204 = vrot.lane.b32.xlu0 %v2190, 96
    %v2205 = vpop.permute.xlu0 %2204
    %2206 = vrot.lane.b32.xlu0 %v2191, 96
    %v2207 = vpop.permute.xlu0 %2206
    %2208 = vrot.lane.b32.xlu0 %v2192, 96
    %v2209 = vpop.permute.xlu0 %2208
    %2210 = vrot.lane.b32.xlu0 %v2193, 96
    %v2211 = vpop.permute.xlu0 %2210
    %v2212 = vsel %vm571, %v2205, 0
    %v2214 = vsel %vm571, %v2207, 0
    %v2216 = vsel %vm571, %v2209, 0
    %v2218 = vsel %vm571, %v2211, 0
    %2220 = vmatprep.subr.mxu0 0.0
    %2221 = vmatpush1.msra.mxu0 0.0
    %2222 = vmatprep.subr.mxu0 0.0
    %2223 = vmatpush1.msra.mxu0 0.0
    %2224 = vmatprep.subr.mxu0 0.0
    %2225 = vmatpush1.msra.mxu0 0.0
    %2226 = vmatprep.subr.mxu0 0.0
    %2227 = vmatpush1.msra.mxu0 0.0
    %2228 = vmatprep.subr.mxu0 0.0
    %2229 = vmatpush1.msra.mxu0 0.0
    %2230 = vmatprep.subr.mxu0 0.0
    %2231 = vmatpush1.msra.mxu0 0.0
    %2232 = vmatprep.subr.mxu0 0.0
    %2233 = vmatpush1.msra.mxu0 0.0
    %2234 = vmatprep.subr.mxu0 0.0
    %2235 = vmatpush1.msra.mxu0 0.0
    %2236 = vmatprep.subr.mxu0 0.0
    %2237 = vmatpush1.msra.mxu0 0.0
    %2238 = vmatprep.subr.mxu0 0.0
    %2239 = vmatpush1.msra.mxu0 0.0
    %2240 = vmatprep.subr.mxu0 0.0
    %2241 = vmatpush1.msra.mxu0 0.0
    %2242 = vmatprep.subr.mxu0 0.0
    %2243 = vmatpush1.msra.mxu0 0.0
    %2244 = vmatprep.subr.mxu0 0.0
    %2245 = vmatpush1.msra.mxu0 %v362
    %2246 = vmatprep.subr.mxu0 0.0
    %2247 = vmatpush1.msra.mxu0 %v361
    %2248 = vmatprep.subr.mxu0 0.0
    %2249 = vmatpush1.msra.mxu0 %v360
    %2250 = vmatprep.subr.mxu0 0.0
    %2251 = vmatpush1.msra.mxu0 %v359
    %2252 = vmatprep.subr.mxu0 0.0
    %2253 = vmatpush2.msra.mxu0 0.0
    %2254 = vmatprep.subr.mxu0 0.0
    %2255 = vmatpush2.msra.mxu0 0.0
    %2256 = vmatprep.subr.mxu0 0.0
    %2257 = vmatpush2.msra.mxu0 0.0
    %2258 = vmatprep.subr.mxu0 0.0
    %2259 = vmatpush2.msra.mxu0 0.0
    %2260 = vmatprep.subr.mxu0 0.0
    %2261 = vmatpush2.msra.mxu0 0.0
    %2262 = vmatprep.subr.mxu0 0.0
    %2263 = vmatpush2.msra.mxu0 0.0
    %2264 = vmatprep.subr.mxu0 0.0
    %2265 = vmatpush2.msra.mxu0 0.0
    %2266 = vmatprep.subr.mxu0 0.0
    %2267 = vmatpush2.msra.mxu0 0.0
    %2268 = vmatprep.subr.mxu0 0.0
    %2269 = vmatpush2.msra.mxu0 0.0
    %2270 = vmatprep.subr.mxu0 0.0
    %2271 = vmatpush2.msra.mxu0 0.0
    %2272 = vmatprep.subr.mxu0 0.0
    %2273 = vmatpush2.msra.mxu0 0.0
    %2274 = vmatprep.subr.mxu0 0.0
    %2275 = vmatpush2.msra.mxu0 0.0
    %2276 = vmatprep.subr.mxu0 0.0
    %2277 = vmatpush2.msra.mxu0 0.0
    %2278 = vmatprep.subr.mxu0 0.0
    %2279 = vmatpush2.msra.mxu0 0.0
    %2280 = vmatprep.subr.mxu0 0.0
    %2281 = vmatpush2.msra.mxu0 0.0
    %2282 = vmatprep.subr.mxu0 0.0
    %2283 = vmatpush2.msra.mxu0 0.0
    %2284 = vmatprep.mubr.f32.mxu0 0.0
    %2285 = vmatmul.mubr.f32.gmra.mxu0 %v2212
    %v2286 = vpop.f32.mrf.mxu0
    %v2287 = vadd.f32 %v2198, %v2286
    %v2288 = vpop.f32.mrf.mxu0
    %2289 = vmatprep.mubr.f32.mxu0 0.0
    %2290 = vmatmul.mubr.f32.gmra.mxu0 %v2214
    %v2291 = vpop.f32.mrf.mxu0
    %v2292 = vadd.f32 %v2198, %v2291
    %v2293 = vpop.f32.mrf.mxu0
    %2294 = vmatprep.mubr.f32.mxu0 0.0
    %2295 = vmatmul.mubr.f32.gmra.mxu0 %v2216
    %v2296 = vpop.f32.mrf.mxu0
    %v2297 = vadd.f32 %v2198, %v2296
    %v2298 = vpop.f32.mrf.mxu0
    %2299 = vmatprep.mubr.f32.mxu0 0.0
    %2300 = vmatmul.mubr.f32.gmra.mxu0 %v2218
    %v2301 = vpop.f32.mrf.mxu0
    %v2302 = vadd.f32 %v2198, %v2301
    %v2303 = vpop.f32.mrf.mxu0
    %2304 = vdwg.mxu0
    %v2306 = vlaneseq
    %v2307 = vshrl.u32 %v2306, 7
    %v2308 = vsub.s32 0, %v2307
    %v2309 = vrot.slane %v368, %v2308
    %2311 = vmatprep.subr.mxu0 0.0
    %2312 = vmatpush1.msra.mxu0 0.0
    %2313 = vmatprep.subr.mxu0 0.0
    %2314 = vmatpush1.msra.mxu0 0.0
    %2315 = vmatprep.subr.mxu0 0.0
    %2316 = vmatpush1.msra.mxu0 0.0
    %2317 = vmatprep.subr.mxu0 0.0
    %2318 = vmatpush1.msra.mxu0 0.0
    %2319 = vmatprep.subr.mxu0 0.0
    %2320 = vmatpush1.msra.mxu0 0.0
    %2321 = vmatprep.subr.mxu0 0.0
    %2322 = vmatpush1.msra.mxu0 0.0
    %2323 = vmatprep.subr.mxu0 0.0
    %2324 = vmatpush1.msra.mxu0 0.0
    %2325 = vmatprep.subr.mxu0 0.0
    %2326 = vmatpush1.msra.mxu0 0.0
    %2327 = vmatprep.subr.mxu0 0.0
    %2328 = vmatpush1.msra.mxu0 0.0
    %2329 = vmatprep.subr.mxu0 0.0
    %2330 = vmatpush1.msra.mxu0 0.0
    %2331 = vmatprep.subr.mxu0 0.0
    %2332 = vmatpush1.msra.mxu0 0.0
    %2333 = vmatprep.subr.mxu0 0.0
    %2334 = vmatpush1.msra.mxu0 0.0
    %2335 = vmatprep.subr.mxu0 0.0
    %2336 = vmatpush1.msra.mxu0 %v366
    %2337 = vmatprep.subr.mxu0 0.0
    %2338 = vmatpush1.msra.mxu0 %v365
    %2339 = vmatprep.subr.mxu0 0.0
    %2340 = vmatpush1.msra.mxu0 %v364
    %2341 = vmatprep.subr.mxu0 0.0
    %2342 = vmatpush1.msra.mxu0 %v363
    %2343 = vmatprep.subr.mxu0 0.0
    %2344 = vmatpush2.msra.mxu0 0.0
    %2345 = vmatprep.subr.mxu0 0.0
    %2346 = vmatpush2.msra.mxu0 0.0
    %2347 = vmatprep.subr.mxu0 0.0
    %2348 = vmatpush2.msra.mxu0 0.0
    %2349 = vmatprep.subr.mxu0 0.0
    %2350 = vmatpush2.msra.mxu0 0.0
    %2351 = vmatprep.subr.mxu0 0.0
    %2352 = vmatpush2.msra.mxu0 0.0
    %2353 = vmatprep.subr.mxu0 0.0
    %2354 = vmatpush2.msra.mxu0 0.0
    %2355 = vmatprep.subr.mxu0 0.0
    %2356 = vmatpush2.msra.mxu0 0.0
    %2357 = vmatprep.subr.mxu0 0.0
    %2358 = vmatpush2.msra.mxu0 0.0
    %2359 = vmatprep.subr.mxu0 0.0
    %2360 = vmatpush2.msra.mxu0 0.0
    %2361 = vmatprep.subr.mxu0 0.0
    %2362 = vmatpush2.msra.mxu0 0.0
    %2363 = vmatprep.subr.mxu0 0.0
    %2364 = vmatpush2.msra.mxu0 0.0
    %2365 = vmatprep.subr.mxu0 0.0
    %2366 = vmatpush2.msra.mxu0 0.0
    %2367 = vmatprep.subr.mxu0 0.0
    %2368 = vmatpush2.msra.mxu0 0.0
    %2369 = vmatprep.subr.mxu0 0.0
    %2370 = vmatpush2.msra.mxu0 0.0
    %2371 = vmatprep.subr.mxu0 0.0
    %2372 = vmatpush2.msra.mxu0 0.0
    %2373 = vmatprep.subr.mxu0 0.0
    %2374 = vmatpush2.msra.mxu0 0.0
    %2375 = vmatprep.mubr.f32.mxu0 0.0
    %2376 = vmatmul.mubr.f32.gmra.mxu0 %v573
    %v2377 = vpop.f32.mrf.mxu0
    %v2378 = vadd.f32 %v2309, %v2377
    %v2379 = vpop.f32.mrf.mxu0
    %2380 = vdwg.mxu0
    %v2382 = vrot.slane %v2378, 1
    %v2383 = vrot.slane %v2378, 2
    %v2384 = vrot.slane %v2378, 3
    %v2389 = vadd.f32 %v2287, %v2378
    %v2390 = vadd.f32 %v2292, %v2382
    %v2391 = vadd.f32 %v2297, %v2383
    %v2392 = vadd.f32 %v2302, %v2384
    %v2393 = vxor.u32 %v2389, 2147483648
    %v2394 = vxor.u32 %v2390, 2147483648
    %v2395 = vxor.u32 %v2391, 2147483648
    %v2396 = vxor.u32 %v2392, 2147483648
    %v2397 = vmul.f32 %v2393, 1.442695
    %v2398 = vpow.pop %v2397
    %v2399 = vmul.f32 %v2394, 1.442695
    %v2400 = vpow.pop %v2399
    %v2401 = vmul.f32 %v2395, 1.442695
    %v2402 = vpow.pop %v2401
    %v2403 = vmul.f32 %v2396, 1.442695
    %v2404 = vpow.pop %v2403
    %v2405 = vadd.f32 %v2398, 1.0
    %v2406 = vadd.f32 %v2400, 1.0
    %v2407 = vadd.f32 %v2402, 1.0
    %v2408 = vadd.f32 %v2404, 1.0
    %v2409 = vrcp.pop %v2405
    %v2410 = vmul.f32 1.0, %v2409
    %v2411 = vrcp.pop %v2406
    %v2412 = vmul.f32 1.0, %v2411
    %v2413 = vrcp.pop %v2407
    %v2414 = vmul.f32 1.0, %v2413
    %v2415 = vrcp.pop %v2408
    %v2416 = vmul.f32 1.0, %v2415
    %2417 = vrot.lane.b32.xlu0 %v2378, 64
    %v2418 = vpop.permute.xlu0 %2417
    %2419 = vrot.lane.b32.xlu0 %v2382, 64
    %v2420 = vpop.permute.xlu0 %2419
    %2421 = vrot.lane.b32.xlu0 %v2383, 64
    %v2422 = vpop.permute.xlu0 %2421
    %2423 = vrot.lane.b32.xlu0 %v2384, 64
    %v2424 = vpop.permute.xlu0 %2423
    %v2429 = vmul.f32 %v2410, %v2418
    %v2430 = vmul.f32 %v2412, %v2420
    %v2431 = vmul.f32 %v2414, %v2422
    %v2432 = vmul.f32 %v2416, %v2424
    %2437 = vrot.lane.b32.xlu0 %v2429, 64
    %v2438 = vpop.permute.xlu0 %2437
    %2439 = vrot.lane.b32.xlu0 %v2430, 64
    %v2440 = vpop.permute.xlu0 %2439
    %2441 = vrot.lane.b32.xlu0 %v2431, 64
    %v2442 = vpop.permute.xlu0 %2441
    %2443 = vrot.lane.b32.xlu0 %v2432, 64
    %v2444 = vpop.permute.xlu0 %2443
    %v2449 = vadd.f32 %v2287, %v2438
    %v2450 = vadd.f32 %v2292, %v2440
    %v2451 = vadd.f32 %v2297, %v2442
    %v2452 = vadd.f32 %v2302, %v2444
    %v2453 = vtanh.pop %v2449
    %v2454 = vtanh.pop %v2450
    %v2455 = vtanh.pop %v2451
    %v2456 = vtanh.pop %v2452
    %v2457 = vsub.f32 1.0, %v2410
    %v2458 = vsub.f32 1.0, %v2412
    %v2459 = vsub.f32 1.0, %v2414
    %v2460 = vsub.f32 1.0, %v2416
    %2465 = vrot.lane.b32.xlu0 %v2453, 96
    %v2466 = vpop.permute.xlu0 %2465
    %2467 = vrot.lane.b32.xlu0 %v2454, 96
    %v2468 = vpop.permute.xlu0 %2467
    %2469 = vrot.lane.b32.xlu0 %v2455, 96
    %v2470 = vpop.permute.xlu0 %2469
    %2471 = vrot.lane.b32.xlu0 %v2456, 96
    %v2472 = vpop.permute.xlu0 %2471
    %v2477 = vmul.f32 %v2457, %v2466
    %v2478 = vmul.f32 %v2458, %v2468
    %v2479 = vmul.f32 %v2459, %v2470
    %v2480 = vmul.f32 %v2460, %v2472
    %v2481 = vmul.f32 %v2410, 0.0
    %v2482 = vmul.f32 %v2412, 0.0
    %v2483 = vmul.f32 %v2414, 0.0
    %v2484 = vmul.f32 %v2416, 0.0
    %v2485 = vadd.f32 %v2477, %v2481
    %v2486 = vadd.f32 %v2478, %v2482
    %v2487 = vadd.f32 %v2479, %v2483
    %v2488 = vadd.f32 %v2480, %v2484
    %v2493 = vrot.slane %v2486, 7
    %v2494 = vsel %vm758, %v2493, %v2485
    %v2495 = vrot.slane %v2487, 6
    %v2496 = vsel %vm761, %v2495, %v2494
    %v2497 = vrot.slane %v2488, 5
    %v2498 = vsel %vm764, %v2497, %v2496
    %2499 = vrot.lane.b32.xlu0 %v2498, 96
    %v2500 = vpop.permute.xlu0 %2499
    %v2501 = vsel %vm571, %v2500, 0
    %2503 = vmatprep.subr.mxu0 0.0
    %2504 = vmatpush1.msra.mxu0 0.0
    %2505 = vmatprep.subr.mxu0 0.0
    %2506 = vmatpush1.msra.mxu0 0.0
    %2507 = vmatprep.subr.mxu0 0.0
    %2508 = vmatpush1.msra.mxu0 0.0
    %2509 = vmatprep.subr.mxu0 0.0
    %2510 = vmatpush1.msra.mxu0 0.0
    %2511 = vmatprep.subr.mxu0 0.0
    %2512 = vmatpush1.msra.mxu0 0.0
    %2513 = vmatprep.subr.mxu0 0.0
    %2514 = vmatpush1.msra.mxu0 0.0
    %2515 = vmatprep.subr.mxu0 0.0
    %2516 = vmatpush1.msra.mxu0 0.0
    %2517 = vmatprep.subr.mxu0 0.0
    %2518 = vmatpush1.msra.mxu0 0.0
    %2519 = vmatprep.subr.mxu0 0.0
    %2520 = vmatpush1.msra.mxu0 0.0
    %2521 = vmatprep.subr.mxu0 0.0
    %2522 = vmatpush1.msra.mxu0 0.0
    %2523 = vmatprep.subr.mxu0 0.0
    %2524 = vmatpush1.msra.mxu0 0.0
    %2525 = vmatprep.subr.mxu0 0.0
    %2526 = vmatpush1.msra.mxu0 0.0
    %2527 = vmatprep.subr.mxu0 0.0
    %2528 = vmatpush1.msra.mxu0 %v366
    %2529 = vmatprep.subr.mxu0 0.0
    %2530 = vmatpush1.msra.mxu0 %v365
    %2531 = vmatprep.subr.mxu0 0.0
    %2532 = vmatpush1.msra.mxu0 %v364
    %2533 = vmatprep.subr.mxu0 0.0
    %2534 = vmatpush1.msra.mxu0 %v363
    %2535 = vmatprep.subr.mxu0 0.0
    %2536 = vmatpush2.msra.mxu0 0.0
    %2537 = vmatprep.subr.mxu0 0.0
    %2538 = vmatpush2.msra.mxu0 0.0
    %2539 = vmatprep.subr.mxu0 0.0
    %2540 = vmatpush2.msra.mxu0 0.0
    %2541 = vmatprep.subr.mxu0 0.0
    %2542 = vmatpush2.msra.mxu0 0.0
    %2543 = vmatprep.subr.mxu0 0.0
    %2544 = vmatpush2.msra.mxu0 0.0
    %2545 = vmatprep.subr.mxu0 0.0
    %2546 = vmatpush2.msra.mxu0 0.0
    %2547 = vmatprep.subr.mxu0 0.0
    %2548 = vmatpush2.msra.mxu0 0.0
    %2549 = vmatprep.subr.mxu0 0.0
    %2550 = vmatpush2.msra.mxu0 0.0
    %2551 = vmatprep.subr.mxu0 0.0
    %2552 = vmatpush2.msra.mxu0 0.0
    %2553 = vmatprep.subr.mxu0 0.0
    %2554 = vmatpush2.msra.mxu0 0.0
    %2555 = vmatprep.subr.mxu0 0.0
    %2556 = vmatpush2.msra.mxu0 0.0
    %2557 = vmatprep.subr.mxu0 0.0
    %2558 = vmatpush2.msra.mxu0 0.0
    %2559 = vmatprep.subr.mxu0 0.0
    %2560 = vmatpush2.msra.mxu0 0.0
    %2561 = vmatprep.subr.mxu0 0.0
    %2562 = vmatpush2.msra.mxu0 0.0
    %2563 = vmatprep.subr.mxu0 0.0
    %2564 = vmatpush2.msra.mxu0 0.0
    %2565 = vmatprep.subr.mxu0 0.0
    %2566 = vmatpush2.msra.mxu0 0.0
    %2567 = vmatprep.mubr.f32.mxu0 0.0
    %2568 = vmatmul.mubr.f32.gmra.mxu0 %v2501
    %v2569 = vpop.f32.mrf.mxu0
    %v2570 = vadd.f32 %v2309, %v2569
    %v2571 = vpop.f32.mrf.mxu0
    %2572 = vdwg.mxu0
    %v2574 = vrot.slane %v2570, 7
    %v2575 = vrot.slane %v2570, 1
    %v2576 = vrot.slane %v2570, 2
    %v2581 = vadd.f32 %v2287, %v2574
    %v2582 = vadd.f32 %v2292, %v2570
    %v2583 = vadd.f32 %v2297, %v2575
    %v2584 = vadd.f32 %v2302, %v2576
    %v2585 = vxor.u32 %v2581, 2147483648
    %v2586 = vxor.u32 %v2582, 2147483648
    %v2587 = vxor.u32 %v2583, 2147483648
    %v2588 = vxor.u32 %v2584, 2147483648
    %v2589 = vmul.f32 %v2585, 1.442695
    %v2590 = vpow.pop %v2589
    %v2591 = vmul.f32 %v2586, 1.442695
    %v2592 = vpow.pop %v2591
    %v2593 = vmul.f32 %v2587, 1.442695
    %v2594 = vpow.pop %v2593
    %v2595 = vmul.f32 %v2588, 1.442695
    %v2596 = vpow.pop %v2595
    %v2597 = vadd.f32 %v2590, 1.0
    %v2598 = vadd.f32 %v2592, 1.0
    %v2599 = vadd.f32 %v2594, 1.0
    %v2600 = vadd.f32 %v2596, 1.0
    %v2601 = vrcp.pop %v2597
    %v2602 = vmul.f32 1.0, %v2601
    %v2603 = vrcp.pop %v2598
    %v2604 = vmul.f32 1.0, %v2603
    %v2605 = vrcp.pop %v2599
    %v2606 = vmul.f32 1.0, %v2605
    %v2607 = vrcp.pop %v2600
    %v2608 = vmul.f32 1.0, %v2607
    %2609 = vrot.lane.b32.xlu0 %v2574, 64
    %v2610 = vpop.permute.xlu0 %2609
    %2611 = vrot.lane.b32.xlu0 %v2570, 64
    %v2612 = vpop.permute.xlu0 %2611
    %2613 = vrot.lane.b32.xlu0 %v2575, 64
    %v2614 = vpop.permute.xlu0 %2613
    %2615 = vrot.lane.b32.xlu0 %v2576, 64
    %v2616 = vpop.permute.xlu0 %2615
    %v2621 = vmul.f32 %v2602, %v2610
    %v2622 = vmul.f32 %v2604, %v2612
    %v2623 = vmul.f32 %v2606, %v2614
    %v2624 = vmul.f32 %v2608, %v2616
    %2629 = vrot.lane.b32.xlu0 %v2621, 64
    %v2630 = vpop.permute.xlu0 %2629
    %2631 = vrot.lane.b32.xlu0 %v2622, 64
    %v2632 = vpop.permute.xlu0 %2631
    %2633 = vrot.lane.b32.xlu0 %v2623, 64
    %v2634 = vpop.permute.xlu0 %2633
    %2635 = vrot.lane.b32.xlu0 %v2624, 64
    %v2636 = vpop.permute.xlu0 %2635
    %v2641 = vadd.f32 %v2287, %v2630
    %v2642 = vadd.f32 %v2292, %v2632
    %v2643 = vadd.f32 %v2297, %v2634
    %v2644 = vadd.f32 %v2302, %v2636
    %v2645 = vtanh.pop %v2641
    %v2646 = vtanh.pop %v2642
    %v2647 = vtanh.pop %v2643
    %v2648 = vtanh.pop %v2644
    %v2649 = vsub.f32 1.0, %v2602
    %v2650 = vsub.f32 1.0, %v2604
    %v2651 = vsub.f32 1.0, %v2606
    %v2652 = vsub.f32 1.0, %v2608
    %2657 = vrot.lane.b32.xlu0 %v2645, 96
    %v2658 = vpop.permute.xlu0 %2657
    %2659 = vrot.lane.b32.xlu0 %v2646, 96
    %v2660 = vpop.permute.xlu0 %2659
    %2661 = vrot.lane.b32.xlu0 %v2647, 96
    %v2662 = vpop.permute.xlu0 %2661
    %2663 = vrot.lane.b32.xlu0 %v2648, 96
    %v2664 = vpop.permute.xlu0 %2663
    %v2669 = vmul.f32 %v2649, %v2658
    %v2670 = vmul.f32 %v2650, %v2660
    %v2671 = vmul.f32 %v2651, %v2662
    %v2672 = vmul.f32 %v2652, %v2664
    %v2673 = vrot.slane %v2485, 7
    %v2674 = vrot.slane %v2487, 7
    %v2675 = vrot.slane %v2488, 7
    %v2680 = vmul.f32 %v2602, %v2673
    %v2681 = vmul.f32 %v2604, %v2493
    %v2682 = vmul.f32 %v2606, %v2674
    %v2683 = vmul.f32 %v2608, %v2675
    %v2684 = vadd.f32 %v2669, %v2680
    %v2685 = vadd.f32 %v2670, %v2681
    %v2686 = vadd.f32 %v2671, %v2682
    %v2687 = vadd.f32 %v2672, %v2683
    %v2692 = vrot.slane %v2684, 1
    %v2693 = vsel %vm758, %v2685, %v2692
    %v2694 = vrot.slane %v2686, 7
    %v2695 = vsel %vm761, %v2694, %v2693
    %v2696 = vrot.slane %v2687, 6
    %v2697 = vsel %vm764, %v2696, %v2695
    %2698 = vrot.lane.b32.xlu0 %v2697, 96
    %v2699 = vpop.permute.xlu0 %2698
    %v2700 = vsel %vm571, %v2699, 0
    %2702 = vmatprep.subr.mxu0 0.0
    %2703 = vmatpush1.msra.mxu0 0.0
    %2704 = vmatprep.subr.mxu0 0.0
    %2705 = vmatpush1.msra.mxu0 0.0
    %2706 = vmatprep.subr.mxu0 0.0
    %2707 = vmatpush1.msra.mxu0 0.0
    %2708 = vmatprep.subr.mxu0 0.0
    %2709 = vmatpush1.msra.mxu0 0.0
    %2710 = vmatprep.subr.mxu0 0.0
    %2711 = vmatpush1.msra.mxu0 0.0
    %2712 = vmatprep.subr.mxu0 0.0
    %2713 = vmatpush1.msra.mxu0 0.0
    %2714 = vmatprep.subr.mxu0 0.0
    %2715 = vmatpush1.msra.mxu0 0.0
    %2716 = vmatprep.subr.mxu0 0.0
    %2717 = vmatpush1.msra.mxu0 0.0
    %2718 = vmatprep.subr.mxu0 0.0
    %2719 = vmatpush1.msra.mxu0 0.0
    %2720 = vmatprep.subr.mxu0 0.0
    %2721 = vmatpush1.msra.mxu0 0.0
    %2722 = vmatprep.subr.mxu0 0.0
    %2723 = vmatpush1.msra.mxu0 0.0
    %2724 = vmatprep.subr.mxu0 0.0
    %2725 = vmatpush1.msra.mxu0 0.0
    %2726 = vmatprep.subr.mxu0 0.0
    %2727 = vmatpush1.msra.mxu0 %v366
    %2728 = vmatprep.subr.mxu0 0.0
    %2729 = vmatpush1.msra.mxu0 %v365
    %2730 = vmatprep.subr.mxu0 0.0
    %2731 = vmatpush1.msra.mxu0 %v364
    %2732 = vmatprep.subr.mxu0 0.0
    %2733 = vmatpush1.msra.mxu0 %v363
    %2734 = vmatprep.subr.mxu0 0.0
    %2735 = vmatpush2.msra.mxu0 0.0
    %2736 = vmatprep.subr.mxu0 0.0
    %2737 = vmatpush2.msra.mxu0 0.0
    %2738 = vmatprep.subr.mxu0 0.0
    %2739 = vmatpush2.msra.mxu0 0.0
    %2740 = vmatprep.subr.mxu0 0.0
    %2741 = vmatpush2.msra.mxu0 0.0
    %2742 = vmatprep.subr.mxu0 0.0
    %2743 = vmatpush2.msra.mxu0 0.0
    %2744 = vmatprep.subr.mxu0 0.0
    %2745 = vmatpush2.msra.mxu0 0.0
    %2746 = vmatprep.subr.mxu0 0.0
    %2747 = vmatpush2.msra.mxu0 0.0
    %2748 = vmatprep.subr.mxu0 0.0
    %2749 = vmatpush2.msra.mxu0 0.0
    %2750 = vmatprep.subr.mxu0 0.0
    %2751 = vmatpush2.msra.mxu0 0.0
    %2752 = vmatprep.subr.mxu0 0.0
    %2753 = vmatpush2.msra.mxu0 0.0
    %2754 = vmatprep.subr.mxu0 0.0
    %2755 = vmatpush2.msra.mxu0 0.0
    %2756 = vmatprep.subr.mxu0 0.0
    %2757 = vmatpush2.msra.mxu0 0.0
    %2758 = vmatprep.subr.mxu0 0.0
    %2759 = vmatpush2.msra.mxu0 0.0
    %2760 = vmatprep.subr.mxu0 0.0
    %2761 = vmatpush2.msra.mxu0 0.0
    %2762 = vmatprep.subr.mxu0 0.0
    %2763 = vmatpush2.msra.mxu0 0.0
    %2764 = vmatprep.subr.mxu0 0.0
    %2765 = vmatpush2.msra.mxu0 0.0
    %2766 = vmatprep.mubr.f32.mxu0 0.0
    %2767 = vmatmul.mubr.f32.gmra.mxu0 %v2700
    %v2768 = vpop.f32.mrf.mxu0
    %v2769 = vadd.f32 %v2309, %v2768
    %v2770 = vpop.f32.mrf.mxu0
    %2771 = vdwg.mxu0
    %v2773 = vrot.slane %v2769, 6
    %v2774 = vrot.slane %v2769, 7
    %v2775 = vrot.slane %v2769, 1
    %v2780 = vadd.f32 %v2287, %v2773
    %v2781 = vadd.f32 %v2292, %v2774
    %v2782 = vadd.f32 %v2297, %v2769
    %v2783 = vadd.f32 %v2302, %v2775
    %v2784 = vxor.u32 %v2780, 2147483648
    %v2785 = vxor.u32 %v2781, 2147483648
    %v2786 = vxor.u32 %v2782, 2147483648
    %v2787 = vxor.u32 %v2783, 2147483648
    %v2788 = vmul.f32 %v2784, 1.442695
    %v2789 = vpow.pop %v2788
    %v2790 = vmul.f32 %v2785, 1.442695
    %v2791 = vpow.pop %v2790
    %v2792 = vmul.f32 %v2786, 1.442695
    %v2793 = vpow.pop %v2792
    %v2794 = vmul.f32 %v2787, 1.442695
    %v2795 = vpow.pop %v2794
    %v2796 = vadd.f32 %v2789, 1.0
    %v2797 = vadd.f32 %v2791, 1.0
    %v2798 = vadd.f32 %v2793, 1.0
    %v2799 = vadd.f32 %v2795, 1.0
    %v2800 = vrcp.pop %v2796
    %v2801 = vmul.f32 1.0, %v2800
    %v2802 = vrcp.pop %v2797
    %v2803 = vmul.f32 1.0, %v2802
    %v2804 = vrcp.pop %v2798
    %v2805 = vmul.f32 1.0, %v2804
    %v2806 = vrcp.pop %v2799
    %v2807 = vmul.f32 1.0, %v2806
    %2808 = vrot.lane.b32.xlu0 %v2773, 64
    %v2809 = vpop.permute.xlu0 %2808
    %2810 = vrot.lane.b32.xlu0 %v2774, 64
    %v2811 = vpop.permute.xlu0 %2810
    %2812 = vrot.lane.b32.xlu0 %v2769, 64
    %v2813 = vpop.permute.xlu0 %2812
    %2814 = vrot.lane.b32.xlu0 %v2775, 64
    %v2815 = vpop.permute.xlu0 %2814
    %v2820 = vmul.f32 %v2801, %v2809
    %v2821 = vmul.f32 %v2803, %v2811
    %v2822 = vmul.f32 %v2805, %v2813
    %v2823 = vmul.f32 %v2807, %v2815
    %2828 = vrot.lane.b32.xlu0 %v2820, 64
    %v2829 = vpop.permute.xlu0 %2828
    %2830 = vrot.lane.b32.xlu0 %v2821, 64
    %v2831 = vpop.permute.xlu0 %2830
    %2832 = vrot.lane.b32.xlu0 %v2822, 64
    %v2833 = vpop.permute.xlu0 %2832
    %2834 = vrot.lane.b32.xlu0 %v2823, 64
    %v2835 = vpop.permute.xlu0 %2834
    %v2840 = vadd.f32 %v2287, %v2829
    %v2841 = vadd.f32 %v2292, %v2831
    %v2842 = vadd.f32 %v2297, %v2833
    %v2843 = vadd.f32 %v2302, %v2835
    %v2844 = vtanh.pop %v2840
    %v2845 = vtanh.pop %v2841
    %v2846 = vtanh.pop %v2842
    %v2847 = vtanh.pop %v2843
    %v2848 = vsub.f32 1.0, %v2801
    %v2849 = vsub.f32 1.0, %v2803
    %v2850 = vsub.f32 1.0, %v2805
    %v2851 = vsub.f32 1.0, %v2807
    %2856 = vrot.lane.b32.xlu0 %v2844, 96
    %v2857 = vpop.permute.xlu0 %2856
    %2858 = vrot.lane.b32.xlu0 %v2845, 96
    %v2859 = vpop.permute.xlu0 %2858
    %2860 = vrot.lane.b32.xlu0 %v2846, 96
    %v2861 = vpop.permute.xlu0 %2860
    %2862 = vrot.lane.b32.xlu0 %v2847, 96
    %v2863 = vpop.permute.xlu0 %2862
    %v2868 = vmul.f32 %v2848, %v2857
    %v2869 = vmul.f32 %v2849, %v2859
    %v2870 = vmul.f32 %v2850, %v2861
    %v2871 = vmul.f32 %v2851, %v2863
    %v2872 = vrot.slane %v2684, 7
    %v2873 = vrot.slane %v2685, 7
    %v2874 = vrot.slane %v2687, 7
    %v2879 = vmul.f32 %v2801, %v2872
    %v2880 = vmul.f32 %v2803, %v2873
    %v2881 = vmul.f32 %v2805, %v2694
    %v2882 = vmul.f32 %v2807, %v2874
    %v2883 = vadd.f32 %v2868, %v2879
    %v2884 = vadd.f32 %v2869, %v2880
    %v2885 = vadd.f32 %v2870, %v2881
    %v2886 = vadd.f32 %v2871, %v2882
    %v2891 = vrot.slane %v2883, 2
    %v2892 = vrot.slane %v2884, 1
    %v2893 = vsel %vm758, %v2892, %v2891
    %v2894 = vsel %vm761, %v2885, %v2893
    %v2895 = vrot.slane %v2886, 7
    %v2896 = vsel %vm764, %v2895, %v2894
    %2897 = vrot.lane.b32.xlu0 %v2896, 96
    %v2898 = vpop.permute.xlu0 %2897
    %v2899 = vsel %vm571, %v2898, 0
    %2901 = vmatprep.subr.mxu0 0.0
    %2902 = vmatpush1.msra.mxu0 0.0
    %2903 = vmatprep.subr.mxu0 0.0
    %2904 = vmatpush1.msra.mxu0 0.0
    %2905 = vmatprep.subr.mxu0 0.0
    %2906 = vmatpush1.msra.mxu0 0.0
    %2907 = vmatprep.subr.mxu0 0.0
    %2908 = vmatpush1.msra.mxu0 0.0
    %2909 = vmatprep.subr.mxu0 0.0
    %2910 = vmatpush1.msra.mxu0 0.0
    %2911 = vmatprep.subr.mxu0 0.0
    %2912 = vmatpush1.msra.mxu0 0.0
    %2913 = vmatprep.subr.mxu0 0.0
    %2914 = vmatpush1.msra.mxu0 0.0
    %2915 = vmatprep.subr.mxu0 0.0
    %2916 = vmatpush1.msra.mxu0 0.0
    %2917 = vmatprep.subr.mxu0 0.0
    %2918 = vmatpush1.msra.mxu0 0.0
    %2919 = vmatprep.subr.mxu0 0.0
    %2920 = vmatpush1.msra.mxu0 0.0
    %2921 = vmatprep.subr.mxu0 0.0
    %2922 = vmatpush1.msra.mxu0 0.0
    %2923 = vmatprep.subr.mxu0 0.0
    %2924 = vmatpush1.msra.mxu0 0.0
    %2925 = vmatprep.subr.mxu0 0.0
    %2926 = vmatpush1.msra.mxu0 %v366
    %2927 = vmatprep.subr.mxu0 0.0
    %2928 = vmatpush1.msra.mxu0 %v365
    %2929 = vmatprep.subr.mxu0 0.0
    %2930 = vmatpush1.msra.mxu0 %v364
    %2931 = vmatprep.subr.mxu0 0.0
    %2932 = vmatpush1.msra.mxu0 %v363
    %2933 = vmatprep.subr.mxu0 0.0
    %2934 = vmatpush2.msra.mxu0 0.0
    %2935 = vmatprep.subr.mxu0 0.0
    %2936 = vmatpush2.msra.mxu0 0.0
    %2937 = vmatprep.subr.mxu0 0.0
    %2938 = vmatpush2.msra.mxu0 0.0
    %2939 = vmatprep.subr.mxu0 0.0
    %2940 = vmatpush2.msra.mxu0 0.0
    %2941 = vmatprep.subr.mxu0 0.0
    %2942 = vmatpush2.msra.mxu0 0.0
    %2943 = vmatprep.subr.mxu0 0.0
    %2944 = vmatpush2.msra.mxu0 0.0
    %2945 = vmatprep.subr.mxu0 0.0
    %2946 = vmatpush2.msra.mxu0 0.0
    %2947 = vmatprep.subr.mxu0 0.0
    %2948 = vmatpush2.msra.mxu0 0.0
    %2949 = vmatprep.subr.mxu0 0.0
    %2950 = vmatpush2.msra.mxu0 0.0
    %2951 = vmatprep.subr.mxu0 0.0
    %2952 = vmatpush2.msra.mxu0 0.0
    %2953 = vmatprep.subr.mxu0 0.0
    %2954 = vmatpush2.msra.mxu0 0.0
    %2955 = vmatprep.subr.mxu0 0.0
    %2956 = vmatpush2.msra.mxu0 0.0
    %2957 = vmatprep.subr.mxu0 0.0
    %2958 = vmatpush2.msra.mxu0 0.0
    %2959 = vmatprep.subr.mxu0 0.0
    %2960 = vmatpush2.msra.mxu0 0.0
    %2961 = vmatprep.subr.mxu0 0.0
    %2962 = vmatpush2.msra.mxu0 0.0
    %2963 = vmatprep.subr.mxu0 0.0
    %2964 = vmatpush2.msra.mxu0 0.0
    %2965 = vmatprep.mubr.f32.mxu0 0.0
    %2966 = vmatmul.mubr.f32.gmra.mxu0 %v2899
    %v2967 = vpop.f32.mrf.mxu0
    %v2968 = vadd.f32 %v2309, %v2967
    %v2969 = vpop.f32.mrf.mxu0
    %2970 = vdwg.mxu0
    %v2972 = vrot.slane %v2968, 5
    %v2973 = vrot.slane %v2968, 6
    %v2974 = vrot.slane %v2968, 7
    %v2979 = vadd.f32 %v2287, %v2972
    %v2980 = vadd.f32 %v2292, %v2973
    %v2981 = vadd.f32 %v2297, %v2974
    %v2982 = vadd.f32 %v2302, %v2968
    %v2983 = vxor.u32 %v2979, 2147483648
    %v2984 = vxor.u32 %v2980, 2147483648
    %v2985 = vxor.u32 %v2981, 2147483648
    %v2986 = vxor.u32 %v2982, 2147483648
    %v2987 = vmul.f32 %v2983, 1.442695
    %v2988 = vpow.pop %v2987
    %v2989 = vmul.f32 %v2984, 1.442695
    %v2990 = vpow.pop %v2989
    %v2991 = vmul.f32 %v2985, 1.442695
    %v2992 = vpow.pop %v2991
    %v2993 = vmul.f32 %v2986, 1.442695
    %v2994 = vpow.pop %v2993
    %v2995 = vadd.f32 %v2988, 1.0
    %v2996 = vadd.f32 %v2990, 1.0
    %v2997 = vadd.f32 %v2992, 1.0
    %v2998 = vadd.f32 %v2994, 1.0
    %v2999 = vrcp.pop %v2995
    %v3000 = vmul.f32 1.0, %v2999
    %v3001 = vrcp.pop %v2996
    %v3002 = vmul.f32 1.0, %v3001
    %v3003 = vrcp.pop %v2997
    %v3004 = vmul.f32 1.0, %v3003
    %v3005 = vrcp.pop %v2998
    %v3006 = vmul.f32 1.0, %v3005
    %3007 = vrot.lane.b32.xlu0 %v2972, 64
    %v3008 = vpop.permute.xlu0 %3007
    %3009 = vrot.lane.b32.xlu0 %v2973, 64
    %v3010 = vpop.permute.xlu0 %3009
    %3011 = vrot.lane.b32.xlu0 %v2974, 64
    %v3012 = vpop.permute.xlu0 %3011
    %3013 = vrot.lane.b32.xlu0 %v2968, 64
    %v3014 = vpop.permute.xlu0 %3013
    %v3019 = vmul.f32 %v3000, %v3008
    %v3020 = vmul.f32 %v3002, %v3010
    %v3021 = vmul.f32 %v3004, %v3012
    %v3022 = vmul.f32 %v3006, %v3014
    %3027 = vrot.lane.b32.xlu0 %v3019, 64
    %v3028 = vpop.permute.xlu0 %3027
    %3029 = vrot.lane.b32.xlu0 %v3020, 64
    %v3030 = vpop.permute.xlu0 %3029
    %3031 = vrot.lane.b32.xlu0 %v3021, 64
    %v3032 = vpop.permute.xlu0 %3031
    %3033 = vrot.lane.b32.xlu0 %v3022, 64
    %v3034 = vpop.permute.xlu0 %3033
    %v3039 = vadd.f32 %v2287, %v3028
    %v3040 = vadd.f32 %v2292, %v3030
    %v3041 = vadd.f32 %v2297, %v3032
    %v3042 = vadd.f32 %v2302, %v3034
    %v3043 = vtanh.pop %v3039
    %v3044 = vtanh.pop %v3040
    %v3045 = vtanh.pop %v3041
    %v3046 = vtanh.pop %v3042
    %v3047 = vsub.f32 1.0, %v3000
    %v3048 = vsub.f32 1.0, %v3002
    %v3049 = vsub.f32 1.0, %v3004
    %v3050 = vsub.f32 1.0, %v3006
    %3055 = vrot.lane.b32.xlu0 %v3043, 96
    %v3056 = vpop.permute.xlu0 %3055
    %3057 = vrot.lane.b32.xlu0 %v3044, 96
    %v3058 = vpop.permute.xlu0 %3057
    %3059 = vrot.lane.b32.xlu0 %v3045, 96
    %v3060 = vpop.permute.xlu0 %3059
    %3061 = vrot.lane.b32.xlu0 %v3046, 96
    %v3062 = vpop.permute.xlu0 %3061
    %v3067 = vmul.f32 %v3047, %v3056
    %v3068 = vmul.f32 %v3048, %v3058
    %v3069 = vmul.f32 %v3049, %v3060
    %v3070 = vmul.f32 %v3050, %v3062
    %v3071 = vrot.slane %v2883, 7
    %v3072 = vrot.slane %v2884, 7
    %v3073 = vrot.slane %v2885, 7
    %v3078 = vmul.f32 %v3000, %v3071
    %v3079 = vmul.f32 %v3002, %v3072
    %v3080 = vmul.f32 %v3004, %v3073
    %v3081 = vmul.f32 %v3006, %v2895
    %v3082 = vadd.f32 %v3067, %v3078
    %v3083 = vadd.f32 %v3068, %v3079
    %v3084 = vadd.f32 %v3069, %v3080
    %v3085 = vadd.f32 %v3070, %v3081
    %v3090 = vrot.slane %v3082, 3
    %v3091 = vrot.slane %v3083, 2
    %v3092 = vsel %vm758, %v3091, %v3090
    %v3093 = vrot.slane %v3084, 1
    %v3094 = vsel %vm761, %v3093, %v3092
    %v3095 = vsel %vm764, %v3085, %v3094
    %3096 = vrot.lane.b32.xlu0 %v3095, 96
    %v3097 = vpop.permute.xlu0 %3096
    %v3098 = vsel %vm571, %v3097, 0
    %3100 = vmatprep.subr.mxu0 0.0
    %3101 = vmatpush1.msra.mxu0 0.0
    %3102 = vmatprep.subr.mxu0 0.0
    %3103 = vmatpush1.msra.mxu0 0.0
    %3104 = vmatprep.subr.mxu0 0.0
    %3105 = vmatpush1.msra.mxu0 0.0
    %3106 = vmatprep.subr.mxu0 0.0
    %3107 = vmatpush1.msra.mxu0 0.0
    %3108 = vmatprep.subr.mxu0 0.0
    %3109 = vmatpush1.msra.mxu0 0.0
    %3110 = vmatprep.subr.mxu0 0.0
    %3111 = vmatpush1.msra.mxu0 0.0
    %3112 = vmatprep.subr.mxu0 0.0
    %3113 = vmatpush1.msra.mxu0 0.0
    %3114 = vmatprep.subr.mxu0 0.0
    %3115 = vmatpush1.msra.mxu0 0.0
    %3116 = vmatprep.subr.mxu0 0.0
    %3117 = vmatpush1.msra.mxu0 0.0
    %3118 = vmatprep.subr.mxu0 0.0
    %3119 = vmatpush1.msra.mxu0 0.0
    %3120 = vmatprep.subr.mxu0 0.0
    %3121 = vmatpush1.msra.mxu0 0.0
    %3122 = vmatprep.subr.mxu0 0.0
    %3123 = vmatpush1.msra.mxu0 0.0
    %3124 = vmatprep.subr.mxu0 0.0
    %3125 = vmatpush1.msra.mxu0 %v366
    %3126 = vmatprep.subr.mxu0 0.0
    %3127 = vmatpush1.msra.mxu0 %v365
    %3128 = vmatprep.subr.mxu0 0.0
    %3129 = vmatpush1.msra.mxu0 %v364
    %3130 = vmatprep.subr.mxu0 0.0
    %3131 = vmatpush1.msra.mxu0 %v363
    %3132 = vmatprep.subr.mxu0 0.0
    %3133 = vmatpush2.msra.mxu0 0.0
    %3134 = vmatprep.subr.mxu0 0.0
    %3135 = vmatpush2.msra.mxu0 0.0
    %3136 = vmatprep.subr.mxu0 0.0
    %3137 = vmatpush2.msra.mxu0 0.0
    %3138 = vmatprep.subr.mxu0 0.0
    %3139 = vmatpush2.msra.mxu0 0.0
    %3140 = vmatprep.subr.mxu0 0.0
    %3141 = vmatpush2.msra.mxu0 0.0
    %3142 = vmatprep.subr.mxu0 0.0
    %3143 = vmatpush2.msra.mxu0 0.0
    %3144 = vmatprep.subr.mxu0 0.0
    %3145 = vmatpush2.msra.mxu0 0.0
    %3146 = vmatprep.subr.mxu0 0.0
    %3147 = vmatpush2.msra.mxu0 0.0
    %3148 = vmatprep.subr.mxu0 0.0
    %3149 = vmatpush2.msra.mxu0 0.0
    %3150 = vmatprep.subr.mxu0 0.0
    %3151 = vmatpush2.msra.mxu0 0.0
    %3152 = vmatprep.subr.mxu0 0.0
    %3153 = vmatpush2.msra.mxu0 0.0
    %3154 = vmatprep.subr.mxu0 0.0
    %3155 = vmatpush2.msra.mxu0 0.0
    %3156 = vmatprep.subr.mxu0 0.0
    %3157 = vmatpush2.msra.mxu0 0.0
    %3158 = vmatprep.subr.mxu0 0.0
    %3159 = vmatpush2.msra.mxu0 0.0
    %3160 = vmatprep.subr.mxu0 0.0
    %3161 = vmatpush2.msra.mxu0 0.0
    %3162 = vmatprep.subr.mxu0 0.0
    %3163 = vmatpush2.msra.mxu0 0.0
    %3164 = vmatprep.mubr.f32.mxu0 0.0
    %3165 = vmatmul.mubr.f32.gmra.mxu0 %v3098
    %v3166 = vpop.f32.mrf.mxu0
    %v3167 = vadd.f32 %v2309, %v3166
    %v3168 = vpop.f32.mrf.mxu0
    %3169 = vdwg.mxu0
    %v3171 = vrot.slane %v3167, 4
    %v3172 = vrot.slane %v3167, 5
    %v3173 = vrot.slane %v3167, 6
    %v3174 = vrot.slane %v3167, 7
    %v3179 = vadd.f32 %v2287, %v3171
    %v3180 = vadd.f32 %v2292, %v3172
    %v3181 = vadd.f32 %v2297, %v3173
    %v3182 = vadd.f32 %v2302, %v3174
    %v3183 = vxor.u32 %v3179, 2147483648
    %v3184 = vxor.u32 %v3180, 2147483648
    %v3185 = vxor.u32 %v3181, 2147483648
    %v3186 = vxor.u32 %v3182, 2147483648
    %v3187 = vmul.f32 %v3183, 1.442695
    %v3188 = vpow.pop %v3187
    %v3189 = vmul.f32 %v3184, 1.442695
    %v3190 = vpow.pop %v3189
    %v3191 = vmul.f32 %v3185, 1.442695
    %v3192 = vpow.pop %v3191
    %v3193 = vmul.f32 %v3186, 1.442695
    %v3194 = vpow.pop %v3193
    %v3195 = vadd.f32 %v3188, 1.0
    %v3196 = vadd.f32 %v3190, 1.0
    %v3197 = vadd.f32 %v3192, 1.0
    %v3198 = vadd.f32 %v3194, 1.0
    %v3199 = vrcp.pop %v3195
    %v3200 = vmul.f32 1.0, %v3199
    %v3201 = vrcp.pop %v3196
    %v3202 = vmul.f32 1.0, %v3201
    %v3203 = vrcp.pop %v3197
    %v3204 = vmul.f32 1.0, %v3203
    %v3205 = vrcp.pop %v3198
    %v3206 = vmul.f32 1.0, %v3205
    %3207 = vrot.lane.b32.xlu0 %v3171, 64
    %v3208 = vpop.permute.xlu0 %3207
    %3209 = vrot.lane.b32.xlu0 %v3172, 64
    %v3210 = vpop.permute.xlu0 %3209
    %3211 = vrot.lane.b32.xlu0 %v3173, 64
    %v3212 = vpop.permute.xlu0 %3211
    %3213 = vrot.lane.b32.xlu0 %v3174, 64
    %v3214 = vpop.permute.xlu0 %3213
    %v3219 = vmul.f32 %v3200, %v3208
    %v3220 = vmul.f32 %v3202, %v3210
    %v3221 = vmul.f32 %v3204, %v3212
    %v3222 = vmul.f32 %v3206, %v3214
    %3227 = vrot.lane.b32.xlu0 %v3219, 64
    %v3228 = vpop.permute.xlu0 %3227
    %3229 = vrot.lane.b32.xlu0 %v3220, 64
    %v3230 = vpop.permute.xlu0 %3229
    %3231 = vrot.lane.b32.xlu0 %v3221, 64
    %v3232 = vpop.permute.xlu0 %3231
    %3233 = vrot.lane.b32.xlu0 %v3222, 64
    %v3234 = vpop.permute.xlu0 %3233
    %v3239 = vadd.f32 %v2287, %v3228
    %v3240 = vadd.f32 %v2292, %v3230
    %v3241 = vadd.f32 %v2297, %v3232
    %v3242 = vadd.f32 %v2302, %v3234
    %v3243 = vtanh.pop %v3239
    %v3244 = vtanh.pop %v3240
    %v3245 = vtanh.pop %v3241
    %v3246 = vtanh.pop %v3242
    %v3247 = vsub.f32 1.0, %v3200
    %v3248 = vsub.f32 1.0, %v3202
    %v3249 = vsub.f32 1.0, %v3204
    %v3250 = vsub.f32 1.0, %v3206
    %3255 = vrot.lane.b32.xlu0 %v3243, 96
    %v3256 = vpop.permute.xlu0 %3255
    %3257 = vrot.lane.b32.xlu0 %v3244, 96
    %v3258 = vpop.permute.xlu0 %3257
    %3259 = vrot.lane.b32.xlu0 %v3245, 96
    %v3260 = vpop.permute.xlu0 %3259
    %3261 = vrot.lane.b32.xlu0 %v3246, 96
    %v3262 = vpop.permute.xlu0 %3261
    %v3267 = vmul.f32 %v3247, %v3256
    %v3268 = vmul.f32 %v3248, %v3258
    %v3269 = vmul.f32 %v3249, %v3260
    %v3270 = vmul.f32 %v3250, %v3262
    %v3271 = vrot.slane %v3082, 7
    %v3272 = vrot.slane %v3083, 7
    %v3273 = vrot.slane %v3084, 7
    %v3274 = vrot.slane %v3085, 7
    %v3279 = vmul.f32 %v3200, %v3271
    %v3280 = vmul.f32 %v3202, %v3272
    %v3281 = vmul.f32 %v3204, %v3273
    %v3282 = vmul.f32 %v3206, %v3274
    %v3283 = vadd.f32 %v3267, %v3279
    %v3284 = vadd.f32 %v3268, %v3280
    %v3285 = vadd.f32 %v3269, %v3281
    %v3286 = vadd.f32 %v3270, %v3282
    %v3291 = vrot.slane %v3283, 4
    %v3292 = vrot.slane %v3284, 3
    %v3293 = vsel %vm758, %v3292, %v3291
    %v3294 = vrot.slane %v3285, 2
    %v3295 = vsel %vm761, %v3294, %v3293
    %v3296 = vrot.slane %v3286, 1
    %v3297 = vsel %vm764, %v3296, %v3295
    %3298 = vrot.lane.b32.xlu0 %v3297, 96
    %v3299 = vpop.permute.xlu0 %3298
    %v3300 = vsel %vm571, %v3299, 0
    %3302 = vmatprep.subr.mxu0 0.0
    %3303 = vmatpush1.msra.mxu0 0.0
    %3304 = vmatprep.subr.mxu0 0.0
    %3305 = vmatpush1.msra.mxu0 0.0
    %3306 = vmatprep.subr.mxu0 0.0
    %3307 = vmatpush1.msra.mxu0 0.0
    %3308 = vmatprep.subr.mxu0 0.0
    %3309 = vmatpush1.msra.mxu0 0.0
    %3310 = vmatprep.subr.mxu0 0.0
    %3311 = vmatpush1.msra.mxu0 0.0
    %3312 = vmatprep.subr.mxu0 0.0
    %3313 = vmatpush1.msra.mxu0 0.0
    %3314 = vmatprep.subr.mxu0 0.0
    %3315 = vmatpush1.msra.mxu0 0.0
    %3316 = vmatprep.subr.mxu0 0.0
    %3317 = vmatpush1.msra.mxu0 0.0
    %3318 = vmatprep.subr.mxu0 0.0
    %3319 = vmatpush1.msra.mxu0 0.0
    %3320 = vmatprep.subr.mxu0 0.0
    %3321 = vmatpush1.msra.mxu0 0.0
    %3322 = vmatprep.subr.mxu0 0.0
    %3323 = vmatpush1.msra.mxu0 0.0
    %3324 = vmatprep.subr.mxu0 0.0
    %3325 = vmatpush1.msra.mxu0 0.0
    %3326 = vmatprep.subr.mxu0 0.0
    %3327 = vmatpush1.msra.mxu0 %v366
    %3328 = vmatprep.subr.mxu0 0.0
    %3329 = vmatpush1.msra.mxu0 %v365
    %3330 = vmatprep.subr.mxu0 0.0
    %3331 = vmatpush1.msra.mxu0 %v364
    %3332 = vmatprep.subr.mxu0 0.0
    %3333 = vmatpush1.msra.mxu0 %v363
    %3334 = vmatprep.subr.mxu0 0.0
    %3335 = vmatpush2.msra.mxu0 0.0
    %3336 = vmatprep.subr.mxu0 0.0
    %3337 = vmatpush2.msra.mxu0 0.0
    %3338 = vmatprep.subr.mxu0 0.0
    %3339 = vmatpush2.msra.mxu0 0.0
    %3340 = vmatprep.subr.mxu0 0.0
    %3341 = vmatpush2.msra.mxu0 0.0
    %3342 = vmatprep.subr.mxu0 0.0
    %3343 = vmatpush2.msra.mxu0 0.0
    %3344 = vmatprep.subr.mxu0 0.0
    %3345 = vmatpush2.msra.mxu0 0.0
    %3346 = vmatprep.subr.mxu0 0.0
    %3347 = vmatpush2.msra.mxu0 0.0
    %3348 = vmatprep.subr.mxu0 0.0
    %3349 = vmatpush2.msra.mxu0 0.0
    %3350 = vmatprep.subr.mxu0 0.0
    %3351 = vmatpush2.msra.mxu0 0.0
    %3352 = vmatprep.subr.mxu0 0.0
    %3353 = vmatpush2.msra.mxu0 0.0
    %3354 = vmatprep.subr.mxu0 0.0
    %3355 = vmatpush2.msra.mxu0 0.0
    %3356 = vmatprep.subr.mxu0 0.0
    %3357 = vmatpush2.msra.mxu0 0.0
    %3358 = vmatprep.subr.mxu0 0.0
    %3359 = vmatpush2.msra.mxu0 0.0
    %3360 = vmatprep.subr.mxu0 0.0
    %3361 = vmatpush2.msra.mxu0 0.0
    %3362 = vmatprep.subr.mxu0 0.0
    %3363 = vmatpush2.msra.mxu0 0.0
    %3364 = vmatprep.subr.mxu0 0.0
    %3365 = vmatpush2.msra.mxu0 0.0
    %3366 = vmatprep.mubr.f32.mxu0 0.0
    %3367 = vmatmul.mubr.f32.gmra.mxu0 %v3300
    %v3368 = vpop.f32.mrf.mxu0
    %v3369 = vadd.f32 %v2309, %v3368
    %v3370 = vpop.f32.mrf.mxu0
    %3371 = vdwg.mxu0
    %v3373 = vrot.slane %v3369, 3
    %v3374 = vrot.slane %v3369, 4
    %v3375 = vrot.slane %v3369, 5
    %v3376 = vrot.slane %v3369, 6
    %v3381 = vadd.f32 %v2287, %v3373
    %v3382 = vadd.f32 %v2292, %v3374
    %v3383 = vadd.f32 %v2297, %v3375
    %v3384 = vadd.f32 %v2302, %v3376
    %v3385 = vxor.u32 %v3381, 2147483648
    %v3386 = vxor.u32 %v3382, 2147483648
    %v3387 = vxor.u32 %v3383, 2147483648
    %v3388 = vxor.u32 %v3384, 2147483648
    %v3389 = vmul.f32 %v3385, 1.442695
    %v3390 = vpow.pop %v3389
    %v3391 = vmul.f32 %v3386, 1.442695
    %v3392 = vpow.pop %v3391
    %v3393 = vmul.f32 %v3387, 1.442695
    %v3394 = vpow.pop %v3393
    %v3395 = vmul.f32 %v3388, 1.442695
    %v3396 = vpow.pop %v3395
    %v3397 = vadd.f32 %v3390, 1.0
    %v3398 = vadd.f32 %v3392, 1.0
    %v3399 = vadd.f32 %v3394, 1.0
    %v3400 = vadd.f32 %v3396, 1.0
    %v3401 = vrcp.pop %v3397
    %v3402 = vmul.f32 1.0, %v3401
    %v3403 = vrcp.pop %v3398
    %v3404 = vmul.f32 1.0, %v3403
    %v3405 = vrcp.pop %v3399
    %v3406 = vmul.f32 1.0, %v3405
    %v3407 = vrcp.pop %v3400
    %v3408 = vmul.f32 1.0, %v3407
    %3409 = vrot.lane.b32.xlu0 %v3373, 64
    %v3410 = vpop.permute.xlu0 %3409
    %3411 = vrot.lane.b32.xlu0 %v3374, 64
    %v3412 = vpop.permute.xlu0 %3411
    %3413 = vrot.lane.b32.xlu0 %v3375, 64
    %v3414 = vpop.permute.xlu0 %3413
    %3415 = vrot.lane.b32.xlu0 %v3376, 64
    %v3416 = vpop.permute.xlu0 %3415
    %v3421 = vmul.f32 %v3402, %v3410
    %v3422 = vmul.f32 %v3404, %v3412
    %v3423 = vmul.f32 %v3406, %v3414
    %v3424 = vmul.f32 %v3408, %v3416
    %3429 = vrot.lane.b32.xlu0 %v3421, 64
    %v3430 = vpop.permute.xlu0 %3429
    %3431 = vrot.lane.b32.xlu0 %v3422, 64
    %v3432 = vpop.permute.xlu0 %3431
    %3433 = vrot.lane.b32.xlu0 %v3423, 64
    %v3434 = vpop.permute.xlu0 %3433
    %3435 = vrot.lane.b32.xlu0 %v3424, 64
    %v3436 = vpop.permute.xlu0 %3435
    %v3441 = vadd.f32 %v2287, %v3430
    %v3442 = vadd.f32 %v2292, %v3432
    %v3443 = vadd.f32 %v2297, %v3434
    %v3444 = vadd.f32 %v2302, %v3436
    %v3445 = vtanh.pop %v3441
    %v3446 = vtanh.pop %v3442
    %v3447 = vtanh.pop %v3443
    %v3448 = vtanh.pop %v3444
    %v3449 = vsub.f32 1.0, %v3402
    %v3450 = vsub.f32 1.0, %v3404
    %v3451 = vsub.f32 1.0, %v3406
    %v3452 = vsub.f32 1.0, %v3408
    %3457 = vrot.lane.b32.xlu0 %v3445, 96
    %v3458 = vpop.permute.xlu0 %3457
    %3459 = vrot.lane.b32.xlu0 %v3446, 96
    %v3460 = vpop.permute.xlu0 %3459
    %3461 = vrot.lane.b32.xlu0 %v3447, 96
    %v3462 = vpop.permute.xlu0 %3461
    %3463 = vrot.lane.b32.xlu0 %v3448, 96
    %v3464 = vpop.permute.xlu0 %3463
    %v3469 = vmul.f32 %v3449, %v3458
    %v3470 = vmul.f32 %v3450, %v3460
    %v3471 = vmul.f32 %v3451, %v3462
    %v3472 = vmul.f32 %v3452, %v3464
    %v3473 = vrot.slane %v3283, 7
    %v3474 = vrot.slane %v3284, 7
    %v3475 = vrot.slane %v3285, 7
    %v3476 = vrot.slane %v3286, 7
    %v3481 = vmul.f32 %v3402, %v3473
    %v3482 = vmul.f32 %v3404, %v3474
    %v3483 = vmul.f32 %v3406, %v3475
    %v3484 = vmul.f32 %v3408, %v3476
    %v3485 = vadd.f32 %v3469, %v3481
    %v3486 = vadd.f32 %v3470, %v3482
    %v3487 = vadd.f32 %v3471, %v3483
    %v3488 = vadd.f32 %v3472, %v3484
    %v3493 = vrot.slane %v3485, 5
    %v3494 = vrot.slane %v3486, 4
    %v3495 = vsel %vm758, %v3494, %v3493
    %v3496 = vrot.slane %v3487, 3
    %v3497 = vsel %vm761, %v3496, %v3495
    %v3498 = vrot.slane %v3488, 2
    %v3499 = vsel %vm764, %v3498, %v3497
    %3500 = vrot.lane.b32.xlu0 %v3499, 96
    %v3501 = vpop.permute.xlu0 %3500
    %v3502 = vsel %vm571, %v3501, 0
    %3504 = vmatprep.subr.mxu0 0.0
    %3505 = vmatpush1.msra.mxu0 0.0
    %3506 = vmatprep.subr.mxu0 0.0
    %3507 = vmatpush1.msra.mxu0 0.0
    %3508 = vmatprep.subr.mxu0 0.0
    %3509 = vmatpush1.msra.mxu0 0.0
    %3510 = vmatprep.subr.mxu0 0.0
    %3511 = vmatpush1.msra.mxu0 0.0
    %3512 = vmatprep.subr.mxu0 0.0
    %3513 = vmatpush1.msra.mxu0 0.0
    %3514 = vmatprep.subr.mxu0 0.0
    %3515 = vmatpush1.msra.mxu0 0.0
    %3516 = vmatprep.subr.mxu0 0.0
    %3517 = vmatpush1.msra.mxu0 0.0
    %3518 = vmatprep.subr.mxu0 0.0
    %3519 = vmatpush1.msra.mxu0 0.0
    %3520 = vmatprep.subr.mxu0 0.0
    %3521 = vmatpush1.msra.mxu0 0.0
    %3522 = vmatprep.subr.mxu0 0.0
    %3523 = vmatpush1.msra.mxu0 0.0
    %3524 = vmatprep.subr.mxu0 0.0
    %3525 = vmatpush1.msra.mxu0 0.0
    %3526 = vmatprep.subr.mxu0 0.0
    %3527 = vmatpush1.msra.mxu0 0.0
    %3528 = vmatprep.subr.mxu0 0.0
    %3529 = vmatpush1.msra.mxu0 %v366
    %3530 = vmatprep.subr.mxu0 0.0
    %3531 = vmatpush1.msra.mxu0 %v365
    %3532 = vmatprep.subr.mxu0 0.0
    %3533 = vmatpush1.msra.mxu0 %v364
    %3534 = vmatprep.subr.mxu0 0.0
    %3535 = vmatpush1.msra.mxu0 %v363
    %3536 = vmatprep.subr.mxu0 0.0
    %3537 = vmatpush2.msra.mxu0 0.0
    %3538 = vmatprep.subr.mxu0 0.0
    %3539 = vmatpush2.msra.mxu0 0.0
    %3540 = vmatprep.subr.mxu0 0.0
    %3541 = vmatpush2.msra.mxu0 0.0
    %3542 = vmatprep.subr.mxu0 0.0
    %3543 = vmatpush2.msra.mxu0 0.0
    %3544 = vmatprep.subr.mxu0 0.0
    %3545 = vmatpush2.msra.mxu0 0.0
    %3546 = vmatprep.subr.mxu0 0.0
    %3547 = vmatpush2.msra.mxu0 0.0
    %3548 = vmatprep.subr.mxu0 0.0
    %3549 = vmatpush2.msra.mxu0 0.0
    %3550 = vmatprep.subr.mxu0 0.0
    %3551 = vmatpush2.msra.mxu0 0.0
    %3552 = vmatprep.subr.mxu0 0.0
    %3553 = vmatpush2.msra.mxu0 0.0
    %3554 = vmatprep.subr.mxu0 0.0
    %3555 = vmatpush2.msra.mxu0 0.0
    %3556 = vmatprep.subr.mxu0 0.0
    %3557 = vmatpush2.msra.mxu0 0.0
    %3558 = vmatprep.subr.mxu0 0.0
    %3559 = vmatpush2.msra.mxu0 0.0
    %3560 = vmatprep.subr.mxu0 0.0
    %3561 = vmatpush2.msra.mxu0 0.0
    %3562 = vmatprep.subr.mxu0 0.0
    %3563 = vmatpush2.msra.mxu0 0.0
    %3564 = vmatprep.subr.mxu0 0.0
    %3565 = vmatpush2.msra.mxu0 0.0
    %3566 = vmatprep.subr.mxu0 0.0
    %3567 = vmatpush2.msra.mxu0 0.0
    %3568 = vmatprep.mubr.f32.mxu0 0.0
    %3569 = vmatmul.mubr.f32.gmra.mxu0 %v3502
    %v3570 = vpop.f32.mrf.mxu0
    %v3571 = vadd.f32 %v2309, %v3570
    %v3572 = vpop.f32.mrf.mxu0
    %3573 = vdwg.mxu0
    %v3575 = vrot.slane %v3571, 2
    %v3576 = vrot.slane %v3571, 3
    %v3577 = vrot.slane %v3571, 4
    %v3578 = vrot.slane %v3571, 5
    %v3583 = vadd.f32 %v2287, %v3575
    %v3584 = vadd.f32 %v2292, %v3576
    %v3585 = vadd.f32 %v2297, %v3577
    %v3586 = vadd.f32 %v2302, %v3578
    %v3587 = vxor.u32 %v3583, 2147483648
    %v3588 = vxor.u32 %v3584, 2147483648
    %v3589 = vxor.u32 %v3585, 2147483648
    %v3590 = vxor.u32 %v3586, 2147483648
    %v3591 = vmul.f32 %v3587, 1.442695
    %v3592 = vpow.pop %v3591
    %v3593 = vmul.f32 %v3588, 1.442695
    %v3594 = vpow.pop %v3593
    %v3595 = vmul.f32 %v3589, 1.442695
    %v3596 = vpow.pop %v3595
    %v3597 = vmul.f32 %v3590, 1.442695
    %v3598 = vpow.pop %v3597
    %v3599 = vadd.f32 %v3592, 1.0
    %v3600 = vadd.f32 %v3594, 1.0
    %v3601 = vadd.f32 %v3596, 1.0
    %v3602 = vadd.f32 %v3598, 1.0
    %v3603 = vrcp.pop %v3599
    %v3604 = vmul.f32 1.0, %v3603
    %v3605 = vrcp.pop %v3600
    %v3606 = vmul.f32 1.0, %v3605
    %v3607 = vrcp.pop %v3601
    %v3608 = vmul.f32 1.0, %v3607
    %v3609 = vrcp.pop %v3602
    %v3610 = vmul.f32 1.0, %v3609
    %3611 = vrot.lane.b32.xlu0 %v3575, 64
    %v3612 = vpop.permute.xlu0 %3611
    %3613 = vrot.lane.b32.xlu0 %v3576, 64
    %v3614 = vpop.permute.xlu0 %3613
    %3615 = vrot.lane.b32.xlu0 %v3577, 64
    %v3616 = vpop.permute.xlu0 %3615
    %3617 = vrot.lane.b32.xlu0 %v3578, 64
    %v3618 = vpop.permute.xlu0 %3617
    %v3623 = vmul.f32 %v3604, %v3612
    %v3624 = vmul.f32 %v3606, %v3614
    %v3625 = vmul.f32 %v3608, %v3616
    %v3626 = vmul.f32 %v3610, %v3618
    %3631 = vrot.lane.b32.xlu0 %v3623, 64
    %v3632 = vpop.permute.xlu0 %3631
    %3633 = vrot.lane.b32.xlu0 %v3624, 64
    %v3634 = vpop.permute.xlu0 %3633
    %3635 = vrot.lane.b32.xlu0 %v3625, 64
    %v3636 = vpop.permute.xlu0 %3635
    %3637 = vrot.lane.b32.xlu0 %v3626, 64
    %v3638 = vpop.permute.xlu0 %3637
    %v3643 = vadd.f32 %v2287, %v3632
    %v3644 = vadd.f32 %v2292, %v3634
    %v3645 = vadd.f32 %v2297, %v3636
    %v3646 = vadd.f32 %v2302, %v3638
    %v3647 = vtanh.pop %v3643
    %v3648 = vtanh.pop %v3644
    %v3649 = vtanh.pop %v3645
    %v3650 = vtanh.pop %v3646
    %v3651 = vsub.f32 1.0, %v3604
    %v3652 = vsub.f32 1.0, %v3606
    %v3653 = vsub.f32 1.0, %v3608
    %v3654 = vsub.f32 1.0, %v3610
    %3659 = vrot.lane.b32.xlu0 %v3647, 96
    %v3660 = vpop.permute.xlu0 %3659
    %3661 = vrot.lane.b32.xlu0 %v3648, 96
    %v3662 = vpop.permute.xlu0 %3661
    %3663 = vrot.lane.b32.xlu0 %v3649, 96
    %v3664 = vpop.permute.xlu0 %3663
    %3665 = vrot.lane.b32.xlu0 %v3650, 96
    %v3666 = vpop.permute.xlu0 %3665
    %v3671 = vmul.f32 %v3651, %v3660
    %v3672 = vmul.f32 %v3652, %v3662
    %v3673 = vmul.f32 %v3653, %v3664
    %v3674 = vmul.f32 %v3654, %v3666
    %v3675 = vrot.slane %v3485, 7
    %v3676 = vrot.slane %v3486, 7
    %v3677 = vrot.slane %v3487, 7
    %v3678 = vrot.slane %v3488, 7
    %v3683 = vmul.f32 %v3604, %v3675
    %v3684 = vmul.f32 %v3606, %v3676
    %v3685 = vmul.f32 %v3608, %v3677
    %v3686 = vmul.f32 %v3610, %v3678
    %v3687 = vadd.f32 %v3671, %v3683
    %v3688 = vadd.f32 %v3672, %v3684
    %v3689 = vadd.f32 %v3673, %v3685
    %v3690 = vadd.f32 %v3674, %v3686
    %v3695 = vrot.slane %v3687, 6
    %v3696 = vrot.slane %v3688, 5
    %v3697 = vsel %vm758, %v3696, %v3695
    %v3698 = vrot.slane %v3689, 4
    %v3699 = vsel %vm761, %v3698, %v3697
    %v3700 = vrot.slane %v3690, 3
    %v3701 = vsel %vm764, %v3700, %v3699
    %3702 = vrot.lane.b32.xlu0 %v3701, 96
    %v3703 = vpop.permute.xlu0 %3702
    %v3704 = vsel %vm571, %v3703, 0
    %3706 = vmatprep.subr.mxu0 0.0
    %3707 = vmatpush1.msra.mxu0 0.0
    %3708 = vmatprep.subr.mxu0 0.0
    %3709 = vmatpush1.msra.mxu0 0.0
    %3710 = vmatprep.subr.mxu0 0.0
    %3711 = vmatpush1.msra.mxu0 0.0
    %3712 = vmatprep.subr.mxu0 0.0
    %3713 = vmatpush1.msra.mxu0 0.0
    %3714 = vmatprep.subr.mxu0 0.0
    %3715 = vmatpush1.msra.mxu0 0.0
    %3716 = vmatprep.subr.mxu0 0.0
    %3717 = vmatpush1.msra.mxu0 0.0
    %3718 = vmatprep.subr.mxu0 0.0
    %3719 = vmatpush1.msra.mxu0 0.0
    %3720 = vmatprep.subr.mxu0 0.0
    %3721 = vmatpush1.msra.mxu0 0.0
    %3722 = vmatprep.subr.mxu0 0.0
    %3723 = vmatpush1.msra.mxu0 0.0
    %3724 = vmatprep.subr.mxu0 0.0
    %3725 = vmatpush1.msra.mxu0 0.0
    %3726 = vmatprep.subr.mxu0 0.0
    %3727 = vmatpush1.msra.mxu0 0.0
    %3728 = vmatprep.subr.mxu0 0.0
    %3729 = vmatpush1.msra.mxu0 0.0
    %3730 = vmatprep.subr.mxu0 0.0
    %3731 = vmatpush1.msra.mxu0 %v366
    %3732 = vmatprep.subr.mxu0 0.0
    %3733 = vmatpush1.msra.mxu0 %v365
    %3734 = vmatprep.subr.mxu0 0.0
    %3735 = vmatpush1.msra.mxu0 %v364
    %3736 = vmatprep.subr.mxu0 0.0
    %3737 = vmatpush1.msra.mxu0 %v363
    %3738 = vmatprep.subr.mxu0 0.0
    %3739 = vmatpush2.msra.mxu0 0.0
    %3740 = vmatprep.subr.mxu0 0.0
    %3741 = vmatpush2.msra.mxu0 0.0
    %3742 = vmatprep.subr.mxu0 0.0
    %3743 = vmatpush2.msra.mxu0 0.0
    %3744 = vmatprep.subr.mxu0 0.0
    %3745 = vmatpush2.msra.mxu0 0.0
    %3746 = vmatprep.subr.mxu0 0.0
    %3747 = vmatpush2.msra.mxu0 0.0
    %3748 = vmatprep.subr.mxu0 0.0
    %3749 = vmatpush2.msra.mxu0 0.0
    %3750 = vmatprep.subr.mxu0 0.0
    %3751 = vmatpush2.msra.mxu0 0.0
    %3752 = vmatprep.subr.mxu0 0.0
    %3753 = vmatpush2.msra.mxu0 0.0
    %3754 = vmatprep.subr.mxu0 0.0
    %3755 = vmatpush2.msra.mxu0 0.0
    %3756 = vmatprep.subr.mxu0 0.0
    %3757 = vmatpush2.msra.mxu0 0.0
    %3758 = vmatprep.subr.mxu0 0.0
    %3759 = vmatpush2.msra.mxu0 0.0
    %3760 = vmatprep.subr.mxu0 0.0
    %3761 = vmatpush2.msra.mxu0 0.0
    %3762 = vmatprep.subr.mxu0 0.0
    %3763 = vmatpush2.msra.mxu0 0.0
    %3764 = vmatprep.subr.mxu0 0.0
    %3765 = vmatpush2.msra.mxu0 0.0
    %3766 = vmatprep.subr.mxu0 0.0
    %3767 = vmatpush2.msra.mxu0 0.0
    %3768 = vmatprep.subr.mxu0 0.0
    %3769 = vmatpush2.msra.mxu0 0.0
    %3770 = vmatprep.mubr.f32.mxu0 0.0
    %3771 = vmatmul.mubr.f32.gmra.mxu0 %v3704
    %v3772 = vpop.f32.mrf.mxu0
    %v3773 = vadd.f32 %v2309, %v3772
    %v3774 = vpop.f32.mrf.mxu0
    %3775 = vdwg.mxu0
    %v3777 = vrot.slane %v3773, 1
    %v3778 = vrot.slane %v3773, 2
    %v3779 = vrot.slane %v3773, 3
    %v3780 = vrot.slane %v3773, 4
    %v3785 = vadd.f32 %v2287, %v3777
    %v3786 = vadd.f32 %v2292, %v3778
    %v3787 = vadd.f32 %v2297, %v3779
    %v3788 = vadd.f32 %v2302, %v3780
    %v3789 = vxor.u32 %v3785, 2147483648
    %v3790 = vxor.u32 %v3786, 2147483648
    %v3791 = vxor.u32 %v3787, 2147483648
    %v3792 = vxor.u32 %v3788, 2147483648
    %v3793 = vmul.f32 %v3789, 1.442695
    %v3794 = vpow.pop %v3793
    %v3795 = vmul.f32 %v3790, 1.442695
    %v3796 = vpow.pop %v3795
    %v3797 = vmul.f32 %v3791, 1.442695
    %v3798 = vpow.pop %v3797
    %v3799 = vmul.f32 %v3792, 1.442695
    %v3800 = vpow.pop %v3799
    %v3801 = vadd.f32 %v3794, 1.0
    %v3802 = vadd.f32 %v3796, 1.0
    %v3803 = vadd.f32 %v3798, 1.0
    %v3804 = vadd.f32 %v3800, 1.0
    %v3805 = vrcp.pop %v3801
    %v3806 = vmul.f32 1.0, %v3805
    %v3807 = vrcp.pop %v3802
    %v3808 = vmul.f32 1.0, %v3807
    %v3809 = vrcp.pop %v3803
    %v3810 = vmul.f32 1.0, %v3809
    %v3811 = vrcp.pop %v3804
    %v3812 = vmul.f32 1.0, %v3811
    %3813 = vrot.lane.b32.xlu0 %v3777, 64
    %v3814 = vpop.permute.xlu0 %3813
    %3815 = vrot.lane.b32.xlu0 %v3778, 64
    %v3816 = vpop.permute.xlu0 %3815
    %3817 = vrot.lane.b32.xlu0 %v3779, 64
    %v3818 = vpop.permute.xlu0 %3817
    %3819 = vrot.lane.b32.xlu0 %v3780, 64
    %v3820 = vpop.permute.xlu0 %3819
    %v3825 = vmul.f32 %v3806, %v3814
    %v3826 = vmul.f32 %v3808, %v3816
    %v3827 = vmul.f32 %v3810, %v3818
    %v3828 = vmul.f32 %v3812, %v3820
    %3833 = vrot.lane.b32.xlu0 %v3825, 64
    %v3834 = vpop.permute.xlu0 %3833
    %3835 = vrot.lane.b32.xlu0 %v3826, 64
    %v3836 = vpop.permute.xlu0 %3835
    %3837 = vrot.lane.b32.xlu0 %v3827, 64
    %v3838 = vpop.permute.xlu0 %3837
    %3839 = vrot.lane.b32.xlu0 %v3828, 64
    %v3840 = vpop.permute.xlu0 %3839
    %v3845 = vadd.f32 %v2287, %v3834
    %v3846 = vadd.f32 %v2292, %v3836
    %v3847 = vadd.f32 %v2297, %v3838
    %v3848 = vadd.f32 %v2302, %v3840
    %v3849 = vtanh.pop %v3845
    %v3850 = vtanh.pop %v3846
    %v3851 = vtanh.pop %v3847
    %v3852 = vtanh.pop %v3848
    %v3853 = vsub.f32 1.0, %v3806
    %v3854 = vsub.f32 1.0, %v3808
    %v3855 = vsub.f32 1.0, %v3810
    %v3856 = vsub.f32 1.0, %v3812
    %3861 = vrot.lane.b32.xlu0 %v3849, 96
    %v3862 = vpop.permute.xlu0 %3861
    %3863 = vrot.lane.b32.xlu0 %v3850, 96
    %v3864 = vpop.permute.xlu0 %3863
    %3865 = vrot.lane.b32.xlu0 %v3851, 96
    %v3866 = vpop.permute.xlu0 %3865
    %3867 = vrot.lane.b32.xlu0 %v3852, 96
    %v3868 = vpop.permute.xlu0 %3867
    %v3873 = vmul.f32 %v3853, %v3862
    %v3874 = vmul.f32 %v3854, %v3864
    %v3875 = vmul.f32 %v3855, %v3866
    %v3876 = vmul.f32 %v3856, %v3868
    %v3877 = vrot.slane %v3687, 7
    %v3878 = vrot.slane %v3688, 7
    %v3879 = vrot.slane %v3689, 7
    %v3880 = vrot.slane %v3690, 7
    %v3885 = vmul.f32 %v3806, %v3877
    %v3886 = vmul.f32 %v3808, %v3878
    %v3887 = vmul.f32 %v3810, %v3879
    %v3888 = vmul.f32 %v3812, %v3880
    %v3889 = vadd.f32 %v3873, %v3885
    %v3890 = vadd.f32 %v3874, %v3886
    %v3891 = vadd.f32 %v3875, %v3887
    %v3892 = vadd.f32 %v3876, %v3888
    %v3893 = vsel %vm2160, %v2485, %v2684
    %v3894 = vsel %vm2160, %v2486, %v2685
    %v3895 = vsel %vm2160, %v2487, %v2686
    %v3896 = vsel %vm2160, %v2488, %v2687
    %v3897 = vsel %vm476, %v3893, %v2883
    %v3898 = vsel %vm476, %v3894, %v2884
    %v3899 = vsel %vm476, %v3895, %v2885
    %v3900 = vsel %vm476, %v3896, %v2886
    %v3901 = vsel %vm2169, %v3897, %v3082
    %v3902 = vsel %vm2169, %v3898, %v3083
    %v3903 = vsel %vm2169, %v3899, %v3084
    %v3904 = vsel %vm2169, %v3900, %v3085
    %v3905 = vsel %vm2174, %v3901, %v3283
    %v3906 = vsel %vm2174, %v3902, %v3284
    %v3907 = vsel %vm2174, %v3903, %v3285
    %v3908 = vsel %vm2174, %v3904, %v3286
    %v3909 = vsel %vm2179, %v3905, %v3485
    %v3910 = vsel %vm2179, %v3906, %v3486
    %v3911 = vsel %vm2179, %v3907, %v3487
    %v3912 = vsel %vm2179, %v3908, %v3488
    %v3913 = vsel %vm2184, %v3909, %v3687
    %v3914 = vsel %vm2184, %v3910, %v3688
    %v3915 = vsel %vm2184, %v3911, %v3689
    %v3916 = vsel %vm2184, %v3912, %v3690
    %v3917 = vsel %vm2189, %v3913, %v3889
    %v3918 = vsel %vm2189, %v3914, %v3890
    %v3919 = vsel %vm2189, %v3915, %v3891
    %v3920 = vsel %vm2189, %v3916, %v3892
    %v3922 = vlaneseq
    %v3923 = vshrl.u32 %v3922, 7
    %v3924 = vsub.s32 0, %v3923
    %v3925 = vrot.slane %v375, %v3924
    %v3927 = vsel %vm452, %v453, 0
    %v3929 = vsel %vm452, %v454, 0
    %v3931 = vsel %vm452, %v455, 0
    %v3933 = vsel %vm452, %v456, 0
    %v3936 = vsel %vm476, %v370, 0
    %3938 = vmatprep.subr.mxu0 0.0
    %3939 = vmatpush1.msra.mxu0 0.0
    %3940 = vmatprep.subr.mxu0 0.0
    %3941 = vmatpush1.msra.mxu0 0.0
    %3942 = vmatprep.subr.mxu0 0.0
    %3943 = vmatpush1.msra.mxu0 0.0
    %3944 = vmatprep.subr.mxu0 0.0
    %3945 = vmatpush1.msra.mxu0 0.0
    %3946 = vmatprep.subr.mxu0 0.0
    %3947 = vmatpush1.msra.mxu0 0.0
    %3948 = vmatprep.subr.mxu0 0.0
    %3949 = vmatpush1.msra.mxu0 0.0
    %3950 = vmatprep.subr.mxu0 0.0
    %3951 = vmatpush1.msra.mxu0 0.0
    %3952 = vmatprep.subr.mxu0 0.0
    %3953 = vmatpush1.msra.mxu0 0.0
    %3954 = vmatprep.subr.mxu0 0.0
    %3955 = vmatpush1.msra.mxu0 0.0
    %3956 = vmatprep.subr.mxu0 0.0
    %3957 = vmatpush1.msra.mxu0 0.0
    %3958 = vmatprep.subr.mxu0 0.0
    %3959 = vmatpush1.msra.mxu0 0.0
    %3960 = vmatprep.subr.mxu0 0.0
    %3961 = vmatpush1.msra.mxu0 0.0
    %3962 = vmatprep.subr.mxu0 0.0
    %3963 = vmatpush1.msra.mxu0 0.0
    %3964 = vmatprep.subr.mxu0 0.0
    %3965 = vmatpush1.msra.mxu0 0.0
    %3966 = vmatprep.subr.mxu0 0.0
    %3967 = vmatpush1.msra.mxu0 %v3936
    %3968 = vmatprep.subr.mxu0 0.0
    %3969 = vmatpush1.msra.mxu0 %v369
    %3970 = vmatprep.subr.mxu0 0.0
    %3971 = vmatpush2.msra.mxu0 0.0
    %3972 = vmatprep.subr.mxu0 0.0
    %3973 = vmatpush2.msra.mxu0 0.0
    %3974 = vmatprep.subr.mxu0 0.0
    %3975 = vmatpush2.msra.mxu0 0.0
    %3976 = vmatprep.subr.mxu0 0.0
    %3977 = vmatpush2.msra.mxu0 0.0
    %3978 = vmatprep.subr.mxu0 0.0
    %3979 = vmatpush2.msra.mxu0 0.0
    %3980 = vmatprep.subr.mxu0 0.0
    %3981 = vmatpush2.msra.mxu0 0.0
    %3982 = vmatprep.subr.mxu0 0.0
    %3983 = vmatpush2.msra.mxu0 0.0
    %3984 = vmatprep.subr.mxu0 0.0
    %3985 = vmatpush2.msra.mxu0 0.0
    %3986 = vmatprep.subr.mxu0 0.0
    %3987 = vmatpush2.msra.mxu0 0.0
    %3988 = vmatprep.subr.mxu0 0.0
    %3989 = vmatpush2.msra.mxu0 0.0
    %3990 = vmatprep.subr.mxu0 0.0
    %3991 = vmatpush2.msra.mxu0 0.0
    %3992 = vmatprep.subr.mxu0 0.0
    %3993 = vmatpush2.msra.mxu0 0.0
    %3994 = vmatprep.subr.mxu0 0.0
    %3995 = vmatpush2.msra.mxu0 0.0
    %3996 = vmatprep.subr.mxu0 0.0
    %3997 = vmatpush2.msra.mxu0 0.0
    %3998 = vmatprep.subr.mxu0 0.0
    %3999 = vmatpush2.msra.mxu0 0.0
    %4000 = vmatprep.subr.mxu0 0.0
    %4001 = vmatpush2.msra.mxu0 0.0
    %4002 = vmatprep.mubr.f32.mxu0 0.0
    %4003 = vmatmul.mubr.f32.gmra.mxu0 %v3927
    %v4004 = vpop.f32.mrf.mxu0
    %v4005 = vadd.f32 %v3925, %v4004
    %v4006 = vpop.f32.mrf.mxu0
    %4007 = vmatprep.mubr.f32.mxu0 0.0
    %4008 = vmatmul.mubr.f32.gmra.mxu0 %v3929
    %v4009 = vpop.f32.mrf.mxu0
    %v4010 = vadd.f32 %v3925, %v4009
    %v4011 = vpop.f32.mrf.mxu0
    %4012 = vmatprep.mubr.f32.mxu0 0.0
    %4013 = vmatmul.mubr.f32.gmra.mxu0 %v3931
    %v4014 = vpop.f32.mrf.mxu0
    %v4015 = vadd.f32 %v3925, %v4014
    %v4016 = vpop.f32.mrf.mxu0
    %4017 = vmatprep.mubr.f32.mxu0 0.0
    %4018 = vmatmul.mubr.f32.gmra.mxu0 %v3933
    %v4019 = vpop.f32.mrf.mxu0
    %v4020 = vadd.f32 %v3925, %v4019
    %v4021 = vpop.f32.mrf.mxu0
    %4022 = vdwg.mxu0
    %v4024 = vlaneseq
    %v4025 = vshrl.u32 %v4024, 7
    %v4026 = vsub.s32 0, %v4025
    %v4027 = vrot.slane %v376, %v4026
    %4029 = vmatprep.subr.mxu0 0.0
    %4030 = vmatpush1.msra.mxu0 0.0
    %4031 = vmatprep.subr.mxu0 0.0
    %4032 = vmatpush1.msra.mxu0 0.0
    %4033 = vmatprep.subr.mxu0 0.0
    %4034 = vmatpush1.msra.mxu0 0.0
    %4035 = vmatprep.subr.mxu0 0.0
    %4036 = vmatpush1.msra.mxu0 0.0
    %4037 = vmatprep.subr.mxu0 0.0
    %4038 = vmatpush1.msra.mxu0 0.0
    %4039 = vmatprep.subr.mxu0 0.0
    %4040 = vmatpush1.msra.mxu0 0.0
    %4041 = vmatprep.subr.mxu0 0.0
    %4042 = vmatpush1.msra.mxu0 0.0
    %4043 = vmatprep.subr.mxu0 0.0
    %4044 = vmatpush1.msra.mxu0 0.0
    %4045 = vmatprep.subr.mxu0 0.0
    %4046 = vmatpush1.msra.mxu0 0.0
    %4047 = vmatprep.subr.mxu0 0.0
    %4048 = vmatpush1.msra.mxu0 0.0
    %4049 = vmatprep.subr.mxu0 0.0
    %4050 = vmatpush1.msra.mxu0 0.0
    %4051 = vmatprep.subr.mxu0 0.0
    %4052 = vmatpush1.msra.mxu0 0.0
    %4053 = vmatprep.subr.mxu0 0.0
    %4054 = vmatpush1.msra.mxu0 %v374
    %4055 = vmatprep.subr.mxu0 0.0
    %4056 = vmatpush1.msra.mxu0 %v373
    %4057 = vmatprep.subr.mxu0 0.0
    %4058 = vmatpush1.msra.mxu0 %v372
    %4059 = vmatprep.subr.mxu0 0.0
    %4060 = vmatpush1.msra.mxu0 %v371
    %4061 = vmatprep.subr.mxu0 0.0
    %4062 = vmatpush2.msra.mxu0 0.0
    %4063 = vmatprep.subr.mxu0 0.0
    %4064 = vmatpush2.msra.mxu0 0.0
    %4065 = vmatprep.subr.mxu0 0.0
    %4066 = vmatpush2.msra.mxu0 0.0
    %4067 = vmatprep.subr.mxu0 0.0
    %4068 = vmatpush2.msra.mxu0 0.0
    %4069 = vmatprep.subr.mxu0 0.0
    %4070 = vmatpush2.msra.mxu0 0.0
    %4071 = vmatprep.subr.mxu0 0.0
    %4072 = vmatpush2.msra.mxu0 0.0
    %4073 = vmatprep.subr.mxu0 0.0
    %4074 = vmatpush2.msra.mxu0 0.0
    %4075 = vmatprep.subr.mxu0 0.0
    %4076 = vmatpush2.msra.mxu0 0.0
    %4077 = vmatprep.subr.mxu0 0.0
    %4078 = vmatpush2.msra.mxu0 0.0
    %4079 = vmatprep.subr.mxu0 0.0
    %4080 = vmatpush2.msra.mxu0 0.0
    %4081 = vmatprep.subr.mxu0 0.0
    %4082 = vmatpush2.msra.mxu0 0.0
    %4083 = vmatprep.subr.mxu0 0.0
    %4084 = vmatpush2.msra.mxu0 0.0
    %4085 = vmatprep.subr.mxu0 0.0
    %4086 = vmatpush2.msra.mxu0 0.0
    %4087 = vmatprep.subr.mxu0 0.0
    %4088 = vmatpush2.msra.mxu0 0.0
    %4089 = vmatprep.subr.mxu0 0.0
    %4090 = vmatpush2.msra.mxu0 0.0
    %4091 = vmatprep.subr.mxu0 0.0
    %4092 = vmatpush2.msra.mxu0 0.0
    %4093 = vmatprep.mubr.f32.mxu0 0.0
    %4094 = vmatmul.mubr.f32.gmra.mxu0 %v573
    %v4095 = vpop.f32.mrf.mxu0
    %v4096 = vadd.f32 %v4027, %v4095
    %v4097 = vpop.f32.mrf.mxu0
    %4098 = vdwg.mxu0
    %v4100 = vrot.slane %v4096, 1
    %v4101 = vrot.slane %v4096, 2
    %v4102 = vrot.slane %v4096, 3
    %v4107 = vadd.f32 %v4005, %v4096
    %v4108 = vadd.f32 %v4010, %v4100
    %v4109 = vadd.f32 %v4015, %v4101
    %v4110 = vadd.f32 %v4020, %v4102
    %v4111 = vxor.u32 %v4107, 2147483648
    %v4112 = vxor.u32 %v4108, 2147483648
    %v4113 = vxor.u32 %v4109, 2147483648
    %v4114 = vxor.u32 %v4110, 2147483648
    %v4115 = vmul.f32 %v4111, 1.442695
    %v4116 = vpow.pop %v4115
    %v4117 = vmul.f32 %v4112, 1.442695
    %v4118 = vpow.pop %v4117
    %v4119 = vmul.f32 %v4113, 1.442695
    %v4120 = vpow.pop %v4119
    %v4121 = vmul.f32 %v4114, 1.442695
    %v4122 = vpow.pop %v4121
    %v4123 = vadd.f32 %v4116, 1.0
    %v4124 = vadd.f32 %v4118, 1.0
    %v4125 = vadd.f32 %v4120, 1.0
    %v4126 = vadd.f32 %v4122, 1.0
    %v4127 = vrcp.pop %v4123
    %v4128 = vmul.f32 1.0, %v4127
    %v4129 = vrcp.pop %v4124
    %v4130 = vmul.f32 1.0, %v4129
    %v4131 = vrcp.pop %v4125
    %v4132 = vmul.f32 1.0, %v4131
    %v4133 = vrcp.pop %v4126
    %v4134 = vmul.f32 1.0, %v4133
    %4135 = vrot.lane.b32.xlu0 %v4096, 64
    %v4136 = vpop.permute.xlu0 %4135
    %4137 = vrot.lane.b32.xlu0 %v4100, 64
    %v4138 = vpop.permute.xlu0 %4137
    %4139 = vrot.lane.b32.xlu0 %v4101, 64
    %v4140 = vpop.permute.xlu0 %4139
    %4141 = vrot.lane.b32.xlu0 %v4102, 64
    %v4142 = vpop.permute.xlu0 %4141
    %v4147 = vmul.f32 %v4128, %v4136
    %v4148 = vmul.f32 %v4130, %v4138
    %v4149 = vmul.f32 %v4132, %v4140
    %v4150 = vmul.f32 %v4134, %v4142
    %4155 = vrot.lane.b32.xlu0 %v4147, 64
    %v4156 = vpop.permute.xlu0 %4155
    %4157 = vrot.lane.b32.xlu0 %v4148, 64
    %v4158 = vpop.permute.xlu0 %4157
    %4159 = vrot.lane.b32.xlu0 %v4149, 64
    %v4160 = vpop.permute.xlu0 %4159
    %4161 = vrot.lane.b32.xlu0 %v4150, 64
    %v4162 = vpop.permute.xlu0 %4161
    %v4167 = vadd.f32 %v4005, %v4156
    %v4168 = vadd.f32 %v4010, %v4158
    %v4169 = vadd.f32 %v4015, %v4160
    %v4170 = vadd.f32 %v4020, %v4162
    %v4171 = vtanh.pop %v4167
    %v4172 = vtanh.pop %v4168
    %v4173 = vtanh.pop %v4169
    %v4174 = vtanh.pop %v4170
    %v4175 = vsub.f32 1.0, %v4128
    %v4176 = vsub.f32 1.0, %v4130
    %v4177 = vsub.f32 1.0, %v4132
    %v4178 = vsub.f32 1.0, %v4134
    %4183 = vrot.lane.b32.xlu0 %v4171, 96
    %v4184 = vpop.permute.xlu0 %4183
    %4185 = vrot.lane.b32.xlu0 %v4172, 96
    %v4186 = vpop.permute.xlu0 %4185
    %4187 = vrot.lane.b32.xlu0 %v4173, 96
    %v4188 = vpop.permute.xlu0 %4187
    %4189 = vrot.lane.b32.xlu0 %v4174, 96
    %v4190 = vpop.permute.xlu0 %4189
    %v4195 = vmul.f32 %v4175, %v4184
    %v4196 = vmul.f32 %v4176, %v4186
    %v4197 = vmul.f32 %v4177, %v4188
    %v4198 = vmul.f32 %v4178, %v4190
    %v4199 = vmul.f32 %v4128, 0.0
    %v4200 = vmul.f32 %v4130, 0.0
    %v4201 = vmul.f32 %v4132, 0.0
    %v4202 = vmul.f32 %v4134, 0.0
    %v4203 = vadd.f32 %v4195, %v4199
    %v4204 = vadd.f32 %v4196, %v4200
    %v4205 = vadd.f32 %v4197, %v4201
    %v4206 = vadd.f32 %v4198, %v4202
    %v4211 = vrot.slane %v4204, 7
    %v4212 = vsel %vm758, %v4211, %v4203
    %v4213 = vrot.slane %v4205, 6
    %v4214 = vsel %vm761, %v4213, %v4212
    %v4215 = vrot.slane %v4206, 5
    %v4216 = vsel %vm764, %v4215, %v4214
    %4217 = vrot.lane.b32.xlu0 %v4216, 96
    %v4218 = vpop.permute.xlu0 %4217
    %v4219 = vsel %vm571, %v4218, 0
    %4221 = vmatprep.subr.mxu0 0.0
    %4222 = vmatpush1.msra.mxu0 0.0
    %4223 = vmatprep.subr.mxu0 0.0
    %4224 = vmatpush1.msra.mxu0 0.0
    %4225 = vmatprep.subr.mxu0 0.0
    %4226 = vmatpush1.msra.mxu0 0.0
    %4227 = vmatprep.subr.mxu0 0.0
    %4228 = vmatpush1.msra.mxu0 0.0
    %4229 = vmatprep.subr.mxu0 0.0
    %4230 = vmatpush1.msra.mxu0 0.0
    %4231 = vmatprep.subr.mxu0 0.0
    %4232 = vmatpush1.msra.mxu0 0.0
    %4233 = vmatprep.subr.mxu0 0.0
    %4234 = vmatpush1.msra.mxu0 0.0
    %4235 = vmatprep.subr.mxu0 0.0
    %4236 = vmatpush1.msra.mxu0 0.0
    %4237 = vmatprep.subr.mxu0 0.0
    %4238 = vmatpush1.msra.mxu0 0.0
    %4239 = vmatprep.subr.mxu0 0.0
    %4240 = vmatpush1.msra.mxu0 0.0
    %4241 = vmatprep.subr.mxu0 0.0
    %4242 = vmatpush1.msra.mxu0 0.0
    %4243 = vmatprep.subr.mxu0 0.0
    %4244 = vmatpush1.msra.mxu0 0.0
    %4245 = vmatprep.subr.mxu0 0.0
    %4246 = vmatpush1.msra.mxu0 %v374
    %4247 = vmatprep.subr.mxu0 0.0
    %4248 = vmatpush1.msra.mxu0 %v373
    %4249 = vmatprep.subr.mxu0 0.0
    %4250 = vmatpush1.msra.mxu0 %v372
    %4251 = vmatprep.subr.mxu0 0.0
    %4252 = vmatpush1.msra.mxu0 %v371
    %4253 = vmatprep.subr.mxu0 0.0
    %4254 = vmatpush2.msra.mxu0 0.0
    %4255 = vmatprep.subr.mxu0 0.0
    %4256 = vmatpush2.msra.mxu0 0.0
    %4257 = vmatprep.subr.mxu0 0.0
    %4258 = vmatpush2.msra.mxu0 0.0
    %4259 = vmatprep.subr.mxu0 0.0
    %4260 = vmatpush2.msra.mxu0 0.0
    %4261 = vmatprep.subr.mxu0 0.0
    %4262 = vmatpush2.msra.mxu0 0.0
    %4263 = vmatprep.subr.mxu0 0.0
    %4264 = vmatpush2.msra.mxu0 0.0
    %4265 = vmatprep.subr.mxu0 0.0
    %4266 = vmatpush2.msra.mxu0 0.0
    %4267 = vmatprep.subr.mxu0 0.0
    %4268 = vmatpush2.msra.mxu0 0.0
    %4269 = vmatprep.subr.mxu0 0.0
    %4270 = vmatpush2.msra.mxu0 0.0
    %4271 = vmatprep.subr.mxu0 0.0
    %4272 = vmatpush2.msra.mxu0 0.0
    %4273 = vmatprep.subr.mxu0 0.0
    %4274 = vmatpush2.msra.mxu0 0.0
    %4275 = vmatprep.subr.mxu0 0.0
    %4276 = vmatpush2.msra.mxu0 0.0
    %4277 = vmatprep.subr.mxu0 0.0
    %4278 = vmatpush2.msra.mxu0 0.0
    %4279 = vmatprep.subr.mxu0 0.0
    %4280 = vmatpush2.msra.mxu0 0.0
    %4281 = vmatprep.subr.mxu0 0.0
    %4282 = vmatpush2.msra.mxu0 0.0
    %4283 = vmatprep.subr.mxu0 0.0
    %4284 = vmatpush2.msra.mxu0 0.0
    %4285 = vmatprep.mubr.f32.mxu0 0.0
    %4286 = vmatmul.mubr.f32.gmra.mxu0 %v4219
    %v4287 = vpop.f32.mrf.mxu0
    %v4288 = vadd.f32 %v4027, %v4287
    %v4289 = vpop.f32.mrf.mxu0
    %4290 = vdwg.mxu0
    %v4292 = vrot.slane %v4288, 7
    %v4293 = vrot.slane %v4288, 1
    %v4294 = vrot.slane %v4288, 2
    %v4299 = vadd.f32 %v4005, %v4292
    %v4300 = vadd.f32 %v4010, %v4288
    %v4301 = vadd.f32 %v4015, %v4293
    %v4302 = vadd.f32 %v4020, %v4294
    %v4303 = vxor.u32 %v4299, 2147483648
    %v4304 = vxor.u32 %v4300, 2147483648
    %v4305 = vxor.u32 %v4301, 2147483648
    %v4306 = vxor.u32 %v4302, 2147483648
    %v4307 = vmul.f32 %v4303, 1.442695
    %v4308 = vpow.pop %v4307
    %v4309 = vmul.f32 %v4304, 1.442695
    %v4310 = vpow.pop %v4309
    %v4311 = vmul.f32 %v4305, 1.442695
    %v4312 = vpow.pop %v4311
    %v4313 = vmul.f32 %v4306, 1.442695
    %v4314 = vpow.pop %v4313
    %v4315 = vadd.f32 %v4308, 1.0
    %v4316 = vadd.f32 %v4310, 1.0
    %v4317 = vadd.f32 %v4312, 1.0
    %v4318 = vadd.f32 %v4314, 1.0
    %v4319 = vrcp.pop %v4315
    %v4320 = vmul.f32 1.0, %v4319
    %v4321 = vrcp.pop %v4316
    %v4322 = vmul.f32 1.0, %v4321
    %v4323 = vrcp.pop %v4317
    %v4324 = vmul.f32 1.0, %v4323
    %v4325 = vrcp.pop %v4318
    %v4326 = vmul.f32 1.0, %v4325
    %4327 = vrot.lane.b32.xlu0 %v4292, 64
    %v4328 = vpop.permute.xlu0 %4327
    %4329 = vrot.lane.b32.xlu0 %v4288, 64
    %v4330 = vpop.permute.xlu0 %4329
    %4331 = vrot.lane.b32.xlu0 %v4293, 64
    %v4332 = vpop.permute.xlu0 %4331
    %4333 = vrot.lane.b32.xlu0 %v4294, 64
    %v4334 = vpop.permute.xlu0 %4333
    %v4339 = vmul.f32 %v4320, %v4328
    %v4340 = vmul.f32 %v4322, %v4330
    %v4341 = vmul.f32 %v4324, %v4332
    %v4342 = vmul.f32 %v4326, %v4334
    %4347 = vrot.lane.b32.xlu0 %v4339, 64
    %v4348 = vpop.permute.xlu0 %4347
    %4349 = vrot.lane.b32.xlu0 %v4340, 64
    %v4350 = vpop.permute.xlu0 %4349
    %4351 = vrot.lane.b32.xlu0 %v4341, 64
    %v4352 = vpop.permute.xlu0 %4351
    %4353 = vrot.lane.b32.xlu0 %v4342, 64
    %v4354 = vpop.permute.xlu0 %4353
    %v4359 = vadd.f32 %v4005, %v4348
    %v4360 = vadd.f32 %v4010, %v4350
    %v4361 = vadd.f32 %v4015, %v4352
    %v4362 = vadd.f32 %v4020, %v4354
    %v4363 = vtanh.pop %v4359
    %v4364 = vtanh.pop %v4360
    %v4365 = vtanh.pop %v4361
    %v4366 = vtanh.pop %v4362
    %v4367 = vsub.f32 1.0, %v4320
    %v4368 = vsub.f32 1.0, %v4322
    %v4369 = vsub.f32 1.0, %v4324
    %v4370 = vsub.f32 1.0, %v4326
    %4375 = vrot.lane.b32.xlu0 %v4363, 96
    %v4376 = vpop.permute.xlu0 %4375
    %4377 = vrot.lane.b32.xlu0 %v4364, 96
    %v4378 = vpop.permute.xlu0 %4377
    %4379 = vrot.lane.b32.xlu0 %v4365, 96
    %v4380 = vpop.permute.xlu0 %4379
    %4381 = vrot.lane.b32.xlu0 %v4366, 96
    %v4382 = vpop.permute.xlu0 %4381
    %v4387 = vmul.f32 %v4367, %v4376
    %v4388 = vmul.f32 %v4368, %v4378
    %v4389 = vmul.f32 %v4369, %v4380
    %v4390 = vmul.f32 %v4370, %v4382
    %v4391 = vrot.slane %v4203, 7
    %v4392 = vrot.slane %v4205, 7
    %v4393 = vrot.slane %v4206, 7
    %v4398 = vmul.f32 %v4320, %v4391
    %v4399 = vmul.f32 %v4322, %v4211
    %v4400 = vmul.f32 %v4324, %v4392
    %v4401 = vmul.f32 %v4326, %v4393
    %v4402 = vadd.f32 %v4387, %v4398
    %v4403 = vadd.f32 %v4388, %v4399
    %v4404 = vadd.f32 %v4389, %v4400
    %v4405 = vadd.f32 %v4390, %v4401
    %v4410 = vrot.slane %v4402, 1
    %v4411 = vsel %vm758, %v4403, %v4410
    %v4412 = vrot.slane %v4404, 7
    %v4413 = vsel %vm761, %v4412, %v4411
    %v4414 = vrot.slane %v4405, 6
    %v4415 = vsel %vm764, %v4414, %v4413
    %4416 = vrot.lane.b32.xlu0 %v4415, 96
    %v4417 = vpop.permute.xlu0 %4416
    %v4418 = vsel %vm571, %v4417, 0
    %4420 = vmatprep.subr.mxu0 0.0
    %4421 = vmatpush1.msra.mxu0 0.0
    %4422 = vmatprep.subr.mxu0 0.0
    %4423 = vmatpush1.msra.mxu0 0.0
    %4424 = vmatprep.subr.mxu0 0.0
    %4425 = vmatpush1.msra.mxu0 0.0
    %4426 = vmatprep.subr.mxu0 0.0
    %4427 = vmatpush1.msra.mxu0 0.0
    %4428 = vmatprep.subr.mxu0 0.0
    %4429 = vmatpush1.msra.mxu0 0.0
    %4430 = vmatprep.subr.mxu0 0.0
    %4431 = vmatpush1.msra.mxu0 0.0
    %4432 = vmatprep.subr.mxu0 0.0
    %4433 = vmatpush1.msra.mxu0 0.0
    %4434 = vmatprep.subr.mxu0 0.0
    %4435 = vmatpush1.msra.mxu0 0.0
    %4436 = vmatprep.subr.mxu0 0.0
    %4437 = vmatpush1.msra.mxu0 0.0
    %4438 = vmatprep.subr.mxu0 0.0
    %4439 = vmatpush1.msra.mxu0 0.0
    %4440 = vmatprep.subr.mxu0 0.0
    %4441 = vmatpush1.msra.mxu0 0.0
    %4442 = vmatprep.subr.mxu0 0.0
    %4443 = vmatpush1.msra.mxu0 0.0
    %4444 = vmatprep.subr.mxu0 0.0
    %4445 = vmatpush1.msra.mxu0 %v374
    %4446 = vmatprep.subr.mxu0 0.0
    %4447 = vmatpush1.msra.mxu0 %v373
    %4448 = vmatprep.subr.mxu0 0.0
    %4449 = vmatpush1.msra.mxu0 %v372
    %4450 = vmatprep.subr.mxu0 0.0
    %4451 = vmatpush1.msra.mxu0 %v371
    %4452 = vmatprep.subr.mxu0 0.0
    %4453 = vmatpush2.msra.mxu0 0.0
    %4454 = vmatprep.subr.mxu0 0.0
    %4455 = vmatpush2.msra.mxu0 0.0
    %4456 = vmatprep.subr.mxu0 0.0
    %4457 = vmatpush2.msra.mxu0 0.0
    %4458 = vmatprep.subr.mxu0 0.0
    %4459 = vmatpush2.msra.mxu0 0.0
    %4460 = vmatprep.subr.mxu0 0.0
    %4461 = vmatpush2.msra.mxu0 0.0
    %4462 = vmatprep.subr.mxu0 0.0
    %4463 = vmatpush2.msra.mxu0 0.0
    %4464 = vmatprep.subr.mxu0 0.0
    %4465 = vmatpush2.msra.mxu0 0.0
    %4466 = vmatprep.subr.mxu0 0.0
    %4467 = vmatpush2.msra.mxu0 0.0
    %4468 = vmatprep.subr.mxu0 0.0
    %4469 = vmatpush2.msra.mxu0 0.0
    %4470 = vmatprep.subr.mxu0 0.0
    %4471 = vmatpush2.msra.mxu0 0.0
    %4472 = vmatprep.subr.mxu0 0.0
    %4473 = vmatpush2.msra.mxu0 0.0
    %4474 = vmatprep.subr.mxu0 0.0
    %4475 = vmatpush2.msra.mxu0 0.0
    %4476 = vmatprep.subr.mxu0 0.0
    %4477 = vmatpush2.msra.mxu0 0.0
    %4478 = vmatprep.subr.mxu0 0.0
    %4479 = vmatpush2.msra.mxu0 0.0
    %4480 = vmatprep.subr.mxu0 0.0
    %4481 = vmatpush2.msra.mxu0 0.0
    %4482 = vmatprep.subr.mxu0 0.0
    %4483 = vmatpush2.msra.mxu0 0.0
    %4484 = vmatprep.mubr.f32.mxu0 0.0
    %4485 = vmatmul.mubr.f32.gmra.mxu0 %v4418
    %v4486 = vpop.f32.mrf.mxu0
    %v4487 = vadd.f32 %v4027, %v4486
    %v4488 = vpop.f32.mrf.mxu0
    %4489 = vdwg.mxu0
    %v4491 = vrot.slane %v4487, 6
    %v4492 = vrot.slane %v4487, 7
    %v4493 = vrot.slane %v4487, 1
    %v4498 = vadd.f32 %v4005, %v4491
    %v4499 = vadd.f32 %v4010, %v4492
    %v4500 = vadd.f32 %v4015, %v4487
    %v4501 = vadd.f32 %v4020, %v4493
    %v4502 = vxor.u32 %v4498, 2147483648
    %v4503 = vxor.u32 %v4499, 2147483648
    %v4504 = vxor.u32 %v4500, 2147483648
    %v4505 = vxor.u32 %v4501, 2147483648
    %v4506 = vmul.f32 %v4502, 1.442695
    %v4507 = vpow.pop %v4506
    %v4508 = vmul.f32 %v4503, 1.442695
    %v4509 = vpow.pop %v4508
    %v4510 = vmul.f32 %v4504, 1.442695
    %v4511 = vpow.pop %v4510
    %v4512 = vmul.f32 %v4505, 1.442695
    %v4513 = vpow.pop %v4512
    %v4514 = vadd.f32 %v4507, 1.0
    %v4515 = vadd.f32 %v4509, 1.0
    %v4516 = vadd.f32 %v4511, 1.0
    %v4517 = vadd.f32 %v4513, 1.0
    %v4518 = vrcp.pop %v4514
    %v4519 = vmul.f32 1.0, %v4518
    %v4520 = vrcp.pop %v4515
    %v4521 = vmul.f32 1.0, %v4520
    %v4522 = vrcp.pop %v4516
    %v4523 = vmul.f32 1.0, %v4522
    %v4524 = vrcp.pop %v4517
    %v4525 = vmul.f32 1.0, %v4524
    %4526 = vrot.lane.b32.xlu0 %v4491, 64
    %v4527 = vpop.permute.xlu0 %4526
    %4528 = vrot.lane.b32.xlu0 %v4492, 64
    %v4529 = vpop.permute.xlu0 %4528
    %4530 = vrot.lane.b32.xlu0 %v4487, 64
    %v4531 = vpop.permute.xlu0 %4530
    %4532 = vrot.lane.b32.xlu0 %v4493, 64
    %v4533 = vpop.permute.xlu0 %4532
    %v4538 = vmul.f32 %v4519, %v4527
    %v4539 = vmul.f32 %v4521, %v4529
    %v4540 = vmul.f32 %v4523, %v4531
    %v4541 = vmul.f32 %v4525, %v4533
    %4546 = vrot.lane.b32.xlu0 %v4538, 64
    %v4547 = vpop.permute.xlu0 %4546
    %4548 = vrot.lane.b32.xlu0 %v4539, 64
    %v4549 = vpop.permute.xlu0 %4548
    %4550 = vrot.lane.b32.xlu0 %v4540, 64
    %v4551 = vpop.permute.xlu0 %4550
    %4552 = vrot.lane.b32.xlu0 %v4541, 64
    %v4553 = vpop.permute.xlu0 %4552
    %v4558 = vadd.f32 %v4005, %v4547
    %v4559 = vadd.f32 %v4010, %v4549
    %v4560 = vadd.f32 %v4015, %v4551
    %v4561 = vadd.f32 %v4020, %v4553
    %v4562 = vtanh.pop %v4558
    %v4563 = vtanh.pop %v4559
    %v4564 = vtanh.pop %v4560
    %v4565 = vtanh.pop %v4561
    %v4566 = vsub.f32 1.0, %v4519
    %v4567 = vsub.f32 1.0, %v4521
    %v4568 = vsub.f32 1.0, %v4523
    %v4569 = vsub.f32 1.0, %v4525
    %4574 = vrot.lane.b32.xlu0 %v4562, 96
    %v4575 = vpop.permute.xlu0 %4574
    %4576 = vrot.lane.b32.xlu0 %v4563, 96
    %v4577 = vpop.permute.xlu0 %4576
    %4578 = vrot.lane.b32.xlu0 %v4564, 96
    %v4579 = vpop.permute.xlu0 %4578
    %4580 = vrot.lane.b32.xlu0 %v4565, 96
    %v4581 = vpop.permute.xlu0 %4580
    %v4586 = vmul.f32 %v4566, %v4575
    %v4587 = vmul.f32 %v4567, %v4577
    %v4588 = vmul.f32 %v4568, %v4579
    %v4589 = vmul.f32 %v4569, %v4581
    %v4590 = vrot.slane %v4402, 7
    %v4591 = vrot.slane %v4403, 7
    %v4592 = vrot.slane %v4405, 7
    %v4597 = vmul.f32 %v4519, %v4590
    %v4598 = vmul.f32 %v4521, %v4591
    %v4599 = vmul.f32 %v4523, %v4412
    %v4600 = vmul.f32 %v4525, %v4592
    %v4601 = vadd.f32 %v4586, %v4597
    %v4602 = vadd.f32 %v4587, %v4598
    %v4603 = vadd.f32 %v4588, %v4599
    %v4604 = vadd.f32 %v4589, %v4600
    %v4609 = vrot.slane %v4601, 2
    %v4610 = vrot.slane %v4602, 1
    %v4611 = vsel %vm758, %v4610, %v4609
    %v4612 = vsel %vm761, %v4603, %v4611
    %v4613 = vrot.slane %v4604, 7
    %v4614 = vsel %vm764, %v4613, %v4612
    %4615 = vrot.lane.b32.xlu0 %v4614, 96
    %v4616 = vpop.permute.xlu0 %4615
    %v4617 = vsel %vm571, %v4616, 0
    %4619 = vmatprep.subr.mxu0 0.0
    %4620 = vmatpush1.msra.mxu0 0.0
    %4621 = vmatprep.subr.mxu0 0.0
    %4622 = vmatpush1.msra.mxu0 0.0
    %4623 = vmatprep.subr.mxu0 0.0
    %4624 = vmatpush1.msra.mxu0 0.0
    %4625 = vmatprep.subr.mxu0 0.0
    %4626 = vmatpush1.msra.mxu0 0.0
    %4627 = vmatprep.subr.mxu0 0.0
    %4628 = vmatpush1.msra.mxu0 0.0
    %4629 = vmatprep.subr.mxu0 0.0
    %4630 = vmatpush1.msra.mxu0 0.0
    %4631 = vmatprep.subr.mxu0 0.0
    %4632 = vmatpush1.msra.mxu0 0.0
    %4633 = vmatprep.subr.mxu0 0.0
    %4634 = vmatpush1.msra.mxu0 0.0
    %4635 = vmatprep.subr.mxu0 0.0
    %4636 = vmatpush1.msra.mxu0 0.0
    %4637 = vmatprep.subr.mxu0 0.0
    %4638 = vmatpush1.msra.mxu0 0.0
    %4639 = vmatprep.subr.mxu0 0.0
    %4640 = vmatpush1.msra.mxu0 0.0
    %4641 = vmatprep.subr.mxu0 0.0
    %4642 = vmatpush1.msra.mxu0 0.0
    %4643 = vmatprep.subr.mxu0 0.0
    %4644 = vmatpush1.msra.mxu0 %v374
    %4645 = vmatprep.subr.mxu0 0.0
    %4646 = vmatpush1.msra.mxu0 %v373
    %4647 = vmatprep.subr.mxu0 0.0
    %4648 = vmatpush1.msra.mxu0 %v372
    %4649 = vmatprep.subr.mxu0 0.0
    %4650 = vmatpush1.msra.mxu0 %v371
    %4651 = vmatprep.subr.mxu0 0.0
    %4652 = vmatpush2.msra.mxu0 0.0
    %4653 = vmatprep.subr.mxu0 0.0
    %4654 = vmatpush2.msra.mxu0 0.0
    %4655 = vmatprep.subr.mxu0 0.0
    %4656 = vmatpush2.msra.mxu0 0.0
    %4657 = vmatprep.subr.mxu0 0.0
    %4658 = vmatpush2.msra.mxu0 0.0
    %4659 = vmatprep.subr.mxu0 0.0
    %4660 = vmatpush2.msra.mxu0 0.0
    %4661 = vmatprep.subr.mxu0 0.0
    %4662 = vmatpush2.msra.mxu0 0.0
    %4663 = vmatprep.subr.mxu0 0.0
    %4664 = vmatpush2.msra.mxu0 0.0
    %4665 = vmatprep.subr.mxu0 0.0
    %4666 = vmatpush2.msra.mxu0 0.0
    %4667 = vmatprep.subr.mxu0 0.0
    %4668 = vmatpush2.msra.mxu0 0.0
    %4669 = vmatprep.subr.mxu0 0.0
    %4670 = vmatpush2.msra.mxu0 0.0
    %4671 = vmatprep.subr.mxu0 0.0
    %4672 = vmatpush2.msra.mxu0 0.0
    %4673 = vmatprep.subr.mxu0 0.0
    %4674 = vmatpush2.msra.mxu0 0.0
    %4675 = vmatprep.subr.mxu0 0.0
    %4676 = vmatpush2.msra.mxu0 0.0
    %4677 = vmatprep.subr.mxu0 0.0
    %4678 = vmatpush2.msra.mxu0 0.0
    %4679 = vmatprep.subr.mxu0 0.0
    %4680 = vmatpush2.msra.mxu0 0.0
    %4681 = vmatprep.subr.mxu0 0.0
    %4682 = vmatpush2.msra.mxu0 0.0
    %4683 = vmatprep.mubr.f32.mxu0 0.0
    %4684 = vmatmul.mubr.f32.gmra.mxu0 %v4617
    %v4685 = vpop.f32.mrf.mxu0
    %v4686 = vadd.f32 %v4027, %v4685
    %v4687 = vpop.f32.mrf.mxu0
    %4688 = vdwg.mxu0
    %v4690 = vrot.slane %v4686, 5
    %v4691 = vrot.slane %v4686, 6
    %v4692 = vrot.slane %v4686, 7
    %v4697 = vadd.f32 %v4005, %v4690
    %v4698 = vadd.f32 %v4010, %v4691
    %v4699 = vadd.f32 %v4015, %v4692
    %v4700 = vadd.f32 %v4020, %v4686
    %v4701 = vxor.u32 %v4697, 2147483648
    %v4702 = vxor.u32 %v4698, 2147483648
    %v4703 = vxor.u32 %v4699, 2147483648
    %v4704 = vxor.u32 %v4700, 2147483648
    %v4705 = vmul.f32 %v4701, 1.442695
    %v4706 = vpow.pop %v4705
    %v4707 = vmul.f32 %v4702, 1.442695
    %v4708 = vpow.pop %v4707
    %v4709 = vmul.f32 %v4703, 1.442695
    %v4710 = vpow.pop %v4709
    %v4711 = vmul.f32 %v4704, 1.442695
    %v4712 = vpow.pop %v4711
    %v4713 = vadd.f32 %v4706, 1.0
    %v4714 = vadd.f32 %v4708, 1.0
    %v4715 = vadd.f32 %v4710, 1.0
    %v4716 = vadd.f32 %v4712, 1.0
    %v4717 = vrcp.pop %v4713
    %v4718 = vmul.f32 1.0, %v4717
    %v4719 = vrcp.pop %v4714
    %v4720 = vmul.f32 1.0, %v4719
    %v4721 = vrcp.pop %v4715
    %v4722 = vmul.f32 1.0, %v4721
    %v4723 = vrcp.pop %v4716
    %v4724 = vmul.f32 1.0, %v4723
    %4725 = vrot.lane.b32.xlu0 %v4690, 64
    %v4726 = vpop.permute.xlu0 %4725
    %4727 = vrot.lane.b32.xlu0 %v4691, 64
    %v4728 = vpop.permute.xlu0 %4727
    %4729 = vrot.lane.b32.xlu0 %v4692, 64
    %v4730 = vpop.permute.xlu0 %4729
    %4731 = vrot.lane.b32.xlu0 %v4686, 64
    %v4732 = vpop.permute.xlu0 %4731
    %v4737 = vmul.f32 %v4718, %v4726
    %v4738 = vmul.f32 %v4720, %v4728
    %v4739 = vmul.f32 %v4722, %v4730
    %v4740 = vmul.f32 %v4724, %v4732
    %4745 = vrot.lane.b32.xlu0 %v4737, 64
    %v4746 = vpop.permute.xlu0 %4745
    %4747 = vrot.lane.b32.xlu0 %v4738, 64
    %v4748 = vpop.permute.xlu0 %4747
    %4749 = vrot.lane.b32.xlu0 %v4739, 64
    %v4750 = vpop.permute.xlu0 %4749
    %4751 = vrot.lane.b32.xlu0 %v4740, 64
    %v4752 = vpop.permute.xlu0 %4751
    %v4757 = vadd.f32 %v4005, %v4746
    %v4758 = vadd.f32 %v4010, %v4748
    %v4759 = vadd.f32 %v4015, %v4750
    %v4760 = vadd.f32 %v4020, %v4752
    %v4761 = vtanh.pop %v4757
    %v4762 = vtanh.pop %v4758
    %v4763 = vtanh.pop %v4759
    %v4764 = vtanh.pop %v4760
    %v4765 = vsub.f32 1.0, %v4718
    %v4766 = vsub.f32 1.0, %v4720
    %v4767 = vsub.f32 1.0, %v4722
    %v4768 = vsub.f32 1.0, %v4724
    %4773 = vrot.lane.b32.xlu0 %v4761, 96
    %v4774 = vpop.permute.xlu0 %4773
    %4775 = vrot.lane.b32.xlu0 %v4762, 96
    %v4776 = vpop.permute.xlu0 %4775
    %4777 = vrot.lane.b32.xlu0 %v4763, 96
    %v4778 = vpop.permute.xlu0 %4777
    %4779 = vrot.lane.b32.xlu0 %v4764, 96
    %v4780 = vpop.permute.xlu0 %4779
    %v4785 = vmul.f32 %v4765, %v4774
    %v4786 = vmul.f32 %v4766, %v4776
    %v4787 = vmul.f32 %v4767, %v4778
    %v4788 = vmul.f32 %v4768, %v4780
    %v4789 = vrot.slane %v4601, 7
    %v4790 = vrot.slane %v4602, 7
    %v4791 = vrot.slane %v4603, 7
    %v4796 = vmul.f32 %v4718, %v4789
    %v4797 = vmul.f32 %v4720, %v4790
    %v4798 = vmul.f32 %v4722, %v4791
    %v4799 = vmul.f32 %v4724, %v4613
    %v4800 = vadd.f32 %v4785, %v4796
    %v4801 = vadd.f32 %v4786, %v4797
    %v4802 = vadd.f32 %v4787, %v4798
    %v4803 = vadd.f32 %v4788, %v4799
    %v4808 = vrot.slane %v4800, 3
    %v4809 = vrot.slane %v4801, 2
    %v4810 = vsel %vm758, %v4809, %v4808
    %v4811 = vrot.slane %v4802, 1
    %v4812 = vsel %vm761, %v4811, %v4810
    %v4813 = vsel %vm764, %v4803, %v4812
    %4814 = vrot.lane.b32.xlu0 %v4813, 96
    %v4815 = vpop.permute.xlu0 %4814
    %v4816 = vsel %vm571, %v4815, 0
    %4818 = vmatprep.subr.mxu0 0.0
    %4819 = vmatpush1.msra.mxu0 0.0
    %4820 = vmatprep.subr.mxu0 0.0
    %4821 = vmatpush1.msra.mxu0 0.0
    %4822 = vmatprep.subr.mxu0 0.0
    %4823 = vmatpush1.msra.mxu0 0.0
    %4824 = vmatprep.subr.mxu0 0.0
    %4825 = vmatpush1.msra.mxu0 0.0
    %4826 = vmatprep.subr.mxu0 0.0
    %4827 = vmatpush1.msra.mxu0 0.0
    %4828 = vmatprep.subr.mxu0 0.0
    %4829 = vmatpush1.msra.mxu0 0.0
    %4830 = vmatprep.subr.mxu0 0.0
    %4831 = vmatpush1.msra.mxu0 0.0
    %4832 = vmatprep.subr.mxu0 0.0
    %4833 = vmatpush1.msra.mxu0 0.0
    %4834 = vmatprep.subr.mxu0 0.0
    %4835 = vmatpush1.msra.mxu0 0.0
    %4836 = vmatprep.subr.mxu0 0.0
    %4837 = vmatpush1.msra.mxu0 0.0
    %4838 = vmatprep.subr.mxu0 0.0
    %4839 = vmatpush1.msra.mxu0 0.0
    %4840 = vmatprep.subr.mxu0 0.0
    %4841 = vmatpush1.msra.mxu0 0.0
    %4842 = vmatprep.subr.mxu0 0.0
    %4843 = vmatpush1.msra.mxu0 %v374
    %4844 = vmatprep.subr.mxu0 0.0
    %4845 = vmatpush1.msra.mxu0 %v373
    %4846 = vmatprep.subr.mxu0 0.0
    %4847 = vmatpush1.msra.mxu0 %v372
    %4848 = vmatprep.subr.mxu0 0.0
    %4849 = vmatpush1.msra.mxu0 %v371
    %4850 = vmatprep.subr.mxu0 0.0
    %4851 = vmatpush2.msra.mxu0 0.0
    %4852 = vmatprep.subr.mxu0 0.0
    %4853 = vmatpush2.msra.mxu0 0.0
    %4854 = vmatprep.subr.mxu0 0.0
    %4855 = vmatpush2.msra.mxu0 0.0
    %4856 = vmatprep.subr.mxu0 0.0
    %4857 = vmatpush2.msra.mxu0 0.0
    %4858 = vmatprep.subr.mxu0 0.0
    %4859 = vmatpush2.msra.mxu0 0.0
    %4860 = vmatprep.subr.mxu0 0.0
    %4861 = vmatpush2.msra.mxu0 0.0
    %4862 = vmatprep.subr.mxu0 0.0
    %4863 = vmatpush2.msra.mxu0 0.0
    %4864 = vmatprep.subr.mxu0 0.0
    %4865 = vmatpush2.msra.mxu0 0.0
    %4866 = vmatprep.subr.mxu0 0.0
    %4867 = vmatpush2.msra.mxu0 0.0
    %4868 = vmatprep.subr.mxu0 0.0
    %4869 = vmatpush2.msra.mxu0 0.0
    %4870 = vmatprep.subr.mxu0 0.0
    %4871 = vmatpush2.msra.mxu0 0.0
    %4872 = vmatprep.subr.mxu0 0.0
    %4873 = vmatpush2.msra.mxu0 0.0
    %4874 = vmatprep.subr.mxu0 0.0
    %4875 = vmatpush2.msra.mxu0 0.0
    %4876 = vmatprep.subr.mxu0 0.0
    %4877 = vmatpush2.msra.mxu0 0.0
    %4878 = vmatprep.subr.mxu0 0.0
    %4879 = vmatpush2.msra.mxu0 0.0
    %4880 = vmatprep.subr.mxu0 0.0
    %4881 = vmatpush2.msra.mxu0 0.0
    %4882 = vmatprep.mubr.f32.mxu0 0.0
    %4883 = vmatmul.mubr.f32.gmra.mxu0 %v4816
    %v4884 = vpop.f32.mrf.mxu0
    %v4885 = vadd.f32 %v4027, %v4884
    %v4886 = vpop.f32.mrf.mxu0
    %4887 = vdwg.mxu0
    %v4889 = vrot.slane %v4885, 4
    %v4890 = vrot.slane %v4885, 5
    %v4891 = vrot.slane %v4885, 6
    %v4892 = vrot.slane %v4885, 7
    %v4897 = vadd.f32 %v4005, %v4889
    %v4898 = vadd.f32 %v4010, %v4890
    %v4899 = vadd.f32 %v4015, %v4891
    %v4900 = vadd.f32 %v4020, %v4892
    %v4901 = vxor.u32 %v4897, 2147483648
    %v4902 = vxor.u32 %v4898, 2147483648
    %v4903 = vxor.u32 %v4899, 2147483648
    %v4904 = vxor.u32 %v4900, 2147483648
    %v4905 = vmul.f32 %v4901, 1.442695
    %v4906 = vpow.pop %v4905
    %v4907 = vmul.f32 %v4902, 1.442695
    %v4908 = vpow.pop %v4907
    %v4909 = vmul.f32 %v4903, 1.442695
    %v4910 = vpow.pop %v4909
    %v4911 = vmul.f32 %v4904, 1.442695
    %v4912 = vpow.pop %v4911
    %v4913 = vadd.f32 %v4906, 1.0
    %v4914 = vadd.f32 %v4908, 1.0
    %v4915 = vadd.f32 %v4910, 1.0
    %v4916 = vadd.f32 %v4912, 1.0
    %v4917 = vrcp.pop %v4913
    %v4918 = vmul.f32 1.0, %v4917
    %v4919 = vrcp.pop %v4914
    %v4920 = vmul.f32 1.0, %v4919
    %v4921 = vrcp.pop %v4915
    %v4922 = vmul.f32 1.0, %v4921
    %v4923 = vrcp.pop %v4916
    %v4924 = vmul.f32 1.0, %v4923
    %4925 = vrot.lane.b32.xlu0 %v4889, 64
    %v4926 = vpop.permute.xlu0 %4925
    %4927 = vrot.lane.b32.xlu0 %v4890, 64
    %v4928 = vpop.permute.xlu0 %4927
    %4929 = vrot.lane.b32.xlu0 %v4891, 64
    %v4930 = vpop.permute.xlu0 %4929
    %4931 = vrot.lane.b32.xlu0 %v4892, 64
    %v4932 = vpop.permute.xlu0 %4931
    %v4937 = vmul.f32 %v4918, %v4926
    %v4938 = vmul.f32 %v4920, %v4928
    %v4939 = vmul.f32 %v4922, %v4930
    %v4940 = vmul.f32 %v4924, %v4932
    %4945 = vrot.lane.b32.xlu0 %v4937, 64
    %v4946 = vpop.permute.xlu0 %4945
    %4947 = vrot.lane.b32.xlu0 %v4938, 64
    %v4948 = vpop.permute.xlu0 %4947
    %4949 = vrot.lane.b32.xlu0 %v4939, 64
    %v4950 = vpop.permute.xlu0 %4949
    %4951 = vrot.lane.b32.xlu0 %v4940, 64
    %v4952 = vpop.permute.xlu0 %4951
    %v4957 = vadd.f32 %v4005, %v4946
    %v4958 = vadd.f32 %v4010, %v4948
    %v4959 = vadd.f32 %v4015, %v4950
    %v4960 = vadd.f32 %v4020, %v4952
    %v4961 = vtanh.pop %v4957
    %v4962 = vtanh.pop %v4958
    %v4963 = vtanh.pop %v4959
    %v4964 = vtanh.pop %v4960
    %v4965 = vsub.f32 1.0, %v4918
    %v4966 = vsub.f32 1.0, %v4920
    %v4967 = vsub.f32 1.0, %v4922
    %v4968 = vsub.f32 1.0, %v4924
    %4973 = vrot.lane.b32.xlu0 %v4961, 96
    %v4974 = vpop.permute.xlu0 %4973
    %4975 = vrot.lane.b32.xlu0 %v4962, 96
    %v4976 = vpop.permute.xlu0 %4975
    %4977 = vrot.lane.b32.xlu0 %v4963, 96
    %v4978 = vpop.permute.xlu0 %4977
    %4979 = vrot.lane.b32.xlu0 %v4964, 96
    %v4980 = vpop.permute.xlu0 %4979
    %v4985 = vmul.f32 %v4965, %v4974
    %v4986 = vmul.f32 %v4966, %v4976
    %v4987 = vmul.f32 %v4967, %v4978
    %v4988 = vmul.f32 %v4968, %v4980
    %v4989 = vrot.slane %v4800, 7
    %v4990 = vrot.slane %v4801, 7
    %v4991 = vrot.slane %v4802, 7
    %v4992 = vrot.slane %v4803, 7
    %v4997 = vmul.f32 %v4918, %v4989
    %v4998 = vmul.f32 %v4920, %v4990
    %v4999 = vmul.f32 %v4922, %v4991
    %v5000 = vmul.f32 %v4924, %v4992
    %v5001 = vadd.f32 %v4985, %v4997
    %v5002 = vadd.f32 %v4986, %v4998
    %v5003 = vadd.f32 %v4987, %v4999
    %v5004 = vadd.f32 %v4988, %v5000
    %v5009 = vrot.slane %v5001, 4
    %v5010 = vrot.slane %v5002, 3
    %v5011 = vsel %vm758, %v5010, %v5009
    %v5012 = vrot.slane %v5003, 2
    %v5013 = vsel %vm761, %v5012, %v5011
    %v5014 = vrot.slane %v5004, 1
    %v5015 = vsel %vm764, %v5014, %v5013
    %5016 = vrot.lane.b32.xlu0 %v5015, 96
    %v5017 = vpop.permute.xlu0 %5016
    %v5018 = vsel %vm571, %v5017, 0
    %5020 = vmatprep.subr.mxu0 0.0
    %5021 = vmatpush1.msra.mxu0 0.0
    %5022 = vmatprep.subr.mxu0 0.0
    %5023 = vmatpush1.msra.mxu0 0.0
    %5024 = vmatprep.subr.mxu0 0.0
    %5025 = vmatpush1.msra.mxu0 0.0
    %5026 = vmatprep.subr.mxu0 0.0
    %5027 = vmatpush1.msra.mxu0 0.0
    %5028 = vmatprep.subr.mxu0 0.0
    %5029 = vmatpush1.msra.mxu0 0.0
    %5030 = vmatprep.subr.mxu0 0.0
    %5031 = vmatpush1.msra.mxu0 0.0
    %5032 = vmatprep.subr.mxu0 0.0
    %5033 = vmatpush1.msra.mxu0 0.0
    %5034 = vmatprep.subr.mxu0 0.0
    %5035 = vmatpush1.msra.mxu0 0.0
    %5036 = vmatprep.subr.mxu0 0.0
    %5037 = vmatpush1.msra.mxu0 0.0
    %5038 = vmatprep.subr.mxu0 0.0
    %5039 = vmatpush1.msra.mxu0 0.0
    %5040 = vmatprep.subr.mxu0 0.0
    %5041 = vmatpush1.msra.mxu0 0.0
    %5042 = vmatprep.subr.mxu0 0.0
    %5043 = vmatpush1.msra.mxu0 0.0
    %5044 = vmatprep.subr.mxu0 0.0
    %5045 = vmatpush1.msra.mxu0 %v374
    %5046 = vmatprep.subr.mxu0 0.0
    %5047 = vmatpush1.msra.mxu0 %v373
    %5048 = vmatprep.subr.mxu0 0.0
    %5049 = vmatpush1.msra.mxu0 %v372
    %5050 = vmatprep.subr.mxu0 0.0
    %5051 = vmatpush1.msra.mxu0 %v371
    %5052 = vmatprep.subr.mxu0 0.0
    %5053 = vmatpush2.msra.mxu0 0.0
    %5054 = vmatprep.subr.mxu0 0.0
    %5055 = vmatpush2.msra.mxu0 0.0
    %5056 = vmatprep.subr.mxu0 0.0
    %5057 = vmatpush2.msra.mxu0 0.0
    %5058 = vmatprep.subr.mxu0 0.0
    %5059 = vmatpush2.msra.mxu0 0.0
    %5060 = vmatprep.subr.mxu0 0.0
    %5061 = vmatpush2.msra.mxu0 0.0
    %5062 = vmatprep.subr.mxu0 0.0
    %5063 = vmatpush2.msra.mxu0 0.0
    %5064 = vmatprep.subr.mxu0 0.0
    %5065 = vmatpush2.msra.mxu0 0.0
    %5066 = vmatprep.subr.mxu0 0.0
    %5067 = vmatpush2.msra.mxu0 0.0
    %5068 = vmatprep.subr.mxu0 0.0
    %5069 = vmatpush2.msra.mxu0 0.0
    %5070 = vmatprep.subr.mxu0 0.0
    %5071 = vmatpush2.msra.mxu0 0.0
    %5072 = vmatprep.subr.mxu0 0.0
    %5073 = vmatpush2.msra.mxu0 0.0
    %5074 = vmatprep.subr.mxu0 0.0
    %5075 = vmatpush2.msra.mxu0 0.0
    %5076 = vmatprep.subr.mxu0 0.0
    %5077 = vmatpush2.msra.mxu0 0.0
    %5078 = vmatprep.subr.mxu0 0.0
    %5079 = vmatpush2.msra.mxu0 0.0
    %5080 = vmatprep.subr.mxu0 0.0
    %5081 = vmatpush2.msra.mxu0 0.0
    %5082 = vmatprep.subr.mxu0 0.0
    %5083 = vmatpush2.msra.mxu0 0.0
    %5084 = vmatprep.mubr.f32.mxu0 0.0
    %5085 = vmatmul.mubr.f32.gmra.mxu0 %v5018
    %v5086 = vpop.f32.mrf.mxu0
    %v5087 = vadd.f32 %v4027, %v5086
    %v5088 = vpop.f32.mrf.mxu0
    %5089 = vdwg.mxu0
    %v5091 = vrot.slane %v5087, 3
    %v5092 = vrot.slane %v5087, 4
    %v5093 = vrot.slane %v5087, 5
    %v5094 = vrot.slane %v5087, 6
    %v5099 = vadd.f32 %v4005, %v5091
    %v5100 = vadd.f32 %v4010, %v5092
    %v5101 = vadd.f32 %v4015, %v5093
    %v5102 = vadd.f32 %v4020, %v5094
    %v5103 = vxor.u32 %v5099, 2147483648
    %v5104 = vxor.u32 %v5100, 2147483648
    %v5105 = vxor.u32 %v5101, 2147483648
    %v5106 = vxor.u32 %v5102, 2147483648
    %v5107 = vmul.f32 %v5103, 1.442695
    %v5108 = vpow.pop %v5107
    %v5109 = vmul.f32 %v5104, 1.442695
    %v5110 = vpow.pop %v5109
    %v5111 = vmul.f32 %v5105, 1.442695
    %v5112 = vpow.pop %v5111
    %v5113 = vmul.f32 %v5106, 1.442695
    %v5114 = vpow.pop %v5113
    %v5115 = vadd.f32 %v5108, 1.0
    %v5116 = vadd.f32 %v5110, 1.0
    %v5117 = vadd.f32 %v5112, 1.0
    %v5118 = vadd.f32 %v5114, 1.0
    %v5119 = vrcp.pop %v5115
    %v5120 = vmul.f32 1.0, %v5119
    %v5121 = vrcp.pop %v5116
    %v5122 = vmul.f32 1.0, %v5121
    %v5123 = vrcp.pop %v5117
    %v5124 = vmul.f32 1.0, %v5123
    %v5125 = vrcp.pop %v5118
    %v5126 = vmul.f32 1.0, %v5125
    %5127 = vrot.lane.b32.xlu0 %v5091, 64
    %v5128 = vpop.permute.xlu0 %5127
    %5129 = vrot.lane.b32.xlu0 %v5092, 64
    %v5130 = vpop.permute.xlu0 %5129
    %5131 = vrot.lane.b32.xlu0 %v5093, 64
    %v5132 = vpop.permute.xlu0 %5131
    %5133 = vrot.lane.b32.xlu0 %v5094, 64
    %v5134 = vpop.permute.xlu0 %5133
    %v5139 = vmul.f32 %v5120, %v5128
    %v5140 = vmul.f32 %v5122, %v5130
    %v5141 = vmul.f32 %v5124, %v5132
    %v5142 = vmul.f32 %v5126, %v5134
    %5147 = vrot.lane.b32.xlu0 %v5139, 64
    %v5148 = vpop.permute.xlu0 %5147
    %5149 = vrot.lane.b32.xlu0 %v5140, 64
    %v5150 = vpop.permute.xlu0 %5149
    %5151 = vrot.lane.b32.xlu0 %v5141, 64
    %v5152 = vpop.permute.xlu0 %5151
    %5153 = vrot.lane.b32.xlu0 %v5142, 64
    %v5154 = vpop.permute.xlu0 %5153
    %v5159 = vadd.f32 %v4005, %v5148
    %v5160 = vadd.f32 %v4010, %v5150
    %v5161 = vadd.f32 %v4015, %v5152
    %v5162 = vadd.f32 %v4020, %v5154
    %v5163 = vtanh.pop %v5159
    %v5164 = vtanh.pop %v5160
    %v5165 = vtanh.pop %v5161
    %v5166 = vtanh.pop %v5162
    %v5167 = vsub.f32 1.0, %v5120
    %v5168 = vsub.f32 1.0, %v5122
    %v5169 = vsub.f32 1.0, %v5124
    %v5170 = vsub.f32 1.0, %v5126
    %5175 = vrot.lane.b32.xlu0 %v5163, 96
    %v5176 = vpop.permute.xlu0 %5175
    %5177 = vrot.lane.b32.xlu0 %v5164, 96
    %v5178 = vpop.permute.xlu0 %5177
    %5179 = vrot.lane.b32.xlu0 %v5165, 96
    %v5180 = vpop.permute.xlu0 %5179
    %5181 = vrot.lane.b32.xlu0 %v5166, 96
    %v5182 = vpop.permute.xlu0 %5181
    %v5187 = vmul.f32 %v5167, %v5176
    %v5188 = vmul.f32 %v5168, %v5178
    %v5189 = vmul.f32 %v5169, %v5180
    %v5190 = vmul.f32 %v5170, %v5182
    %v5191 = vrot.slane %v5001, 7
    %v5192 = vrot.slane %v5002, 7
    %v5193 = vrot.slane %v5003, 7
    %v5194 = vrot.slane %v5004, 7
    %v5199 = vmul.f32 %v5120, %v5191
    %v5200 = vmul.f32 %v5122, %v5192
    %v5201 = vmul.f32 %v5124, %v5193
    %v5202 = vmul.f32 %v5126, %v5194
    %v5203 = vadd.f32 %v5187, %v5199
    %v5204 = vadd.f32 %v5188, %v5200
    %v5205 = vadd.f32 %v5189, %v5201
    %v5206 = vadd.f32 %v5190, %v5202
    %v5211 = vrot.slane %v5203, 5
    %v5212 = vrot.slane %v5204, 4
    %v5213 = vsel %vm758, %v5212, %v5211
    %v5214 = vrot.slane %v5205, 3
    %v5215 = vsel %vm761, %v5214, %v5213
    %v5216 = vrot.slane %v5206, 2
    %v5217 = vsel %vm764, %v5216, %v5215
    %5218 = vrot.lane.b32.xlu0 %v5217, 96
    %v5219 = vpop.permute.xlu0 %5218
    %v5220 = vsel %vm571, %v5219, 0
    %5222 = vmatprep.subr.mxu0 0.0
    %5223 = vmatpush1.msra.mxu0 0.0
    %5224 = vmatprep.subr.mxu0 0.0
    %5225 = vmatpush1.msra.mxu0 0.0
    %5226 = vmatprep.subr.mxu0 0.0
    %5227 = vmatpush1.msra.mxu0 0.0
    %5228 = vmatprep.subr.mxu0 0.0
    %5229 = vmatpush1.msra.mxu0 0.0
    %5230 = vmatprep.subr.mxu0 0.0
    %5231 = vmatpush1.msra.mxu0 0.0
    %5232 = vmatprep.subr.mxu0 0.0
    %5233 = vmatpush1.msra.mxu0 0.0
    %5234 = vmatprep.subr.mxu0 0.0
    %5235 = vmatpush1.msra.mxu0 0.0
    %5236 = vmatprep.subr.mxu0 0.0
    %5237 = vmatpush1.msra.mxu0 0.0
    %5238 = vmatprep.subr.mxu0 0.0
    %5239 = vmatpush1.msra.mxu0 0.0
    %5240 = vmatprep.subr.mxu0 0.0
    %5241 = vmatpush1.msra.mxu0 0.0
    %5242 = vmatprep.subr.mxu0 0.0
    %5243 = vmatpush1.msra.mxu0 0.0
    %5244 = vmatprep.subr.mxu0 0.0
    %5245 = vmatpush1.msra.mxu0 0.0
    %5246 = vmatprep.subr.mxu0 0.0
    %5247 = vmatpush1.msra.mxu0 %v374
    %5248 = vmatprep.subr.mxu0 0.0
    %5249 = vmatpush1.msra.mxu0 %v373
    %5250 = vmatprep.subr.mxu0 0.0
    %5251 = vmatpush1.msra.mxu0 %v372
    %5252 = vmatprep.subr.mxu0 0.0
    %5253 = vmatpush1.msra.mxu0 %v371
    %5254 = vmatprep.subr.mxu0 0.0
    %5255 = vmatpush2.msra.mxu0 0.0
    %5256 = vmatprep.subr.mxu0 0.0
    %5257 = vmatpush2.msra.mxu0 0.0
    %5258 = vmatprep.subr.mxu0 0.0
    %5259 = vmatpush2.msra.mxu0 0.0
    %5260 = vmatprep.subr.mxu0 0.0
    %5261 = vmatpush2.msra.mxu0 0.0
    %5262 = vmatprep.subr.mxu0 0.0
    %5263 = vmatpush2.msra.mxu0 0.0
    %5264 = vmatprep.subr.mxu0 0.0
    %5265 = vmatpush2.msra.mxu0 0.0
    %5266 = vmatprep.subr.mxu0 0.0
    %5267 = vmatpush2.msra.mxu0 0.0
    %5268 = vmatprep.subr.mxu0 0.0
    %5269 = vmatpush2.msra.mxu0 0.0
    %5270 = vmatprep.subr.mxu0 0.0
    %5271 = vmatpush2.msra.mxu0 0.0
    %5272 = vmatprep.subr.mxu0 0.0
    %5273 = vmatpush2.msra.mxu0 0.0
    %5274 = vmatprep.subr.mxu0 0.0
    %5275 = vmatpush2.msra.mxu0 0.0
    %5276 = vmatprep.subr.mxu0 0.0
    %5277 = vmatpush2.msra.mxu0 0.0
    %5278 = vmatprep.subr.mxu0 0.0
    %5279 = vmatpush2.msra.mxu0 0.0
    %5280 = vmatprep.subr.mxu0 0.0
    %5281 = vmatpush2.msra.mxu0 0.0
    %5282 = vmatprep.subr.mxu0 0.0
    %5283 = vmatpush2.msra.mxu0 0.0
    %5284 = vmatprep.subr.mxu0 0.0
    %5285 = vmatpush2.msra.mxu0 0.0
    %5286 = vmatprep.mubr.f32.mxu0 0.0
    %5287 = vmatmul.mubr.f32.gmra.mxu0 %v5220
    %v5288 = vpop.f32.mrf.mxu0
    %v5289 = vadd.f32 %v4027, %v5288
    %v5290 = vpop.f32.mrf.mxu0
    %5291 = vdwg.mxu0
    %v5293 = vrot.slane %v5289, 2
    %v5294 = vrot.slane %v5289, 3
    %v5295 = vrot.slane %v5289, 4
    %v5296 = vrot.slane %v5289, 5
    %v5301 = vadd.f32 %v4005, %v5293
    %v5302 = vadd.f32 %v4010, %v5294
    %v5303 = vadd.f32 %v4015, %v5295
    %v5304 = vadd.f32 %v4020, %v5296
    %v5305 = vxor.u32 %v5301, 2147483648
    %v5306 = vxor.u32 %v5302, 2147483648
    %v5307 = vxor.u32 %v5303, 2147483648
    %v5308 = vxor.u32 %v5304, 2147483648
    %v5309 = vmul.f32 %v5305, 1.442695
    %v5310 = vpow.pop %v5309
    %v5311 = vmul.f32 %v5306, 1.442695
    %v5312 = vpow.pop %v5311
    %v5313 = vmul.f32 %v5307, 1.442695
    %v5314 = vpow.pop %v5313
    %v5315 = vmul.f32 %v5308, 1.442695
    %v5316 = vpow.pop %v5315
    %v5317 = vadd.f32 %v5310, 1.0
    %v5318 = vadd.f32 %v5312, 1.0
    %v5319 = vadd.f32 %v5314, 1.0
    %v5320 = vadd.f32 %v5316, 1.0
    %v5321 = vrcp.pop %v5317
    %v5322 = vmul.f32 1.0, %v5321
    %v5323 = vrcp.pop %v5318
    %v5324 = vmul.f32 1.0, %v5323
    %v5325 = vrcp.pop %v5319
    %v5326 = vmul.f32 1.0, %v5325
    %v5327 = vrcp.pop %v5320
    %v5328 = vmul.f32 1.0, %v5327
    %5329 = vrot.lane.b32.xlu0 %v5293, 64
    %v5330 = vpop.permute.xlu0 %5329
    %5331 = vrot.lane.b32.xlu0 %v5294, 64
    %v5332 = vpop.permute.xlu0 %5331
    %5333 = vrot.lane.b32.xlu0 %v5295, 64
    %v5334 = vpop.permute.xlu0 %5333
    %5335 = vrot.lane.b32.xlu0 %v5296, 64
    %v5336 = vpop.permute.xlu0 %5335
    %v5341 = vmul.f32 %v5322, %v5330
    %v5342 = vmul.f32 %v5324, %v5332
    %v5343 = vmul.f32 %v5326, %v5334
    %v5344 = vmul.f32 %v5328, %v5336
    %5349 = vrot.lane.b32.xlu0 %v5341, 64
    %v5350 = vpop.permute.xlu0 %5349
    %5351 = vrot.lane.b32.xlu0 %v5342, 64
    %v5352 = vpop.permute.xlu0 %5351
    %5353 = vrot.lane.b32.xlu0 %v5343, 64
    %v5354 = vpop.permute.xlu0 %5353
    %5355 = vrot.lane.b32.xlu0 %v5344, 64
    %v5356 = vpop.permute.xlu0 %5355
    %v5361 = vadd.f32 %v4005, %v5350
    %v5362 = vadd.f32 %v4010, %v5352
    %v5363 = vadd.f32 %v4015, %v5354
    %v5364 = vadd.f32 %v4020, %v5356
    %v5365 = vtanh.pop %v5361
    %v5366 = vtanh.pop %v5362
    %v5367 = vtanh.pop %v5363
    %v5368 = vtanh.pop %v5364
    %v5369 = vsub.f32 1.0, %v5322
    %v5370 = vsub.f32 1.0, %v5324
    %v5371 = vsub.f32 1.0, %v5326
    %v5372 = vsub.f32 1.0, %v5328
    %5377 = vrot.lane.b32.xlu0 %v5365, 96
    %v5378 = vpop.permute.xlu0 %5377
    %5379 = vrot.lane.b32.xlu0 %v5366, 96
    %v5380 = vpop.permute.xlu0 %5379
    %5381 = vrot.lane.b32.xlu0 %v5367, 96
    %v5382 = vpop.permute.xlu0 %5381
    %5383 = vrot.lane.b32.xlu0 %v5368, 96
    %v5384 = vpop.permute.xlu0 %5383
    %v5389 = vmul.f32 %v5369, %v5378
    %v5390 = vmul.f32 %v5370, %v5380
    %v5391 = vmul.f32 %v5371, %v5382
    %v5392 = vmul.f32 %v5372, %v5384
    %v5393 = vrot.slane %v5203, 7
    %v5394 = vrot.slane %v5204, 7
    %v5395 = vrot.slane %v5205, 7
    %v5396 = vrot.slane %v5206, 7
    %v5401 = vmul.f32 %v5322, %v5393
    %v5402 = vmul.f32 %v5324, %v5394
    %v5403 = vmul.f32 %v5326, %v5395
    %v5404 = vmul.f32 %v5328, %v5396
    %v5405 = vadd.f32 %v5389, %v5401
    %v5406 = vadd.f32 %v5390, %v5402
    %v5407 = vadd.f32 %v5391, %v5403
    %v5408 = vadd.f32 %v5392, %v5404
    %v5413 = vrot.slane %v5405, 6
    %v5414 = vrot.slane %v5406, 5
    %v5415 = vsel %vm758, %v5414, %v5413
    %v5416 = vrot.slane %v5407, 4
    %v5417 = vsel %vm761, %v5416, %v5415
    %v5418 = vrot.slane %v5408, 3
    %v5419 = vsel %vm764, %v5418, %v5417
    %5420 = vrot.lane.b32.xlu0 %v5419, 96
    %v5421 = vpop.permute.xlu0 %5420
    %v5422 = vsel %vm571, %v5421, 0
    %5424 = vmatprep.subr.mxu0 0.0
    %5425 = vmatpush1.msra.mxu0 0.0
    %5426 = vmatprep.subr.mxu0 0.0
    %5427 = vmatpush1.msra.mxu0 0.0
    %5428 = vmatprep.subr.mxu0 0.0
    %5429 = vmatpush1.msra.mxu0 0.0
    %5430 = vmatprep.subr.mxu0 0.0
    %5431 = vmatpush1.msra.mxu0 0.0
    %5432 = vmatprep.subr.mxu0 0.0
    %5433 = vmatpush1.msra.mxu0 0.0
    %5434 = vmatprep.subr.mxu0 0.0
    %5435 = vmatpush1.msra.mxu0 0.0
    %5436 = vmatprep.subr.mxu0 0.0
    %5437 = vmatpush1.msra.mxu0 0.0
    %5438 = vmatprep.subr.mxu0 0.0
    %5439 = vmatpush1.msra.mxu0 0.0
    %5440 = vmatprep.subr.mxu0 0.0
    %5441 = vmatpush1.msra.mxu0 0.0
    %5442 = vmatprep.subr.mxu0 0.0
    %5443 = vmatpush1.msra.mxu0 0.0
    %5444 = vmatprep.subr.mxu0 0.0
    %5445 = vmatpush1.msra.mxu0 0.0
    %5446 = vmatprep.subr.mxu0 0.0
    %5447 = vmatpush1.msra.mxu0 0.0
    %5448 = vmatprep.subr.mxu0 0.0
    %5449 = vmatpush1.msra.mxu0 %v374
    %5450 = vmatprep.subr.mxu0 0.0
    %5451 = vmatpush1.msra.mxu0 %v373
    %5452 = vmatprep.subr.mxu0 0.0
    %5453 = vmatpush1.msra.mxu0 %v372
    %5454 = vmatprep.subr.mxu0 0.0
    %5455 = vmatpush1.msra.mxu0 %v371
    %5456 = vmatprep.subr.mxu0 0.0
    %5457 = vmatpush2.msra.mxu0 0.0
    %5458 = vmatprep.subr.mxu0 0.0
    %5459 = vmatpush2.msra.mxu0 0.0
    %5460 = vmatprep.subr.mxu0 0.0
    %5461 = vmatpush2.msra.mxu0 0.0
    %5462 = vmatprep.subr.mxu0 0.0
    %5463 = vmatpush2.msra.mxu0 0.0
    %5464 = vmatprep.subr.mxu0 0.0
    %5465 = vmatpush2.msra.mxu0 0.0
    %5466 = vmatprep.subr.mxu0 0.0
    %5467 = vmatpush2.msra.mxu0 0.0
    %5468 = vmatprep.subr.mxu0 0.0
    %5469 = vmatpush2.msra.mxu0 0.0
    %5470 = vmatprep.subr.mxu0 0.0
    %5471 = vmatpush2.msra.mxu0 0.0
    %5472 = vmatprep.subr.mxu0 0.0
    %5473 = vmatpush2.msra.mxu0 0.0
    %5474 = vmatprep.subr.mxu0 0.0
    %5475 = vmatpush2.msra.mxu0 0.0
    %5476 = vmatprep.subr.mxu0 0.0
    %5477 = vmatpush2.msra.mxu0 0.0
    %5478 = vmatprep.subr.mxu0 0.0
    %5479 = vmatpush2.msra.mxu0 0.0
    %5480 = vmatprep.subr.mxu0 0.0
    %5481 = vmatpush2.msra.mxu0 0.0
    %5482 = vmatprep.subr.mxu0 0.0
    %5483 = vmatpush2.msra.mxu0 0.0
    %5484 = vmatprep.subr.mxu0 0.0
    %5485 = vmatpush2.msra.mxu0 0.0
    %5486 = vmatprep.subr.mxu0 0.0
    %5487 = vmatpush2.msra.mxu0 0.0
    %5488 = vmatprep.mubr.f32.mxu0 0.0
    %5489 = vmatmul.mubr.f32.gmra.mxu0 %v5422
    %v5490 = vpop.f32.mrf.mxu0
    %v5491 = vadd.f32 %v4027, %v5490
    %v5492 = vpop.f32.mrf.mxu0
    %5493 = vdwg.mxu0
    %v5495 = vrot.slane %v5491, 1
    %v5496 = vrot.slane %v5491, 2
    %v5497 = vrot.slane %v5491, 3
    %v5498 = vrot.slane %v5491, 4
    %v5503 = vadd.f32 %v4005, %v5495
    %v5504 = vadd.f32 %v4010, %v5496
    %v5505 = vadd.f32 %v4015, %v5497
    %v5506 = vadd.f32 %v4020, %v5498
    %v5507 = vxor.u32 %v5503, 2147483648
    %v5508 = vxor.u32 %v5504, 2147483648
    %v5509 = vxor.u32 %v5505, 2147483648
    %v5510 = vxor.u32 %v5506, 2147483648
    %v5511 = vmul.f32 %v5507, 1.442695
    %v5512 = vpow.pop %v5511
    %v5513 = vmul.f32 %v5508, 1.442695
    %v5514 = vpow.pop %v5513
    %v5515 = vmul.f32 %v5509, 1.442695
    %v5516 = vpow.pop %v5515
    %v5517 = vmul.f32 %v5510, 1.442695
    %v5518 = vpow.pop %v5517
    %v5519 = vadd.f32 %v5512, 1.0
    %v5520 = vadd.f32 %v5514, 1.0
    %v5521 = vadd.f32 %v5516, 1.0
    %v5522 = vadd.f32 %v5518, 1.0
    %v5523 = vrcp.pop %v5519
    %v5524 = vmul.f32 1.0, %v5523
    %v5525 = vrcp.pop %v5520
    %v5526 = vmul.f32 1.0, %v5525
    %v5527 = vrcp.pop %v5521
    %v5528 = vmul.f32 1.0, %v5527
    %v5529 = vrcp.pop %v5522
    %v5530 = vmul.f32 1.0, %v5529
    %5531 = vrot.lane.b32.xlu0 %v5495, 64
    %v5532 = vpop.permute.xlu0 %5531
    %5533 = vrot.lane.b32.xlu0 %v5496, 64
    %v5534 = vpop.permute.xlu0 %5533
    %5535 = vrot.lane.b32.xlu0 %v5497, 64
    %v5536 = vpop.permute.xlu0 %5535
    %5537 = vrot.lane.b32.xlu0 %v5498, 64
    %v5538 = vpop.permute.xlu0 %5537
    %v5543 = vmul.f32 %v5524, %v5532
    %v5544 = vmul.f32 %v5526, %v5534
    %v5545 = vmul.f32 %v5528, %v5536
    %v5546 = vmul.f32 %v5530, %v5538
    %5551 = vrot.lane.b32.xlu0 %v5543, 64
    %v5552 = vpop.permute.xlu0 %5551
    %5553 = vrot.lane.b32.xlu0 %v5544, 64
    %v5554 = vpop.permute.xlu0 %5553
    %5555 = vrot.lane.b32.xlu0 %v5545, 64
    %v5556 = vpop.permute.xlu0 %5555
    %5557 = vrot.lane.b32.xlu0 %v5546, 64
    %v5558 = vpop.permute.xlu0 %5557
    %v5563 = vadd.f32 %v4005, %v5552
    %v5564 = vadd.f32 %v4010, %v5554
    %v5565 = vadd.f32 %v4015, %v5556
    %v5566 = vadd.f32 %v4020, %v5558
    %v5567 = vtanh.pop %v5563
    %v5568 = vtanh.pop %v5564
    %v5569 = vtanh.pop %v5565
    %v5570 = vtanh.pop %v5566
    %v5571 = vsub.f32 1.0, %v5524
    %v5572 = vsub.f32 1.0, %v5526
    %v5573 = vsub.f32 1.0, %v5528
    %v5574 = vsub.f32 1.0, %v5530
    %5579 = vrot.lane.b32.xlu0 %v5567, 96
    %v5580 = vpop.permute.xlu0 %5579
    %5581 = vrot.lane.b32.xlu0 %v5568, 96
    %v5582 = vpop.permute.xlu0 %5581
    %5583 = vrot.lane.b32.xlu0 %v5569, 96
    %v5584 = vpop.permute.xlu0 %5583
    %5585 = vrot.lane.b32.xlu0 %v5570, 96
    %v5586 = vpop.permute.xlu0 %5585
    %v5591 = vmul.f32 %v5571, %v5580
    %v5592 = vmul.f32 %v5572, %v5582
    %v5593 = vmul.f32 %v5573, %v5584
    %v5594 = vmul.f32 %v5574, %v5586
    %v5595 = vrot.slane %v5405, 7
    %v5596 = vrot.slane %v5406, 7
    %v5597 = vrot.slane %v5407, 7
    %v5598 = vrot.slane %v5408, 7
    %v5603 = vmul.f32 %v5524, %v5595
    %v5604 = vmul.f32 %v5526, %v5596
    %v5605 = vmul.f32 %v5528, %v5597
    %v5606 = vmul.f32 %v5530, %v5598
    %v5607 = vadd.f32 %v5591, %v5603
    %v5608 = vadd.f32 %v5592, %v5604
    %v5609 = vadd.f32 %v5593, %v5605
    %v5610 = vadd.f32 %v5594, %v5606
    %v5611 = vsel %vm2160, %v4203, %v4402
    %v5612 = vsel %vm2160, %v4204, %v4403
    %v5613 = vsel %vm2160, %v4205, %v4404
    %v5614 = vsel %vm2160, %v4206, %v4405
    %v5615 = vsel %vm476, %v5611, %v4601
    %v5616 = vsel %vm476, %v5612, %v4602
    %v5617 = vsel %vm476, %v5613, %v4603
    %v5618 = vsel %vm476, %v5614, %v4604
    %v5619 = vsel %vm2169, %v5615, %v4800
    %v5620 = vsel %vm2169, %v5616, %v4801
    %v5621 = vsel %vm2169, %v5617, %v4802
    %v5622 = vsel %vm2169, %v5618, %v4803
    %v5623 = vsel %vm2174, %v5619, %v5001
    %v5624 = vsel %vm2174, %v5620, %v5002
    %v5625 = vsel %vm2174, %v5621, %v5003
    %v5626 = vsel %vm2174, %v5622, %v5004
    %v5627 = vsel %vm2179, %v5623, %v5203
    %v5628 = vsel %vm2179, %v5624, %v5204
    %v5629 = vsel %vm2179, %v5625, %v5205
    %v5630 = vsel %vm2179, %v5626, %v5206
    %v5631 = vsel %vm2184, %v5627, %v5405
    %v5632 = vsel %vm2184, %v5628, %v5406
    %v5633 = vsel %vm2184, %v5629, %v5407
    %v5634 = vsel %vm2184, %v5630, %v5408
    %v5635 = vsel %vm2189, %v5631, %v5607
    %v5636 = vsel %vm2189, %v5632, %v5608
    %v5637 = vsel %vm2189, %v5633, %v5609
    %v5638 = vsel %vm2189, %v5634, %v5610
    %v5640 = vlaneseq
    %v5641 = vshrl.u32 %v5640, 7
    %v5642 = vsub.s32 0, %v5641
    %v5643 = vrot.slane %v385, %v5642
    %5649 = vrot.lane.b32.xlu0 %v5635, 96
    %v5650 = vpop.permute.xlu0 %5649
    %5651 = vrot.lane.b32.xlu0 %v5636, 96
    %v5652 = vpop.permute.xlu0 %5651
    %5653 = vrot.lane.b32.xlu0 %v5637, 96
    %v5654 = vpop.permute.xlu0 %5653
    %5655 = vrot.lane.b32.xlu0 %v5638, 96
    %v5656 = vpop.permute.xlu0 %5655
    %v5657 = vsel %vm571, %v5650, 0
    %v5659 = vsel %vm571, %v5652, 0
    %v5661 = vsel %vm571, %v5654, 0
    %v5663 = vsel %vm571, %v5656, 0
    %5665 = vmatprep.subr.mxu0 0.0
    %5666 = vmatpush1.msra.mxu0 0.0
    %5667 = vmatprep.subr.mxu0 0.0
    %5668 = vmatpush1.msra.mxu0 0.0
    %5669 = vmatprep.subr.mxu0 0.0
    %5670 = vmatpush1.msra.mxu0 0.0
    %5671 = vmatprep.subr.mxu0 0.0
    %5672 = vmatpush1.msra.mxu0 0.0
    %5673 = vmatprep.subr.mxu0 0.0
    %5674 = vmatpush1.msra.mxu0 0.0
    %5675 = vmatprep.subr.mxu0 0.0
    %5676 = vmatpush1.msra.mxu0 0.0
    %5677 = vmatprep.subr.mxu0 0.0
    %5678 = vmatpush1.msra.mxu0 0.0
    %5679 = vmatprep.subr.mxu0 0.0
    %5680 = vmatpush1.msra.mxu0 0.0
    %5681 = vmatprep.subr.mxu0 0.0
    %5682 = vmatpush1.msra.mxu0 0.0
    %5683 = vmatprep.subr.mxu0 0.0
    %5684 = vmatpush1.msra.mxu0 0.0
    %5685 = vmatprep.subr.mxu0 0.0
    %5686 = vmatpush1.msra.mxu0 0.0
    %5687 = vmatprep.subr.mxu0 0.0
    %5688 = vmatpush1.msra.mxu0 0.0
    %5689 = vmatprep.subr.mxu0 0.0
    %5690 = vmatpush1.msra.mxu0 %v380
    %5691 = vmatprep.subr.mxu0 0.0
    %5692 = vmatpush1.msra.mxu0 %v379
    %5693 = vmatprep.subr.mxu0 0.0
    %5694 = vmatpush1.msra.mxu0 %v378
    %5695 = vmatprep.subr.mxu0 0.0
    %5696 = vmatpush1.msra.mxu0 %v377
    %5697 = vmatprep.subr.mxu0 0.0
    %5698 = vmatpush2.msra.mxu0 0.0
    %5699 = vmatprep.subr.mxu0 0.0
    %5700 = vmatpush2.msra.mxu0 0.0
    %5701 = vmatprep.subr.mxu0 0.0
    %5702 = vmatpush2.msra.mxu0 0.0
    %5703 = vmatprep.subr.mxu0 0.0
    %5704 = vmatpush2.msra.mxu0 0.0
    %5705 = vmatprep.subr.mxu0 0.0
    %5706 = vmatpush2.msra.mxu0 0.0
    %5707 = vmatprep.subr.mxu0 0.0
    %5708 = vmatpush2.msra.mxu0 0.0
    %5709 = vmatprep.subr.mxu0 0.0
    %5710 = vmatpush2.msra.mxu0 0.0
    %5711 = vmatprep.subr.mxu0 0.0
    %5712 = vmatpush2.msra.mxu0 0.0
    %5713 = vmatprep.subr.mxu0 0.0
    %5714 = vmatpush2.msra.mxu0 0.0
    %5715 = vmatprep.subr.mxu0 0.0
    %5716 = vmatpush2.msra.mxu0 0.0
    %5717 = vmatprep.subr.mxu0 0.0
    %5718 = vmatpush2.msra.mxu0 0.0
    %5719 = vmatprep.subr.mxu0 0.0
    %5720 = vmatpush2.msra.mxu0 0.0
    %5721 = vmatprep.subr.mxu0 0.0
    %5722 = vmatpush2.msra.mxu0 0.0
    %5723 = vmatprep.subr.mxu0 0.0
    %5724 = vmatpush2.msra.mxu0 0.0
    %5725 = vmatprep.subr.mxu0 0.0
    %5726 = vmatpush2.msra.mxu0 0.0
    %5727 = vmatprep.subr.mxu0 0.0
    %5728 = vmatpush2.msra.mxu0 0.0
    %5729 = vmatprep.mubr.f32.mxu0 0.0
    %5730 = vmatmul.mubr.f32.gmra.mxu0 %v5657
    %v5731 = vpop.f32.mrf.mxu0
    %v5732 = vadd.f32 %v5643, %v5731
    %v5733 = vpop.f32.mrf.mxu0
    %5734 = vmatprep.mubr.f32.mxu0 0.0
    %5735 = vmatmul.mubr.f32.gmra.mxu0 %v5659
    %v5736 = vpop.f32.mrf.mxu0
    %v5737 = vadd.f32 %v5643, %v5736
    %v5738 = vpop.f32.mrf.mxu0
    %5739 = vmatprep.mubr.f32.mxu0 0.0
    %5740 = vmatmul.mubr.f32.gmra.mxu0 %v5661
    %v5741 = vpop.f32.mrf.mxu0
    %v5742 = vadd.f32 %v5643, %v5741
    %v5743 = vpop.f32.mrf.mxu0
    %5744 = vmatprep.mubr.f32.mxu0 0.0
    %5745 = vmatmul.mubr.f32.gmra.mxu0 %v5663
    %v5746 = vpop.f32.mrf.mxu0
    %v5747 = vadd.f32 %v5643, %v5746
    %v5748 = vpop.f32.mrf.mxu0
    %5749 = vdwg.mxu0
    %v5751 = vlaneseq
    %v5752 = vshrl.u32 %v5751, 7
    %v5753 = vsub.s32 0, %v5752
    %v5754 = vrot.slane %v386, %v5753
    %5756 = vmatprep.subr.mxu0 0.0
    %5757 = vmatpush1.msra.mxu0 0.0
    %5758 = vmatprep.subr.mxu0 0.0
    %5759 = vmatpush1.msra.mxu0 0.0
    %5760 = vmatprep.subr.mxu0 0.0
    %5761 = vmatpush1.msra.mxu0 0.0
    %5762 = vmatprep.subr.mxu0 0.0
    %5763 = vmatpush1.msra.mxu0 0.0
    %5764 = vmatprep.subr.mxu0 0.0
    %5765 = vmatpush1.msra.mxu0 0.0
    %5766 = vmatprep.subr.mxu0 0.0
    %5767 = vmatpush1.msra.mxu0 0.0
    %5768 = vmatprep.subr.mxu0 0.0
    %5769 = vmatpush1.msra.mxu0 0.0
    %5770 = vmatprep.subr.mxu0 0.0
    %5771 = vmatpush1.msra.mxu0 0.0
    %5772 = vmatprep.subr.mxu0 0.0
    %5773 = vmatpush1.msra.mxu0 0.0
    %5774 = vmatprep.subr.mxu0 0.0
    %5775 = vmatpush1.msra.mxu0 0.0
    %5776 = vmatprep.subr.mxu0 0.0
    %5777 = vmatpush1.msra.mxu0 0.0
    %5778 = vmatprep.subr.mxu0 0.0
    %5779 = vmatpush1.msra.mxu0 0.0
    %5780 = vmatprep.subr.mxu0 0.0
    %5781 = vmatpush1.msra.mxu0 %v384
    %5782 = vmatprep.subr.mxu0 0.0
    %5783 = vmatpush1.msra.mxu0 %v383
    %5784 = vmatprep.subr.mxu0 0.0
    %5785 = vmatpush1.msra.mxu0 %v382
    %5786 = vmatprep.subr.mxu0 0.0
    %5787 = vmatpush1.msra.mxu0 %v381
    %5788 = vmatprep.subr.mxu0 0.0
    %5789 = vmatpush2.msra.mxu0 0.0
    %5790 = vmatprep.subr.mxu0 0.0
    %5791 = vmatpush2.msra.mxu0 0.0
    %5792 = vmatprep.subr.mxu0 0.0
    %5793 = vmatpush2.msra.mxu0 0.0
    %5794 = vmatprep.subr.mxu0 0.0
    %5795 = vmatpush2.msra.mxu0 0.0
    %5796 = vmatprep.subr.mxu0 0.0
    %5797 = vmatpush2.msra.mxu0 0.0
    %5798 = vmatprep.subr.mxu0 0.0
    %5799 = vmatpush2.msra.mxu0 0.0
    %5800 = vmatprep.subr.mxu0 0.0
    %5801 = vmatpush2.msra.mxu0 0.0
    %5802 = vmatprep.subr.mxu0 0.0
    %5803 = vmatpush2.msra.mxu0 0.0
    %5804 = vmatprep.subr.mxu0 0.0
    %5805 = vmatpush2.msra.mxu0 0.0
    %5806 = vmatprep.subr.mxu0 0.0
    %5807 = vmatpush2.msra.mxu0 0.0
    %5808 = vmatprep.subr.mxu0 0.0
    %5809 = vmatpush2.msra.mxu0 0.0
    %5810 = vmatprep.subr.mxu0 0.0
    %5811 = vmatpush2.msra.mxu0 0.0
    %5812 = vmatprep.subr.mxu0 0.0
    %5813 = vmatpush2.msra.mxu0 0.0
    %5814 = vmatprep.subr.mxu0 0.0
    %5815 = vmatpush2.msra.mxu0 0.0
    %5816 = vmatprep.subr.mxu0 0.0
    %5817 = vmatpush2.msra.mxu0 0.0
    %5818 = vmatprep.subr.mxu0 0.0
    %5819 = vmatpush2.msra.mxu0 0.0
    %5820 = vmatprep.mubr.f32.mxu0 0.0
    %5821 = vmatmul.mubr.f32.gmra.mxu0 %v573
    %v5822 = vpop.f32.mrf.mxu0
    %v5823 = vadd.f32 %v5754, %v5822
    %v5824 = vpop.f32.mrf.mxu0
    %5825 = vdwg.mxu0
    %v5827 = vrot.slane %v5823, 1
    %v5828 = vrot.slane %v5823, 2
    %v5829 = vrot.slane %v5823, 3
    %v5834 = vadd.f32 %v5732, %v5823
    %v5835 = vadd.f32 %v5737, %v5827
    %v5836 = vadd.f32 %v5742, %v5828
    %v5837 = vadd.f32 %v5747, %v5829
    %v5838 = vxor.u32 %v5834, 2147483648
    %v5839 = vxor.u32 %v5835, 2147483648
    %v5840 = vxor.u32 %v5836, 2147483648
    %v5841 = vxor.u32 %v5837, 2147483648
    %v5842 = vmul.f32 %v5838, 1.442695
    %v5843 = vpow.pop %v5842
    %v5844 = vmul.f32 %v5839, 1.442695
    %v5845 = vpow.pop %v5844
    %v5846 = vmul.f32 %v5840, 1.442695
    %v5847 = vpow.pop %v5846
    %v5848 = vmul.f32 %v5841, 1.442695
    %v5849 = vpow.pop %v5848
    %v5850 = vadd.f32 %v5843, 1.0
    %v5851 = vadd.f32 %v5845, 1.0
    %v5852 = vadd.f32 %v5847, 1.0
    %v5853 = vadd.f32 %v5849, 1.0
    %v5854 = vrcp.pop %v5850
    %v5855 = vmul.f32 1.0, %v5854
    %v5856 = vrcp.pop %v5851
    %v5857 = vmul.f32 1.0, %v5856
    %v5858 = vrcp.pop %v5852
    %v5859 = vmul.f32 1.0, %v5858
    %v5860 = vrcp.pop %v5853
    %v5861 = vmul.f32 1.0, %v5860
    %5862 = vrot.lane.b32.xlu0 %v5823, 64
    %v5863 = vpop.permute.xlu0 %5862
    %5864 = vrot.lane.b32.xlu0 %v5827, 64
    %v5865 = vpop.permute.xlu0 %5864
    %5866 = vrot.lane.b32.xlu0 %v5828, 64
    %v5867 = vpop.permute.xlu0 %5866
    %5868 = vrot.lane.b32.xlu0 %v5829, 64
    %v5869 = vpop.permute.xlu0 %5868
    %v5874 = vmul.f32 %v5855, %v5863
    %v5875 = vmul.f32 %v5857, %v5865
    %v5876 = vmul.f32 %v5859, %v5867
    %v5877 = vmul.f32 %v5861, %v5869
    %5882 = vrot.lane.b32.xlu0 %v5874, 64
    %v5883 = vpop.permute.xlu0 %5882
    %5884 = vrot.lane.b32.xlu0 %v5875, 64
    %v5885 = vpop.permute.xlu0 %5884
    %5886 = vrot.lane.b32.xlu0 %v5876, 64
    %v5887 = vpop.permute.xlu0 %5886
    %5888 = vrot.lane.b32.xlu0 %v5877, 64
    %v5889 = vpop.permute.xlu0 %5888
    %v5894 = vadd.f32 %v5732, %v5883
    %v5895 = vadd.f32 %v5737, %v5885
    %v5896 = vadd.f32 %v5742, %v5887
    %v5897 = vadd.f32 %v5747, %v5889
    %v5898 = vtanh.pop %v5894
    %v5899 = vtanh.pop %v5895
    %v5900 = vtanh.pop %v5896
    %v5901 = vtanh.pop %v5897
    %v5902 = vsub.f32 1.0, %v5855
    %v5903 = vsub.f32 1.0, %v5857
    %v5904 = vsub.f32 1.0, %v5859
    %v5905 = vsub.f32 1.0, %v5861
    %5910 = vrot.lane.b32.xlu0 %v5898, 96
    %v5911 = vpop.permute.xlu0 %5910
    %5912 = vrot.lane.b32.xlu0 %v5899, 96
    %v5913 = vpop.permute.xlu0 %5912
    %5914 = vrot.lane.b32.xlu0 %v5900, 96
    %v5915 = vpop.permute.xlu0 %5914
    %5916 = vrot.lane.b32.xlu0 %v5901, 96
    %v5917 = vpop.permute.xlu0 %5916
    %v5922 = vmul.f32 %v5902, %v5911
    %v5923 = vmul.f32 %v5903, %v5913
    %v5924 = vmul.f32 %v5904, %v5915
    %v5925 = vmul.f32 %v5905, %v5917
    %v5926 = vmul.f32 %v5855, 0.0
    %v5927 = vmul.f32 %v5857, 0.0
    %v5928 = vmul.f32 %v5859, 0.0
    %v5929 = vmul.f32 %v5861, 0.0
    %v5930 = vadd.f32 %v5922, %v5926
    %v5931 = vadd.f32 %v5923, %v5927
    %v5932 = vadd.f32 %v5924, %v5928
    %v5933 = vadd.f32 %v5925, %v5929
    %v5938 = vrot.slane %v5931, 7
    %v5939 = vsel %vm758, %v5938, %v5930
    %v5940 = vrot.slane %v5932, 6
    %v5941 = vsel %vm761, %v5940, %v5939
    %v5942 = vrot.slane %v5933, 5
    %v5943 = vsel %vm764, %v5942, %v5941
    %5944 = vrot.lane.b32.xlu0 %v5943, 96
    %v5945 = vpop.permute.xlu0 %5944
    %v5946 = vsel %vm571, %v5945, 0
    %5948 = vmatprep.subr.mxu0 0.0
    %5949 = vmatpush1.msra.mxu0 0.0
    %5950 = vmatprep.subr.mxu0 0.0
    %5951 = vmatpush1.msra.mxu0 0.0
    %5952 = vmatprep.subr.mxu0 0.0
    %5953 = vmatpush1.msra.mxu0 0.0
    %5954 = vmatprep.subr.mxu0 0.0
    %5955 = vmatpush1.msra.mxu0 0.0
    %5956 = vmatprep.subr.mxu0 0.0
    %5957 = vmatpush1.msra.mxu0 0.0
    %5958 = vmatprep.subr.mxu0 0.0
    %5959 = vmatpush1.msra.mxu0 0.0
    %5960 = vmatprep.subr.mxu0 0.0
    %5961 = vmatpush1.msra.mxu0 0.0
    %5962 = vmatprep.subr.mxu0 0.0
    %5963 = vmatpush1.msra.mxu0 0.0
    %5964 = vmatprep.subr.mxu0 0.0
    %5965 = vmatpush1.msra.mxu0 0.0
    %5966 = vmatprep.subr.mxu0 0.0
    %5967 = vmatpush1.msra.mxu0 0.0
    %5968 = vmatprep.subr.mxu0 0.0
    %5969 = vmatpush1.msra.mxu0 0.0
    %5970 = vmatprep.subr.mxu0 0.0
    %5971 = vmatpush1.msra.mxu0 0.0
    %5972 = vmatprep.subr.mxu0 0.0
    %5973 = vmatpush1.msra.mxu0 %v384
    %5974 = vmatprep.subr.mxu0 0.0
    %5975 = vmatpush1.msra.mxu0 %v383
    %5976 = vmatprep.subr.mxu0 0.0
    %5977 = vmatpush1.msra.mxu0 %v382
    %5978 = vmatprep.subr.mxu0 0.0
    %5979 = vmatpush1.msra.mxu0 %v381
    %5980 = vmatprep.subr.mxu0 0.0
    %5981 = vmatpush2.msra.mxu0 0.0
    %5982 = vmatprep.subr.mxu0 0.0
    %5983 = vmatpush2.msra.mxu0 0.0
    %5984 = vmatprep.subr.mxu0 0.0
    %5985 = vmatpush2.msra.mxu0 0.0
    %5986 = vmatprep.subr.mxu0 0.0
    %5987 = vmatpush2.msra.mxu0 0.0
    %5988 = vmatprep.subr.mxu0 0.0
    %5989 = vmatpush2.msra.mxu0 0.0
    %5990 = vmatprep.subr.mxu0 0.0
    %5991 = vmatpush2.msra.mxu0 0.0
    %5992 = vmatprep.subr.mxu0 0.0
    %5993 = vmatpush2.msra.mxu0 0.0
    %5994 = vmatprep.subr.mxu0 0.0
    %5995 = vmatpush2.msra.mxu0 0.0
    %5996 = vmatprep.subr.mxu0 0.0
    %5997 = vmatpush2.msra.mxu0 0.0
    %5998 = vmatprep.subr.mxu0 0.0
    %5999 = vmatpush2.msra.mxu0 0.0
    %6000 = vmatprep.subr.mxu0 0.0
    %6001 = vmatpush2.msra.mxu0 0.0
    %6002 = vmatprep.subr.mxu0 0.0
    %6003 = vmatpush2.msra.mxu0 0.0
    %6004 = vmatprep.subr.mxu0 0.0
    %6005 = vmatpush2.msra.mxu0 0.0
    %6006 = vmatprep.subr.mxu0 0.0
    %6007 = vmatpush2.msra.mxu0 0.0
    %6008 = vmatprep.subr.mxu0 0.0
    %6009 = vmatpush2.msra.mxu0 0.0
    %6010 = vmatprep.subr.mxu0 0.0
    %6011 = vmatpush2.msra.mxu0 0.0
    %6012 = vmatprep.mubr.f32.mxu0 0.0
    %6013 = vmatmul.mubr.f32.gmra.mxu0 %v5946
    %v6014 = vpop.f32.mrf.mxu0
    %v6015 = vadd.f32 %v5754, %v6014
    %v6016 = vpop.f32.mrf.mxu0
    %6017 = vdwg.mxu0
    %v6019 = vrot.slane %v6015, 7
    %v6020 = vrot.slane %v6015, 1
    %v6021 = vrot.slane %v6015, 2
    %v6026 = vadd.f32 %v5732, %v6019
    %v6027 = vadd.f32 %v5737, %v6015
    %v6028 = vadd.f32 %v5742, %v6020
    %v6029 = vadd.f32 %v5747, %v6021
    %v6030 = vxor.u32 %v6026, 2147483648
    %v6031 = vxor.u32 %v6027, 2147483648
    %v6032 = vxor.u32 %v6028, 2147483648
    %v6033 = vxor.u32 %v6029, 2147483648
    %v6034 = vmul.f32 %v6030, 1.442695
    %v6035 = vpow.pop %v6034
    %v6036 = vmul.f32 %v6031, 1.442695
    %v6037 = vpow.pop %v6036
    %v6038 = vmul.f32 %v6032, 1.442695
    %v6039 = vpow.pop %v6038
    %v6040 = vmul.f32 %v6033, 1.442695
    %v6041 = vpow.pop %v6040
    %v6042 = vadd.f32 %v6035, 1.0
    %v6043 = vadd.f32 %v6037, 1.0
    %v6044 = vadd.f32 %v6039, 1.0
    %v6045 = vadd.f32 %v6041, 1.0
    %v6046 = vrcp.pop %v6042
    %v6047 = vmul.f32 1.0, %v6046
    %v6048 = vrcp.pop %v6043
    %v6049 = vmul.f32 1.0, %v6048
    %v6050 = vrcp.pop %v6044
    %v6051 = vmul.f32 1.0, %v6050
    %v6052 = vrcp.pop %v6045
    %v6053 = vmul.f32 1.0, %v6052
    %6054 = vrot.lane.b32.xlu0 %v6019, 64
    %v6055 = vpop.permute.xlu0 %6054
    %6056 = vrot.lane.b32.xlu0 %v6015, 64
    %v6057 = vpop.permute.xlu0 %6056
    %6058 = vrot.lane.b32.xlu0 %v6020, 64
    %v6059 = vpop.permute.xlu0 %6058
    %6060 = vrot.lane.b32.xlu0 %v6021, 64
    %v6061 = vpop.permute.xlu0 %6060
    %v6066 = vmul.f32 %v6047, %v6055
    %v6067 = vmul.f32 %v6049, %v6057
    %v6068 = vmul.f32 %v6051, %v6059
    %v6069 = vmul.f32 %v6053, %v6061
    %6074 = vrot.lane.b32.xlu0 %v6066, 64
    %v6075 = vpop.permute.xlu0 %6074
    %6076 = vrot.lane.b32.xlu0 %v6067, 64
    %v6077 = vpop.permute.xlu0 %6076
    %6078 = vrot.lane.b32.xlu0 %v6068, 64
    %v6079 = vpop.permute.xlu0 %6078
    %6080 = vrot.lane.b32.xlu0 %v6069, 64
    %v6081 = vpop.permute.xlu0 %6080
    %v6086 = vadd.f32 %v5732, %v6075
    %v6087 = vadd.f32 %v5737, %v6077
    %v6088 = vadd.f32 %v5742, %v6079
    %v6089 = vadd.f32 %v5747, %v6081
    %v6090 = vtanh.pop %v6086
    %v6091 = vtanh.pop %v6087
    %v6092 = vtanh.pop %v6088
    %v6093 = vtanh.pop %v6089
    %v6094 = vsub.f32 1.0, %v6047
    %v6095 = vsub.f32 1.0, %v6049
    %v6096 = vsub.f32 1.0, %v6051
    %v6097 = vsub.f32 1.0, %v6053
    %6102 = vrot.lane.b32.xlu0 %v6090, 96
    %v6103 = vpop.permute.xlu0 %6102
    %6104 = vrot.lane.b32.xlu0 %v6091, 96
    %v6105 = vpop.permute.xlu0 %6104
    %6106 = vrot.lane.b32.xlu0 %v6092, 96
    %v6107 = vpop.permute.xlu0 %6106
    %6108 = vrot.lane.b32.xlu0 %v6093, 96
    %v6109 = vpop.permute.xlu0 %6108
    %v6114 = vmul.f32 %v6094, %v6103
    %v6115 = vmul.f32 %v6095, %v6105
    %v6116 = vmul.f32 %v6096, %v6107
    %v6117 = vmul.f32 %v6097, %v6109
    %v6118 = vrot.slane %v5930, 7
    %v6119 = vrot.slane %v5932, 7
    %v6120 = vrot.slane %v5933, 7
    %v6125 = vmul.f32 %v6047, %v6118
    %v6126 = vmul.f32 %v6049, %v5938
    %v6127 = vmul.f32 %v6051, %v6119
    %v6128 = vmul.f32 %v6053, %v6120
    %v6129 = vadd.f32 %v6114, %v6125
    %v6130 = vadd.f32 %v6115, %v6126
    %v6131 = vadd.f32 %v6116, %v6127
    %v6132 = vadd.f32 %v6117, %v6128
    %v6137 = vrot.slane %v6129, 1
    %v6138 = vsel %vm758, %v6130, %v6137
    %v6139 = vrot.slane %v6131, 7
    %v6140 = vsel %vm761, %v6139, %v6138
    %v6141 = vrot.slane %v6132, 6
    %v6142 = vsel %vm764, %v6141, %v6140
    %6143 = vrot.lane.b32.xlu0 %v6142, 96
    %v6144 = vpop.permute.xlu0 %6143
    %v6145 = vsel %vm571, %v6144, 0
    %6147 = vmatprep.subr.mxu0 0.0
    %6148 = vmatpush1.msra.mxu0 0.0
    %6149 = vmatprep.subr.mxu0 0.0
    %6150 = vmatpush1.msra.mxu0 0.0
    %6151 = vmatprep.subr.mxu0 0.0
    %6152 = vmatpush1.msra.mxu0 0.0
    %6153 = vmatprep.subr.mxu0 0.0
    %6154 = vmatpush1.msra.mxu0 0.0
    %6155 = vmatprep.subr.mxu0 0.0
    %6156 = vmatpush1.msra.mxu0 0.0
    %6157 = vmatprep.subr.mxu0 0.0
    %6158 = vmatpush1.msra.mxu0 0.0
    %6159 = vmatprep.subr.mxu0 0.0
    %6160 = vmatpush1.msra.mxu0 0.0
    %6161 = vmatprep.subr.mxu0 0.0
    %6162 = vmatpush1.msra.mxu0 0.0
    %6163 = vmatprep.subr.mxu0 0.0
    %6164 = vmatpush1.msra.mxu0 0.0
    %6165 = vmatprep.subr.mxu0 0.0
    %6166 = vmatpush1.msra.mxu0 0.0
    %6167 = vmatprep.subr.mxu0 0.0
    %6168 = vmatpush1.msra.mxu0 0.0
    %6169 = vmatprep.subr.mxu0 0.0
    %6170 = vmatpush1.msra.mxu0 0.0
    %6171 = vmatprep.subr.mxu0 0.0
    %6172 = vmatpush1.msra.mxu0 %v384
    %6173 = vmatprep.subr.mxu0 0.0
    %6174 = vmatpush1.msra.mxu0 %v383
    %6175 = vmatprep.subr.mxu0 0.0
    %6176 = vmatpush1.msra.mxu0 %v382
    %6177 = vmatprep.subr.mxu0 0.0
    %6178 = vmatpush1.msra.mxu0 %v381
    %6179 = vmatprep.subr.mxu0 0.0
    %6180 = vmatpush2.msra.mxu0 0.0
    %6181 = vmatprep.subr.mxu0 0.0
    %6182 = vmatpush2.msra.mxu0 0.0
    %6183 = vmatprep.subr.mxu0 0.0
    %6184 = vmatpush2.msra.mxu0 0.0
    %6185 = vmatprep.subr.mxu0 0.0
    %6186 = vmatpush2.msra.mxu0 0.0
    %6187 = vmatprep.subr.mxu0 0.0
    %6188 = vmatpush2.msra.mxu0 0.0
    %6189 = vmatprep.subr.mxu0 0.0
    %6190 = vmatpush2.msra.mxu0 0.0
    %6191 = vmatprep.subr.mxu0 0.0
    %6192 = vmatpush2.msra.mxu0 0.0
    %6193 = vmatprep.subr.mxu0 0.0
    %6194 = vmatpush2.msra.mxu0 0.0
    %6195 = vmatprep.subr.mxu0 0.0
    %6196 = vmatpush2.msra.mxu0 0.0
    %6197 = vmatprep.subr.mxu0 0.0
    %6198 = vmatpush2.msra.mxu0 0.0
    %6199 = vmatprep.subr.mxu0 0.0
    %6200 = vmatpush2.msra.mxu0 0.0
    %6201 = vmatprep.subr.mxu0 0.0
    %6202 = vmatpush2.msra.mxu0 0.0
    %6203 = vmatprep.subr.mxu0 0.0
    %6204 = vmatpush2.msra.mxu0 0.0
    %6205 = vmatprep.subr.mxu0 0.0
    %6206 = vmatpush2.msra.mxu0 0.0
    %6207 = vmatprep.subr.mxu0 0.0
    %6208 = vmatpush2.msra.mxu0 0.0
    %6209 = vmatprep.subr.mxu0 0.0
    %6210 = vmatpush2.msra.mxu0 0.0
    %6211 = vmatprep.mubr.f32.mxu0 0.0
    %6212 = vmatmul.mubr.f32.gmra.mxu0 %v6145
    %v6213 = vpop.f32.mrf.mxu0
    %v6214 = vadd.f32 %v5754, %v6213
    %v6215 = vpop.f32.mrf.mxu0
    %6216 = vdwg.mxu0
    %v6218 = vrot.slane %v6214, 6
    %v6219 = vrot.slane %v6214, 7
    %v6220 = vrot.slane %v6214, 1
    %v6225 = vadd.f32 %v5732, %v6218
    %v6226 = vadd.f32 %v5737, %v6219
    %v6227 = vadd.f32 %v5742, %v6214
    %v6228 = vadd.f32 %v5747, %v6220
    %v6229 = vxor.u32 %v6225, 2147483648
    %v6230 = vxor.u32 %v6226, 2147483648
    %v6231 = vxor.u32 %v6227, 2147483648
    %v6232 = vxor.u32 %v6228, 2147483648
    %v6233 = vmul.f32 %v6229, 1.442695
    %v6234 = vpow.pop %v6233
    %v6235 = vmul.f32 %v6230, 1.442695
    %v6236 = vpow.pop %v6235
    %v6237 = vmul.f32 %v6231, 1.442695
    %v6238 = vpow.pop %v6237
    %v6239 = vmul.f32 %v6232, 1.442695
    %v6240 = vpow.pop %v6239
    %v6241 = vadd.f32 %v6234, 1.0
    %v6242 = vadd.f32 %v6236, 1.0
    %v6243 = vadd.f32 %v6238, 1.0
    %v6244 = vadd.f32 %v6240, 1.0
    %v6245 = vrcp.pop %v6241
    %v6246 = vmul.f32 1.0, %v6245
    %v6247 = vrcp.pop %v6242
    %v6248 = vmul.f32 1.0, %v6247
    %v6249 = vrcp.pop %v6243
    %v6250 = vmul.f32 1.0, %v6249
    %v6251 = vrcp.pop %v6244
    %v6252 = vmul.f32 1.0, %v6251
    %6253 = vrot.lane.b32.xlu0 %v6218, 64
    %v6254 = vpop.permute.xlu0 %6253
    %6255 = vrot.lane.b32.xlu0 %v6219, 64
    %v6256 = vpop.permute.xlu0 %6255
    %6257 = vrot.lane.b32.xlu0 %v6214, 64
    %v6258 = vpop.permute.xlu0 %6257
    %6259 = vrot.lane.b32.xlu0 %v6220, 64
    %v6260 = vpop.permute.xlu0 %6259
    %v6265 = vmul.f32 %v6246, %v6254
    %v6266 = vmul.f32 %v6248, %v6256
    %v6267 = vmul.f32 %v6250, %v6258
    %v6268 = vmul.f32 %v6252, %v6260
    %6273 = vrot.lane.b32.xlu0 %v6265, 64
    %v6274 = vpop.permute.xlu0 %6273
    %6275 = vrot.lane.b32.xlu0 %v6266, 64
    %v6276 = vpop.permute.xlu0 %6275
    %6277 = vrot.lane.b32.xlu0 %v6267, 64
    %v6278 = vpop.permute.xlu0 %6277
    %6279 = vrot.lane.b32.xlu0 %v6268, 64
    %v6280 = vpop.permute.xlu0 %6279
    %v6285 = vadd.f32 %v5732, %v6274
    %v6286 = vadd.f32 %v5737, %v6276
    %v6287 = vadd.f32 %v5742, %v6278
    %v6288 = vadd.f32 %v5747, %v6280
    %v6289 = vtanh.pop %v6285
    %v6290 = vtanh.pop %v6286
    %v6291 = vtanh.pop %v6287
    %v6292 = vtanh.pop %v6288
    %v6293 = vsub.f32 1.0, %v6246
    %v6294 = vsub.f32 1.0, %v6248
    %v6295 = vsub.f32 1.0, %v6250
    %v6296 = vsub.f32 1.0, %v6252
    %6301 = vrot.lane.b32.xlu0 %v6289, 96
    %v6302 = vpop.permute.xlu0 %6301
    %6303 = vrot.lane.b32.xlu0 %v6290, 96
    %v6304 = vpop.permute.xlu0 %6303
    %6305 = vrot.lane.b32.xlu0 %v6291, 96
    %v6306 = vpop.permute.xlu0 %6305
    %6307 = vrot.lane.b32.xlu0 %v6292, 96
    %v6308 = vpop.permute.xlu0 %6307
    %v6313 = vmul.f32 %v6293, %v6302
    %v6314 = vmul.f32 %v6294, %v6304
    %v6315 = vmul.f32 %v6295, %v6306
    %v6316 = vmul.f32 %v6296, %v6308
    %v6317 = vrot.slane %v6129, 7
    %v6318 = vrot.slane %v6130, 7
    %v6319 = vrot.slane %v6132, 7
    %v6324 = vmul.f32 %v6246, %v6317
    %v6325 = vmul.f32 %v6248, %v6318
    %v6326 = vmul.f32 %v6250, %v6139
    %v6327 = vmul.f32 %v6252, %v6319
    %v6328 = vadd.f32 %v6313, %v6324
    %v6329 = vadd.f32 %v6314, %v6325
    %v6330 = vadd.f32 %v6315, %v6326
    %v6331 = vadd.f32 %v6316, %v6327
    %v6336 = vrot.slane %v6328, 2
    %v6337 = vrot.slane %v6329, 1
    %v6338 = vsel %vm758, %v6337, %v6336
    %v6339 = vsel %vm761, %v6330, %v6338
    %v6340 = vrot.slane %v6331, 7
    %v6341 = vsel %vm764, %v6340, %v6339
    %6342 = vrot.lane.b32.xlu0 %v6341, 96
    %v6343 = vpop.permute.xlu0 %6342
    %v6344 = vsel %vm571, %v6343, 0
    %6346 = vmatprep.subr.mxu0 0.0
    %6347 = vmatpush1.msra.mxu0 0.0
    %6348 = vmatprep.subr.mxu0 0.0
    %6349 = vmatpush1.msra.mxu0 0.0
    %6350 = vmatprep.subr.mxu0 0.0
    %6351 = vmatpush1.msra.mxu0 0.0
    %6352 = vmatprep.subr.mxu0 0.0
    %6353 = vmatpush1.msra.mxu0 0.0
    %6354 = vmatprep.subr.mxu0 0.0
    %6355 = vmatpush1.msra.mxu0 0.0
    %6356 = vmatprep.subr.mxu0 0.0
    %6357 = vmatpush1.msra.mxu0 0.0
    %6358 = vmatprep.subr.mxu0 0.0
    %6359 = vmatpush1.msra.mxu0 0.0
    %6360 = vmatprep.subr.mxu0 0.0
    %6361 = vmatpush1.msra.mxu0 0.0
    %6362 = vmatprep.subr.mxu0 0.0
    %6363 = vmatpush1.msra.mxu0 0.0
    %6364 = vmatprep.subr.mxu0 0.0
    %6365 = vmatpush1.msra.mxu0 0.0
    %6366 = vmatprep.subr.mxu0 0.0
    %6367 = vmatpush1.msra.mxu0 0.0
    %6368 = vmatprep.subr.mxu0 0.0
    %6369 = vmatpush1.msra.mxu0 0.0
    %6370 = vmatprep.subr.mxu0 0.0
    %6371 = vmatpush1.msra.mxu0 %v384
    %6372 = vmatprep.subr.mxu0 0.0
    %6373 = vmatpush1.msra.mxu0 %v383
    %6374 = vmatprep.subr.mxu0 0.0
    %6375 = vmatpush1.msra.mxu0 %v382
    %6376 = vmatprep.subr.mxu0 0.0
    %6377 = vmatpush1.msra.mxu0 %v381
    %6378 = vmatprep.subr.mxu0 0.0
    %6379 = vmatpush2.msra.mxu0 0.0
    %6380 = vmatprep.subr.mxu0 0.0
    %6381 = vmatpush2.msra.mxu0 0.0
    %6382 = vmatprep.subr.mxu0 0.0
    %6383 = vmatpush2.msra.mxu0 0.0
    %6384 = vmatprep.subr.mxu0 0.0
    %6385 = vmatpush2.msra.mxu0 0.0
    %6386 = vmatprep.subr.mxu0 0.0
    %6387 = vmatpush2.msra.mxu0 0.0
    %6388 = vmatprep.subr.mxu0 0.0
    %6389 = vmatpush2.msra.mxu0 0.0
    %6390 = vmatprep.subr.mxu0 0.0
    %6391 = vmatpush2.msra.mxu0 0.0
    %6392 = vmatprep.subr.mxu0 0.0
    %6393 = vmatpush2.msra.mxu0 0.0
    %6394 = vmatprep.subr.mxu0 0.0
    %6395 = vmatpush2.msra.mxu0 0.0
    %6396 = vmatprep.subr.mxu0 0.0
    %6397 = vmatpush2.msra.mxu0 0.0
    %6398 = vmatprep.subr.mxu0 0.0
    %6399 = vmatpush2.msra.mxu0 0.0
    %6400 = vmatprep.subr.mxu0 0.0
    %6401 = vmatpush2.msra.mxu0 0.0
    %6402 = vmatprep.subr.mxu0 0.0
    %6403 = vmatpush2.msra.mxu0 0.0
    %6404 = vmatprep.subr.mxu0 0.0
    %6405 = vmatpush2.msra.mxu0 0.0
    %6406 = vmatprep.subr.mxu0 0.0
    %6407 = vmatpush2.msra.mxu0 0.0
    %6408 = vmatprep.subr.mxu0 0.0
    %6409 = vmatpush2.msra.mxu0 0.0
    %6410 = vmatprep.mubr.f32.mxu0 0.0
    %6411 = vmatmul.mubr.f32.gmra.mxu0 %v6344
    %v6412 = vpop.f32.mrf.mxu0
    %v6413 = vadd.f32 %v5754, %v6412
    %v6414 = vpop.f32.mrf.mxu0
    %6415 = vdwg.mxu0
    %v6417 = vrot.slane %v6413, 5
    %v6418 = vrot.slane %v6413, 6
    %v6419 = vrot.slane %v6413, 7
    %v6424 = vadd.f32 %v5732, %v6417
    %v6425 = vadd.f32 %v5737, %v6418
    %v6426 = vadd.f32 %v5742, %v6419
    %v6427 = vadd.f32 %v5747, %v6413
    %v6428 = vxor.u32 %v6424, 2147483648
    %v6429 = vxor.u32 %v6425, 2147483648
    %v6430 = vxor.u32 %v6426, 2147483648
    %v6431 = vxor.u32 %v6427, 2147483648
    %v6432 = vmul.f32 %v6428, 1.442695
    %v6433 = vpow.pop %v6432
    %v6434 = vmul.f32 %v6429, 1.442695
    %v6435 = vpow.pop %v6434
    %v6436 = vmul.f32 %v6430, 1.442695
    %v6437 = vpow.pop %v6436
    %v6438 = vmul.f32 %v6431, 1.442695
    %v6439 = vpow.pop %v6438
    %v6440 = vadd.f32 %v6433, 1.0
    %v6441 = vadd.f32 %v6435, 1.0
    %v6442 = vadd.f32 %v6437, 1.0
    %v6443 = vadd.f32 %v6439, 1.0
    %v6444 = vrcp.pop %v6440
    %v6445 = vmul.f32 1.0, %v6444
    %v6446 = vrcp.pop %v6441
    %v6447 = vmul.f32 1.0, %v6446
    %v6448 = vrcp.pop %v6442
    %v6449 = vmul.f32 1.0, %v6448
    %v6450 = vrcp.pop %v6443
    %v6451 = vmul.f32 1.0, %v6450
    %6452 = vrot.lane.b32.xlu0 %v6417, 64
    %v6453 = vpop.permute.xlu0 %6452
    %6454 = vrot.lane.b32.xlu0 %v6418, 64
    %v6455 = vpop.permute.xlu0 %6454
    %6456 = vrot.lane.b32.xlu0 %v6419, 64
    %v6457 = vpop.permute.xlu0 %6456
    %6458 = vrot.lane.b32.xlu0 %v6413, 64
    %v6459 = vpop.permute.xlu0 %6458
    %v6464 = vmul.f32 %v6445, %v6453
    %v6465 = vmul.f32 %v6447, %v6455
    %v6466 = vmul.f32 %v6449, %v6457
    %v6467 = vmul.f32 %v6451, %v6459
    %6472 = vrot.lane.b32.xlu0 %v6464, 64
    %v6473 = vpop.permute.xlu0 %6472
    %6474 = vrot.lane.b32.xlu0 %v6465, 64
    %v6475 = vpop.permute.xlu0 %6474
    %6476 = vrot.lane.b32.xlu0 %v6466, 64
    %v6477 = vpop.permute.xlu0 %6476
    %6478 = vrot.lane.b32.xlu0 %v6467, 64
    %v6479 = vpop.permute.xlu0 %6478
    %v6484 = vadd.f32 %v5732, %v6473
    %v6485 = vadd.f32 %v5737, %v6475
    %v6486 = vadd.f32 %v5742, %v6477
    %v6487 = vadd.f32 %v5747, %v6479
    %v6488 = vtanh.pop %v6484
    %v6489 = vtanh.pop %v6485
    %v6490 = vtanh.pop %v6486
    %v6491 = vtanh.pop %v6487
    %v6492 = vsub.f32 1.0, %v6445
    %v6493 = vsub.f32 1.0, %v6447
    %v6494 = vsub.f32 1.0, %v6449
    %v6495 = vsub.f32 1.0, %v6451
    %6500 = vrot.lane.b32.xlu0 %v6488, 96
    %v6501 = vpop.permute.xlu0 %6500
    %6502 = vrot.lane.b32.xlu0 %v6489, 96
    %v6503 = vpop.permute.xlu0 %6502
    %6504 = vrot.lane.b32.xlu0 %v6490, 96
    %v6505 = vpop.permute.xlu0 %6504
    %6506 = vrot.lane.b32.xlu0 %v6491, 96
    %v6507 = vpop.permute.xlu0 %6506
    %v6512 = vmul.f32 %v6492, %v6501
    %v6513 = vmul.f32 %v6493, %v6503
    %v6514 = vmul.f32 %v6494, %v6505
    %v6515 = vmul.f32 %v6495, %v6507
    %v6516 = vrot.slane %v6328, 7
    %v6517 = vrot.slane %v6329, 7
    %v6518 = vrot.slane %v6330, 7
    %v6523 = vmul.f32 %v6445, %v6516
    %v6524 = vmul.f32 %v6447, %v6517
    %v6525 = vmul.f32 %v6449, %v6518
    %v6526 = vmul.f32 %v6451, %v6340
    %v6527 = vadd.f32 %v6512, %v6523
    %v6528 = vadd.f32 %v6513, %v6524
    %v6529 = vadd.f32 %v6514, %v6525
    %v6530 = vadd.f32 %v6515, %v6526
    %v6535 = vrot.slane %v6527, 3
    %v6536 = vrot.slane %v6528, 2
    %v6537 = vsel %vm758, %v6536, %v6535
    %v6538 = vrot.slane %v6529, 1
    %v6539 = vsel %vm761, %v6538, %v6537
    %v6540 = vsel %vm764, %v6530, %v6539
    %6541 = vrot.lane.b32.xlu0 %v6540, 96
    %v6542 = vpop.permute.xlu0 %6541
    %v6543 = vsel %vm571, %v6542, 0
    %6545 = vmatprep.subr.mxu0 0.0
    %6546 = vmatpush1.msra.mxu0 0.0
    %6547 = vmatprep.subr.mxu0 0.0
    %6548 = vmatpush1.msra.mxu0 0.0
    %6549 = vmatprep.subr.mxu0 0.0
    %6550 = vmatpush1.msra.mxu0 0.0
    %6551 = vmatprep.subr.mxu0 0.0
    %6552 = vmatpush1.msra.mxu0 0.0
    %6553 = vmatprep.subr.mxu0 0.0
    %6554 = vmatpush1.msra.mxu0 0.0
    %6555 = vmatprep.subr.mxu0 0.0
    %6556 = vmatpush1.msra.mxu0 0.0
    %6557 = vmatprep.subr.mxu0 0.0
    %6558 = vmatpush1.msra.mxu0 0.0
    %6559 = vmatprep.subr.mxu0 0.0
    %6560 = vmatpush1.msra.mxu0 0.0
    %6561 = vmatprep.subr.mxu0 0.0
    %6562 = vmatpush1.msra.mxu0 0.0
    %6563 = vmatprep.subr.mxu0 0.0
    %6564 = vmatpush1.msra.mxu0 0.0
    %6565 = vmatprep.subr.mxu0 0.0
    %6566 = vmatpush1.msra.mxu0 0.0
    %6567 = vmatprep.subr.mxu0 0.0
    %6568 = vmatpush1.msra.mxu0 0.0
    %6569 = vmatprep.subr.mxu0 0.0
    %6570 = vmatpush1.msra.mxu0 %v384
    %6571 = vmatprep.subr.mxu0 0.0
    %6572 = vmatpush1.msra.mxu0 %v383
    %6573 = vmatprep.subr.mxu0 0.0
    %6574 = vmatpush1.msra.mxu0 %v382
    %6575 = vmatprep.subr.mxu0 0.0
    %6576 = vmatpush1.msra.mxu0 %v381
    %6577 = vmatprep.subr.mxu0 0.0
    %6578 = vmatpush2.msra.mxu0 0.0
    %6579 = vmatprep.subr.mxu0 0.0
    %6580 = vmatpush2.msra.mxu0 0.0
    %6581 = vmatprep.subr.mxu0 0.0
    %6582 = vmatpush2.msra.mxu0 0.0
    %6583 = vmatprep.subr.mxu0 0.0
    %6584 = vmatpush2.msra.mxu0 0.0
    %6585 = vmatprep.subr.mxu0 0.0
    %6586 = vmatpush2.msra.mxu0 0.0
    %6587 = vmatprep.subr.mxu0 0.0
    %6588 = vmatpush2.msra.mxu0 0.0
    %6589 = vmatprep.subr.mxu0 0.0
    %6590 = vmatpush2.msra.mxu0 0.0
    %6591 = vmatprep.subr.mxu0 0.0
    %6592 = vmatpush2.msra.mxu0 0.0
    %6593 = vmatprep.subr.mxu0 0.0
    %6594 = vmatpush2.msra.mxu0 0.0
    %6595 = vmatprep.subr.mxu0 0.0
    %6596 = vmatpush2.msra.mxu0 0.0
    %6597 = vmatprep.subr.mxu0 0.0
    %6598 = vmatpush2.msra.mxu0 0.0
    %6599 = vmatprep.subr.mxu0 0.0
    %6600 = vmatpush2.msra.mxu0 0.0
    %6601 = vmatprep.subr.mxu0 0.0
    %6602 = vmatpush2.msra.mxu0 0.0
    %6603 = vmatprep.subr.mxu0 0.0
    %6604 = vmatpush2.msra.mxu0 0.0
    %6605 = vmatprep.subr.mxu0 0.0
    %6606 = vmatpush2.msra.mxu0 0.0
    %6607 = vmatprep.subr.mxu0 0.0
    %6608 = vmatpush2.msra.mxu0 0.0
    %6609 = vmatprep.mubr.f32.mxu0 0.0
    %6610 = vmatmul.mubr.f32.gmra.mxu0 %v6543
    %v6611 = vpop.f32.mrf.mxu0
    %v6612 = vadd.f32 %v5754, %v6611
    %v6613 = vpop.f32.mrf.mxu0
    %6614 = vdwg.mxu0
    %v6616 = vrot.slane %v6612, 4
    %v6617 = vrot.slane %v6612, 5
    %v6618 = vrot.slane %v6612, 6
    %v6619 = vrot.slane %v6612, 7
    %v6624 = vadd.f32 %v5732, %v6616
    %v6625 = vadd.f32 %v5737, %v6617
    %v6626 = vadd.f32 %v5742, %v6618
    %v6627 = vadd.f32 %v5747, %v6619
    %v6628 = vxor.u32 %v6624, 2147483648
    %v6629 = vxor.u32 %v6625, 2147483648
    %v6630 = vxor.u32 %v6626, 2147483648
    %v6631 = vxor.u32 %v6627, 2147483648
    %v6632 = vmul.f32 %v6628, 1.442695
    %v6633 = vpow.pop %v6632
    %v6634 = vmul.f32 %v6629, 1.442695
    %v6635 = vpow.pop %v6634
    %v6636 = vmul.f32 %v6630, 1.442695
    %v6637 = vpow.pop %v6636
    %v6638 = vmul.f32 %v6631, 1.442695
    %v6639 = vpow.pop %v6638
    %v6640 = vadd.f32 %v6633, 1.0
    %v6641 = vadd.f32 %v6635, 1.0
    %v6642 = vadd.f32 %v6637, 1.0
    %v6643 = vadd.f32 %v6639, 1.0
    %v6644 = vrcp.pop %v6640
    %v6645 = vmul.f32 1.0, %v6644
    %v6646 = vrcp.pop %v6641
    %v6647 = vmul.f32 1.0, %v6646
    %v6648 = vrcp.pop %v6642
    %v6649 = vmul.f32 1.0, %v6648
    %v6650 = vrcp.pop %v6643
    %v6651 = vmul.f32 1.0, %v6650
    %6652 = vrot.lane.b32.xlu0 %v6616, 64
    %v6653 = vpop.permute.xlu0 %6652
    %6654 = vrot.lane.b32.xlu0 %v6617, 64
    %v6655 = vpop.permute.xlu0 %6654
    %6656 = vrot.lane.b32.xlu0 %v6618, 64
    %v6657 = vpop.permute.xlu0 %6656
    %6658 = vrot.lane.b32.xlu0 %v6619, 64
    %v6659 = vpop.permute.xlu0 %6658
    %v6664 = vmul.f32 %v6645, %v6653
    %v6665 = vmul.f32 %v6647, %v6655
    %v6666 = vmul.f32 %v6649, %v6657
    %v6667 = vmul.f32 %v6651, %v6659
    %6672 = vrot.lane.b32.xlu0 %v6664, 64
    %v6673 = vpop.permute.xlu0 %6672
    %6674 = vrot.lane.b32.xlu0 %v6665, 64
    %v6675 = vpop.permute.xlu0 %6674
    %6676 = vrot.lane.b32.xlu0 %v6666, 64
    %v6677 = vpop.permute.xlu0 %6676
    %6678 = vrot.lane.b32.xlu0 %v6667, 64
    %v6679 = vpop.permute.xlu0 %6678
    %v6684 = vadd.f32 %v5732, %v6673
    %v6685 = vadd.f32 %v5737, %v6675
    %v6686 = vadd.f32 %v5742, %v6677
    %v6687 = vadd.f32 %v5747, %v6679
    %v6688 = vtanh.pop %v6684
    %v6689 = vtanh.pop %v6685
    %v6690 = vtanh.pop %v6686
    %v6691 = vtanh.pop %v6687
    %v6692 = vsub.f32 1.0, %v6645
    %v6693 = vsub.f32 1.0, %v6647
    %v6694 = vsub.f32 1.0, %v6649
    %v6695 = vsub.f32 1.0, %v6651
    %6700 = vrot.lane.b32.xlu0 %v6688, 96
    %v6701 = vpop.permute.xlu0 %6700
    %6702 = vrot.lane.b32.xlu0 %v6689, 96
    %v6703 = vpop.permute.xlu0 %6702
    %6704 = vrot.lane.b32.xlu0 %v6690, 96
    %v6705 = vpop.permute.xlu0 %6704
    %6706 = vrot.lane.b32.xlu0 %v6691, 96
    %v6707 = vpop.permute.xlu0 %6706
    %v6712 = vmul.f32 %v6692, %v6701
    %v6713 = vmul.f32 %v6693, %v6703
    %v6714 = vmul.f32 %v6694, %v6705
    %v6715 = vmul.f32 %v6695, %v6707
    %v6716 = vrot.slane %v6527, 7
    %v6717 = vrot.slane %v6528, 7
    %v6718 = vrot.slane %v6529, 7
    %v6719 = vrot.slane %v6530, 7
    %v6724 = vmul.f32 %v6645, %v6716
    %v6725 = vmul.f32 %v6647, %v6717
    %v6726 = vmul.f32 %v6649, %v6718
    %v6727 = vmul.f32 %v6651, %v6719
    %v6728 = vadd.f32 %v6712, %v6724
    %v6729 = vadd.f32 %v6713, %v6725
    %v6730 = vadd.f32 %v6714, %v6726
    %v6731 = vadd.f32 %v6715, %v6727
    %v6736 = vrot.slane %v6728, 4
    %v6737 = vrot.slane %v6729, 3
    %v6738 = vsel %vm758, %v6737, %v6736
    %v6739 = vrot.slane %v6730, 2
    %v6740 = vsel %vm761, %v6739, %v6738
    %v6741 = vrot.slane %v6731, 1
    %v6742 = vsel %vm764, %v6741, %v6740
    %6743 = vrot.lane.b32.xlu0 %v6742, 96
    %v6744 = vpop.permute.xlu0 %6743
    %v6745 = vsel %vm571, %v6744, 0
    %6747 = vmatprep.subr.mxu0 0.0
    %6748 = vmatpush1.msra.mxu0 0.0
    %6749 = vmatprep.subr.mxu0 0.0
    %6750 = vmatpush1.msra.mxu0 0.0
    %6751 = vmatprep.subr.mxu0 0.0
    %6752 = vmatpush1.msra.mxu0 0.0
    %6753 = vmatprep.subr.mxu0 0.0
    %6754 = vmatpush1.msra.mxu0 0.0
    %6755 = vmatprep.subr.mxu0 0.0
    %6756 = vmatpush1.msra.mxu0 0.0
    %6757 = vmatprep.subr.mxu0 0.0
    %6758 = vmatpush1.msra.mxu0 0.0
    %6759 = vmatprep.subr.mxu0 0.0
    %6760 = vmatpush1.msra.mxu0 0.0
    %6761 = vmatprep.subr.mxu0 0.0
    %6762 = vmatpush1.msra.mxu0 0.0
    %6763 = vmatprep.subr.mxu0 0.0
    %6764 = vmatpush1.msra.mxu0 0.0
    %6765 = vmatprep.subr.mxu0 0.0
    %6766 = vmatpush1.msra.mxu0 0.0
    %6767 = vmatprep.subr.mxu0 0.0
    %6768 = vmatpush1.msra.mxu0 0.0
    %6769 = vmatprep.subr.mxu0 0.0
    %6770 = vmatpush1.msra.mxu0 0.0
    %6771 = vmatprep.subr.mxu0 0.0
    %6772 = vmatpush1.msra.mxu0 %v384
    %6773 = vmatprep.subr.mxu0 0.0
    %6774 = vmatpush1.msra.mxu0 %v383
    %6775 = vmatprep.subr.mxu0 0.0
    %6776 = vmatpush1.msra.mxu0 %v382
    %6777 = vmatprep.subr.mxu0 0.0
    %6778 = vmatpush1.msra.mxu0 %v381
    %6779 = vmatprep.subr.mxu0 0.0
    %6780 = vmatpush2.msra.mxu0 0.0
    %6781 = vmatprep.subr.mxu0 0.0
    %6782 = vmatpush2.msra.mxu0 0.0
    %6783 = vmatprep.subr.mxu0 0.0
    %6784 = vmatpush2.msra.mxu0 0.0
    %6785 = vmatprep.subr.mxu0 0.0
    %6786 = vmatpush2.msra.mxu0 0.0
    %6787 = vmatprep.subr.mxu0 0.0
    %6788 = vmatpush2.msra.mxu0 0.0
    %6789 = vmatprep.subr.mxu0 0.0
    %6790 = vmatpush2.msra.mxu0 0.0
    %6791 = vmatprep.subr.mxu0 0.0
    %6792 = vmatpush2.msra.mxu0 0.0
    %6793 = vmatprep.subr.mxu0 0.0
    %6794 = vmatpush2.msra.mxu0 0.0
    %6795 = vmatprep.subr.mxu0 0.0
    %6796 = vmatpush2.msra.mxu0 0.0
    %6797 = vmatprep.subr.mxu0 0.0
    %6798 = vmatpush2.msra.mxu0 0.0
    %6799 = vmatprep.subr.mxu0 0.0
    %6800 = vmatpush2.msra.mxu0 0.0
    %6801 = vmatprep.subr.mxu0 0.0
    %6802 = vmatpush2.msra.mxu0 0.0
    %6803 = vmatprep.subr.mxu0 0.0
    %6804 = vmatpush2.msra.mxu0 0.0
    %6805 = vmatprep.subr.mxu0 0.0
    %6806 = vmatpush2.msra.mxu0 0.0
    %6807 = vmatprep.subr.mxu0 0.0
    %6808 = vmatpush2.msra.mxu0 0.0
    %6809 = vmatprep.subr.mxu0 0.0
    %6810 = vmatpush2.msra.mxu0 0.0
    %6811 = vmatprep.mubr.f32.mxu0 0.0
    %6812 = vmatmul.mubr.f32.gmra.mxu0 %v6745
    %v6813 = vpop.f32.mrf.mxu0
    %v6814 = vadd.f32 %v5754, %v6813
    %v6815 = vpop.f32.mrf.mxu0
    %6816 = vdwg.mxu0
    %v6818 = vrot.slane %v6814, 3
    %v6819 = vrot.slane %v6814, 4
    %v6820 = vrot.slane %v6814, 5
    %v6821 = vrot.slane %v6814, 6
    %v6826 = vadd.f32 %v5732, %v6818
    %v6827 = vadd.f32 %v5737, %v6819
    %v6828 = vadd.f32 %v5742, %v6820
    %v6829 = vadd.f32 %v5747, %v6821
    %v6830 = vxor.u32 %v6826, 2147483648
    %v6831 = vxor.u32 %v6827, 2147483648
    %v6832 = vxor.u32 %v6828, 2147483648
    %v6833 = vxor.u32 %v6829, 2147483648
    %v6834 = vmul.f32 %v6830, 1.442695
    %v6835 = vpow.pop %v6834
    %v6836 = vmul.f32 %v6831, 1.442695
    %v6837 = vpow.pop %v6836
    %v6838 = vmul.f32 %v6832, 1.442695
    %v6839 = vpow.pop %v6838
    %v6840 = vmul.f32 %v6833, 1.442695
    %v6841 = vpow.pop %v6840
    %v6842 = vadd.f32 %v6835, 1.0
    %v6843 = vadd.f32 %v6837, 1.0
    %v6844 = vadd.f32 %v6839, 1.0
    %v6845 = vadd.f32 %v6841, 1.0
    %v6846 = vrcp.pop %v6842
    %v6847 = vmul.f32 1.0, %v6846
    %v6848 = vrcp.pop %v6843
    %v6849 = vmul.f32 1.0, %v6848
    %v6850 = vrcp.pop %v6844
    %v6851 = vmul.f32 1.0, %v6850
    %v6852 = vrcp.pop %v6845
    %v6853 = vmul.f32 1.0, %v6852
    %6854 = vrot.lane.b32.xlu0 %v6818, 64
    %v6855 = vpop.permute.xlu0 %6854
    %6856 = vrot.lane.b32.xlu0 %v6819, 64
    %v6857 = vpop.permute.xlu0 %6856
    %6858 = vrot.lane.b32.xlu0 %v6820, 64
    %v6859 = vpop.permute.xlu0 %6858
    %6860 = vrot.lane.b32.xlu0 %v6821, 64
    %v6861 = vpop.permute.xlu0 %6860
    %v6866 = vmul.f32 %v6847, %v6855
    %v6867 = vmul.f32 %v6849, %v6857
    %v6868 = vmul.f32 %v6851, %v6859
    %v6869 = vmul.f32 %v6853, %v6861
    %6874 = vrot.lane.b32.xlu0 %v6866, 64
    %v6875 = vpop.permute.xlu0 %6874
    %6876 = vrot.lane.b32.xlu0 %v6867, 64
    %v6877 = vpop.permute.xlu0 %6876
    %6878 = vrot.lane.b32.xlu0 %v6868, 64
    %v6879 = vpop.permute.xlu0 %6878
    %6880 = vrot.lane.b32.xlu0 %v6869, 64
    %v6881 = vpop.permute.xlu0 %6880
    %v6886 = vadd.f32 %v5732, %v6875
    %v6887 = vadd.f32 %v5737, %v6877
    %v6888 = vadd.f32 %v5742, %v6879
    %v6889 = vadd.f32 %v5747, %v6881
    %v6890 = vtanh.pop %v6886
    %v6891 = vtanh.pop %v6887
    %v6892 = vtanh.pop %v6888
    %v6893 = vtanh.pop %v6889
    %v6894 = vsub.f32 1.0, %v6847
    %v6895 = vsub.f32 1.0, %v6849
    %v6896 = vsub.f32 1.0, %v6851
    %v6897 = vsub.f32 1.0, %v6853
    %6902 = vrot.lane.b32.xlu0 %v6890, 96
    %v6903 = vpop.permute.xlu0 %6902
    %6904 = vrot.lane.b32.xlu0 %v6891, 96
    %v6905 = vpop.permute.xlu0 %6904
    %6906 = vrot.lane.b32.xlu0 %v6892, 96
    %v6907 = vpop.permute.xlu0 %6906
    %6908 = vrot.lane.b32.xlu0 %v6893, 96
    %v6909 = vpop.permute.xlu0 %6908
    %v6914 = vmul.f32 %v6894, %v6903
    %v6915 = vmul.f32 %v6895, %v6905
    %v6916 = vmul.f32 %v6896, %v6907
    %v6917 = vmul.f32 %v6897, %v6909
    %v6918 = vrot.slane %v6728, 7
    %v6919 = vrot.slane %v6729, 7
    %v6920 = vrot.slane %v6730, 7
    %v6921 = vrot.slane %v6731, 7
    %v6926 = vmul.f32 %v6847, %v6918
    %v6927 = vmul.f32 %v6849, %v6919
    %v6928 = vmul.f32 %v6851, %v6920
    %v6929 = vmul.f32 %v6853, %v6921
    %v6930 = vadd.f32 %v6914, %v6926
    %v6931 = vadd.f32 %v6915, %v6927
    %v6932 = vadd.f32 %v6916, %v6928
    %v6933 = vadd.f32 %v6917, %v6929
    %v6938 = vrot.slane %v6930, 5
    %v6939 = vrot.slane %v6931, 4
    %v6940 = vsel %vm758, %v6939, %v6938
    %v6941 = vrot.slane %v6932, 3
    %v6942 = vsel %vm761, %v6941, %v6940
    %v6943 = vrot.slane %v6933, 2
    %v6944 = vsel %vm764, %v6943, %v6942
    %6945 = vrot.lane.b32.xlu0 %v6944, 96
    %v6946 = vpop.permute.xlu0 %6945
    %v6947 = vsel %vm571, %v6946, 0
    %6949 = vmatprep.subr.mxu0 0.0
    %6950 = vmatpush1.msra.mxu0 0.0
    %6951 = vmatprep.subr.mxu0 0.0
    %6952 = vmatpush1.msra.mxu0 0.0
    %6953 = vmatprep.subr.mxu0 0.0
    %6954 = vmatpush1.msra.mxu0 0.0
    %6955 = vmatprep.subr.mxu0 0.0
    %6956 = vmatpush1.msra.mxu0 0.0
    %6957 = vmatprep.subr.mxu0 0.0
    %6958 = vmatpush1.msra.mxu0 0.0
    %6959 = vmatprep.subr.mxu0 0.0
    %6960 = vmatpush1.msra.mxu0 0.0
    %6961 = vmatprep.subr.mxu0 0.0
    %6962 = vmatpush1.msra.mxu0 0.0
    %6963 = vmatprep.subr.mxu0 0.0
    %6964 = vmatpush1.msra.mxu0 0.0
    %6965 = vmatprep.subr.mxu0 0.0
    %6966 = vmatpush1.msra.mxu0 0.0
    %6967 = vmatprep.subr.mxu0 0.0
    %6968 = vmatpush1.msra.mxu0 0.0
    %6969 = vmatprep.subr.mxu0 0.0
    %6970 = vmatpush1.msra.mxu0 0.0
    %6971 = vmatprep.subr.mxu0 0.0
    %6972 = vmatpush1.msra.mxu0 0.0
    %6973 = vmatprep.subr.mxu0 0.0
    %6974 = vmatpush1.msra.mxu0 %v384
    %6975 = vmatprep.subr.mxu0 0.0
    %6976 = vmatpush1.msra.mxu0 %v383
    %6977 = vmatprep.subr.mxu0 0.0
    %6978 = vmatpush1.msra.mxu0 %v382
    %6979 = vmatprep.subr.mxu0 0.0
    %6980 = vmatpush1.msra.mxu0 %v381
    %6981 = vmatprep.subr.mxu0 0.0
    %6982 = vmatpush2.msra.mxu0 0.0
    %6983 = vmatprep.subr.mxu0 0.0
    %6984 = vmatpush2.msra.mxu0 0.0
    %6985 = vmatprep.subr.mxu0 0.0
    %6986 = vmatpush2.msra.mxu0 0.0
    %6987 = vmatprep.subr.mxu0 0.0
    %6988 = vmatpush2.msra.mxu0 0.0
    %6989 = vmatprep.subr.mxu0 0.0
    %6990 = vmatpush2.msra.mxu0 0.0
    %6991 = vmatprep.subr.mxu0 0.0
    %6992 = vmatpush2.msra.mxu0 0.0
    %6993 = vmatprep.subr.mxu0 0.0
    %6994 = vmatpush2.msra.mxu0 0.0
    %6995 = vmatprep.subr.mxu0 0.0
    %6996 = vmatpush2.msra.mxu0 0.0
    %6997 = vmatprep.subr.mxu0 0.0
    %6998 = vmatpush2.msra.mxu0 0.0
    %6999 = vmatprep.subr.mxu0 0.0
    %7000 = vmatpush2.msra.mxu0 0.0
    %7001 = vmatprep.subr.mxu0 0.0
    %7002 = vmatpush2.msra.mxu0 0.0
    %7003 = vmatprep.subr.mxu0 0.0
    %7004 = vmatpush2.msra.mxu0 0.0
    %7005 = vmatprep.subr.mxu0 0.0
    %7006 = vmatpush2.msra.mxu0 0.0
    %7007 = vmatprep.subr.mxu0 0.0
    %7008 = vmatpush2.msra.mxu0 0.0
    %7009 = vmatprep.subr.mxu0 0.0
    %7010 = vmatpush2.msra.mxu0 0.0
    %7011 = vmatprep.subr.mxu0 0.0
    %7012 = vmatpush2.msra.mxu0 0.0
    %7013 = vmatprep.mubr.f32.mxu0 0.0
    %7014 = vmatmul.mubr.f32.gmra.mxu0 %v6947
    %v7015 = vpop.f32.mrf.mxu0
    %v7016 = vadd.f32 %v5754, %v7015
    %v7017 = vpop.f32.mrf.mxu0
    %7018 = vdwg.mxu0
    %v7020 = vrot.slane %v7016, 2
    %v7021 = vrot.slane %v7016, 3
    %v7022 = vrot.slane %v7016, 4
    %v7023 = vrot.slane %v7016, 5
    %v7028 = vadd.f32 %v5732, %v7020
    %v7029 = vadd.f32 %v5737, %v7021
    %v7030 = vadd.f32 %v5742, %v7022
    %v7031 = vadd.f32 %v5747, %v7023
    %v7032 = vxor.u32 %v7028, 2147483648
    %v7033 = vxor.u32 %v7029, 2147483648
    %v7034 = vxor.u32 %v7030, 2147483648
    %v7035 = vxor.u32 %v7031, 2147483648
    %v7036 = vmul.f32 %v7032, 1.442695
    %v7037 = vpow.pop %v7036
    %v7038 = vmul.f32 %v7033, 1.442695
    %v7039 = vpow.pop %v7038
    %v7040 = vmul.f32 %v7034, 1.442695
    %v7041 = vpow.pop %v7040
    %v7042 = vmul.f32 %v7035, 1.442695
    %v7043 = vpow.pop %v7042
    %v7044 = vadd.f32 %v7037, 1.0
    %v7045 = vadd.f32 %v7039, 1.0
    %v7046 = vadd.f32 %v7041, 1.0
    %v7047 = vadd.f32 %v7043, 1.0
    %v7048 = vrcp.pop %v7044
    %v7049 = vmul.f32 1.0, %v7048
    %v7050 = vrcp.pop %v7045
    %v7051 = vmul.f32 1.0, %v7050
    %v7052 = vrcp.pop %v7046
    %v7053 = vmul.f32 1.0, %v7052
    %v7054 = vrcp.pop %v7047
    %v7055 = vmul.f32 1.0, %v7054
    %7056 = vrot.lane.b32.xlu0 %v7020, 64
    %v7057 = vpop.permute.xlu0 %7056
    %7058 = vrot.lane.b32.xlu0 %v7021, 64
    %v7059 = vpop.permute.xlu0 %7058
    %7060 = vrot.lane.b32.xlu0 %v7022, 64
    %v7061 = vpop.permute.xlu0 %7060
    %7062 = vrot.lane.b32.xlu0 %v7023, 64
    %v7063 = vpop.permute.xlu0 %7062
    %v7068 = vmul.f32 %v7049, %v7057
    %v7069 = vmul.f32 %v7051, %v7059
    %v7070 = vmul.f32 %v7053, %v7061
    %v7071 = vmul.f32 %v7055, %v7063
    %7076 = vrot.lane.b32.xlu0 %v7068, 64
    %v7077 = vpop.permute.xlu0 %7076
    %7078 = vrot.lane.b32.xlu0 %v7069, 64
    %v7079 = vpop.permute.xlu0 %7078
    %7080 = vrot.lane.b32.xlu0 %v7070, 64
    %v7081 = vpop.permute.xlu0 %7080
    %7082 = vrot.lane.b32.xlu0 %v7071, 64
    %v7083 = vpop.permute.xlu0 %7082
    %v7088 = vadd.f32 %v5732, %v7077
    %v7089 = vadd.f32 %v5737, %v7079
    %v7090 = vadd.f32 %v5742, %v7081
    %v7091 = vadd.f32 %v5747, %v7083
    %v7092 = vtanh.pop %v7088
    %v7093 = vtanh.pop %v7089
    %v7094 = vtanh.pop %v7090
    %v7095 = vtanh.pop %v7091
    %v7096 = vsub.f32 1.0, %v7049
    %v7097 = vsub.f32 1.0, %v7051
    %v7098 = vsub.f32 1.0, %v7053
    %v7099 = vsub.f32 1.0, %v7055
    %7104 = vrot.lane.b32.xlu0 %v7092, 96
    %v7105 = vpop.permute.xlu0 %7104
    %7106 = vrot.lane.b32.xlu0 %v7093, 96
    %v7107 = vpop.permute.xlu0 %7106
    %7108 = vrot.lane.b32.xlu0 %v7094, 96
    %v7109 = vpop.permute.xlu0 %7108
    %7110 = vrot.lane.b32.xlu0 %v7095, 96
    %v7111 = vpop.permute.xlu0 %7110
    %v7116 = vmul.f32 %v7096, %v7105
    %v7117 = vmul.f32 %v7097, %v7107
    %v7118 = vmul.f32 %v7098, %v7109
    %v7119 = vmul.f32 %v7099, %v7111
    %v7120 = vrot.slane %v6930, 7
    %v7121 = vrot.slane %v6931, 7
    %v7122 = vrot.slane %v6932, 7
    %v7123 = vrot.slane %v6933, 7
    %v7128 = vmul.f32 %v7049, %v7120
    %v7129 = vmul.f32 %v7051, %v7121
    %v7130 = vmul.f32 %v7053, %v7122
    %v7131 = vmul.f32 %v7055, %v7123
    %v7132 = vadd.f32 %v7116, %v7128
    %v7133 = vadd.f32 %v7117, %v7129
    %v7134 = vadd.f32 %v7118, %v7130
    %v7135 = vadd.f32 %v7119, %v7131
    %v7140 = vrot.slane %v7132, 6
    %v7141 = vrot.slane %v7133, 5
    %v7142 = vsel %vm758, %v7141, %v7140
    %v7143 = vrot.slane %v7134, 4
    %v7144 = vsel %vm761, %v7143, %v7142
    %v7145 = vrot.slane %v7135, 3
    %v7146 = vsel %vm764, %v7145, %v7144
    %7147 = vrot.lane.b32.xlu0 %v7146, 96
    %v7148 = vpop.permute.xlu0 %7147
    %v7149 = vsel %vm571, %v7148, 0
    %7151 = vmatprep.subr.mxu0 0.0
    %7152 = vmatpush1.msra.mxu0 0.0
    %7153 = vmatprep.subr.mxu0 0.0
    %7154 = vmatpush1.msra.mxu0 0.0
    %7155 = vmatprep.subr.mxu0 0.0
    %7156 = vmatpush1.msra.mxu0 0.0
    %7157 = vmatprep.subr.mxu0 0.0
    %7158 = vmatpush1.msra.mxu0 0.0
    %7159 = vmatprep.subr.mxu0 0.0
    %7160 = vmatpush1.msra.mxu0 0.0
    %7161 = vmatprep.subr.mxu0 0.0
    %7162 = vmatpush1.msra.mxu0 0.0
    %7163 = vmatprep.subr.mxu0 0.0
    %7164 = vmatpush1.msra.mxu0 0.0
    %7165 = vmatprep.subr.mxu0 0.0
    %7166 = vmatpush1.msra.mxu0 0.0
    %7167 = vmatprep.subr.mxu0 0.0
    %7168 = vmatpush1.msra.mxu0 0.0
    %7169 = vmatprep.subr.mxu0 0.0
    %7170 = vmatpush1.msra.mxu0 0.0
    %7171 = vmatprep.subr.mxu0 0.0
    %7172 = vmatpush1.msra.mxu0 0.0
    %7173 = vmatprep.subr.mxu0 0.0
    %7174 = vmatpush1.msra.mxu0 0.0
    %7175 = vmatprep.subr.mxu0 0.0
    %7176 = vmatpush1.msra.mxu0 %v384
    %7177 = vmatprep.subr.mxu0 0.0
    %7178 = vmatpush1.msra.mxu0 %v383
    %7179 = vmatprep.subr.mxu0 0.0
    %7180 = vmatpush1.msra.mxu0 %v382
    %7181 = vmatprep.subr.mxu0 0.0
    %7182 = vmatpush1.msra.mxu0 %v381
    %7183 = vmatprep.subr.mxu0 0.0
    %7184 = vmatpush2.msra.mxu0 0.0
    %7185 = vmatprep.subr.mxu0 0.0
    %7186 = vmatpush2.msra.mxu0 0.0
    %7187 = vmatprep.subr.mxu0 0.0
    %7188 = vmatpush2.msra.mxu0 0.0
    %7189 = vmatprep.subr.mxu0 0.0
    %7190 = vmatpush2.msra.mxu0 0.0
    %7191 = vmatprep.subr.mxu0 0.0
    %7192 = vmatpush2.msra.mxu0 0.0
    %7193 = vmatprep.subr.mxu0 0.0
    %7194 = vmatpush2.msra.mxu0 0.0
    %7195 = vmatprep.subr.mxu0 0.0
    %7196 = vmatpush2.msra.mxu0 0.0
    %7197 = vmatprep.subr.mxu0 0.0
    %7198 = vmatpush2.msra.mxu0 0.0
    %7199 = vmatprep.subr.mxu0 0.0
    %7200 = vmatpush2.msra.mxu0 0.0
    %7201 = vmatprep.subr.mxu0 0.0
    %7202 = vmatpush2.msra.mxu0 0.0
    %7203 = vmatprep.subr.mxu0 0.0
    %7204 = vmatpush2.msra.mxu0 0.0
    %7205 = vmatprep.subr.mxu0 0.0
    %7206 = vmatpush2.msra.mxu0 0.0
    %7207 = vmatprep.subr.mxu0 0.0
    %7208 = vmatpush2.msra.mxu0 0.0
    %7209 = vmatprep.subr.mxu0 0.0
    %7210 = vmatpush2.msra.mxu0 0.0
    %7211 = vmatprep.subr.mxu0 0.0
    %7212 = vmatpush2.msra.mxu0 0.0
    %7213 = vmatprep.subr.mxu0 0.0
    %7214 = vmatpush2.msra.mxu0 0.0
    %7215 = vmatprep.mubr.f32.mxu0 0.0
    %7216 = vmatmul.mubr.f32.gmra.mxu0 %v7149
    %v7217 = vpop.f32.mrf.mxu0
    %v7218 = vadd.f32 %v5754, %v7217
    %v7219 = vpop.f32.mrf.mxu0
    %7220 = vdwg.mxu0
    %v7222 = vrot.slane %v7218, 1
    %v7223 = vrot.slane %v7218, 2
    %v7224 = vrot.slane %v7218, 3
    %v7225 = vrot.slane %v7218, 4
    %v7230 = vadd.f32 %v5732, %v7222
    %v7231 = vadd.f32 %v5737, %v7223
    %v7232 = vadd.f32 %v5742, %v7224
    %v7233 = vadd.f32 %v5747, %v7225
    %v7234 = vxor.u32 %v7230, 2147483648
    %v7235 = vxor.u32 %v7231, 2147483648
    %v7236 = vxor.u32 %v7232, 2147483648
    %v7237 = vxor.u32 %v7233, 2147483648
    %v7238 = vmul.f32 %v7234, 1.442695
    %v7239 = vpow.pop %v7238
    %v7240 = vmul.f32 %v7235, 1.442695
    %v7241 = vpow.pop %v7240
    %v7242 = vmul.f32 %v7236, 1.442695
    %v7243 = vpow.pop %v7242
    %v7244 = vmul.f32 %v7237, 1.442695
    %v7245 = vpow.pop %v7244
    %v7246 = vadd.f32 %v7239, 1.0
    %v7247 = vadd.f32 %v7241, 1.0
    %v7248 = vadd.f32 %v7243, 1.0
    %v7249 = vadd.f32 %v7245, 1.0
    %v7250 = vrcp.pop %v7246
    %v7251 = vmul.f32 1.0, %v7250
    %v7252 = vrcp.pop %v7247
    %v7253 = vmul.f32 1.0, %v7252
    %v7254 = vrcp.pop %v7248
    %v7255 = vmul.f32 1.0, %v7254
    %v7256 = vrcp.pop %v7249
    %v7257 = vmul.f32 1.0, %v7256
    %7258 = vrot.lane.b32.xlu0 %v7222, 64
    %v7259 = vpop.permute.xlu0 %7258
    %7260 = vrot.lane.b32.xlu0 %v7223, 64
    %v7261 = vpop.permute.xlu0 %7260
    %7262 = vrot.lane.b32.xlu0 %v7224, 64
    %v7263 = vpop.permute.xlu0 %7262
    %7264 = vrot.lane.b32.xlu0 %v7225, 64
    %v7265 = vpop.permute.xlu0 %7264
    %v7270 = vmul.f32 %v7251, %v7259
    %v7271 = vmul.f32 %v7253, %v7261
    %v7272 = vmul.f32 %v7255, %v7263
    %v7273 = vmul.f32 %v7257, %v7265
    %7278 = vrot.lane.b32.xlu0 %v7270, 64
    %v7279 = vpop.permute.xlu0 %7278
    %7280 = vrot.lane.b32.xlu0 %v7271, 64
    %v7281 = vpop.permute.xlu0 %7280
    %7282 = vrot.lane.b32.xlu0 %v7272, 64
    %v7283 = vpop.permute.xlu0 %7282
    %7284 = vrot.lane.b32.xlu0 %v7273, 64
    %v7285 = vpop.permute.xlu0 %7284
    %v7290 = vadd.f32 %v5732, %v7279
    %v7291 = vadd.f32 %v5737, %v7281
    %v7292 = vadd.f32 %v5742, %v7283
    %v7293 = vadd.f32 %v5747, %v7285
    %v7294 = vtanh.pop %v7290
    %v7295 = vtanh.pop %v7291
    %v7296 = vtanh.pop %v7292
    %v7297 = vtanh.pop %v7293
    %v7298 = vsub.f32 1.0, %v7251
    %v7299 = vsub.f32 1.0, %v7253
    %v7300 = vsub.f32 1.0, %v7255
    %v7301 = vsub.f32 1.0, %v7257
    %7306 = vrot.lane.b32.xlu0 %v7294, 96
    %v7307 = vpop.permute.xlu0 %7306
    %7308 = vrot.lane.b32.xlu0 %v7295, 96
    %v7309 = vpop.permute.xlu0 %7308
    %7310 = vrot.lane.b32.xlu0 %v7296, 96
    %v7311 = vpop.permute.xlu0 %7310
    %7312 = vrot.lane.b32.xlu0 %v7297, 96
    %v7313 = vpop.permute.xlu0 %7312
    %v7318 = vmul.f32 %v7298, %v7307
    %v7319 = vmul.f32 %v7299, %v7309
    %v7320 = vmul.f32 %v7300, %v7311
    %v7321 = vmul.f32 %v7301, %v7313
    %v7322 = vrot.slane %v7132, 7
    %v7323 = vrot.slane %v7133, 7
    %v7324 = vrot.slane %v7134, 7
    %v7325 = vrot.slane %v7135, 7
    %v7330 = vmul.f32 %v7251, %v7322
    %v7331 = vmul.f32 %v7253, %v7323
    %v7332 = vmul.f32 %v7255, %v7324
    %v7333 = vmul.f32 %v7257, %v7325
    %v7334 = vadd.f32 %v7318, %v7330
    %v7335 = vadd.f32 %v7319, %v7331
    %v7336 = vadd.f32 %v7320, %v7332
    %v7337 = vadd.f32 %v7321, %v7333
    %v7338 = vsel %vm2160, %v5930, %v6129
    %v7339 = vsel %vm2160, %v5931, %v6130
    %v7340 = vsel %vm2160, %v5932, %v6131
    %v7341 = vsel %vm2160, %v5933, %v6132
    %v7342 = vsel %vm476, %v7338, %v6328
    %v7343 = vsel %vm476, %v7339, %v6329
    %v7344 = vsel %vm476, %v7340, %v6330
    %v7345 = vsel %vm476, %v7341, %v6331
    %v7346 = vsel %vm2169, %v7342, %v6527
    %v7347 = vsel %vm2169, %v7343, %v6528
    %v7348 = vsel %vm2169, %v7344, %v6529
    %v7349 = vsel %vm2169, %v7345, %v6530
    %v7350 = vsel %vm2174, %v7346, %v6728
    %v7351 = vsel %vm2174, %v7347, %v6729
    %v7352 = vsel %vm2174, %v7348, %v6730
    %v7353 = vsel %vm2174, %v7349, %v6731
    %v7354 = vsel %vm2179, %v7350, %v6930
    %v7355 = vsel %vm2179, %v7351, %v6931
    %v7356 = vsel %vm2179, %v7352, %v6932
    %v7357 = vsel %vm2179, %v7353, %v6933
    %v7358 = vsel %vm2184, %v7354, %v7132
    %v7359 = vsel %vm2184, %v7355, %v7133
    %v7360 = vsel %vm2184, %v7356, %v7134
    %v7361 = vsel %vm2184, %v7357, %v7135
    %v7362 = vsel %vm2189, %v7358, %v7334
    %v7363 = vsel %vm2189, %v7359, %v7335
    %v7364 = vsel %vm2189, %v7360, %v7336
    %v7365 = vsel %vm2189, %v7361, %v7337
    %v7367 = vlaneseq
    %v7368 = vshrl.u32 %v7367, 7
    %v7369 = vsub.s32 0, %v7368
    %v7370 = vrot.slane %v391, %v7369
    %7376 = vrot.lane.b32.xlu0 %v3917, 96
    %v7377 = vpop.permute.xlu0 %7376
    %7378 = vrot.lane.b32.xlu0 %v3918, 96
    %v7379 = vpop.permute.xlu0 %7378
    %7380 = vrot.lane.b32.xlu0 %v3919, 96
    %v7381 = vpop.permute.xlu0 %7380
    %7382 = vrot.lane.b32.xlu0 %v3920, 96
    %v7383 = vpop.permute.xlu0 %7382
    %v7384 = vsel %vm571, %v7377, 0
    %v7386 = vsel %vm571, %v7379, 0
    %v7388 = vsel %vm571, %v7381, 0
    %v7390 = vsel %vm571, %v7383, 0
    %7392 = vmatprep.subr.mxu0 0.0
    %7393 = vmatpush1.msra.mxu0 0.0
    %7394 = vmatprep.subr.mxu0 0.0
    %7395 = vmatpush1.msra.mxu0 0.0
    %7396 = vmatprep.subr.mxu0 0.0
    %7397 = vmatpush1.msra.mxu0 0.0
    %7398 = vmatprep.subr.mxu0 0.0
    %7399 = vmatpush1.msra.mxu0 0.0
    %7400 = vmatprep.subr.mxu0 0.0
    %7401 = vmatpush1.msra.mxu0 0.0
    %7402 = vmatprep.subr.mxu0 0.0
    %7403 = vmatpush1.msra.mxu0 0.0
    %7404 = vmatprep.subr.mxu0 0.0
    %7405 = vmatpush1.msra.mxu0 0.0
    %7406 = vmatprep.subr.mxu0 0.0
    %7407 = vmatpush1.msra.mxu0 0.0
    %7408 = vmatprep.subr.mxu0 0.0
    %7409 = vmatpush1.msra.mxu0 0.0
    %7410 = vmatprep.subr.mxu0 0.0
    %7411 = vmatpush1.msra.mxu0 0.0
    %7412 = vmatprep.subr.mxu0 0.0
    %7413 = vmatpush1.msra.mxu0 0.0
    %7414 = vmatprep.subr.mxu0 0.0
    %7415 = vmatpush1.msra.mxu0 0.0
    %7416 = vmatprep.subr.mxu0 0.0
    %7417 = vmatpush1.msra.mxu0 %v390
    %7418 = vmatprep.subr.mxu0 0.0
    %7419 = vmatpush1.msra.mxu0 %v389
    %7420 = vmatprep.subr.mxu0 0.0
    %7421 = vmatpush1.msra.mxu0 %v388
    %7422 = vmatprep.subr.mxu0 0.0
    %7423 = vmatpush1.msra.mxu0 %v387
    %7424 = vmatprep.subr.mxu0 0.0
    %7425 = vmatpush2.msra.mxu0 0.0
    %7426 = vmatprep.subr.mxu0 0.0
    %7427 = vmatpush2.msra.mxu0 0.0
    %7428 = vmatprep.subr.mxu0 0.0
    %7429 = vmatpush2.msra.mxu0 0.0
    %7430 = vmatprep.subr.mxu0 0.0
    %7431 = vmatpush2.msra.mxu0 0.0
    %7432 = vmatprep.subr.mxu0 0.0
    %7433 = vmatpush2.msra.mxu0 0.0
    %7434 = vmatprep.subr.mxu0 0.0
    %7435 = vmatpush2.msra.mxu0 0.0
    %7436 = vmatprep.subr.mxu0 0.0
    %7437 = vmatpush2.msra.mxu0 0.0
    %7438 = vmatprep.subr.mxu0 0.0
    %7439 = vmatpush2.msra.mxu0 0.0
    %7440 = vmatprep.subr.mxu0 0.0
    %7441 = vmatpush2.msra.mxu0 0.0
    %7442 = vmatprep.subr.mxu0 0.0
    %7443 = vmatpush2.msra.mxu0 0.0
    %7444 = vmatprep.subr.mxu0 0.0
    %7445 = vmatpush2.msra.mxu0 0.0
    %7446 = vmatprep.subr.mxu0 0.0
    %7447 = vmatpush2.msra.mxu0 0.0
    %7448 = vmatprep.subr.mxu0 0.0
    %7449 = vmatpush2.msra.mxu0 0.0
    %7450 = vmatprep.subr.mxu0 0.0
    %7451 = vmatpush2.msra.mxu0 0.0
    %7452 = vmatprep.subr.mxu0 0.0
    %7453 = vmatpush2.msra.mxu0 0.0
    %7454 = vmatprep.subr.mxu0 0.0
    %7455 = vmatpush2.msra.mxu0 0.0
    %7456 = vmatprep.mubr.f32.mxu0 0.0
    %7457 = vmatmul.mubr.f32.gmra.mxu0 %v7384
    %v7458 = vpop.f32.mrf.mxu0
    %v7459 = vadd.f32 %v7370, %v7458
    %v7460 = vpop.f32.mrf.mxu0
    %7461 = vmatprep.mubr.f32.mxu0 0.0
    %7462 = vmatmul.mubr.f32.gmra.mxu0 %v7386
    %v7463 = vpop.f32.mrf.mxu0
    %v7464 = vadd.f32 %v7370, %v7463
    %v7465 = vpop.f32.mrf.mxu0
    %7466 = vmatprep.mubr.f32.mxu0 0.0
    %7467 = vmatmul.mubr.f32.gmra.mxu0 %v7388
    %v7468 = vpop.f32.mrf.mxu0
    %v7469 = vadd.f32 %v7370, %v7468
    %v7470 = vpop.f32.mrf.mxu0
    %7471 = vmatprep.mubr.f32.mxu0 0.0
    %7472 = vmatmul.mubr.f32.gmra.mxu0 %v7390
    %v7473 = vpop.f32.mrf.mxu0
    %v7474 = vadd.f32 %v7370, %v7473
    %v7475 = vpop.f32.mrf.mxu0
    %7476 = vdwg.mxu0
    %7478 = vrot.lane.b32.xlu0 %v7459, 96
    %v7479 = vpop.permute.xlu0 %7478
    %v7480 = vsel %vm571, %v7459, 0
    %v7482 = vsel %vm571, %v7479, 0
    %7484 = vmatprep.subr.mxu0 0.0
    %7485 = vmatpush1.xpose.msra.mxu0 0.0
    %7486 = vmatprep.subr.mxu0 0.0
    %7487 = vmatpush1.xpose.msra.mxu0 0.0
    %7488 = vmatprep.subr.mxu0 0.0
    %7489 = vmatpush1.xpose.msra.mxu0 0.0
    %7490 = vmatprep.subr.mxu0 0.0
    %7491 = vmatpush1.xpose.msra.mxu0 0.0
    %7492 = vmatprep.subr.mxu0 0.0
    %7493 = vmatpush1.xpose.msra.mxu0 0.0
    %7494 = vmatprep.subr.mxu0 0.0
    %7495 = vmatpush1.xpose.msra.mxu0 0.0
    %7496 = vmatprep.subr.mxu0 0.0
    %7497 = vmatpush1.xpose.msra.mxu0 0.0
    %7498 = vmatprep.subr.mxu0 0.0
    %7499 = vmatpush1.xpose.msra.mxu0 0.0
    %7500 = vmatprep.subr.mxu0 0.0
    %7501 = vmatpush1.xpose.msra.mxu0 0.0
    %7502 = vmatprep.subr.mxu0 0.0
    %7503 = vmatpush1.xpose.msra.mxu0 0.0
    %7504 = vmatprep.subr.mxu0 0.0
    %7505 = vmatpush1.xpose.msra.mxu0 0.0
    %7506 = vmatprep.subr.mxu0 0.0
    %7507 = vmatpush1.xpose.msra.mxu0 0.0
    %7508 = vmatprep.subr.mxu0 0.0
    %7509 = vmatpush1.xpose.msra.mxu0 0.0
    %7510 = vmatprep.subr.mxu0 0.0
    %7511 = vmatpush1.xpose.msra.mxu0 0.0
    %7512 = vmatprep.subr.mxu0 0.0
    %7513 = vmatpush1.xpose.msra.mxu0 0.0
    %7514 = vmatprep.subr.mxu0 0.0
    %7515 = vmatpush1.xpose.msra.mxu0 %v7482
    %7516 = vmatprep.subr.mxu0 0.0
    %7517 = vmatpush2.xpose.msra.mxu0 0.0
    %7518 = vmatprep.subr.mxu0 0.0
    %7519 = vmatpush2.xpose.msra.mxu0 0.0
    %7520 = vmatprep.subr.mxu0 0.0
    %7521 = vmatpush2.xpose.msra.mxu0 0.0
    %7522 = vmatprep.subr.mxu0 0.0
    %7523 = vmatpush2.xpose.msra.mxu0 0.0
    %7524 = vmatprep.subr.mxu0 0.0
    %7525 = vmatpush2.xpose.msra.mxu0 0.0
    %7526 = vmatprep.subr.mxu0 0.0
    %7527 = vmatpush2.xpose.msra.mxu0 0.0
    %7528 = vmatprep.subr.mxu0 0.0
    %7529 = vmatpush2.xpose.msra.mxu0 0.0
    %7530 = vmatprep.subr.mxu0 0.0
    %7531 = vmatpush2.xpose.msra.mxu0 0.0
    %7532 = vmatprep.subr.mxu0 0.0
    %7533 = vmatpush2.xpose.msra.mxu0 0.0
    %7534 = vmatprep.subr.mxu0 0.0
    %7535 = vmatpush2.xpose.msra.mxu0 0.0
    %7536 = vmatprep.subr.mxu0 0.0
    %7537 = vmatpush2.xpose.msra.mxu0 0.0
    %7538 = vmatprep.subr.mxu0 0.0
    %7539 = vmatpush2.xpose.msra.mxu0 0.0
    %7540 = vmatprep.subr.mxu0 0.0
    %7541 = vmatpush2.xpose.msra.mxu0 0.0
    %7542 = vmatprep.subr.mxu0 0.0
    %7543 = vmatpush2.xpose.msra.mxu0 0.0
    %7544 = vmatprep.subr.mxu0 0.0
    %7545 = vmatpush2.xpose.msra.mxu0 0.0
    %7546 = vmatprep.subr.mxu0 0.0
    %7547 = vmatpush2.xpose.msra.mxu0 0.0
    %7548 = vmatprep.mubr.f32.mxu0 0.0
    %7549 = vmatmul.mubr.f32.gmra.mxu0 %v7480
    %v7550 = vpop.f32.mrf.mxu0
    %v7551 = vadd.f32 0.0, %v7550
    %v7552 = vpop.f32.mrf.mxu0
    %7553 = vdwg.mxu0
    %7555 = vrot.lane.b32.xlu0 %v7464, 96
    %v7556 = vpop.permute.xlu0 %7555
    %v7557 = vsel %vm571, %v7464, 0
    %v7559 = vsel %vm571, %v7556, 0
    %7561 = vmatprep.subr.mxu0 0.0
    %7562 = vmatpush1.xpose.msra.mxu0 0.0
    %7563 = vmatprep.subr.mxu0 0.0
    %7564 = vmatpush1.xpose.msra.mxu0 0.0
    %7565 = vmatprep.subr.mxu0 0.0
    %7566 = vmatpush1.xpose.msra.mxu0 0.0
    %7567 = vmatprep.subr.mxu0 0.0
    %7568 = vmatpush1.xpose.msra.mxu0 0.0
    %7569 = vmatprep.subr.mxu0 0.0
    %7570 = vmatpush1.xpose.msra.mxu0 0.0
    %7571 = vmatprep.subr.mxu0 0.0
    %7572 = vmatpush1.xpose.msra.mxu0 0.0
    %7573 = vmatprep.subr.mxu0 0.0
    %7574 = vmatpush1.xpose.msra.mxu0 0.0
    %7575 = vmatprep.subr.mxu0 0.0
    %7576 = vmatpush1.xpose.msra.mxu0 0.0
    %7577 = vmatprep.subr.mxu0 0.0
    %7578 = vmatpush1.xpose.msra.mxu0 0.0
    %7579 = vmatprep.subr.mxu0 0.0
    %7580 = vmatpush1.xpose.msra.mxu0 0.0
    %7581 = vmatprep.subr.mxu0 0.0
    %7582 = vmatpush1.xpose.msra.mxu0 0.0
    %7583 = vmatprep.subr.mxu0 0.0
    %7584 = vmatpush1.xpose.msra.mxu0 0.0
    %7585 = vmatprep.subr.mxu0 0.0
    %7586 = vmatpush1.xpose.msra.mxu0 0.0
    %7587 = vmatprep.subr.mxu0 0.0
    %7588 = vmatpush1.xpose.msra.mxu0 0.0
    %7589 = vmatprep.subr.mxu0 0.0
    %7590 = vmatpush1.xpose.msra.mxu0 0.0
    %7591 = vmatprep.subr.mxu0 0.0
    %7592 = vmatpush1.xpose.msra.mxu0 %v7559
    %7593 = vmatprep.subr.mxu0 0.0
    %7594 = vmatpush2.xpose.msra.mxu0 0.0
    %7595 = vmatprep.subr.mxu0 0.0
    %7596 = vmatpush2.xpose.msra.mxu0 0.0
    %7597 = vmatprep.subr.mxu0 0.0
    %7598 = vmatpush2.xpose.msra.mxu0 0.0
    %7599 = vmatprep.subr.mxu0 0.0
    %7600 = vmatpush2.xpose.msra.mxu0 0.0
    %7601 = vmatprep.subr.mxu0 0.0
    %7602 = vmatpush2.xpose.msra.mxu0 0.0
    %7603 = vmatprep.subr.mxu0 0.0
    %7604 = vmatpush2.xpose.msra.mxu0 0.0
    %7605 = vmatprep.subr.mxu0 0.0
    %7606 = vmatpush2.xpose.msra.mxu0 0.0
    %7607 = vmatprep.subr.mxu0 0.0
    %7608 = vmatpush2.xpose.msra.mxu0 0.0
    %7609 = vmatprep.subr.mxu0 0.0
    %7610 = vmatpush2.xpose.msra.mxu0 0.0
    %7611 = vmatprep.subr.mxu0 0.0
    %7612 = vmatpush2.xpose.msra.mxu0 0.0
    %7613 = vmatprep.subr.mxu0 0.0
    %7614 = vmatpush2.xpose.msra.mxu0 0.0
    %7615 = vmatprep.subr.mxu0 0.0
    %7616 = vmatpush2.xpose.msra.mxu0 0.0
    %7617 = vmatprep.subr.mxu0 0.0
    %7618 = vmatpush2.xpose.msra.mxu0 0.0
    %7619 = vmatprep.subr.mxu0 0.0
    %7620 = vmatpush2.xpose.msra.mxu0 0.0
    %7621 = vmatprep.subr.mxu0 0.0
    %7622 = vmatpush2.xpose.msra.mxu0 0.0
    %7623 = vmatprep.subr.mxu0 0.0
    %7624 = vmatpush2.xpose.msra.mxu0 0.0
    %7625 = vmatprep.mubr.f32.mxu0 0.0
    %7626 = vmatmul.mubr.f32.gmra.mxu0 %v7557
    %v7627 = vpop.f32.mrf.mxu0
    %v7628 = vadd.f32 0.0, %v7627
    %v7629 = vpop.f32.mrf.mxu0
    %7630 = vdwg.mxu0
    %7632 = vrot.lane.b32.xlu0 %v7469, 96
    %v7633 = vpop.permute.xlu0 %7632
    %v7634 = vsel %vm571, %v7469, 0
    %v7636 = vsel %vm571, %v7633, 0
    %7638 = vmatprep.subr.mxu0 0.0
    %7639 = vmatpush1.xpose.msra.mxu0 0.0
    %7640 = vmatprep.subr.mxu0 0.0
    %7641 = vmatpush1.xpose.msra.mxu0 0.0
    %7642 = vmatprep.subr.mxu0 0.0
    %7643 = vmatpush1.xpose.msra.mxu0 0.0
    %7644 = vmatprep.subr.mxu0 0.0
    %7645 = vmatpush1.xpose.msra.mxu0 0.0
    %7646 = vmatprep.subr.mxu0 0.0
    %7647 = vmatpush1.xpose.msra.mxu0 0.0
    %7648 = vmatprep.subr.mxu0 0.0
    %7649 = vmatpush1.xpose.msra.mxu0 0.0
    %7650 = vmatprep.subr.mxu0 0.0
    %7651 = vmatpush1.xpose.msra.mxu0 0.0
    %7652 = vmatprep.subr.mxu0 0.0
    %7653 = vmatpush1.xpose.msra.mxu0 0.0
    %7654 = vmatprep.subr.mxu0 0.0
    %7655 = vmatpush1.xpose.msra.mxu0 0.0
    %7656 = vmatprep.subr.mxu0 0.0
    %7657 = vmatpush1.xpose.msra.mxu0 0.0
    %7658 = vmatprep.subr.mxu0 0.0
    %7659 = vmatpush1.xpose.msra.mxu0 0.0
    %7660 = vmatprep.subr.mxu0 0.0
    %7661 = vmatpush1.xpose.msra.mxu0 0.0
    %7662 = vmatprep.subr.mxu0 0.0
    %7663 = vmatpush1.xpose.msra.mxu0 0.0
    %7664 = vmatprep.subr.mxu0 0.0
    %7665 = vmatpush1.xpose.msra.mxu0 0.0
    %7666 = vmatprep.subr.mxu0 0.0
    %7667 = vmatpush1.xpose.msra.mxu0 0.0
    %7668 = vmatprep.subr.mxu0 0.0
    %7669 = vmatpush1.xpose.msra.mxu0 %v7636
    %7670 = vmatprep.subr.mxu0 0.0
    %7671 = vmatpush2.xpose.msra.mxu0 0.0
    %7672 = vmatprep.subr.mxu0 0.0
    %7673 = vmatpush2.xpose.msra.mxu0 0.0
    %7674 = vmatprep.subr.mxu0 0.0
    %7675 = vmatpush2.xpose.msra.mxu0 0.0
    %7676 = vmatprep.subr.mxu0 0.0
    %7677 = vmatpush2.xpose.msra.mxu0 0.0
    %7678 = vmatprep.subr.mxu0 0.0
    %7679 = vmatpush2.xpose.msra.mxu0 0.0
    %7680 = vmatprep.subr.mxu0 0.0
    %7681 = vmatpush2.xpose.msra.mxu0 0.0
    %7682 = vmatprep.subr.mxu0 0.0
    %7683 = vmatpush2.xpose.msra.mxu0 0.0
    %7684 = vmatprep.subr.mxu0 0.0
    %7685 = vmatpush2.xpose.msra.mxu0 0.0
    %7686 = vmatprep.subr.mxu0 0.0
    %7687 = vmatpush2.xpose.msra.mxu0 0.0
    %7688 = vmatprep.subr.mxu0 0.0
    %7689 = vmatpush2.xpose.msra.mxu0 0.0
    %7690 = vmatprep.subr.mxu0 0.0
    %7691 = vmatpush2.xpose.msra.mxu0 0.0
    %7692 = vmatprep.subr.mxu0 0.0
    %7693 = vmatpush2.xpose.msra.mxu0 0.0
    %7694 = vmatprep.subr.mxu0 0.0
    %7695 = vmatpush2.xpose.msra.mxu0 0.0
    %7696 = vmatprep.subr.mxu0 0.0
    %7697 = vmatpush2.xpose.msra.mxu0 0.0
    %7698 = vmatprep.subr.mxu0 0.0
    %7699 = vmatpush2.xpose.msra.mxu0 0.0
    %7700 = vmatprep.subr.mxu0 0.0
    %7701 = vmatpush2.xpose.msra.mxu0 0.0
    %7702 = vmatprep.mubr.f32.mxu0 0.0
    %7703 = vmatmul.mubr.f32.gmra.mxu0 %v7634
    %v7704 = vpop.f32.mrf.mxu0
    %v7705 = vadd.f32 0.0, %v7704
    %v7706 = vpop.f32.mrf.mxu0
    %7707 = vdwg.mxu0
    %7709 = vrot.lane.b32.xlu0 %v7474, 96
    %v7710 = vpop.permute.xlu0 %7709
    %v7711 = vsel %vm571, %v7474, 0
    %v7713 = vsel %vm571, %v7710, 0
    %7715 = vmatprep.subr.mxu0 0.0
    %7716 = vmatpush1.xpose.msra.mxu0 0.0
    %7717 = vmatprep.subr.mxu0 0.0
    %7718 = vmatpush1.xpose.msra.mxu0 0.0
    %7719 = vmatprep.subr.mxu0 0.0
    %7720 = vmatpush1.xpose.msra.mxu0 0.0
    %7721 = vmatprep.subr.mxu0 0.0
    %7722 = vmatpush1.xpose.msra.mxu0 0.0
    %7723 = vmatprep.subr.mxu0 0.0
    %7724 = vmatpush1.xpose.msra.mxu0 0.0
    %7725 = vmatprep.subr.mxu0 0.0
    %7726 = vmatpush1.xpose.msra.mxu0 0.0
    %7727 = vmatprep.subr.mxu0 0.0
    %7728 = vmatpush1.xpose.msra.mxu0 0.0
    %7729 = vmatprep.subr.mxu0 0.0
    %7730 = vmatpush1.xpose.msra.mxu0 0.0
    %7731 = vmatprep.subr.mxu0 0.0
    %7732 = vmatpush1.xpose.msra.mxu0 0.0
    %7733 = vmatprep.subr.mxu0 0.0
    %7734 = vmatpush1.xpose.msra.mxu0 0.0
    %7735 = vmatprep.subr.mxu0 0.0
    %7736 = vmatpush1.xpose.msra.mxu0 0.0
    %7737 = vmatprep.subr.mxu0 0.0
    %7738 = vmatpush1.xpose.msra.mxu0 0.0
    %7739 = vmatprep.subr.mxu0 0.0
    %7740 = vmatpush1.xpose.msra.mxu0 0.0
    %7741 = vmatprep.subr.mxu0 0.0
    %7742 = vmatpush1.xpose.msra.mxu0 0.0
    %7743 = vmatprep.subr.mxu0 0.0
    %7744 = vmatpush1.xpose.msra.mxu0 0.0
    %7745 = vmatprep.subr.mxu0 0.0
    %7746 = vmatpush1.xpose.msra.mxu0 %v7713
    %7747 = vmatprep.subr.mxu0 0.0
    %7748 = vmatpush2.xpose.msra.mxu0 0.0
    %7749 = vmatprep.subr.mxu0 0.0
    %7750 = vmatpush2.xpose.msra.mxu0 0.0
    %7751 = vmatprep.subr.mxu0 0.0
    %7752 = vmatpush2.xpose.msra.mxu0 0.0
    %7753 = vmatprep.subr.mxu0 0.0
    %7754 = vmatpush2.xpose.msra.mxu0 0.0
    %7755 = vmatprep.subr.mxu0 0.0
    %7756 = vmatpush2.xpose.msra.mxu0 0.0
    %7757 = vmatprep.subr.mxu0 0.0
    %7758 = vmatpush2.xpose.msra.mxu0 0.0
    %7759 = vmatprep.subr.mxu0 0.0
    %7760 = vmatpush2.xpose.msra.mxu0 0.0
    %7761 = vmatprep.subr.mxu0 0.0
    %7762 = vmatpush2.xpose.msra.mxu0 0.0
    %7763 = vmatprep.subr.mxu0 0.0
    %7764 = vmatpush2.xpose.msra.mxu0 0.0
    %7765 = vmatprep.subr.mxu0 0.0
    %7766 = vmatpush2.xpose.msra.mxu0 0.0
    %7767 = vmatprep.subr.mxu0 0.0
    %7768 = vmatpush2.xpose.msra.mxu0 0.0
    %7769 = vmatprep.subr.mxu0 0.0
    %7770 = vmatpush2.xpose.msra.mxu0 0.0
    %7771 = vmatprep.subr.mxu0 0.0
    %7772 = vmatpush2.xpose.msra.mxu0 0.0
    %7773 = vmatprep.subr.mxu0 0.0
    %7774 = vmatpush2.xpose.msra.mxu0 0.0
    %7775 = vmatprep.subr.mxu0 0.0
    %7776 = vmatpush2.xpose.msra.mxu0 0.0
    %7777 = vmatprep.subr.mxu0 0.0
    %7778 = vmatpush2.xpose.msra.mxu0 0.0
    %7779 = vmatprep.mubr.f32.mxu0 0.0
    %7780 = vmatmul.mubr.f32.gmra.mxu0 %v7711
    %v7781 = vpop.f32.mrf.mxu0
    %v7782 = vadd.f32 0.0, %v7781
    %v7783 = vpop.f32.mrf.mxu0
    %7784 = vdwg.mxu0
    %v7785 = vmul.f32 %v7551, 0.17677669
    %v7786 = vmul.f32 %v7628, 0.17677669
    %v7787 = vmul.f32 %v7705, 0.17677669
    %v7788 = vmul.f32 %v7782, 0.17677669
    %vm7789 = vcmask 64512
    %v7790 = vsel %vm7789, %v7785, -inf
    %7791 = vmax.xlane.f32.xlu0 %v7790
    %v7792 = vpop.xlane.xlu0 %7791
    %v7793 = vsel %vm7789, %v7786, -inf
    %7794 = vmax.xlane.f32.xlu0 %v7793
    %v7795 = vpop.xlane.xlu0 %7794
    %v7796 = vsel %vm7789, %v7787, -inf
    %7797 = vmax.xlane.f32.xlu0 %v7796
    %v7798 = vpop.xlane.xlu0 %7797
    %v7799 = vsel %vm7789, %v7788, -inf
    %7800 = vmax.xlane.f32.xlu0 %v7799
    %v7801 = vpop.xlane.xlu0 %7800
    %v7802 = vsub.f32 %v7785, %v7792
    %v7803 = vsub.f32 %v7786, %v7795
    %v7804 = vsub.f32 %v7787, %v7798
    %v7805 = vsub.f32 %v7788, %v7801
    %v7806 = vmul.f32 %v7802, 1.442695
    %v7807 = vpow.pop %v7806
    %v7808 = vmul.f32 %v7803, 1.442695
    %v7809 = vpow.pop %v7808
    %v7810 = vmul.f32 %v7804, 1.442695
    %v7811 = vpow.pop %v7810
    %v7812 = vmul.f32 %v7805, 1.442695
    %v7813 = vpow.pop %v7812
    %v7814 = vsel %vm7789, %v7807, 0.0
    %7815 = vadd.xlane.f32.xlu0 %v7814
    %v7816 = vpop.xlane.xlu0 %7815
    %v7817 = vsel %vm7789, %v7809, 0.0
    %7818 = vadd.xlane.f32.xlu0 %v7817
    %v7819 = vpop.xlane.xlu0 %7818
    %v7820 = vsel %vm7789, %v7811, 0.0
    %7821 = vadd.xlane.f32.xlu0 %v7820
    %v7822 = vpop.xlane.xlu0 %7821
    %v7823 = vsel %vm7789, %v7813, 0.0
    %7824 = vadd.xlane.f32.xlu0 %v7823
    %v7825 = vpop.xlane.xlu0 %7824
    %v7826 = vrcp.pop %v7816
    %v7827 = vrcp.pop %v7819
    %v7828 = vrcp.pop %v7822
    %v7829 = vrcp.pop %v7825
    %v7830 = vmul.f32 %v7807, %v7826
    %v7831 = vmul.f32 %v7809, %v7827
    %v7832 = vmul.f32 %v7811, %v7828
    %v7833 = vmul.f32 %v7813, %v7829
    %7834 = vrot.lane.b32.xlu0 %v7459, 64
    %v7835 = vpop.permute.xlu0 %7834
    %v7838 = vsel %vm7789, %v7830, 0
    %7840 = vmatprep.subr.mxu0 0.0
    %7841 = vmatpush1.msra.mxu0 0.0
    %7842 = vmatprep.subr.mxu0 0.0
    %7843 = vmatpush1.msra.mxu0 0.0
    %7844 = vmatprep.subr.mxu0 0.0
    %7845 = vmatpush1.msra.mxu0 0.0
    %7846 = vmatprep.subr.mxu0 0.0
    %7847 = vmatpush1.msra.mxu0 0.0
    %7848 = vmatprep.subr.mxu0 0.0
    %7849 = vmatpush1.msra.mxu0 0.0
    %7850 = vmatprep.subr.mxu0 0.0
    %7851 = vmatpush1.msra.mxu0 0.0
    %7852 = vmatprep.subr.mxu0 0.0
    %7853 = vmatpush1.msra.mxu0 0.0
    %7854 = vmatprep.subr.mxu0 0.0
    %7855 = vmatpush1.msra.mxu0 0.0
    %7856 = vmatprep.subr.mxu0 0.0
    %7857 = vmatpush1.msra.mxu0 0.0
    %7858 = vmatprep.subr.mxu0 0.0
    %7859 = vmatpush1.msra.mxu0 0.0
    %7860 = vmatprep.subr.mxu0 0.0
    %7861 = vmatpush1.msra.mxu0 0.0
    %7862 = vmatprep.subr.mxu0 0.0
    %7863 = vmatpush1.msra.mxu0 0.0
    %7864 = vmatprep.subr.mxu0 0.0
    %7865 = vmatpush1.msra.mxu0 0.0
    %7866 = vmatprep.subr.mxu0 0.0
    %7867 = vmatpush1.msra.mxu0 0.0
    %7868 = vmatprep.subr.mxu0 0.0
    %7869 = vmatpush1.msra.mxu0 0.0
    %7870 = vmatprep.subr.mxu0 0.0
    %7871 = vmatpush1.msra.mxu0 %v7835
    %7872 = vmatprep.subr.mxu0 0.0
    %7873 = vmatpush2.msra.mxu0 0.0
    %7874 = vmatprep.subr.mxu0 0.0
    %7875 = vmatpush2.msra.mxu0 0.0
    %7876 = vmatprep.subr.mxu0 0.0
    %7877 = vmatpush2.msra.mxu0 0.0
    %7878 = vmatprep.subr.mxu0 0.0
    %7879 = vmatpush2.msra.mxu0 0.0
    %7880 = vmatprep.subr.mxu0 0.0
    %7881 = vmatpush2.msra.mxu0 0.0
    %7882 = vmatprep.subr.mxu0 0.0
    %7883 = vmatpush2.msra.mxu0 0.0
    %7884 = vmatprep.subr.mxu0 0.0
    %7885 = vmatpush2.msra.mxu0 0.0
    %7886 = vmatprep.subr.mxu0 0.0
    %7887 = vmatpush2.msra.mxu0 0.0
    %7888 = vmatprep.subr.mxu0 0.0
    %7889 = vmatpush2.msra.mxu0 0.0
    %7890 = vmatprep.subr.mxu0 0.0
    %7891 = vmatpush2.msra.mxu0 0.0
    %7892 = vmatprep.subr.mxu0 0.0
    %7893 = vmatpush2.msra.mxu0 0.0
    %7894 = vmatprep.subr.mxu0 0.0
    %7895 = vmatpush2.msra.mxu0 0.0
    %7896 = vmatprep.subr.mxu0 0.0
    %7897 = vmatpush2.msra.mxu0 0.0
    %7898 = vmatprep.subr.mxu0 0.0
    %7899 = vmatpush2.msra.mxu0 0.0
    %7900 = vmatprep.subr.mxu0 0.0
    %7901 = vmatpush2.msra.mxu0 0.0
    %7902 = vmatprep.subr.mxu0 0.0
    %7903 = vmatpush2.msra.mxu0 0.0
    %7904 = vmatprep.mubr.f32.mxu0 0.0
    %7905 = vmatmul.mubr.f32.gmra.mxu0 %v7838
    %v7906 = vpop.f32.mrf.mxu0
    %v7907 = vadd.f32 0.0, %v7906
    %v7908 = vpop.f32.mrf.mxu0
    %7909 = vdwg.mxu0
    %7910 = vrot.lane.b32.xlu0 %v7464, 64
    %v7911 = vpop.permute.xlu0 %7910
    %v7914 = vsel %vm7789, %v7831, 0
    %7916 = vmatprep.subr.mxu0 0.0
    %7917 = vmatpush1.msra.mxu0 0.0
    %7918 = vmatprep.subr.mxu0 0.0
    %7919 = vmatpush1.msra.mxu0 0.0
    %7920 = vmatprep.subr.mxu0 0.0
    %7921 = vmatpush1.msra.mxu0 0.0
    %7922 = vmatprep.subr.mxu0 0.0
    %7923 = vmatpush1.msra.mxu0 0.0
    %7924 = vmatprep.subr.mxu0 0.0
    %7925 = vmatpush1.msra.mxu0 0.0
    %7926 = vmatprep.subr.mxu0 0.0
    %7927 = vmatpush1.msra.mxu0 0.0
    %7928 = vmatprep.subr.mxu0 0.0
    %7929 = vmatpush1.msra.mxu0 0.0
    %7930 = vmatprep.subr.mxu0 0.0
    %7931 = vmatpush1.msra.mxu0 0.0
    %7932 = vmatprep.subr.mxu0 0.0
    %7933 = vmatpush1.msra.mxu0 0.0
    %7934 = vmatprep.subr.mxu0 0.0
    %7935 = vmatpush1.msra.mxu0 0.0
    %7936 = vmatprep.subr.mxu0 0.0
    %7937 = vmatpush1.msra.mxu0 0.0
    %7938 = vmatprep.subr.mxu0 0.0
    %7939 = vmatpush1.msra.mxu0 0.0
    %7940 = vmatprep.subr.mxu0 0.0
    %7941 = vmatpush1.msra.mxu0 0.0
    %7942 = vmatprep.subr.mxu0 0.0
    %7943 = vmatpush1.msra.mxu0 0.0
    %7944 = vmatprep.subr.mxu0 0.0
    %7945 = vmatpush1.msra.mxu0 0.0
    %7946 = vmatprep.subr.mxu0 0.0
    %7947 = vmatpush1.msra.mxu0 %v7911
    %7948 = vmatprep.subr.mxu0 0.0
    %7949 = vmatpush2.msra.mxu0 0.0
    %7950 = vmatprep.subr.mxu0 0.0
    %7951 = vmatpush2.msra.mxu0 0.0
    %7952 = vmatprep.subr.mxu0 0.0
    %7953 = vmatpush2.msra.mxu0 0.0
    %7954 = vmatprep.subr.mxu0 0.0
    %7955 = vmatpush2.msra.mxu0 0.0
    %7956 = vmatprep.subr.mxu0 0.0
    %7957 = vmatpush2.msra.mxu0 0.0
    %7958 = vmatprep.subr.mxu0 0.0
    %7959 = vmatpush2.msra.mxu0 0.0
    %7960 = vmatprep.subr.mxu0 0.0
    %7961 = vmatpush2.msra.mxu0 0.0
    %7962 = vmatprep.subr.mxu0 0.0
    %7963 = vmatpush2.msra.mxu0 0.0
    %7964 = vmatprep.subr.mxu0 0.0
    %7965 = vmatpush2.msra.mxu0 0.0
    %7966 = vmatprep.subr.mxu0 0.0
    %7967 = vmatpush2.msra.mxu0 0.0
    %7968 = vmatprep.subr.mxu0 0.0
    %7969 = vmatpush2.msra.mxu0 0.0
    %7970 = vmatprep.subr.mxu0 0.0
    %7971 = vmatpush2.msra.mxu0 0.0
    %7972 = vmatprep.subr.mxu0 0.0
    %7973 = vmatpush2.msra.mxu0 0.0
    %7974 = vmatprep.subr.mxu0 0.0
    %7975 = vmatpush2.msra.mxu0 0.0
    %7976 = vmatprep.subr.mxu0 0.0
    %7977 = vmatpush2.msra.mxu0 0.0
    %7978 = vmatprep.subr.mxu0 0.0
    %7979 = vmatpush2.msra.mxu0 0.0
    %7980 = vmatprep.mubr.f32.mxu0 0.0
    %7981 = vmatmul.mubr.f32.gmra.mxu0 %v7914
    %v7982 = vpop.f32.mrf.mxu0
    %v7983 = vadd.f32 0.0, %v7982
    %v7984 = vpop.f32.mrf.mxu0
    %7985 = vdwg.mxu0
    %7986 = vrot.lane.b32.xlu0 %v7469, 64
    %v7987 = vpop.permute.xlu0 %7986
    %v7990 = vsel %vm7789, %v7832, 0
    %7992 = vmatprep.subr.mxu0 0.0
    %7993 = vmatpush1.msra.mxu0 0.0
    %7994 = vmatprep.subr.mxu0 0.0
    %7995 = vmatpush1.msra.mxu0 0.0
    %7996 = vmatprep.subr.mxu0 0.0
    %7997 = vmatpush1.msra.mxu0 0.0
    %7998 = vmatprep.subr.mxu0 0.0
    %7999 = vmatpush1.msra.mxu0 0.0
    %8000 = vmatprep.subr.mxu0 0.0
    %8001 = vmatpush1.msra.mxu0 0.0
    %8002 = vmatprep.subr.mxu0 0.0
    %8003 = vmatpush1.msra.mxu0 0.0
    %8004 = vmatprep.subr.mxu0 0.0
    %8005 = vmatpush1.msra.mxu0 0.0
    %8006 = vmatprep.subr.mxu0 0.0
    %8007 = vmatpush1.msra.mxu0 0.0
    %8008 = vmatprep.subr.mxu0 0.0
    %8009 = vmatpush1.msra.mxu0 0.0
    %8010 = vmatprep.subr.mxu0 0.0
    %8011 = vmatpush1.msra.mxu0 0.0
    %8012 = vmatprep.subr.mxu0 0.0
    %8013 = vmatpush1.msra.mxu0 0.0
    %8014 = vmatprep.subr.mxu0 0.0
    %8015 = vmatpush1.msra.mxu0 0.0
    %8016 = vmatprep.subr.mxu0 0.0
    %8017 = vmatpush1.msra.mxu0 0.0
    %8018 = vmatprep.subr.mxu0 0.0
    %8019 = vmatpush1.msra.mxu0 0.0
    %8020 = vmatprep.subr.mxu0 0.0
    %8021 = vmatpush1.msra.mxu0 0.0
    %8022 = vmatprep.subr.mxu0 0.0
    %8023 = vmatpush1.msra.mxu0 %v7987
    %8024 = vmatprep.subr.mxu0 0.0
    %8025 = vmatpush2.msra.mxu0 0.0
    %8026 = vmatprep.subr.mxu0 0.0
    %8027 = vmatpush2.msra.mxu0 0.0
    %8028 = vmatprep.subr.mxu0 0.0
    %8029 = vmatpush2.msra.mxu0 0.0
    %8030 = vmatprep.subr.mxu0 0.0
    %8031 = vmatpush2.msra.mxu0 0.0
    %8032 = vmatprep.subr.mxu0 0.0
    %8033 = vmatpush2.msra.mxu0 0.0
    %8034 = vmatprep.subr.mxu0 0.0
    %8035 = vmatpush2.msra.mxu0 0.0
    %8036 = vmatprep.subr.mxu0 0.0
    %8037 = vmatpush2.msra.mxu0 0.0
    %8038 = vmatprep.subr.mxu0 0.0
    %8039 = vmatpush2.msra.mxu0 0.0
    %8040 = vmatprep.subr.mxu0 0.0
    %8041 = vmatpush2.msra.mxu0 0.0
    %8042 = vmatprep.subr.mxu0 0.0
    %8043 = vmatpush2.msra.mxu0 0.0
    %8044 = vmatprep.subr.mxu0 0.0
    %8045 = vmatpush2.msra.mxu0 0.0
    %8046 = vmatprep.subr.mxu0 0.0
    %8047 = vmatpush2.msra.mxu0 0.0
    %8048 = vmatprep.subr.mxu0 0.0
    %8049 = vmatpush2.msra.mxu0 0.0
    %8050 = vmatprep.subr.mxu0 0.0
    %8051 = vmatpush2.msra.mxu0 0.0
    %8052 = vmatprep.subr.mxu0 0.0
    %8053 = vmatpush2.msra.mxu0 0.0
    %8054 = vmatprep.subr.mxu0 0.0
    %8055 = vmatpush2.msra.mxu0 0.0
    %8056 = vmatprep.mubr.f32.mxu0 0.0
    %8057 = vmatmul.mubr.f32.gmra.mxu0 %v7990
    %v8058 = vpop.f32.mrf.mxu0
    %v8059 = vadd.f32 0.0, %v8058
    %v8060 = vpop.f32.mrf.mxu0
    %8061 = vdwg.mxu0
    %8062 = vrot.lane.b32.xlu0 %v7474, 64
    %v8063 = vpop.permute.xlu0 %8062
    %v8066 = vsel %vm7789, %v7833, 0
    %8068 = vmatprep.subr.mxu0 0.0
    %8069 = vmatpush1.msra.mxu0 0.0
    %8070 = vmatprep.subr.mxu0 0.0
    %8071 = vmatpush1.msra.mxu0 0.0
    %8072 = vmatprep.subr.mxu0 0.0
    %8073 = vmatpush1.msra.mxu0 0.0
    %8074 = vmatprep.subr.mxu0 0.0
    %8075 = vmatpush1.msra.mxu0 0.0
    %8076 = vmatprep.subr.mxu0 0.0
    %8077 = vmatpush1.msra.mxu0 0.0
    %8078 = vmatprep.subr.mxu0 0.0
    %8079 = vmatpush1.msra.mxu0 0.0
    %8080 = vmatprep.subr.mxu0 0.0
    %8081 = vmatpush1.msra.mxu0 0.0
    %8082 = vmatprep.subr.mxu0 0.0
    %8083 = vmatpush1.msra.mxu0 0.0
    %8084 = vmatprep.subr.mxu0 0.0
    %8085 = vmatpush1.msra.mxu0 0.0
    %8086 = vmatprep.subr.mxu0 0.0
    %8087 = vmatpush1.msra.mxu0 0.0
    %8088 = vmatprep.subr.mxu0 0.0
    %8089 = vmatpush1.msra.mxu0 0.0
    %8090 = vmatprep.subr.mxu0 0.0
    %8091 = vmatpush1.msra.mxu0 0.0
    %8092 = vmatprep.subr.mxu0 0.0
    %8093 = vmatpush1.msra.mxu0 0.0
    %8094 = vmatprep.subr.mxu0 0.0
    %8095 = vmatpush1.msra.mxu0 0.0
    %8096 = vmatprep.subr.mxu0 0.0
    %8097 = vmatpush1.msra.mxu0 0.0
    %8098 = vmatprep.subr.mxu0 0.0
    %8099 = vmatpush1.msra.mxu0 %v8063
    %8100 = vmatprep.subr.mxu0 0.0
    %8101 = vmatpush2.msra.mxu0 0.0
    %8102 = vmatprep.subr.mxu0 0.0
    %8103 = vmatpush2.msra.mxu0 0.0
    %8104 = vmatprep.subr.mxu0 0.0
    %8105 = vmatpush2.msra.mxu0 0.0
    %8106 = vmatprep.subr.mxu0 0.0
    %8107 = vmatpush2.msra.mxu0 0.0
    %8108 = vmatprep.subr.mxu0 0.0
    %8109 = vmatpush2.msra.mxu0 0.0
    %8110 = vmatprep.subr.mxu0 0.0
    %8111 = vmatpush2.msra.mxu0 0.0
    %8112 = vmatprep.subr.mxu0 0.0
    %8113 = vmatpush2.msra.mxu0 0.0
    %8114 = vmatprep.subr.mxu0 0.0
    %8115 = vmatpush2.msra.mxu0 0.0
    %8116 = vmatprep.subr.mxu0 0.0
    %8117 = vmatpush2.msra.mxu0 0.0
    %8118 = vmatprep.subr.mxu0 0.0
    %8119 = vmatpush2.msra.mxu0 0.0
    %8120 = vmatprep.subr.mxu0 0.0
    %8121 = vmatpush2.msra.mxu0 0.0
    %8122 = vmatprep.subr.mxu0 0.0
    %8123 = vmatpush2.msra.mxu0 0.0
    %8124 = vmatprep.subr.mxu0 0.0
    %8125 = vmatpush2.msra.mxu0 0.0
    %8126 = vmatprep.subr.mxu0 0.0
    %8127 = vmatpush2.msra.mxu0 0.0
    %8128 = vmatprep.subr.mxu0 0.0
    %8129 = vmatpush2.msra.mxu0 0.0
    %8130 = vmatprep.subr.mxu0 0.0
    %8131 = vmatpush2.msra.mxu0 0.0
    %8132 = vmatprep.mubr.f32.mxu0 0.0
    %8133 = vmatmul.mubr.f32.gmra.mxu0 %v8066
    %v8134 = vpop.f32.mrf.mxu0
    %v8135 = vadd.f32 0.0, %v8134
    %v8136 = vpop.f32.mrf.mxu0
    %8137 = vdwg.mxu0
    %v8139 = vlaneseq
    %v8140 = vshrl.u32 %v8139, 7
    %v8141 = vsub.s32 0, %v8140
    %v8142 = vrot.slane %v396, %v8141
    %8148 = vrot.lane.b32.xlu0 %v7362, 96
    %v8149 = vpop.permute.xlu0 %8148
    %8150 = vrot.lane.b32.xlu0 %v7363, 96
    %v8151 = vpop.permute.xlu0 %8150
    %8152 = vrot.lane.b32.xlu0 %v7364, 96
    %v8153 = vpop.permute.xlu0 %8152
    %8154 = vrot.lane.b32.xlu0 %v7365, 96
    %v8155 = vpop.permute.xlu0 %8154
    %v8156 = vsel %vm571, %v8149, 0
    %v8158 = vsel %vm571, %v8151, 0
    %v8160 = vsel %vm571, %v8153, 0
    %v8162 = vsel %vm571, %v8155, 0
    %8164 = vmatprep.subr.mxu0 0.0
    %8165 = vmatpush1.msra.mxu0 0.0
    %8166 = vmatprep.subr.mxu0 0.0
    %8167 = vmatpush1.msra.mxu0 0.0
    %8168 = vmatprep.subr.mxu0 0.0
    %8169 = vmatpush1.msra.mxu0 0.0
    %8170 = vmatprep.subr.mxu0 0.0
    %8171 = vmatpush1.msra.mxu0 0.0
    %8172 = vmatprep.subr.mxu0 0.0
    %8173 = vmatpush1.msra.mxu0 0.0
    %8174 = vmatprep.subr.mxu0 0.0
    %8175 = vmatpush1.msra.mxu0 0.0
    %8176 = vmatprep.subr.mxu0 0.0
    %8177 = vmatpush1.msra.mxu0 0.0
    %8178 = vmatprep.subr.mxu0 0.0
    %8179 = vmatpush1.msra.mxu0 0.0
    %8180 = vmatprep.subr.mxu0 0.0
    %8181 = vmatpush1.msra.mxu0 0.0
    %8182 = vmatprep.subr.mxu0 0.0
    %8183 = vmatpush1.msra.mxu0 0.0
    %8184 = vmatprep.subr.mxu0 0.0
    %8185 = vmatpush1.msra.mxu0 0.0
    %8186 = vmatprep.subr.mxu0 0.0
    %8187 = vmatpush1.msra.mxu0 0.0
    %8188 = vmatprep.subr.mxu0 0.0
    %8189 = vmatpush1.msra.mxu0 %v395
    %8190 = vmatprep.subr.mxu0 0.0
    %8191 = vmatpush1.msra.mxu0 %v394
    %8192 = vmatprep.subr.mxu0 0.0
    %8193 = vmatpush1.msra.mxu0 %v393
    %8194 = vmatprep.subr.mxu0 0.0
    %8195 = vmatpush1.msra.mxu0 %v392
    %8196 = vmatprep.subr.mxu0 0.0
    %8197 = vmatpush2.msra.mxu0 0.0
    %8198 = vmatprep.subr.mxu0 0.0
    %8199 = vmatpush2.msra.mxu0 0.0
    %8200 = vmatprep.subr.mxu0 0.0
    %8201 = vmatpush2.msra.mxu0 0.0
    %8202 = vmatprep.subr.mxu0 0.0
    %8203 = vmatpush2.msra.mxu0 0.0
    %8204 = vmatprep.subr.mxu0 0.0
    %8205 = vmatpush2.msra.mxu0 0.0
    %8206 = vmatprep.subr.mxu0 0.0
    %8207 = vmatpush2.msra.mxu0 0.0
    %8208 = vmatprep.subr.mxu0 0.0
    %8209 = vmatpush2.msra.mxu0 0.0
    %8210 = vmatprep.subr.mxu0 0.0
    %8211 = vmatpush2.msra.mxu0 0.0
    %8212 = vmatprep.subr.mxu0 0.0
    %8213 = vmatpush2.msra.mxu0 0.0
    %8214 = vmatprep.subr.mxu0 0.0
    %8215 = vmatpush2.msra.mxu0 0.0
    %8216 = vmatprep.subr.mxu0 0.0
    %8217 = vmatpush2.msra.mxu0 0.0
    %8218 = vmatprep.subr.mxu0 0.0
    %8219 = vmatpush2.msra.mxu0 0.0
    %8220 = vmatprep.subr.mxu0 0.0
    %8221 = vmatpush2.msra.mxu0 0.0
    %8222 = vmatprep.subr.mxu0 0.0
    %8223 = vmatpush2.msra.mxu0 0.0
    %8224 = vmatprep.subr.mxu0 0.0
    %8225 = vmatpush2.msra.mxu0 0.0
    %8226 = vmatprep.subr.mxu0 0.0
    %8227 = vmatpush2.msra.mxu0 0.0
    %8228 = vmatprep.mubr.f32.mxu0 0.0
    %8229 = vmatmul.mubr.f32.gmra.mxu0 %v8156
    %v8230 = vpop.f32.mrf.mxu0
    %v8231 = vadd.f32 %v8142, %v8230
    %v8232 = vpop.f32.mrf.mxu0
    %8233 = vmatprep.mubr.f32.mxu0 0.0
    %8234 = vmatmul.mubr.f32.gmra.mxu0 %v8158
    %v8235 = vpop.f32.mrf.mxu0
    %v8236 = vadd.f32 %v8142, %v8235
    %v8237 = vpop.f32.mrf.mxu0
    %8238 = vmatprep.mubr.f32.mxu0 0.0
    %8239 = vmatmul.mubr.f32.gmra.mxu0 %v8160
    %v8240 = vpop.f32.mrf.mxu0
    %v8241 = vadd.f32 %v8142, %v8240
    %v8242 = vpop.f32.mrf.mxu0
    %8243 = vmatprep.mubr.f32.mxu0 0.0
    %8244 = vmatmul.mubr.f32.gmra.mxu0 %v8162
    %v8245 = vpop.f32.mrf.mxu0
    %v8246 = vadd.f32 %v8142, %v8245
    %v8247 = vpop.f32.mrf.mxu0
    %8248 = vdwg.mxu0
    %8250 = vrot.lane.b32.xlu0 %v8231, 96
    %v8251 = vpop.permute.xlu0 %8250
    %v8252 = vsel %vm571, %v8231, 0
    %v8254 = vsel %vm571, %v8251, 0
    %8256 = vmatprep.subr.mxu0 0.0
    %8257 = vmatpush1.xpose.msra.mxu0 0.0
    %8258 = vmatprep.subr.mxu0 0.0
    %8259 = vmatpush1.xpose.msra.mxu0 0.0
    %8260 = vmatprep.subr.mxu0 0.0
    %8261 = vmatpush1.xpose.msra.mxu0 0.0
    %8262 = vmatprep.subr.mxu0 0.0
    %8263 = vmatpush1.xpose.msra.mxu0 0.0
    %8264 = vmatprep.subr.mxu0 0.0
    %8265 = vmatpush1.xpose.msra.mxu0 0.0
    %8266 = vmatprep.subr.mxu0 0.0
    %8267 = vmatpush1.xpose.msra.mxu0 0.0
    %8268 = vmatprep.subr.mxu0 0.0
    %8269 = vmatpush1.xpose.msra.mxu0 0.0
    %8270 = vmatprep.subr.mxu0 0.0
    %8271 = vmatpush1.xpose.msra.mxu0 0.0
    %8272 = vmatprep.subr.mxu0 0.0
    %8273 = vmatpush1.xpose.msra.mxu0 0.0
    %8274 = vmatprep.subr.mxu0 0.0
    %8275 = vmatpush1.xpose.msra.mxu0 0.0
    %8276 = vmatprep.subr.mxu0 0.0
    %8277 = vmatpush1.xpose.msra.mxu0 0.0
    %8278 = vmatprep.subr.mxu0 0.0
    %8279 = vmatpush1.xpose.msra.mxu0 0.0
    %8280 = vmatprep.subr.mxu0 0.0
    %8281 = vmatpush1.xpose.msra.mxu0 0.0
    %8282 = vmatprep.subr.mxu0 0.0
    %8283 = vmatpush1.xpose.msra.mxu0 0.0
    %8284 = vmatprep.subr.mxu0 0.0
    %8285 = vmatpush1.xpose.msra.mxu0 0.0
    %8286 = vmatprep.subr.mxu0 0.0
    %8287 = vmatpush1.xpose.msra.mxu0 %v8254
    %8288 = vmatprep.subr.mxu0 0.0
    %8289 = vmatpush2.xpose.msra.mxu0 0.0
    %8290 = vmatprep.subr.mxu0 0.0
    %8291 = vmatpush2.xpose.msra.mxu0 0.0
    %8292 = vmatprep.subr.mxu0 0.0
    %8293 = vmatpush2.xpose.msra.mxu0 0.0
    %8294 = vmatprep.subr.mxu0 0.0
    %8295 = vmatpush2.xpose.msra.mxu0 0.0
    %8296 = vmatprep.subr.mxu0 0.0
    %8297 = vmatpush2.xpose.msra.mxu0 0.0
    %8298 = vmatprep.subr.mxu0 0.0
    %8299 = vmatpush2.xpose.msra.mxu0 0.0
    %8300 = vmatprep.subr.mxu0 0.0
    %8301 = vmatpush2.xpose.msra.mxu0 0.0
    %8302 = vmatprep.subr.mxu0 0.0
    %8303 = vmatpush2.xpose.msra.mxu0 0.0
    %8304 = vmatprep.subr.mxu0 0.0
    %8305 = vmatpush2.xpose.msra.mxu0 0.0
    %8306 = vmatprep.subr.mxu0 0.0
    %8307 = vmatpush2.xpose.msra.mxu0 0.0
    %8308 = vmatprep.subr.mxu0 0.0
    %8309 = vmatpush2.xpose.msra.mxu0 0.0
    %8310 = vmatprep.subr.mxu0 0.0
    %8311 = vmatpush2.xpose.msra.mxu0 0.0
    %8312 = vmatprep.subr.mxu0 0.0
    %8313 = vmatpush2.xpose.msra.mxu0 0.0
    %8314 = vmatprep.subr.mxu0 0.0
    %8315 = vmatpush2.xpose.msra.mxu0 0.0
    %8316 = vmatprep.subr.mxu0 0.0
    %8317 = vmatpush2.xpose.msra.mxu0 0.0
    %8318 = vmatprep.subr.mxu0 0.0
    %8319 = vmatpush2.xpose.msra.mxu0 0.0
    %8320 = vmatprep.mubr.f32.mxu0 0.0
    %8321 = vmatmul.mubr.f32.gmra.mxu0 %v8252
    %v8322 = vpop.f32.mrf.mxu0
    %v8323 = vadd.f32 0.0, %v8322
    %v8324 = vpop.f32.mrf.mxu0
    %8325 = vdwg.mxu0
    %8327 = vrot.lane.b32.xlu0 %v8236, 96
    %v8328 = vpop.permute.xlu0 %8327
    %v8329 = vsel %vm571, %v8236, 0
    %v8331 = vsel %vm571, %v8328, 0
    %8333 = vmatprep.subr.mxu0 0.0
    %8334 = vmatpush1.xpose.msra.mxu0 0.0
    %8335 = vmatprep.subr.mxu0 0.0
    %8336 = vmatpush1.xpose.msra.mxu0 0.0
    %8337 = vmatprep.subr.mxu0 0.0
    %8338 = vmatpush1.xpose.msra.mxu0 0.0
    %8339 = vmatprep.subr.mxu0 0.0
    %8340 = vmatpush1.xpose.msra.mxu0 0.0
    %8341 = vmatprep.subr.mxu0 0.0
    %8342 = vmatpush1.xpose.msra.mxu0 0.0
    %8343 = vmatprep.subr.mxu0 0.0
    %8344 = vmatpush1.xpose.msra.mxu0 0.0
    %8345 = vmatprep.subr.mxu0 0.0
    %8346 = vmatpush1.xpose.msra.mxu0 0.0
    %8347 = vmatprep.subr.mxu0 0.0
    %8348 = vmatpush1.xpose.msra.mxu0 0.0
    %8349 = vmatprep.subr.mxu0 0.0
    %8350 = vmatpush1.xpose.msra.mxu0 0.0
    %8351 = vmatprep.subr.mxu0 0.0
    %8352 = vmatpush1.xpose.msra.mxu0 0.0
    %8353 = vmatprep.subr.mxu0 0.0
    %8354 = vmatpush1.xpose.msra.mxu0 0.0
    %8355 = vmatprep.subr.mxu0 0.0
    %8356 = vmatpush1.xpose.msra.mxu0 0.0
    %8357 = vmatprep.subr.mxu0 0.0
    %8358 = vmatpush1.xpose.msra.mxu0 0.0
    %8359 = vmatprep.subr.mxu0 0.0
    %8360 = vmatpush1.xpose.msra.mxu0 0.0
    %8361 = vmatprep.subr.mxu0 0.0
    %8362 = vmatpush1.xpose.msra.mxu0 0.0
    %8363 = vmatprep.subr.mxu0 0.0
    %8364 = vmatpush1.xpose.msra.mxu0 %v8331
    %8365 = vmatprep.subr.mxu0 0.0
    %8366 = vmatpush2.xpose.msra.mxu0 0.0
    %8367 = vmatprep.subr.mxu0 0.0
    %8368 = vmatpush2.xpose.msra.mxu0 0.0
    %8369 = vmatprep.subr.mxu0 0.0
    %8370 = vmatpush2.xpose.msra.mxu0 0.0
    %8371 = vmatprep.subr.mxu0 0.0
    %8372 = vmatpush2.xpose.msra.mxu0 0.0
    %8373 = vmatprep.subr.mxu0 0.0
    %8374 = vmatpush2.xpose.msra.mxu0 0.0
    %8375 = vmatprep.subr.mxu0 0.0
    %8376 = vmatpush2.xpose.msra.mxu0 0.0
    %8377 = vmatprep.subr.mxu0 0.0
    %8378 = vmatpush2.xpose.msra.mxu0 0.0
    %8379 = vmatprep.subr.mxu0 0.0
    %8380 = vmatpush2.xpose.msra.mxu0 0.0
    %8381 = vmatprep.subr.mxu0 0.0
    %8382 = vmatpush2.xpose.msra.mxu0 0.0
    %8383 = vmatprep.subr.mxu0 0.0
    %8384 = vmatpush2.xpose.msra.mxu0 0.0
    %8385 = vmatprep.subr.mxu0 0.0
    %8386 = vmatpush2.xpose.msra.mxu0 0.0
    %8387 = vmatprep.subr.mxu0 0.0
    %8388 = vmatpush2.xpose.msra.mxu0 0.0
    %8389 = vmatprep.subr.mxu0 0.0
    %8390 = vmatpush2.xpose.msra.mxu0 0.0
    %8391 = vmatprep.subr.mxu0 0.0
    %8392 = vmatpush2.xpose.msra.mxu0 0.0
    %8393 = vmatprep.subr.mxu0 0.0
    %8394 = vmatpush2.xpose.msra.mxu0 0.0
    %8395 = vmatprep.subr.mxu0 0.0
    %8396 = vmatpush2.xpose.msra.mxu0 0.0
    %8397 = vmatprep.mubr.f32.mxu0 0.0
    %8398 = vmatmul.mubr.f32.gmra.mxu0 %v8329
    %v8399 = vpop.f32.mrf.mxu0
    %v8400 = vadd.f32 0.0, %v8399
    %v8401 = vpop.f32.mrf.mxu0
    %8402 = vdwg.mxu0
    %8404 = vrot.lane.b32.xlu0 %v8241, 96
    %v8405 = vpop.permute.xlu0 %8404
    %v8406 = vsel %vm571, %v8241, 0
    %v8408 = vsel %vm571, %v8405, 0
    %8410 = vmatprep.subr.mxu0 0.0
    %8411 = vmatpush1.xpose.msra.mxu0 0.0
    %8412 = vmatprep.subr.mxu0 0.0
    %8413 = vmatpush1.xpose.msra.mxu0 0.0
    %8414 = vmatprep.subr.mxu0 0.0
    %8415 = vmatpush1.xpose.msra.mxu0 0.0
    %8416 = vmatprep.subr.mxu0 0.0
    %8417 = vmatpush1.xpose.msra.mxu0 0.0
    %8418 = vmatprep.subr.mxu0 0.0
    %8419 = vmatpush1.xpose.msra.mxu0 0.0
    %8420 = vmatprep.subr.mxu0 0.0
    %8421 = vmatpush1.xpose.msra.mxu0 0.0
    %8422 = vmatprep.subr.mxu0 0.0
    %8423 = vmatpush1.xpose.msra.mxu0 0.0
    %8424 = vmatprep.subr.mxu0 0.0
    %8425 = vmatpush1.xpose.msra.mxu0 0.0
    %8426 = vmatprep.subr.mxu0 0.0
    %8427 = vmatpush1.xpose.msra.mxu0 0.0
    %8428 = vmatprep.subr.mxu0 0.0
    %8429 = vmatpush1.xpose.msra.mxu0 0.0
    %8430 = vmatprep.subr.mxu0 0.0
    %8431 = vmatpush1.xpose.msra.mxu0 0.0
    %8432 = vmatprep.subr.mxu0 0.0
    %8433 = vmatpush1.xpose.msra.mxu0 0.0
    %8434 = vmatprep.subr.mxu0 0.0
    %8435 = vmatpush1.xpose.msra.mxu0 0.0
    %8436 = vmatprep.subr.mxu0 0.0
    %8437 = vmatpush1.xpose.msra.mxu0 0.0
    %8438 = vmatprep.subr.mxu0 0.0
    %8439 = vmatpush1.xpose.msra.mxu0 0.0
    %8440 = vmatprep.subr.mxu0 0.0
    %8441 = vmatpush1.xpose.msra.mxu0 %v8408
    %8442 = vmatprep.subr.mxu0 0.0
    %8443 = vmatpush2.xpose.msra.mxu0 0.0
    %8444 = vmatprep.subr.mxu0 0.0
    %8445 = vmatpush2.xpose.msra.mxu0 0.0
    %8446 = vmatprep.subr.mxu0 0.0
    %8447 = vmatpush2.xpose.msra.mxu0 0.0
    %8448 = vmatprep.subr.mxu0 0.0
    %8449 = vmatpush2.xpose.msra.mxu0 0.0
    %8450 = vmatprep.subr.mxu0 0.0
    %8451 = vmatpush2.xpose.msra.mxu0 0.0
    %8452 = vmatprep.subr.mxu0 0.0
    %8453 = vmatpush2.xpose.msra.mxu0 0.0
    %8454 = vmatprep.subr.mxu0 0.0
    %8455 = vmatpush2.xpose.msra.mxu0 0.0
    %8456 = vmatprep.subr.mxu0 0.0
    %8457 = vmatpush2.xpose.msra.mxu0 0.0
    %8458 = vmatprep.subr.mxu0 0.0
    %8459 = vmatpush2.xpose.msra.mxu0 0.0
    %8460 = vmatprep.subr.mxu0 0.0
    %8461 = vmatpush2.xpose.msra.mxu0 0.0
    %8462 = vmatprep.subr.mxu0 0.0
    %8463 = vmatpush2.xpose.msra.mxu0 0.0
    %8464 = vmatprep.subr.mxu0 0.0
    %8465 = vmatpush2.xpose.msra.mxu0 0.0
    %8466 = vmatprep.subr.mxu0 0.0
    %8467 = vmatpush2.xpose.msra.mxu0 0.0
    %8468 = vmatprep.subr.mxu0 0.0
    %8469 = vmatpush2.xpose.msra.mxu0 0.0
    %8470 = vmatprep.subr.mxu0 0.0
    %8471 = vmatpush2.xpose.msra.mxu0 0.0
    %8472 = vmatprep.subr.mxu0 0.0
    %8473 = vmatpush2.xpose.msra.mxu0 0.0
    %8474 = vmatprep.mubr.f32.mxu0 0.0
    %8475 = vmatmul.mubr.f32.gmra.mxu0 %v8406
    %v8476 = vpop.f32.mrf.mxu0
    %v8477 = vadd.f32 0.0, %v8476
    %v8478 = vpop.f32.mrf.mxu0
    %8479 = vdwg.mxu0
    %8481 = vrot.lane.b32.xlu0 %v8246, 96
    %v8482 = vpop.permute.xlu0 %8481
    %v8483 = vsel %vm571, %v8246, 0
    %v8485 = vsel %vm571, %v8482, 0
    %8487 = vmatprep.subr.mxu0 0.0
    %8488 = vmatpush1.xpose.msra.mxu0 0.0
    %8489 = vmatprep.subr.mxu0 0.0
    %8490 = vmatpush1.xpose.msra.mxu0 0.0
    %8491 = vmatprep.subr.mxu0 0.0
    %8492 = vmatpush1.xpose.msra.mxu0 0.0
    %8493 = vmatprep.subr.mxu0 0.0
    %8494 = vmatpush1.xpose.msra.mxu0 0.0
    %8495 = vmatprep.subr.mxu0 0.0
    %8496 = vmatpush1.xpose.msra.mxu0 0.0
    %8497 = vmatprep.subr.mxu0 0.0
    %8498 = vmatpush1.xpose.msra.mxu0 0.0
    %8499 = vmatprep.subr.mxu0 0.0
    %8500 = vmatpush1.xpose.msra.mxu0 0.0
    %8501 = vmatprep.subr.mxu0 0.0
    %8502 = vmatpush1.xpose.msra.mxu0 0.0
    %8503 = vmatprep.subr.mxu0 0.0
    %8504 = vmatpush1.xpose.msra.mxu0 0.0
    %8505 = vmatprep.subr.mxu0 0.0
    %8506 = vmatpush1.xpose.msra.mxu0 0.0
    %8507 = vmatprep.subr.mxu0 0.0
    %8508 = vmatpush1.xpose.msra.mxu0 0.0
    %8509 = vmatprep.subr.mxu0 0.0
    %8510 = vmatpush1.xpose.msra.mxu0 0.0
    %8511 = vmatprep.subr.mxu0 0.0
    %8512 = vmatpush1.xpose.msra.mxu0 0.0
    %8513 = vmatprep.subr.mxu0 0.0
    %8514 = vmatpush1.xpose.msra.mxu0 0.0
    %8515 = vmatprep.subr.mxu0 0.0
    %8516 = vmatpush1.xpose.msra.mxu0 0.0
    %8517 = vmatprep.subr.mxu0 0.0
    %8518 = vmatpush1.xpose.msra.mxu0 %v8485
    %8519 = vmatprep.subr.mxu0 0.0
    %8520 = vmatpush2.xpose.msra.mxu0 0.0
    %8521 = vmatprep.subr.mxu0 0.0
    %8522 = vmatpush2.xpose.msra.mxu0 0.0
    %8523 = vmatprep.subr.mxu0 0.0
    %8524 = vmatpush2.xpose.msra.mxu0 0.0
    %8525 = vmatprep.subr.mxu0 0.0
    %8526 = vmatpush2.xpose.msra.mxu0 0.0
    %8527 = vmatprep.subr.mxu0 0.0
    %8528 = vmatpush2.xpose.msra.mxu0 0.0
    %8529 = vmatprep.subr.mxu0 0.0
    %8530 = vmatpush2.xpose.msra.mxu0 0.0
    %8531 = vmatprep.subr.mxu0 0.0
    %8532 = vmatpush2.xpose.msra.mxu0 0.0
    %8533 = vmatprep.subr.mxu0 0.0
    %8534 = vmatpush2.xpose.msra.mxu0 0.0
    %8535 = vmatprep.subr.mxu0 0.0
    %8536 = vmatpush2.xpose.msra.mxu0 0.0
    %8537 = vmatprep.subr.mxu0 0.0
    %8538 = vmatpush2.xpose.msra.mxu0 0.0
    %8539 = vmatprep.subr.mxu0 0.0
    %8540 = vmatpush2.xpose.msra.mxu0 0.0
    %8541 = vmatprep.subr.mxu0 0.0
    %8542 = vmatpush2.xpose.msra.mxu0 0.0
    %8543 = vmatprep.subr.mxu0 0.0
    %8544 = vmatpush2.xpose.msra.mxu0 0.0
    %8545 = vmatprep.subr.mxu0 0.0
    %8546 = vmatpush2.xpose.msra.mxu0 0.0
    %8547 = vmatprep.subr.mxu0 0.0
    %8548 = vmatpush2.xpose.msra.mxu0 0.0
    %8549 = vmatprep.subr.mxu0 0.0
    %8550 = vmatpush2.xpose.msra.mxu0 0.0
    %8551 = vmatprep.mubr.f32.mxu0 0.0
    %8552 = vmatmul.mubr.f32.gmra.mxu0 %v8483
    %v8553 = vpop.f32.mrf.mxu0
    %v8554 = vadd.f32 0.0, %v8553
    %v8555 = vpop.f32.mrf.mxu0
    %8556 = vdwg.mxu0
    %v8557 = vmul.f32 %v8323, 0.17677669
    %v8558 = vmul.f32 %v8400, 0.17677669
    %v8559 = vmul.f32 %v8477, 0.17677669
    %v8560 = vmul.f32 %v8554, 0.17677669
    %v8561 = vsel %vm7789, %v8557, -inf
    %8562 = vmax.xlane.f32.xlu0 %v8561
    %v8563 = vpop.xlane.xlu0 %8562
    %v8564 = vsel %vm7789, %v8558, -inf
    %8565 = vmax.xlane.f32.xlu0 %v8564
    %v8566 = vpop.xlane.xlu0 %8565
    %v8567 = vsel %vm7789, %v8559, -inf
    %8568 = vmax.xlane.f32.xlu0 %v8567
    %v8569 = vpop.xlane.xlu0 %8568
    %v8570 = vsel %vm7789, %v8560, -inf
    %8571 = vmax.xlane.f32.xlu0 %v8570
    %v8572 = vpop.xlane.xlu0 %8571
    %v8573 = vsub.f32 %v8557, %v8563
    %v8574 = vsub.f32 %v8558, %v8566
    %v8575 = vsub.f32 %v8559, %v8569
    %v8576 = vsub.f32 %v8560, %v8572
    %v8577 = vmul.f32 %v8573, 1.442695
    %v8578 = vpow.pop %v8577
    %v8579 = vmul.f32 %v8574, 1.442695
    %v8580 = vpow.pop %v8579
    %v8581 = vmul.f32 %v8575, 1.442695
    %v8582 = vpow.pop %v8581
    %v8583 = vmul.f32 %v8576, 1.442695
    %v8584 = vpow.pop %v8583
    %v8585 = vsel %vm7789, %v8578, 0.0
    %8586 = vadd.xlane.f32.xlu0 %v8585
    %v8587 = vpop.xlane.xlu0 %8586
    %v8588 = vsel %vm7789, %v8580, 0.0
    %8589 = vadd.xlane.f32.xlu0 %v8588
    %v8590 = vpop.xlane.xlu0 %8589
    %v8591 = vsel %vm7789, %v8582, 0.0
    %8592 = vadd.xlane.f32.xlu0 %v8591
    %v8593 = vpop.xlane.xlu0 %8592
    %v8594 = vsel %vm7789, %v8584, 0.0
    %8595 = vadd.xlane.f32.xlu0 %v8594
    %v8596 = vpop.xlane.xlu0 %8595
    %v8597 = vrcp.pop %v8587
    %v8598 = vrcp.pop %v8590
    %v8599 = vrcp.pop %v8593
    %v8600 = vrcp.pop %v8596
    %v8601 = vmul.f32 %v8578, %v8597
    %v8602 = vmul.f32 %v8580, %v8598
    %v8603 = vmul.f32 %v8582, %v8599
    %v8604 = vmul.f32 %v8584, %v8600
    %8605 = vrot.lane.b32.xlu0 %v8231, 64
    %v8606 = vpop.permute.xlu0 %8605
    %v8609 = vsel %vm7789, %v8601, 0
    %8611 = vmatprep.subr.mxu0 0.0
    %8612 = vmatpush1.msra.mxu0 0.0
    %8613 = vmatprep.subr.mxu0 0.0
    %8614 = vmatpush1.msra.mxu0 0.0
    %8615 = vmatprep.subr.mxu0 0.0
    %8616 = vmatpush1.msra.mxu0 0.0
    %8617 = vmatprep.subr.mxu0 0.0
    %8618 = vmatpush1.msra.mxu0 0.0
    %8619 = vmatprep.subr.mxu0 0.0
    %8620 = vmatpush1.msra.mxu0 0.0
    %8621 = vmatprep.subr.mxu0 0.0
    %8622 = vmatpush1.msra.mxu0 0.0
    %8623 = vmatprep.subr.mxu0 0.0
    %8624 = vmatpush1.msra.mxu0 0.0
    %8625 = vmatprep.subr.mxu0 0.0
    %8626 = vmatpush1.msra.mxu0 0.0
    %8627 = vmatprep.subr.mxu0 0.0
    %8628 = vmatpush1.msra.mxu0 0.0
    %8629 = vmatprep.subr.mxu0 0.0
    %8630 = vmatpush1.msra.mxu0 0.0
    %8631 = vmatprep.subr.mxu0 0.0
    %8632 = vmatpush1.msra.mxu0 0.0
    %8633 = vmatprep.subr.mxu0 0.0
    %8634 = vmatpush1.msra.mxu0 0.0
    %8635 = vmatprep.subr.mxu0 0.0
    %8636 = vmatpush1.msra.mxu0 0.0
    %8637 = vmatprep.subr.mxu0 0.0
    %8638 = vmatpush1.msra.mxu0 0.0
    %8639 = vmatprep.subr.mxu0 0.0
    %8640 = vmatpush1.msra.mxu0 0.0
    %8641 = vmatprep.subr.mxu0 0.0
    %8642 = vmatpush1.msra.mxu0 %v8606
    %8643 = vmatprep.subr.mxu0 0.0
    %8644 = vmatpush2.msra.mxu0 0.0
    %8645 = vmatprep.subr.mxu0 0.0
    %8646 = vmatpush2.msra.mxu0 0.0
    %8647 = vmatprep.subr.mxu0 0.0
    %8648 = vmatpush2.msra.mxu0 0.0
    %8649 = vmatprep.subr.mxu0 0.0
    %8650 = vmatpush2.msra.mxu0 0.0
    %8651 = vmatprep.subr.mxu0 0.0
    %8652 = vmatpush2.msra.mxu0 0.0
    %8653 = vmatprep.subr.mxu0 0.0
    %8654 = vmatpush2.msra.mxu0 0.0
    %8655 = vmatprep.subr.mxu0 0.0
    %8656 = vmatpush2.msra.mxu0 0.0
    %8657 = vmatprep.subr.mxu0 0.0
    %8658 = vmatpush2.msra.mxu0 0.0
    %8659 = vmatprep.subr.mxu0 0.0
    %8660 = vmatpush2.msra.mxu0 0.0
    %8661 = vmatprep.subr.mxu0 0.0
    %8662 = vmatpush2.msra.mxu0 0.0
    %8663 = vmatprep.subr.mxu0 0.0
    %8664 = vmatpush2.msra.mxu0 0.0
    %8665 = vmatprep.subr.mxu0 0.0
    %8666 = vmatpush2.msra.mxu0 0.0
    %8667 = vmatprep.subr.mxu0 0.0
    %8668 = vmatpush2.msra.mxu0 0.0
    %8669 = vmatprep.subr.mxu0 0.0
    %8670 = vmatpush2.msra.mxu0 0.0
    %8671 = vmatprep.subr.mxu0 0.0
    %8672 = vmatpush2.msra.mxu0 0.0
    %8673 = vmatprep.subr.mxu0 0.0
    %8674 = vmatpush2.msra.mxu0 0.0
    %8675 = vmatprep.mubr.f32.mxu0 0.0
    %8676 = vmatmul.mubr.f32.gmra.mxu0 %v8609
    %v8677 = vpop.f32.mrf.mxu0
    %v8678 = vadd.f32 0.0, %v8677
    %v8679 = vpop.f32.mrf.mxu0
    %8680 = vdwg.mxu0
    %8681 = vrot.lane.b32.xlu0 %v8236, 64
    %v8682 = vpop.permute.xlu0 %8681
    %v8685 = vsel %vm7789, %v8602, 0
    %8687 = vmatprep.subr.mxu0 0.0
    %8688 = vmatpush1.msra.mxu0 0.0
    %8689 = vmatprep.subr.mxu0 0.0
    %8690 = vmatpush1.msra.mxu0 0.0
    %8691 = vmatprep.subr.mxu0 0.0
    %8692 = vmatpush1.msra.mxu0 0.0
    %8693 = vmatprep.subr.mxu0 0.0
    %8694 = vmatpush1.msra.mxu0 0.0
    %8695 = vmatprep.subr.mxu0 0.0
    %8696 = vmatpush1.msra.mxu0 0.0
    %8697 = vmatprep.subr.mxu0 0.0
    %8698 = vmatpush1.msra.mxu0 0.0
    %8699 = vmatprep.subr.mxu0 0.0
    %8700 = vmatpush1.msra.mxu0 0.0
    %8701 = vmatprep.subr.mxu0 0.0
    %8702 = vmatpush1.msra.mxu0 0.0
    %8703 = vmatprep.subr.mxu0 0.0
    %8704 = vmatpush1.msra.mxu0 0.0
    %8705 = vmatprep.subr.mxu0 0.0
    %8706 = vmatpush1.msra.mxu0 0.0
    %8707 = vmatprep.subr.mxu0 0.0
    %8708 = vmatpush1.msra.mxu0 0.0
    %8709 = vmatprep.subr.mxu0 0.0
    %8710 = vmatpush1.msra.mxu0 0.0
    %8711 = vmatprep.subr.mxu0 0.0
    %8712 = vmatpush1.msra.mxu0 0.0
    %8713 = vmatprep.subr.mxu0 0.0
    %8714 = vmatpush1.msra.mxu0 0.0
    %8715 = vmatprep.subr.mxu0 0.0
    %8716 = vmatpush1.msra.mxu0 0.0
    %8717 = vmatprep.subr.mxu0 0.0
    %8718 = vmatpush1.msra.mxu0 %v8682
    %8719 = vmatprep.subr.mxu0 0.0
    %8720 = vmatpush2.msra.mxu0 0.0
    %8721 = vmatprep.subr.mxu0 0.0
    %8722 = vmatpush2.msra.mxu0 0.0
    %8723 = vmatprep.subr.mxu0 0.0
    %8724 = vmatpush2.msra.mxu0 0.0
    %8725 = vmatprep.subr.mxu0 0.0
    %8726 = vmatpush2.msra.mxu0 0.0
    %8727 = vmatprep.subr.mxu0 0.0
    %8728 = vmatpush2.msra.mxu0 0.0
    %8729 = vmatprep.subr.mxu0 0.0
    %8730 = vmatpush2.msra.mxu0 0.0
    %8731 = vmatprep.subr.mxu0 0.0
    %8732 = vmatpush2.msra.mxu0 0.0
    %8733 = vmatprep.subr.mxu0 0.0
    %8734 = vmatpush2.msra.mxu0 0.0
    %8735 = vmatprep.subr.mxu0 0.0
    %8736 = vmatpush2.msra.mxu0 0.0
    %8737 = vmatprep.subr.mxu0 0.0
    %8738 = vmatpush2.msra.mxu0 0.0
    %8739 = vmatprep.subr.mxu0 0.0
    %8740 = vmatpush2.msra.mxu0 0.0
    %8741 = vmatprep.subr.mxu0 0.0
    %8742 = vmatpush2.msra.mxu0 0.0
    %8743 = vmatprep.subr.mxu0 0.0
    %8744 = vmatpush2.msra.mxu0 0.0
    %8745 = vmatprep.subr.mxu0 0.0
    %8746 = vmatpush2.msra.mxu0 0.0
    %8747 = vmatprep.subr.mxu0 0.0
    %8748 = vmatpush2.msra.mxu0 0.0
    %8749 = vmatprep.subr.mxu0 0.0
    %8750 = vmatpush2.msra.mxu0 0.0
    %8751 = vmatprep.mubr.f32.mxu0 0.0
    %8752 = vmatmul.mubr.f32.gmra.mxu0 %v8685
    %v8753 = vpop.f32.mrf.mxu0
    %v8754 = vadd.f32 0.0, %v8753
    %v8755 = vpop.f32.mrf.mxu0
    %8756 = vdwg.mxu0
    %8757 = vrot.lane.b32.xlu0 %v8241, 64
    %v8758 = vpop.permute.xlu0 %8757
    %v8761 = vsel %vm7789, %v8603, 0
    %8763 = vmatprep.subr.mxu0 0.0
    %8764 = vmatpush1.msra.mxu0 0.0
    %8765 = vmatprep.subr.mxu0 0.0
    %8766 = vmatpush1.msra.mxu0 0.0
    %8767 = vmatprep.subr.mxu0 0.0
    %8768 = vmatpush1.msra.mxu0 0.0
    %8769 = vmatprep.subr.mxu0 0.0
    %8770 = vmatpush1.msra.mxu0 0.0
    %8771 = vmatprep.subr.mxu0 0.0
    %8772 = vmatpush1.msra.mxu0 0.0
    %8773 = vmatprep.subr.mxu0 0.0
    %8774 = vmatpush1.msra.mxu0 0.0
    %8775 = vmatprep.subr.mxu0 0.0
    %8776 = vmatpush1.msra.mxu0 0.0
    %8777 = vmatprep.subr.mxu0 0.0
    %8778 = vmatpush1.msra.mxu0 0.0
    %8779 = vmatprep.subr.mxu0 0.0
    %8780 = vmatpush1.msra.mxu0 0.0
    %8781 = vmatprep.subr.mxu0 0.0
    %8782 = vmatpush1.msra.mxu0 0.0
    %8783 = vmatprep.subr.mxu0 0.0
    %8784 = vmatpush1.msra.mxu0 0.0
    %8785 = vmatprep.subr.mxu0 0.0
    %8786 = vmatpush1.msra.mxu0 0.0
    %8787 = vmatprep.subr.mxu0 0.0
    %8788 = vmatpush1.msra.mxu0 0.0
    %8789 = vmatprep.subr.mxu0 0.0
    %8790 = vmatpush1.msra.mxu0 0.0
    %8791 = vmatprep.subr.mxu0 0.0
    %8792 = vmatpush1.msra.mxu0 0.0
    %8793 = vmatprep.subr.mxu0 0.0
    %8794 = vmatpush1.msra.mxu0 %v8758
    %8795 = vmatprep.subr.mxu0 0.0
    %8796 = vmatpush2.msra.mxu0 0.0
    %8797 = vmatprep.subr.mxu0 0.0
    %8798 = vmatpush2.msra.mxu0 0.0
    %8799 = vmatprep.subr.mxu0 0.0
    %8800 = vmatpush2.msra.mxu0 0.0
    %8801 = vmatprep.subr.mxu0 0.0
    %8802 = vmatpush2.msra.mxu0 0.0
    %8803 = vmatprep.subr.mxu0 0.0
    %8804 = vmatpush2.msra.mxu0 0.0
    %8805 = vmatprep.subr.mxu0 0.0
    %8806 = vmatpush2.msra.mxu0 0.0
    %8807 = vmatprep.subr.mxu0 0.0
    %8808 = vmatpush2.msra.mxu0 0.0
    %8809 = vmatprep.subr.mxu0 0.0
    %8810 = vmatpush2.msra.mxu0 0.0
    %8811 = vmatprep.subr.mxu0 0.0
    %8812 = vmatpush2.msra.mxu0 0.0
    %8813 = vmatprep.subr.mxu0 0.0
    %8814 = vmatpush2.msra.mxu0 0.0
    %8815 = vmatprep.subr.mxu0 0.0
    %8816 = vmatpush2.msra.mxu0 0.0
    %8817 = vmatprep.subr.mxu0 0.0
    %8818 = vmatpush2.msra.mxu0 0.0
    %8819 = vmatprep.subr.mxu0 0.0
    %8820 = vmatpush2.msra.mxu0 0.0
    %8821 = vmatprep.subr.mxu0 0.0
    %8822 = vmatpush2.msra.mxu0 0.0
    %8823 = vmatprep.subr.mxu0 0.0
    %8824 = vmatpush2.msra.mxu0 0.0
    %8825 = vmatprep.subr.mxu0 0.0
    %8826 = vmatpush2.msra.mxu0 0.0
    %8827 = vmatprep.mubr.f32.mxu0 0.0
    %8828 = vmatmul.mubr.f32.gmra.mxu0 %v8761
    %v8829 = vpop.f32.mrf.mxu0
    %v8830 = vadd.f32 0.0, %v8829
    %v8831 = vpop.f32.mrf.mxu0
    %8832 = vdwg.mxu0
    %8833 = vrot.lane.b32.xlu0 %v8246, 64
    %v8834 = vpop.permute.xlu0 %8833
    %v8837 = vsel %vm7789, %v8604, 0
    %8839 = vmatprep.subr.mxu0 0.0
    %8840 = vmatpush1.msra.mxu0 0.0
    %8841 = vmatprep.subr.mxu0 0.0
    %8842 = vmatpush1.msra.mxu0 0.0
    %8843 = vmatprep.subr.mxu0 0.0
    %8844 = vmatpush1.msra.mxu0 0.0
    %8845 = vmatprep.subr.mxu0 0.0
    %8846 = vmatpush1.msra.mxu0 0.0
    %8847 = vmatprep.subr.mxu0 0.0
    %8848 = vmatpush1.msra.mxu0 0.0
    %8849 = vmatprep.subr.mxu0 0.0
    %8850 = vmatpush1.msra.mxu0 0.0
    %8851 = vmatprep.subr.mxu0 0.0
    %8852 = vmatpush1.msra.mxu0 0.0
    %8853 = vmatprep.subr.mxu0 0.0
    %8854 = vmatpush1.msra.mxu0 0.0
    %8855 = vmatprep.subr.mxu0 0.0
    %8856 = vmatpush1.msra.mxu0 0.0
    %8857 = vmatprep.subr.mxu0 0.0
    %8858 = vmatpush1.msra.mxu0 0.0
    %8859 = vmatprep.subr.mxu0 0.0
    %8860 = vmatpush1.msra.mxu0 0.0
    %8861 = vmatprep.subr.mxu0 0.0
    %8862 = vmatpush1.msra.mxu0 0.0
    %8863 = vmatprep.subr.mxu0 0.0
    %8864 = vmatpush1.msra.mxu0 0.0
    %8865 = vmatprep.subr.mxu0 0.0
    %8866 = vmatpush1.msra.mxu0 0.0
    %8867 = vmatprep.subr.mxu0 0.0
    %8868 = vmatpush1.msra.mxu0 0.0
    %8869 = vmatprep.subr.mxu0 0.0
    %8870 = vmatpush1.msra.mxu0 %v8834
    %8871 = vmatprep.subr.mxu0 0.0
    %8872 = vmatpush2.msra.mxu0 0.0
    %8873 = vmatprep.subr.mxu0 0.0
    %8874 = vmatpush2.msra.mxu0 0.0
    %8875 = vmatprep.subr.mxu0 0.0
    %8876 = vmatpush2.msra.mxu0 0.0
    %8877 = vmatprep.subr.mxu0 0.0
    %8878 = vmatpush2.msra.mxu0 0.0
    %8879 = vmatprep.subr.mxu0 0.0
    %8880 = vmatpush2.msra.mxu0 0.0
    %8881 = vmatprep.subr.mxu0 0.0
    %8882 = vmatpush2.msra.mxu0 0.0
    %8883 = vmatprep.subr.mxu0 0.0
    %8884 = vmatpush2.msra.mxu0 0.0
    %8885 = vmatprep.subr.mxu0 0.0
    %8886 = vmatpush2.msra.mxu0 0.0
    %8887 = vmatprep.subr.mxu0 0.0
    %8888 = vmatpush2.msra.mxu0 0.0
    %8889 = vmatprep.subr.mxu0 0.0
    %8890 = vmatpush2.msra.mxu0 0.0
    %8891 = vmatprep.subr.mxu0 0.0
    %8892 = vmatpush2.msra.mxu0 0.0
    %8893 = vmatprep.subr.mxu0 0.0
    %8894 = vmatpush2.msra.mxu0 0.0
    %8895 = vmatprep.subr.mxu0 0.0
    %8896 = vmatpush2.msra.mxu0 0.0
    %8897 = vmatprep.subr.mxu0 0.0
    %8898 = vmatpush2.msra.mxu0 0.0
    %8899 = vmatprep.subr.mxu0 0.0
    %8900 = vmatpush2.msra.mxu0 0.0
    %8901 = vmatprep.subr.mxu0 0.0
    %8902 = vmatpush2.msra.mxu0 0.0
    %8903 = vmatprep.mubr.f32.mxu0 0.0
    %8904 = vmatmul.mubr.f32.gmra.mxu0 %v8837
    %v8905 = vpop.f32.mrf.mxu0
    %v8906 = vadd.f32 0.0, %v8905
    %v8907 = vpop.f32.mrf.mxu0
    %8908 = vdwg.mxu0
    %v8910 = vlaneseq
    %v8911 = vshrl.u32 %v8910, 7
    %v8912 = vsub.s32 0, %v8911
    %v8913 = vrot.slane %v401, %v8912
    %v8916 = vsel %vm571, %v7907, 0
    %v8919 = vsel %vm571, %v7983, 0
    %v8922 = vsel %vm571, %v8059, 0
    %v8925 = vsel %vm571, %v8135, 0
    %8927 = vmatprep.subr.mxu0 0.0
    %8928 = vmatpush1.msra.mxu0 0.0
    %8929 = vmatprep.subr.mxu0 0.0
    %8930 = vmatpush1.msra.mxu0 0.0
    %8931 = vmatprep.subr.mxu0 0.0
    %8932 = vmatpush1.msra.mxu0 0.0
    %8933 = vmatprep.subr.mxu0 0.0
    %8934 = vmatpush1.msra.mxu0 0.0
    %8935 = vmatprep.subr.mxu0 0.0
    %8936 = vmatpush1.msra.mxu0 0.0
    %8937 = vmatprep.subr.mxu0 0.0
    %8938 = vmatpush1.msra.mxu0 0.0
    %8939 = vmatprep.subr.mxu0 0.0
    %8940 = vmatpush1.msra.mxu0 0.0
    %8941 = vmatprep.subr.mxu0 0.0
    %8942 = vmatpush1.msra.mxu0 0.0
    %8943 = vmatprep.subr.mxu0 0.0
    %8944 = vmatpush1.msra.mxu0 0.0
    %8945 = vmatprep.subr.mxu0 0.0
    %8946 = vmatpush1.msra.mxu0 0.0
    %8947 = vmatprep.subr.mxu0 0.0
    %8948 = vmatpush1.msra.mxu0 0.0
    %8949 = vmatprep.subr.mxu0 0.0
    %8950 = vmatpush1.msra.mxu0 0.0
    %8951 = vmatprep.subr.mxu0 0.0
    %8952 = vmatpush1.msra.mxu0 %v400
    %8953 = vmatprep.subr.mxu0 0.0
    %8954 = vmatpush1.msra.mxu0 %v399
    %8955 = vmatprep.subr.mxu0 0.0
    %8956 = vmatpush1.msra.mxu0 %v398
    %8957 = vmatprep.subr.mxu0 0.0
    %8958 = vmatpush1.msra.mxu0 %v397
    %8959 = vmatprep.subr.mxu0 0.0
    %8960 = vmatpush2.msra.mxu0 0.0
    %8961 = vmatprep.subr.mxu0 0.0
    %8962 = vmatpush2.msra.mxu0 0.0
    %8963 = vmatprep.subr.mxu0 0.0
    %8964 = vmatpush2.msra.mxu0 0.0
    %8965 = vmatprep.subr.mxu0 0.0
    %8966 = vmatpush2.msra.mxu0 0.0
    %8967 = vmatprep.subr.mxu0 0.0
    %8968 = vmatpush2.msra.mxu0 0.0
    %8969 = vmatprep.subr.mxu0 0.0
    %8970 = vmatpush2.msra.mxu0 0.0
    %8971 = vmatprep.subr.mxu0 0.0
    %8972 = vmatpush2.msra.mxu0 0.0
    %8973 = vmatprep.subr.mxu0 0.0
    %8974 = vmatpush2.msra.mxu0 0.0
    %8975 = vmatprep.subr.mxu0 0.0
    %8976 = vmatpush2.msra.mxu0 0.0
    %8977 = vmatprep.subr.mxu0 0.0
    %8978 = vmatpush2.msra.mxu0 0.0
    %8979 = vmatprep.subr.mxu0 0.0
    %8980 = vmatpush2.msra.mxu0 0.0
    %8981 = vmatprep.subr.mxu0 0.0
    %8982 = vmatpush2.msra.mxu0 0.0
    %8983 = vmatprep.subr.mxu0 0.0
    %8984 = vmatpush2.msra.mxu0 0.0
    %8985 = vmatprep.subr.mxu0 0.0
    %8986 = vmatpush2.msra.mxu0 0.0
    %8987 = vmatprep.subr.mxu0 0.0
    %8988 = vmatpush2.msra.mxu0 0.0
    %8989 = vmatprep.subr.mxu0 0.0
    %8990 = vmatpush2.msra.mxu0 0.0
    %8991 = vmatprep.mubr.f32.mxu0 0.0
    %8992 = vmatmul.mubr.f32.gmra.mxu0 %v8916
    %v8993 = vpop.f32.mrf.mxu0
    %v8994 = vadd.f32 %v8913, %v8993
    %v8995 = vpop.f32.mrf.mxu0
    %8996 = vmatprep.mubr.f32.mxu0 0.0
    %8997 = vmatmul.mubr.f32.gmra.mxu0 %v8919
    %v8998 = vpop.f32.mrf.mxu0
    %v8999 = vadd.f32 %v8913, %v8998
    %v9000 = vpop.f32.mrf.mxu0
    %9001 = vmatprep.mubr.f32.mxu0 0.0
    %9002 = vmatmul.mubr.f32.gmra.mxu0 %v8922
    %v9003 = vpop.f32.mrf.mxu0
    %v9004 = vadd.f32 %v8913, %v9003
    %v9005 = vpop.f32.mrf.mxu0
    %9006 = vmatprep.mubr.f32.mxu0 0.0
    %9007 = vmatmul.mubr.f32.gmra.mxu0 %v8925
    %v9008 = vpop.f32.mrf.mxu0
    %v9009 = vadd.f32 %v8913, %v9008
    %v9010 = vpop.f32.mrf.mxu0
    %9011 = vdwg.mxu0
    %vm9012 = vcmp.ge.f32.partialorder %v8994, 0.0
    %vm9013 = vcmp.ge.f32.partialorder %v8999, 0.0
    %vm9014 = vcmp.ge.f32.partialorder %v9004, 0.0
    %vm9015 = vcmp.ge.f32.partialorder %v9009, 0.0
    %v9016 = vmul.f32 %v8994, 0.01
    %v9017 = vmul.f32 %v8999, 0.01
    %v9018 = vmul.f32 %v9004, 0.01
    %v9019 = vmul.f32 %v9009, 0.01
    %v9020 = vsel %vm9012, %v8994, %v9016
    %v9021 = vsel %vm9013, %v8999, %v9017
    %v9022 = vsel %vm9014, %v9004, %v9018
    %v9023 = vsel %vm9015, %v9009, %v9019
    %v9025 = vlaneseq
    %v9026 = vshrl.u32 %v9025, 7
    %v9027 = vsub.s32 0, %v9026
    %v9028 = vrot.slane %v410, %v9027
    %vm9030 = vcmask 523264
    %v9032 = vsel %vm9030, %v9020, 0
    %v9035 = vsel %vm9030, %v9021, 0
    %v9038 = vsel %vm9030, %v9022, 0
    %v9041 = vsel %vm9030, %v9023, 0
    %9043 = vmatprep.subr.mxu0 0.0
    %9044 = vmatpush1.msra.mxu0 0.0
    %9045 = vmatprep.subr.mxu0 0.0
    %9046 = vmatpush1.msra.mxu0 0.0
    %9047 = vmatprep.subr.mxu0 0.0
    %9048 = vmatpush1.msra.mxu0 0.0
    %9049 = vmatprep.subr.mxu0 0.0
    %9050 = vmatpush1.msra.mxu0 0.0
    %9051 = vmatprep.subr.mxu0 0.0
    %9052 = vmatpush1.msra.mxu0 0.0
    %9053 = vmatprep.subr.mxu0 0.0
    %9054 = vmatpush1.msra.mxu0 0.0
    %9055 = vmatprep.subr.mxu0 0.0
    %9056 = vmatpush1.msra.mxu0 0.0
    %9057 = vmatprep.subr.mxu0 0.0
    %9058 = vmatpush1.msra.mxu0 0.0
    %9059 = vmatprep.subr.mxu0 0.0
    %9060 = vmatpush1.msra.mxu0 %v409
    %9061 = vmatprep.subr.mxu0 0.0
    %9062 = vmatpush1.msra.mxu0 %v408
    %9063 = vmatprep.subr.mxu0 0.0
    %9064 = vmatpush1.msra.mxu0 %v407
    %9065 = vmatprep.subr.mxu0 0.0
    %9066 = vmatpush1.msra.mxu0 %v406
    %9067 = vmatprep.subr.mxu0 0.0
    %9068 = vmatpush1.msra.mxu0 %v405
    %9069 = vmatprep.subr.mxu0 0.0
    %9070 = vmatpush1.msra.mxu0 %v404
    %9071 = vmatprep.subr.mxu0 0.0
    %9072 = vmatpush1.msra.mxu0 %v403
    %9073 = vmatprep.subr.mxu0 0.0
    %9074 = vmatpush1.msra.mxu0 %v402
    %9075 = vmatprep.subr.mxu0 0.0
    %9076 = vmatpush2.msra.mxu0 0.0
    %9077 = vmatprep.subr.mxu0 0.0
    %9078 = vmatpush2.msra.mxu0 0.0
    %9079 = vmatprep.subr.mxu0 0.0
    %9080 = vmatpush2.msra.mxu0 0.0
    %9081 = vmatprep.subr.mxu0 0.0
    %9082 = vmatpush2.msra.mxu0 0.0
    %9083 = vmatprep.subr.mxu0 0.0
    %9084 = vmatpush2.msra.mxu0 0.0
    %9085 = vmatprep.subr.mxu0 0.0
    %9086 = vmatpush2.msra.mxu0 0.0
    %9087 = vmatprep.subr.mxu0 0.0
    %9088 = vmatpush2.msra.mxu0 0.0
    %9089 = vmatprep.subr.mxu0 0.0
    %9090 = vmatpush2.msra.mxu0 0.0
    %9091 = vmatprep.subr.mxu0 0.0
    %9092 = vmatpush2.msra.mxu0 0.0
    %9093 = vmatprep.subr.mxu0 0.0
    %9094 = vmatpush2.msra.mxu0 0.0
    %9095 = vmatprep.subr.mxu0 0.0
    %9096 = vmatpush2.msra.mxu0 0.0
    %9097 = vmatprep.subr.mxu0 0.0
    %9098 = vmatpush2.msra.mxu0 0.0
    %9099 = vmatprep.subr.mxu0 0.0
    %9100 = vmatpush2.msra.mxu0 0.0
    %9101 = vmatprep.subr.mxu0 0.0
    %9102 = vmatpush2.msra.mxu0 0.0
    %9103 = vmatprep.subr.mxu0 0.0
    %9104 = vmatpush2.msra.mxu0 0.0
    %9105 = vmatprep.subr.mxu0 0.0
    %9106 = vmatpush2.msra.mxu0 0.0
    %9107 = vmatprep.mubr.f32.mxu0 0.0
    %9108 = vmatmul.mubr.f32.gmra.mxu0 %v9032
    %v9109 = vpop.f32.mrf.mxu0
    %v9110 = vadd.f32 %v9028, %v9109
    %v9111 = vpop.f32.mrf.mxu0
    %9112 = vmatprep.mubr.f32.mxu0 0.0
    %9113 = vmatmul.mubr.f32.gmra.mxu0 %v9035
    %v9114 = vpop.f32.mrf.mxu0
    %v9115 = vadd.f32 %v9028, %v9114
    %v9116 = vpop.f32.mrf.mxu0
    %9117 = vmatprep.mubr.f32.mxu0 0.0
    %9118 = vmatmul.mubr.f32.gmra.mxu0 %v9038
    %v9119 = vpop.f32.mrf.mxu0
    %v9120 = vadd.f32 %v9028, %v9119
    %v9121 = vpop.f32.mrf.mxu0
    %9122 = vmatprep.mubr.f32.mxu0 0.0
    %9123 = vmatmul.mubr.f32.gmra.mxu0 %v9041
    %v9124 = vpop.f32.mrf.mxu0
    %v9125 = vadd.f32 %v9028, %v9124
    %v9126 = vpop.f32.mrf.mxu0
    %9127 = vdwg.mxu0
    %v9129 = vlaneseq
    %v9130 = vshrl.u32 %v9129, 7
    %v9131 = vsub.s32 0, %v9130
    %v9132 = vrot.slane %v417, %v9131
    %9134 = vrot.lane.b32.xlu0 %v9020, 64
    %v9135 = vpop.permute.xlu0 %9134
    %9136 = vrot.lane.b32.xlu0 %v9021, 64
    %v9137 = vpop.permute.xlu0 %9136
    %9138 = vrot.lane.b32.xlu0 %v9022, 64
    %v9139 = vpop.permute.xlu0 %9138
    %9140 = vrot.lane.b32.xlu0 %v9023, 64
    %v9141 = vpop.permute.xlu0 %9140
    %vm9142 = vcmask 392192
    %v9143 = vsel %vm9142, %v9135, 0
    %v9145 = vsel %vm9142, %v9137, 0
    %v9147 = vsel %vm9142, %v9139, 0
    %v9149 = vsel %vm9142, %v9141, 0
    %9151 = vmatprep.subr.mxu0 0.0
    %9152 = vmatpush1.msra.mxu0 0.0
    %9153 = vmatprep.subr.mxu0 0.0
    %9154 = vmatpush1.msra.mxu0 0.0
    %9155 = vmatprep.subr.mxu0 0.0
    %9156 = vmatpush1.msra.mxu0 0.0
    %9157 = vmatprep.subr.mxu0 0.0
    %9158 = vmatpush1.msra.mxu0 0.0
    %9159 = vmatprep.subr.mxu0 0.0
    %9160 = vmatpush1.msra.mxu0 0.0
    %9161 = vmatprep.subr.mxu0 0.0
    %9162 = vmatpush1.msra.mxu0 0.0
    %9163 = vmatprep.subr.mxu0 0.0
    %9164 = vmatpush1.msra.mxu0 0.0
    %9165 = vmatprep.subr.mxu0 0.0
    %9166 = vmatpush1.msra.mxu0 0.0
    %9167 = vmatprep.subr.mxu0 0.0
    %9168 = vmatpush1.msra.mxu0 0.0
    %9169 = vmatprep.subr.mxu0 0.0
    %9170 = vmatpush1.msra.mxu0 0.0
    %9171 = vmatprep.subr.mxu0 0.0
    %9172 = vmatpush1.msra.mxu0 %v416
    %9173 = vmatprep.subr.mxu0 0.0
    %9174 = vmatpush1.msra.mxu0 %v415
    %9175 = vmatprep.subr.mxu0 0.0
    %9176 = vmatpush1.msra.mxu0 %v414
    %9177 = vmatprep.subr.mxu0 0.0
    %9178 = vmatpush1.msra.mxu0 %v413
    %9179 = vmatprep.subr.mxu0 0.0
    %9180 = vmatpush1.msra.mxu0 %v412
    %9181 = vmatprep.subr.mxu0 0.0
    %9182 = vmatpush1.msra.mxu0 %v411
    %9183 = vmatprep.subr.mxu0 0.0
    %9184 = vmatpush2.msra.mxu0 0.0
    %9185 = vmatprep.subr.mxu0 0.0
    %9186 = vmatpush2.msra.mxu0 0.0
    %9187 = vmatprep.subr.mxu0 0.0
    %9188 = vmatpush2.msra.mxu0 0.0
    %9189 = vmatprep.subr.mxu0 0.0
    %9190 = vmatpush2.msra.mxu0 0.0
    %9191 = vmatprep.subr.mxu0 0.0
    %9192 = vmatpush2.msra.mxu0 0.0
    %9193 = vmatprep.subr.mxu0 0.0
    %9194 = vmatpush2.msra.mxu0 0.0
    %9195 = vmatprep.subr.mxu0 0.0
    %9196 = vmatpush2.msra.mxu0 0.0
    %9197 = vmatprep.subr.mxu0 0.0
    %9198 = vmatpush2.msra.mxu0 0.0
    %9199 = vmatprep.subr.mxu0 0.0
    %9200 = vmatpush2.msra.mxu0 0.0
    %9201 = vmatprep.subr.mxu0 0.0
    %9202 = vmatpush2.msra.mxu0 0.0
    %9203 = vmatprep.subr.mxu0 0.0
    %9204 = vmatpush2.msra.mxu0 0.0
    %9205 = vmatprep.subr.mxu0 0.0
    %9206 = vmatpush2.msra.mxu0 0.0
    %9207 = vmatprep.subr.mxu0 0.0
    %9208 = vmatpush2.msra.mxu0 0.0
    %9209 = vmatprep.subr.mxu0 0.0
    %9210 = vmatpush2.msra.mxu0 0.0
    %9211 = vmatprep.subr.mxu0 0.0
    %9212 = vmatpush2.msra.mxu0 0.0
    %9213 = vmatprep.subr.mxu0 0.0
    %9214 = vmatpush2.msra.mxu0 0.0
    %9215 = vmatprep.mubr.f32.mxu0 0.0
    %9216 = vmatmul.mubr.f32.gmra.mxu0 %v9143
    %v9217 = vpop.f32.mrf.mxu0
    %v9218 = vadd.f32 %v9132, %v9217
    %v9219 = vpop.f32.mrf.mxu0
    %9220 = vmatprep.mubr.f32.mxu0 0.0
    %9221 = vmatmul.mubr.f32.gmra.mxu0 %v9145
    %v9222 = vpop.f32.mrf.mxu0
    %v9223 = vadd.f32 %v9132, %v9222
    %v9224 = vpop.f32.mrf.mxu0
    %9225 = vmatprep.mubr.f32.mxu0 0.0
    %9226 = vmatmul.mubr.f32.gmra.mxu0 %v9147
    %v9227 = vpop.f32.mrf.mxu0
    %v9228 = vadd.f32 %v9132, %v9227
    %v9229 = vpop.f32.mrf.mxu0
    %9230 = vmatprep.mubr.f32.mxu0 0.0
    %9231 = vmatmul.mubr.f32.gmra.mxu0 %v9149
    %v9232 = vpop.f32.mrf.mxu0
    %v9233 = vadd.f32 %v9132, %v9232
    %v9234 = vpop.f32.mrf.mxu0
    %9235 = vdwg.mxu0
    %v9237 = vlaneseq
    %v9238 = vshrl.u32 %v9237, 7
    %v9239 = vsub.s32 0, %v9238
    %v9240 = vrot.slane %v422, %v9239
    %v9243 = vsel %vm571, %v8678, 0
    %v9246 = vsel %vm571, %v8754, 0
    %v9249 = vsel %vm571, %v8830, 0
    %v9252 = vsel %vm571, %v8906, 0
    %9254 = vmatprep.subr.mxu0 0.0
    %9255 = vmatpush1.msra.mxu0 0.0
    %9256 = vmatprep.subr.mxu0 0.0
    %9257 = vmatpush1.msra.mxu0 0.0
    %9258 = vmatprep.subr.mxu0 0.0
    %9259 = vmatpush1.msra.mxu0 0.0
    %9260 = vmatprep.subr.mxu0 0.0
    %9261 = vmatpush1.msra.mxu0 0.0
    %9262 = vmatprep.subr.mxu0 0.0
    %9263 = vmatpush1.msra.mxu0 0.0
    %9264 = vmatprep.subr.mxu0 0.0
    %9265 = vmatpush1.msra.mxu0 0.0
    %9266 = vmatprep.subr.mxu0 0.0
    %9267 = vmatpush1.msra.mxu0 0.0
    %9268 = vmatprep.subr.mxu0 0.0
    %9269 = vmatpush1.msra.mxu0 0.0
    %9270 = vmatprep.subr.mxu0 0.0
    %9271 = vmatpush1.msra.mxu0 0.0
    %9272 = vmatprep.subr.mxu0 0.0
    %9273 = vmatpush1.msra.mxu0 0.0
    %9274 = vmatprep.subr.mxu0 0.0
    %9275 = vmatpush1.msra.mxu0 0.0
    %9276 = vmatprep.subr.mxu0 0.0
    %9277 = vmatpush1.msra.mxu0 0.0
    %9278 = vmatprep.subr.mxu0 0.0
    %9279 = vmatpush1.msra.mxu0 %v421
    %9280 = vmatprep.subr.mxu0 0.0
    %9281 = vmatpush1.msra.mxu0 %v420
    %9282 = vmatprep.subr.mxu0 0.0
    %9283 = vmatpush1.msra.mxu0 %v419
    %9284 = vmatprep.subr.mxu0 0.0
    %9285 = vmatpush1.msra.mxu0 %v418
    %9286 = vmatprep.subr.mxu0 0.0
    %9287 = vmatpush2.msra.mxu0 0.0
    %9288 = vmatprep.subr.mxu0 0.0
    %9289 = vmatpush2.msra.mxu0 0.0
    %9290 = vmatprep.subr.mxu0 0.0
    %9291 = vmatpush2.msra.mxu0 0.0
    %9292 = vmatprep.subr.mxu0 0.0
    %9293 = vmatpush2.msra.mxu0 0.0
    %9294 = vmatprep.subr.mxu0 0.0
    %9295 = vmatpush2.msra.mxu0 0.0
    %9296 = vmatprep.subr.mxu0 0.0
    %9297 = vmatpush2.msra.mxu0 0.0
    %9298 = vmatprep.subr.mxu0 0.0
    %9299 = vmatpush2.msra.mxu0 0.0
    %9300 = vmatprep.subr.mxu0 0.0
    %9301 = vmatpush2.msra.mxu0 0.0
    %9302 = vmatprep.subr.mxu0 0.0
    %9303 = vmatpush2.msra.mxu0 0.0
    %9304 = vmatprep.subr.mxu0 0.0
    %9305 = vmatpush2.msra.mxu0 0.0
    %9306 = vmatprep.subr.mxu0 0.0
    %9307 = vmatpush2.msra.mxu0 0.0
    %9308 = vmatprep.subr.mxu0 0.0
    %9309 = vmatpush2.msra.mxu0 0.0
    %9310 = vmatprep.subr.mxu0 0.0
    %9311 = vmatpush2.msra.mxu0 0.0
    %9312 = vmatprep.subr.mxu0 0.0
    %9313 = vmatpush2.msra.mxu0 0.0
    %9314 = vmatprep.subr.mxu0 0.0
    %9315 = vmatpush2.msra.mxu0 0.0
    %9316 = vmatprep.subr.mxu0 0.0
    %9317 = vmatpush2.msra.mxu0 0.0
    %9318 = vmatprep.mubr.f32.mxu0 0.0
    %9319 = vmatmul.mubr.f32.gmra.mxu0 %v9243
    %v9320 = vpop.f32.mrf.mxu0
    %v9321 = vadd.f32 %v9240, %v9320
    %v9322 = vpop.f32.mrf.mxu0
    %9323 = vmatprep.mubr.f32.mxu0 0.0
    %9324 = vmatmul.mubr.f32.gmra.mxu0 %v9246
    %v9325 = vpop.f32.mrf.mxu0
    %v9326 = vadd.f32 %v9240, %v9325
    %v9327 = vpop.f32.mrf.mxu0
    %9328 = vmatprep.mubr.f32.mxu0 0.0
    %9329 = vmatmul.mubr.f32.gmra.mxu0 %v9249
    %v9330 = vpop.f32.mrf.mxu0
    %v9331 = vadd.f32 %v9240, %v9330
    %v9332 = vpop.f32.mrf.mxu0
    %9333 = vmatprep.mubr.f32.mxu0 0.0
    %9334 = vmatmul.mubr.f32.gmra.mxu0 %v9252
    %v9335 = vpop.f32.mrf.mxu0
    %v9336 = vadd.f32 %v9240, %v9335
    %v9337 = vpop.f32.mrf.mxu0
    %9338 = vdwg.mxu0
    %vm9339 = vcmp.ge.f32.partialorder %v9321, 0.0
    %vm9340 = vcmp.ge.f32.partialorder %v9326, 0.0
    %vm9341 = vcmp.ge.f32.partialorder %v9331, 0.0
    %vm9342 = vcmp.ge.f32.partialorder %v9336, 0.0
    %v9343 = vmul.f32 %v9321, 0.01
    %v9344 = vmul.f32 %v9326, 0.01
    %v9345 = vmul.f32 %v9331, 0.01
    %v9346 = vmul.f32 %v9336, 0.01
    %v9347 = vsel %vm9339, %v9321, %v9343
    %v9348 = vsel %vm9340, %v9326, %v9344
    %v9349 = vsel %vm9341, %v9331, %v9345
    %v9350 = vsel %vm9342, %v9336, %v9346
    %v9352 = vlaneseq
    %v9353 = vshrl.u32 %v9352, 7
    %v9354 = vsub.s32 0, %v9353
    %v9355 = vrot.slane %v431, %v9354
    %v9358 = vsel %vm9030, %v9347, 0
    %v9361 = vsel %vm9030, %v9348, 0
    %v9364 = vsel %vm9030, %v9349, 0
    %v9367 = vsel %vm9030, %v9350, 0
    %9369 = vmatprep.subr.mxu0 0.0
    %9370 = vmatpush1.msra.mxu0 0.0
    %9371 = vmatprep.subr.mxu0 0.0
    %9372 = vmatpush1.msra.mxu0 0.0
    %9373 = vmatprep.subr.mxu0 0.0
    %9374 = vmatpush1.msra.mxu0 0.0
    %9375 = vmatprep.subr.mxu0 0.0
    %9376 = vmatpush1.msra.mxu0 0.0
    %9377 = vmatprep.subr.mxu0 0.0
    %9378 = vmatpush1.msra.mxu0 0.0
    %9379 = vmatprep.subr.mxu0 0.0
    %9380 = vmatpush1.msra.mxu0 0.0
    %9381 = vmatprep.subr.mxu0 0.0
    %9382 = vmatpush1.msra.mxu0 0.0
    %9383 = vmatprep.subr.mxu0 0.0
    %9384 = vmatpush1.msra.mxu0 0.0
    %9385 = vmatprep.subr.mxu0 0.0
    %9386 = vmatpush1.msra.mxu0 %v430
    %9387 = vmatprep.subr.mxu0 0.0
    %9388 = vmatpush1.msra.mxu0 %v429
    %9389 = vmatprep.subr.mxu0 0.0
    %9390 = vmatpush1.msra.mxu0 %v428
    %9391 = vmatprep.subr.mxu0 0.0
    %9392 = vmatpush1.msra.mxu0 %v427
    %9393 = vmatprep.subr.mxu0 0.0
    %9394 = vmatpush1.msra.mxu0 %v426
    %9395 = vmatprep.subr.mxu0 0.0
    %9396 = vmatpush1.msra.mxu0 %v425
    %9397 = vmatprep.subr.mxu0 0.0
    %9398 = vmatpush1.msra.mxu0 %v424
    %9399 = vmatprep.subr.mxu0 0.0
    %9400 = vmatpush1.msra.mxu0 %v423
    %9401 = vmatprep.subr.mxu0 0.0
    %9402 = vmatpush2.msra.mxu0 0.0
    %9403 = vmatprep.subr.mxu0 0.0
    %9404 = vmatpush2.msra.mxu0 0.0
    %9405 = vmatprep.subr.mxu0 0.0
    %9406 = vmatpush2.msra.mxu0 0.0
    %9407 = vmatprep.subr.mxu0 0.0
    %9408 = vmatpush2.msra.mxu0 0.0
    %9409 = vmatprep.subr.mxu0 0.0
    %9410 = vmatpush2.msra.mxu0 0.0
    %9411 = vmatprep.subr.mxu0 0.0
    %9412 = vmatpush2.msra.mxu0 0.0
    %9413 = vmatprep.subr.mxu0 0.0
    %9414 = vmatpush2.msra.mxu0 0.0
    %9415 = vmatprep.subr.mxu0 0.0
    %9416 = vmatpush2.msra.mxu0 0.0
    %9417 = vmatprep.subr.mxu0 0.0
    %9418 = vmatpush2.msra.mxu0 0.0
    %9419 = vmatprep.subr.mxu0 0.0
    %9420 = vmatpush2.msra.mxu0 0.0
    %9421 = vmatprep.subr.mxu0 0.0
    %9422 = vmatpush2.msra.mxu0 0.0
    %9423 = vmatprep.subr.mxu0 0.0
    %9424 = vmatpush2.msra.mxu0 0.0
    %9425 = vmatprep.subr.mxu0 0.0
    %9426 = vmatpush2.msra.mxu0 0.0
    %9427 = vmatprep.subr.mxu0 0.0
    %9428 = vmatpush2.msra.mxu0 0.0
    %9429 = vmatprep.subr.mxu0 0.0
    %9430 = vmatpush2.msra.mxu0 0.0
    %9431 = vmatprep.subr.mxu0 0.0
    %9432 = vmatpush2.msra.mxu0 0.0
    %9433 = vmatprep.mubr.f32.mxu0 0.0
    %9434 = vmatmul.mubr.f32.gmra.mxu0 %v9358
    %v9435 = vpop.f32.mrf.mxu0
    %v9436 = vadd.f32 %v9355, %v9435
    %v9437 = vpop.f32.mrf.mxu0
    %9438 = vmatprep.mubr.f32.mxu0 0.0
    %9439 = vmatmul.mubr.f32.gmra.mxu0 %v9361
    %v9440 = vpop.f32.mrf.mxu0
    %v9441 = vadd.f32 %v9355, %v9440
    %v9442 = vpop.f32.mrf.mxu0
    %9443 = vmatprep.mubr.f32.mxu0 0.0
    %9444 = vmatmul.mubr.f32.gmra.mxu0 %v9364
    %v9445 = vpop.f32.mrf.mxu0
    %v9446 = vadd.f32 %v9355, %v9445
    %v9447 = vpop.f32.mrf.mxu0
    %9448 = vmatprep.mubr.f32.mxu0 0.0
    %9449 = vmatmul.mubr.f32.gmra.mxu0 %v9367
    %v9450 = vpop.f32.mrf.mxu0
    %v9451 = vadd.f32 %v9355, %v9450
    %v9452 = vpop.f32.mrf.mxu0
    %9453 = vdwg.mxu0
    %v9454 = vxor.u32 %v9218, 2147483648
    %v9455 = vxor.u32 %v9223, 2147483648
    %v9456 = vxor.u32 %v9228, 2147483648
    %v9457 = vxor.u32 %v9233, 2147483648
    %v9458 = vmul.f32 %v9454, 1.442695
    %v9459 = vpow.pop %v9458
    %v9460 = vmul.f32 %v9455, 1.442695
    %v9461 = vpow.pop %v9460
    %v9462 = vmul.f32 %v9456, 1.442695
    %v9463 = vpow.pop %v9462
    %v9464 = vmul.f32 %v9457, 1.442695
    %v9465 = vpow.pop %v9464
    %v9466 = vadd.f32 %v9459, 1.0
    %v9467 = vadd.f32 %v9461, 1.0
    %v9468 = vadd.f32 %v9463, 1.0
    %v9469 = vadd.f32 %v9465, 1.0
    %v9470 = vrcp.pop %v9466
    %v9471 = vmul.f32 1.0, %v9470
    %v9472 = vrcp.pop %v9467
    %v9473 = vmul.f32 1.0, %v9472
    %v9474 = vrcp.pop %v9468
    %v9475 = vmul.f32 1.0, %v9474
    %v9476 = vrcp.pop %v9469
    %v9477 = vmul.f32 1.0, %v9476
    %v9478 = vmul.f32 %v9471, %v9436
    %v9479 = vmul.f32 %v9473, %v9441
    %v9480 = vmul.f32 %v9475, %v9446
    %v9481 = vmul.f32 %v9477, %v9451
    %v9482 = vadd.f32 %v9478, %v9110
    %v9483 = vadd.f32 %v9479, %v9115
    %v9484 = vadd.f32 %v9480, %v9120
    %v9485 = vadd.f32 %v9481, %v9125
    %vm9486 = vcmask 48128
    %9487 = vst.msk [vmem:[%s63] sm:$0xff] %vm9486, %v9482
    %9488 = vst.msk [vmem:[%s63 + $0x8] sm:$0xff] %vm9486, %v9483
    %9489 = vst.msk [vmem:[%s63 + $0x10] sm:$0xff] %vm9486, %v9484
    %9490 = vst.msk [vmem:[%s63 + $0x18] sm:$0xff] %vm9486, %v9485
    // Predicated region
    $region198: #{tpu_custom_call.1} parent=1 // pred_check
      _
    $region199: #{tpu_custom_call.1} parent=1 // pred_check_branch
      %9492 = sbr.rel (0) target = $region201
    $region200: #{tpu_custom_call.1} parent=1 // pred_region
      _
    $region201: #{tpu_custom_call.1} parent=1 // pred_fallthru
      _
    // Predicated region
    $region202: #{tpu_custom_call.1} parent=1 // pred_check
      _
    $region203: #{tpu_custom_call.1} parent=1 // pred_check_branch
      %9494 = sbr.rel (0) target = $region205
    $region204: #{tpu_custom_call.1} parent=1 // pred_region
      _
    $region205: #{tpu_custom_call.1} parent=1 // pred_fallthru
      _
    %9495 = vsyncpa [#allocation3], 1
    %9496 = vsyncpa [#allocation5], 1
    %9497 = vsyncpa [#allocation8], 1
    %9498 = vsyncpa [#allocation11], 1
    %9499 = vsyncpa [#allocation14], 1
    %9500 = vsyncpa [#allocation17], 1
    %9501 = vsyncpa [#allocation20], 1
    %9502 = vsyncpa [#allocation23], 1
    %9503 = vsyncpa [#allocation26], 1
    %9504 = vsyncpa [#allocation29], 1

</llo_original>
